<compile_context>
chip_gen: v7x
topology: tpu7x:2x2x1
jax: 0.10.0
libtpu: 0.0.40
codegen_flags: <defaults>
</compile_context>

<pallas_src>
import jax
import jax.numpy as jnp
import numpy as np
from jax.experimental import pallas as pl
from jax.experimental.pallas import tpu as pltpu

EPS = 1e-5


# --------------------------------------------------------------------------
# VMEM budgeting (per generation)
# --------------------------------------------------------------------------
def _vmem_limit_bytes():
    """~3/4 of physical VMEM, capped at 100 MiB (v5e/v6e: 96 MiB, v7x: 48 MiB).

    Returns None (keep compiler default) if the hardware query is unavailable.
    """
    try:
        cap = int(pltpu.get_tpu_info().vmem_capacity_bytes)
    except Exception:
        return None
    return min((cap * 3) // 4, 100 * 1024 * 1024)


def _compiler_params(semantics):
    kw = dict(dimension_semantics=semantics)
    vlim = _vmem_limit_bytes()
    if vlim is not None:
        kw["vmem_limit_bytes"] = vlim
    return pltpu.CompilerParams(**kw)


# --------------------------------------------------------------------------
# In-kernel helpers
# --------------------------------------------------------------------------
def _conv3x3_acc(get_rows, w_ref, acc_ref, H, W, Cp):
    """Accumulate a 3x3 SAME conv into acc_ref ((H*W, Cp), f32).

    get_rows(kh) -> (H, W, Cp) slab whose row h equals input row h + kh - 1
    (zero outside the image, provided by the H-only padding of the caller).
    w_ref: (3, 3*Cp, Cp) weights with the three kw taps stacked along K.
    The +/-1 W shifts use pltpu.roll on the flattened (H*W) sublane axis plus
    a one-column mask; the wrapped rows are exactly the masked positions.
    """
    HW = H * W
    # W-index of every output row, broadcast over lanes (no relayout: W % 8 == 0).
    wcol = jax.lax.broadcasted_iota(jnp.int32, (H, W, Cp), 1).reshape(HW, Cp)
    not_first = wcol > 0        # valid positions for the kw=0 tap (shift +1)
    not_last = wcol < W - 1     # valid positions for the kw=2 tap (shift -1)

    acc_ref[...] = jnp.zeros(acc_ref.shape, acc_ref.dtype)
    for kh in range(3):
        rows = get_rows(kh).reshape(HW, Cp)
        left = jnp.where(not_first, pltpu.roll(rows, 1, 0), 0.0)
        right = jnp.where(not_last, pltpu.roll(rows, HW - 1, 0), 0.0)
        lhs = jnp.concatenate([left, rows, right], axis=1)      # (HW, 3*Cp)
        acc_ref[...] += jnp.dot(lhs, w_ref[kh],
                                preferred_element_type=jnp.float32)


def _partial_stats(acc):
    """Per-image (sum, sum_sq) over rows of a (HW, Cp) tile -> (1, 2, Cp)."""
    s = jnp.sum(acc, axis=0, keepdims=True)
    q = jnp.sum(acc * acc, axis=0, keepdims=True)
    return jnp.concatenate([s, q], axis=0)[None]


# --------------------------------------------------------------------------
# Kernels
# --------------------------------------------------------------------------
def conv_stats_kernel(x_ref, w_ref, y_ref, stats_ref, acc_ref):
    """conv1 on one image (input already H-padded in HBM) + BN partial stats."""
    _, H, W, Cp = y_ref.shape
    _conv3x3_acc(lambda kh: x_ref[0, kh:kh + H], w_ref, acc_ref, H, W, Cp)
    acc = acc_ref[...]
    y_ref[...] = acc.reshape(1, H, W, Cp)
    stats_ref[...] = _partial_stats(acc)


def bn_relu_conv_stats_kernel(y1_ref, scale_ref, shift_ref, w_ref,
                              y2_ref, stats_ref, pad_ref, acc_ref):
    """bn1 (pre-folded scale/shift) + relu + conv2 + BN partial stats."""
    _, H, W, Cp = y1_ref.shape
    scale = scale_ref[...].reshape(1, 1, Cp)
    shift = shift_ref[...].reshape(1, 1, Cp)
    act = jnp.maximum(y1_ref[0] * scale + shift, 0.0)           # (H, W, Cp)
    # Only the two halo rows are (re)zeroed -- not the whole scratch.
    pad_ref[0, :, :] = jnp.zeros((W, Cp), jnp.float32)
    pad_ref[H + 1, :, :] = jnp.zeros((W, Cp), jnp.float32)
    pad_ref[1:H + 1, :, :] = act
    _conv3x3_acc(lambda kh: pad_ref[kh:kh + H], w_ref, acc_ref, H, W, Cp)
    acc = acc_ref[...]
    y2_ref[...] = acc.reshape(1, H, W, Cp)
    stats_ref[...] = _partial_stats(acc)


def bn_add_relu_kernel(y2_ref, scale_ref, shift_ref, x_ref, o_ref):
    """bn2 (pre-folded) + residual add + relu, whole batch block per step."""
    _, H, _, Cp = y2_ref.shape
    scale = scale_ref[...].reshape(1, 1, 1, Cp)
    shift = shift_ref[...].reshape(1, 1, 1, Cp)
    y = y2_ref[...] * scale + shift
    o_ref[...] = jnp.maximum(y + x_ref[:, 1:H + 1, :, :], 0.0)


# --------------------------------------------------------------------------
# Wrapper-side BN fold
# --------------------------------------------------------------------------
def _fold_bn(stats, gamma, beta, count):
    """(N, 2, Cp) per-image partial sums -> per-channel (1,Cp) scale & shift."""
    ssum = jnp.sum(stats[:, 0, :], axis=0, keepdims=True)       # (1, Cp)
    ssq = jnp.sum(stats[:, 1, :], axis=0, keepdims=True)        # (1, Cp)
    mean = ssum / count
    # TODO(synk): one-pass E[x^2]-E[x]^2 can cancel for activations with
    #             |mean| >> std; switch to a centered/Welford merge if needed.
    var = jnp.maximum(ssq / count - mean * mean, 0.0)            # biased variance
    scale = gamma * jax.lax.rsqrt(var + EPS)
    shift = beta - mean * scale
    return scale, shift


# --------------------------------------------------------------------------
# Forward
# --------------------------------------------------------------------------
def residual_block_forward(x_nchw, params):
    """x_nchw: (N, C, H, W) float32.  Returns (N, C, H, W) float32."""
    w1, b1, g1, be1, w2, b2, g2, be2 = params
    del b1, b2  # additive conv bias is exactly cancelled by training-mode BN

    x_nhwc = jnp.transpose(x_nchw, (0, 2, 3, 1)).astype(jnp.float32)
    N, H, W, C = x_nhwc.shape
    assert w1.shape[-1] == C and w2.shape[-1] == C, "residual needs Cin==Cout"
    assert W % 8 == 0, "W must be sublane-aligned for the layout-free reshapes"

    # Lane-dense channel dim; padded channels stay exactly zero end-to-end
    # (weights / gamma / beta padded with 0).
    Cp = ((C + 127) // 128) * 128
    cpad = Cp - C
    # Single pad op: zero halo rows along H + lane padding of channels.
    xpad = jnp.pad(x_nhwc, ((0, 0), (1, 1), (0, 0), (0, cpad)))

    def prep_w(w):  # HWIO -> (3, 3*Cp, Cp), kw-major K for the merged-tap matmul
        wp = jnp.pad(w.astype(jnp.float32),
                     ((0, 0), (0, 0), (0, cpad), (0, cpad)))
        return wp.reshape(3, 3 * Cp, Cp)

    w1m, w2m = prep_w(w1), prep_w(w2)
    vec = lambda v: jnp.pad(v.astype(jnp.float32).reshape(1, -1),
                            ((0, 0), (0, cpad)))
    g1p, be1p, g2p, be2p = vec(g1), vec(be1), vec(g2), vec(be2)

    count = float(N * H * W)

    img_pad = pl.BlockSpec((1, H + 2, W, Cp), lambda i: (i, 0, 0, 0))
    img = pl.BlockSpec((1, H, W, Cp), lambda i: (i, 0, 0, 0))
    stats_spec = pl.BlockSpec((1, 2, Cp), lambda i: (i, 0, 0))
    full = lambda shape: pl.BlockSpec(shape, lambda i, n=len(shape): (0,) * n)

    acc_scratch = pltpu.VMEM((H * W, Cp), jnp.float32)
    pad_scratch = pltpu.VMEM((H + 2, W, Cp), jnp.float32)
    cparams = _compiler_params(("parallel",))

    # Pass 1: conv1 + per-image statistics.
    y1_raw, stats1 = pl.pallas_call(
        conv_stats_kernel,
        out_shape=(jax.ShapeDtypeStruct((N, H, W, Cp), jnp.float32),
                   jax.ShapeDtypeStruct((N, 2, Cp), jnp.float32)),
        grid=(N,),
        in_specs=[img_pad, full(w1m.shape)],
        out_specs=(img, stats_spec),
        scratch_shapes=[acc_scratch],
        compiler_params=cparams,
    )(xpad, w1m)

    scale1, shift1 = _fold_bn(stats1, g1p, be1p, count)

    # Pass 2 (fused): bn1 + relu + conv2 + per-image statistics.
    y2_raw, stats2 = pl.pallas_call(
        bn_relu_conv_stats_kernel,
        out_shape=(jax.ShapeDtypeStruct((N, H, W, Cp), jnp.float32),
                   jax.ShapeDtypeStruct((N, 2, Cp), jnp.float32)),
        grid=(N,),
        in_specs=[img, full((1, Cp)), full((1, Cp)), full(w2m.shape)],
        out_specs=(img, stats_spec),
        scratch_shapes=[pad_scratch, acc_scratch],
        compiler_params=cparams,
    )(y1_raw, scale1, shift1, w2m)

    scale2, shift2 = _fold_bn(stats2, g2p, be2p, count)

    # Pass 3: bn2 + residual + relu.  Whole batch per grid step; output aliased
    # onto the conv2 intermediate to avoid a third N*H*W*Cp HBM allocation.
    nb = N  # TODO(synk): tile nb (and H) for large batches / v7x VMEM budgets.
    img_nb = pl.BlockSpec((nb, H, W, Cp), lambda i: (i, 0, 0, 0))
    img_pad_nb = pl.BlockSpec((nb, H + 2, W, Cp), lambda i: (i, 0, 0, 0))
    out = pl.pallas_call(
        bn_add_relu_kernel,
        out_shape=jax.ShapeDtypeStruct((N, H, W, Cp), jnp.float32),
        grid=(pl.cdiv(N, nb),),
        in_specs=[img_nb, full((1, Cp)), full((1, Cp)), img_pad_nb],
        out_specs=img_nb,
        input_output_aliases={0: 0},
        compiler_params=_compiler_params(("arbitrary",)),
    )(y2_raw, scale2, shift2, xpad)

    out = out[..., :C]                        # drop lane-padding channels
    return jnp.transpose(out, (0, 3, 1, 2))   # -> NCHW


# --------------------------------------------------------------------------
# Pure-JAX reference (XLA conv, with conv biases) for correctness checking.
# --------------------------------------------------------------------------
def _reference_forward(x_nchw, params):
    w1, b1, g1, be1, w2, b2, g2, be2 = params
    x = jnp.transpose(x_nchw, (0, 2, 3, 1))

    def conv(a, w, b):
        y = jax.lax.conv_general_dilated(
            a, w, (1, 1), "SAME", dimension_numbers=("NHWC", "HWIO", "NHWC"))
        return y + b

    def bn(y, g, be):
        m = jnp.mean(y, axis=(0, 1, 2), keepdims=True)
        v = jnp.mean((y - m) ** 2, axis=(0, 1, 2), keepdims=True)
        return (y - m) * jax.lax.rsqrt(v + EPS) * g + be

    y = jax.nn.relu(bn(conv(x, w1, b1), g1, be1))
    y = bn(conv(y, w2, b2), g2, be2)
    return jnp.transpose(jax.nn.relu(y + x), (0, 3, 1, 2))


if __name__ == "__main__":
    # Small shapes: batch=2, channels=4 (in == out so the residual is valid),
    # spatial 16x16.  Deterministic synthetic parameters.
    N, C, H, W = 2, 4, 16, 16
    key = jax.random.PRNGKey(0)
    k_x, k_w1, k_b1, k_w2, k_b2 = jax.random.split(key, 5)

    x = jax.random.normal(k_x, (N, C, H, W), jnp.float32)

    # Conv weights in HWIO layout (3, 3, Cin, Cout); BN gamma=1, beta=0.
    w1 = jax.random.normal(k_w1, (3, 3, C, C), jnp.float32) * 0.1
    b1 = jax.random.normal(k_b1, (C,), jnp.float32) * 0.1
    w2 = jax.random.normal(k_w2, (3, 3, C, C), jnp.float32) * 0.1
    b2 = jax.random.normal(k_b2, (C,), jnp.float32) * 0.1
    g1 = jnp.ones((C,), jnp.float32)
    be1 = jnp.zeros((C,), jnp.float32)
    g2 = jnp.ones((C,), jnp.float32)
    be2 = jnp.zeros((C,), jnp.float32)
    params = (w1, b1, g1, be1, w2, b2, g2, be2)

    fwd = jax.jit(residual_block_forward)
    out = jax.block_until_ready(fwd(x, params))
    ref = jax.block_until_ready(_reference_forward(x, params))
    np.testing.assert_allclose(np.asarray(out), np.asarray(ref),
                               rtol=1e-4, atol=1e-4)

    assert out.shape == (N, C, H, W)
    print("KERNEL_OK")
</pallas_src>

<mosaic_0001>
module attributes {stable_mosaic.version = 11 : i64} {
  func.func @conv_stats_kernel(%arg0: i32, %arg1: memref<1x18x16x128xf32, #tpu.memory_space<vmem>>, %arg2: memref<3x384x128xf32, #tpu.memory_space<vmem>>, %arg3: memref<1x16x16x128xf32, #tpu.memory_space<vmem>>, %arg4: memref<1x2x128xf32, #tpu.memory_space<vmem>>, %arg5: memref<256x128xf32, #tpu.memory_space<vmem>>) attributes {dimension_semantics = [#tpu.dimension_semantics<parallel>], iteration_bounds = array<i64: 2>, scalar_prefetch = 0 : i64, scratch_operands = 1 : i64, tpu.core_type = #tpu.core_type<tc>, window_params = [{transform_indices = @transform_0, window_bounds = array<i64: 1, 18, 16, 128>}, {pipeline_mode = #tpu.pipeline_mode<synchronous>, transform_indices = @transform_1, window_bounds = array<i64: 3, 384, 128>}, {transform_indices = @transform_2, window_bounds = array<i64: 1, 16, 16, 128>}, {transform_indices = @transform_3, window_bounds = array<i64: 1, 2, 128>}]} {
    %0 = tpu.iota {dimensions = array<i32: 1>} : vector<16x16x128xi32>
    %1 = vector.shape_cast %0 : vector<16x16x128xi32> to vector<256x128xi32>
    %c0_i32 = arith.constant 0 : i32
    %2 = vector.broadcast %c0_i32 : i32 to vector<256x128xi32>
    %3 = arith.cmpi sgt, %1, %2 : vector<256x128xi32>
    %c15_i32 = arith.constant 15 : i32
    %4 = vector.broadcast %c15_i32 : i32 to vector<256x128xi32>
    %5 = arith.cmpi slt, %1, %4 : vector<256x128xi32>
    %cst = arith.constant 0.000000e+00 : f32
    %6 = vector.broadcast %cst : f32 to vector<256x128xf32>
    %c0 = arith.constant 0 : index
    %c0_0 = arith.constant 0 : index
    %7 = vector.load %arg5[%c0, %c0_0] : memref<256x128xf32, #tpu.memory_space<vmem>>, vector<256x128xf32>
    tpu.vector_store %arg5[%c0, %c0_0], %6 {strides = array<i32>} : memref<256x128xf32, #tpu.memory_space<vmem>>, vector<256x128xf32>,
    %c0_1 = arith.constant 0 : index
    %c0_2 = arith.constant 0 : index
    %c0_3 = arith.constant 0 : index
    %c0_4 = arith.constant 0 : index
    %8 = vector.load %arg1[%c0_1, %c0_2, %c0_3, %c0_4] : memref<1x18x16x128xf32, #tpu.memory_space<vmem>>, vector<1x16x16x128xf32>
    %9 = vector.shape_cast %8 : vector<1x16x16x128xf32> to vector<16x16x128xf32>
    %10 = vector.shape_cast %9 : vector<16x16x128xf32> to vector<256x128xf32>
    %c1_i32 = arith.constant 1 : i32
    %11 = tpu.dynamic_rotate %10 by %c1_i32 dim 0 : vector<256x128xf32>, i32 -> vector<256x128xf32>
    %cst_5 = arith.constant 0.000000e+00 : f32
    %12 = vector.broadcast %cst_5 : f32 to vector<256x128xf32>
    %13 = arith.select %3, %11, %12 : vector<256x128xi1>, vector<256x128xf32>
    %c255_i32 = arith.constant 255 : i32
    %14 = tpu.dynamic_rotate %10 by %c255_i32 dim 0 : vector<256x128xf32>, i32 -> vector<256x128xf32>
    %cst_6 = arith.constant 0.000000e+00 : f32
    %15 = vector.broadcast %cst_6 : f32 to vector<256x128xf32>
    %16 = arith.select %5, %14, %15 : vector<256x128xi1>, vector<256x128xf32>
    %17 = tpu.concatenate %13, %10, %16 in 1 : vector<256x128xf32>, vector<256x128xf32>, vector<256x128xf32> -> vector<256x384xf32>
    %c0_7 = arith.constant 0 : index
    %c0_8 = arith.constant 0 : index
    %18 = vector.load %arg5[%c0_7, %c0_8] : memref<256x128xf32, #tpu.memory_space<vmem>>, vector<256x128xf32>
    %c0_9 = arith.constant 0 : index
    %c0_10 = arith.constant 0 : index
    %c0_11 = arith.constant 0 : index
    %19 = vector.load %arg2[%c0_9, %c0_10, %c0_11] : memref<3x384x128xf32, #tpu.memory_space<vmem>>, vector<1x384x128xf32>
    %20 = vector.shape_cast %19 : vector<1x384x128xf32> to vector<384x128xf32>
    %cst_12 = arith.constant dense<0.000000e+00> : vector<256x128xf32>
    %21 = tpu.matmul %17, %20, %cst_12 {dimension_numbers = #tpu.dot_dimension_numbers<[1], [0], [0], [1], [0, 0, 1, 1], [], []>} : vector<256x384xf32>, vector<384x128xf32>, vector<256x128xf32> -> vector<256x128xf32>
    %22 = arith.addf %18, %21 : vector<256x128xf32>
    %c0_13 = arith.constant 0 : index
    %c0_14 = arith.constant 0 : index
    %23 = vector.load %arg5[%c0_13, %c0_14] : memref<256x128xf32, #tpu.memory_space<vmem>>, vector<256x128xf32>
    tpu.vector_store %arg5[%c0_13, %c0_14], %22 {strides = array<i32>} : memref<256x128xf32, #tpu.memory_space<vmem>>, vector<256x128xf32>,
    %c0_15 = arith.constant 0 : index
    %c1 = arith.constant 1 : index
    %c0_16 = arith.constant 0 : index
    %c0_17 = arith.constant 0 : index
    %24 = vector.load %arg1[%c0_15, %c1, %c0_16, %c0_17] : memref<1x18x16x128xf32, #tpu.memory_space<vmem>>, vector<1x16x16x128xf32>
    %25 = vector.shape_cast %24 : vector<1x16x16x128xf32> to vector<16x16x128xf32>
    %26 = vector.shape_cast %25 : vector<16x16x128xf32> to vector<256x128xf32>
    %c1_i32_18 = arith.constant 1 : i32
    %27 = tpu.dynamic_rotate %26 by %c1_i32_18 dim 0 : vector<256x128xf32>, i32 -> vector<256x128xf32>
    %cst_19 = arith.constant 0.000000e+00 : f32
    %28 = vector.broadcast %cst_19 : f32 to vector<256x128xf32>
    %29 = arith.select %3, %27, %28 : vector<256x128xi1>, vector<256x128xf32>
    %c255_i32_20 = arith.constant 255 : i32
    %30 = tpu.dynamic_rotate %26 by %c255_i32_20 dim 0 : vector<256x128xf32>, i32 -> vector<256x128xf32>
    %cst_21 = arith.constant 0.000000e+00 : f32
    %31 = vector.broadcast %cst_21 : f32 to vector<256x128xf32>
    %32 = arith.select %5, %30, %31 : vector<256x128xi1>, vector<256x128xf32>
    %33 = tpu.concatenate %29, %26, %32 in 1 : vector<256x128xf32>, vector<256x128xf32>, vector<256x128xf32> -> vector<256x384xf32>
    %c0_22 = arith.constant 0 : index
    %c0_23 = arith.constant 0 : index
    %34 = vector.load %arg5[%c0_22, %c0_23] : memref<256x128xf32, #tpu.memory_space<vmem>>, vector<256x128xf32>
    %c1_24 = arith.constant 1 : index
    %c0_25 = arith.constant 0 : index
    %c0_26 = arith.constant 0 : index
    %35 = vector.load %arg2[%c1_24, %c0_25, %c0_26] : memref<3x384x128xf32, #tpu.memory_space<vmem>>, vector<1x384x128xf32>
    %36 = vector.shape_cast %35 : vector<1x384x128xf32> to vector<384x128xf32>
    %cst_27 = arith.constant dense<0.000000e+00> : vector<256x128xf32>
    %37 = tpu.matmul %33, %36, %cst_27 {dimension_numbers = #tpu.dot_dimension_numbers<[1], [0], [0], [1], [0, 0, 1, 1], [], []>} : vector<256x384xf32>, vector<384x128xf32>, vector<256x128xf32> -> vector<256x128xf32>
    %38 = arith.addf %34, %37 : vector<256x128xf32>
    %c0_28 = arith.constant 0 : index
    %c0_29 = arith.constant 0 : index
    %39 = vector.load %arg5[%c0_28, %c0_29] : memref<256x128xf32, #tpu.memory_space<vmem>>, vector<256x128xf32>
    tpu.vector_store %arg5[%c0_28, %c0_29], %38 {strides = array<i32>} : memref<256x128xf32, #tpu.memory_space<vmem>>, vector<256x128xf32>,
    %c0_30 = arith.constant 0 : index
    %c2 = arith.constant 2 : index
    %c0_31 = arith.constant 0 : index
    %c0_32 = arith.constant 0 : index
    %40 = vector.load %arg1[%c0_30, %c2, %c0_31, %c0_32] : memref<1x18x16x128xf32, #tpu.memory_space<vmem>>, vector<1x16x16x128xf32>
    %41 = vector.shape_cast %40 : vector<1x16x16x128xf32> to vector<16x16x128xf32>
    %42 = vector.shape_cast %41 : vector<16x16x128xf32> to vector<256x128xf32>
    %c1_i32_33 = arith.constant 1 : i32
    %43 = tpu.dynamic_rotate %42 by %c1_i32_33 dim 0 : vector<256x128xf32>, i32 -> vector<256x128xf32>
    %cst_34 = arith.constant 0.000000e+00 : f32
    %44 = vector.broadcast %cst_34 : f32 to vector<256x128xf32>
    %45 = arith.select %3, %43, %44 : vector<256x128xi1>, vector<256x128xf32>
    %c255_i32_35 = arith.constant 255 : i32
    %46 = tpu.dynamic_rotate %42 by %c255_i32_35 dim 0 : vector<256x128xf32>, i32 -> vector<256x128xf32>
    %cst_36 = arith.constant 0.000000e+00 : f32
    %47 = vector.broadcast %cst_36 : f32 to vector<256x128xf32>
    %48 = arith.select %5, %46, %47 : vector<256x128xi1>, vector<256x128xf32>
    %49 = tpu.concatenate %45, %42, %48 in 1 : vector<256x128xf32>, vector<256x128xf32>, vector<256x128xf32> -> vector<256x384xf32>
    %c0_37 = arith.constant 0 : index
    %c0_38 = arith.constant 0 : index
    %50 = vector.load %arg5[%c0_37, %c0_38] : memref<256x128xf32, #tpu.memory_space<vmem>>, vector<256x128xf32>
    %c2_39 = arith.constant 2 : index
    %c0_40 = arith.constant 0 : index
    %c0_41 = arith.constant 0 : index
    %51 = vector.load %arg2[%c2_39, %c0_40, %c0_41] : memref<3x384x128xf32, #tpu.memory_space<vmem>>, vector<1x384x128xf32>
    %52 = vector.shape_cast %51 : vector<1x384x128xf32> to vector<384x128xf32>
    %cst_42 = arith.constant dense<0.000000e+00> : vector<256x128xf32>
    %53 = tpu.matmul %49, %52, %cst_42 {dimension_numbers = #tpu.dot_dimension_numbers<[1], [0], [0], [1], [0, 0, 1, 1], [], []>} : vector<256x384xf32>, vector<384x128xf32>, vector<256x128xf32> -> vector<256x128xf32>
    %54 = arith.addf %50, %53 : vector<256x128xf32>
    %c0_43 = arith.constant 0 : index
    %c0_44 = arith.constant 0 : index
    %55 = vector.load %arg5[%c0_43, %c0_44] : memref<256x128xf32, #tpu.memory_space<vmem>>, vector<256x128xf32>
    tpu.vector_store %arg5[%c0_43, %c0_44], %54 {strides = array<i32>} : memref<256x128xf32, #tpu.memory_space<vmem>>, vector<256x128xf32>,
    %c0_45 = arith.constant 0 : index
    %c0_46 = arith.constant 0 : index
    %56 = vector.load %arg5[%c0_45, %c0_46] : memref<256x128xf32, #tpu.memory_space<vmem>>, vector<256x128xf32>
    %57 = vector.shape_cast %56 : vector<256x128xf32> to vector<1x16x16x128xf32>
    %c0_47 = arith.constant 0 : index
    %c0_48 = arith.constant 0 : index
    %c0_49 = arith.constant 0 : index
    %c0_50 = arith.constant 0 : index
    %58 = vector.load %arg3[%c0_47, %c0_48, %c0_49, %c0_50] : memref<1x16x16x128xf32, #tpu.memory_space<vmem>>, vector<1x16x16x128xf32>
    tpu.vector_store %arg3[%c0_47, %c0_48, %c0_49, %c0_50], %57 {strides = array<i32>} : memref<1x16x16x128xf32, #tpu.memory_space<vmem>>, vector<1x16x16x128xf32>,
    %cst_51 = arith.constant dense<0.000000e+00> : vector<128xf32>
    %59 = vector.multi_reduction <add>, %56, %cst_51 [0] : vector<256x128xf32> to vector<128xf32>
    %60 = vector.shape_cast %59 : vector<128xf32> to vector<1x128xf32>
    %61 = arith.mulf %56, %56 : vector<256x128xf32>
    %cst_52 = arith.constant dense<0.000000e+00> : vector<128xf32>
    %62 = vector.multi_reduction <add>, %61, %cst_52 [0] : vector<256x128xf32> to vector<128xf32>
    %63 = vector.shape_cast %62 : vector<128xf32> to vector<1x128xf32>
    %64 = tpu.concatenate %60, %63 in 0 : vector<1x128xf32>, vector<1x128xf32> -> vector<2x128xf32>
    %65 = vector.shape_cast %64 : vector<2x128xf32> to vector<1x2x128xf32>
    %c0_53 = arith.constant 0 : index
    %c0_54 = arith.constant 0 : index
    %c0_55 = arith.constant 0 : index
    %66 = vector.load %arg4[%c0_53, %c0_54, %c0_55] : memref<1x2x128xf32, #tpu.memory_space<vmem>>, vector<1x2x128xf32>
    tpu.vector_store %arg4[%c0_53, %c0_54, %c0_55], %65 {strides = array<i32>} : memref<1x2x128xf32, #tpu.memory_space<vmem>>, vector<1x2x128xf32>,
    return
  }
  func.func @transform_0(%arg0: i32) -> (i32, i32, i32, i32) {
    %c0_i32 = arith.constant 0 : i32
    %c0_i32_0 = arith.constant 0 : i32
    %c0_i32_1 = arith.constant 0 : i32
    %c0_i32_2 = arith.constant 0 : i32
    return %arg0, %c0_i32, %c0_i32_0, %c0_i32_1 : i32, i32, i32, i32
  }
  func.func @transform_1(%arg0: i32) -> (i32, i32, i32) {
    %c0_i32 = arith.constant 0 : i32
    %c0_i32_0 = arith.constant 0 : i32
    %c0_i32_1 = arith.constant 0 : i32
    %c0_i32_2 = arith.constant 0 : i32
    return %c0_i32, %c0_i32_0, %c0_i32_1 : i32, i32, i32
  }
  func.func @transform_2(%arg0: i32) -> (i32, i32, i32, i32) {
    %c0_i32 = arith.constant 0 : i32
    %c0_i32_0 = arith.constant 0 : i32
    %c0_i32_1 = arith.constant 0 : i32
    %c0_i32_2 = arith.constant 0 : i32
    return %arg0, %c0_i32, %c0_i32_0, %c0_i32_1 : i32, i32, i32, i32
  }
  func.func @transform_3(%arg0: i32) -> (i32, i32, i32) {
    %c0_i32 = arith.constant 0 : i32
    %c0_i32_0 = arith.constant 0 : i32
    %c0_i32_1 = arith.constant 0 : i32
    return %arg0, %c0_i32, %c0_i32_0 : i32, i32, i32
  }
}

module attributes {stable_mosaic.version = 11 : i64} {
  func.func @bn_relu_conv_stats_kernel(%arg0: i32, %arg1: memref<1x16x16x128xf32, #tpu.memory_space<vmem>>, %arg2: memref<1x128xf32, #tpu.memory_space<vmem>>, %arg3: memref<1x128xf32, #tpu.memory_space<vmem>>, %arg4: memref<3x384x128xf32, #tpu.memory_space<vmem>>, %arg5: memref<1x16x16x128xf32, #tpu.memory_space<vmem>>, %arg6: memref<1x2x128xf32, #tpu.memory_space<vmem>>, %arg7: memref<18x16x128xf32, #tpu.memory_space<vmem>>, %arg8: memref<256x128xf32, #tpu.memory_space<vmem>>) attributes {dimension_semantics = [#tpu.dimension_semantics<parallel>], iteration_bounds = array<i64: 2>, scalar_prefetch = 0 : i64, scratch_operands = 2 : i64, tpu.core_type = #tpu.core_type<tc>, window_params = [{transform_indices = @transform_0, window_bounds = array<i64: 1, 16, 16, 128>}, {pipeline_mode = #tpu.pipeline_mode<synchronous>, transform_indices = @transform_1, window_bounds = array<i64: 1, 128>}, {pipeline_mode = #tpu.pipeline_mode<synchronous>, transform_indices = @transform_2, window_bounds = array<i64: 1, 128>}, {pipeline_mode = #tpu.pipeline_mode<synchronous>, transform_indices = @transform_3, window_bounds = array<i64: 3, 384, 128>}, {transform_indices = @transform_4, window_bounds = array<i64: 1, 16, 16, 128>}, {transform_indices = @transform_5, window_bounds = array<i64: 1, 2, 128>}]} {
    %c0 = arith.constant 0 : index
    %c0_0 = arith.constant 0 : index
    %0 = vector.load %arg2[%c0, %c0_0] : memref<1x128xf32, #tpu.memory_space<vmem>>, vector<1x128xf32>
    %1 = vector.shape_cast %0 : vector<1x128xf32> to vector<1x1x128xf32>
    %c0_1 = arith.constant 0 : index
    %c0_2 = arith.constant 0 : index
    %2 = vector.load %arg3[%c0_1, %c0_2] : memref<1x128xf32, #tpu.memory_space<vmem>>, vector<1x128xf32>
    %3 = vector.shape_cast %2 : vector<1x128xf32> to vector<1x1x128xf32>
    %c0_3 = arith.constant 0 : index
    %c0_4 = arith.constant 0 : index
    %c0_5 = arith.constant 0 : index
    %c0_6 = arith.constant 0 : index
    %4 = vector.load %arg1[%c0_3, %c0_4, %c0_5, %c0_6] : memref<1x16x16x128xf32, #tpu.memory_space<vmem>>, vector<1x16x16x128xf32>
    %5 = vector.shape_cast %4 : vector<1x16x16x128xf32> to vector<16x16x128xf32>
    %6 = vector.broadcast %1 : vector<1x1x128xf32> to vector<16x16x128xf32>
    %7 = arith.mulf %5, %6 : vector<16x16x128xf32>
    %8 = vector.broadcast %3 : vector<1x1x128xf32> to vector<16x16x128xf32>
    %9 = arith.addf %7, %8 : vector<16x16x128xf32>
    %cst = arith.constant 0.000000e+00 : f32
    %10 = vector.broadcast %cst : f32 to vector<16x16x128xf32>
    %11 = arith.maximumf %9, %10 : vector<16x16x128xf32>
    %cst_7 = arith.constant 0.000000e+00 : f32
    %12 = vector.broadcast %cst_7 : f32 to vector<16x128xf32>
    %c0_8 = arith.constant 0 : index
    %c0_9 = arith.constant 0 : index
    %c0_10 = arith.constant 0 : index
    %13 = vector.load %arg7[%c0_8, %c0_9, %c0_10] : memref<18x16x128xf32, #tpu.memory_space<vmem>>, vector<1x16x128xf32>
    %14 = vector.shape_cast %13 : vector<1x16x128xf32> to vector<16x128xf32>
    %15 = vector.shape_cast %12 : vector<16x128xf32> to vector<1x16x128xf32>
    tpu.vector_store %arg7[%c0_8, %c0_9, %c0_10], %15 {strides = array<i32>} : memref<18x16x128xf32, #tpu.memory_space<vmem>>, vector<1x16x128xf32>,
    %cst_11 = arith.constant 0.000000e+00 : f32
    %16 = vector.broadcast %cst_11 : f32 to vector<16x128xf32>
    %c17 = arith.constant 17 : index
    %c0_12 = arith.constant 0 : index
    %c0_13 = arith.constant 0 : index
    %17 = vector.load %arg7[%c17, %c0_12, %c0_13] : memref<18x16x128xf32, #tpu.memory_space<vmem>>, vector<1x16x128xf32>
    %18 = vector.shape_cast %17 : vector<1x16x128xf32> to vector<16x128xf32>
    %19 = vector.shape_cast %16 : vector<16x128xf32> to vector<1x16x128xf32>
    tpu.vector_store %arg7[%c17, %c0_12, %c0_13], %19 {strides = array<i32>} : memref<18x16x128xf32, #tpu.memory_space<vmem>>, vector<1x16x128xf32>,
    %c1 = arith.constant 1 : index
    %c0_14 = arith.constant 0 : index
    %c0_15 = arith.constant 0 : index
    %20 = vector.load %arg7[%c1, %c0_14, %c0_15] : memref<18x16x128xf32, #tpu.memory_space<vmem>>, vector<16x16x128xf32>
    tpu.vector_store %arg7[%c1, %c0_14, %c0_15], %11 {strides = array<i32>} : memref<18x16x128xf32, #tpu.memory_space<vmem>>, vector<16x16x128xf32>,
    %21 = tpu.iota {dimensions = array<i32: 1>} : vector<16x16x128xi32>
    %22 = vector.shape_cast %21 : vector<16x16x128xi32> to vector<256x128xi32>
    %c0_i32 = arith.constant 0 : i32
    %23 = vector.broadcast %c0_i32 : i32 to vector<256x128xi32>
    %24 = arith.cmpi sgt, %22, %23 : vector<256x128xi32>
    %c15_i32 = arith.constant 15 : i32
    %25 = vector.broadcast %c15_i32 : i32 to vector<256x128xi32>
    %26 = arith.cmpi slt, %22, %25 : vector<256x128xi32>
    %cst_16 = arith.constant 0.000000e+00 : f32
    %27 = vector.broadcast %cst_16 : f32 to vector<256x128xf32>
    %c0_17 = arith.constant 0 : index
    %c0_18 = arith.constant 0 : index
    %28 = vector.load %arg8[%c0_17, %c0_18] : memref<256x128xf32, #tpu.memory_space<vmem>>, vector<256x128xf32>
    tpu.vector_store %arg8[%c0_17, %c0_18], %27 {strides = array<i32>} : memref<256x128xf32, #tpu.memory_space<vmem>>, vector<256x128xf32>,
    %c0_19 = arith.constant 0 : index
    %c0_20 = arith.constant 0 : index
    %c0_21 = arith.constant 0 : index
    %29 = vector.load %arg7[%c0_19, %c0_20, %c0_21] : memref<18x16x128xf32, #tpu.memory_space<vmem>>, vector<16x16x128xf32>
    %30 = vector.shape_cast %29 : vector<16x16x128xf32> to vector<256x128xf32>
    %c1_i32 = arith.constant 1 : i32
    %31 = tpu.dynamic_rotate %30 by %c1_i32 dim 0 : vector<256x128xf32>, i32 -> vector<256x128xf32>
    %cst_22 = arith.constant 0.000000e+00 : f32
    %32 = vector.broadcast %cst_22 : f32 to vector<256x128xf32>
    %33 = arith.select %24, %31, %32 : vector<256x128xi1>, vector<256x128xf32>
    %c255_i32 = arith.constant 255 : i32
    %34 = tpu.dynamic_rotate %30 by %c255_i32 dim 0 : vector<256x128xf32>, i32 -> vector<256x128xf32>
    %cst_23 = arith.constant 0.000000e+00 : f32
    %35 = vector.broadcast %cst_23 : f32 to vector<256x128xf32>
    %36 = arith.select %26, %34, %35 : vector<256x128xi1>, vector<256x128xf32>
    %37 = tpu.concatenate %33, %30, %36 in 1 : vector<256x128xf32>, vector<256x128xf32>, vector<256x128xf32> -> vector<256x384xf32>
    %c0_24 = arith.constant 0 : index
    %c0_25 = arith.constant 0 : index
    %38 = vector.load %arg8[%c0_24, %c0_25] : memref<256x128xf32, #tpu.memory_space<vmem>>, vector<256x128xf32>
    %c0_26 = arith.constant 0 : index
    %c0_27 = arith.constant 0 : index
    %c0_28 = arith.constant 0 : index
    %39 = vector.load %arg4[%c0_26, %c0_27, %c0_28] : memref<3x384x128xf32, #tpu.memory_space<vmem>>, vector<1x384x128xf32>
    %40 = vector.shape_cast %39 : vector<1x384x128xf32> to vector<384x128xf32>
    %cst_29 = arith.constant dense<0.000000e+00> : vector<256x128xf32>
    %41 = tpu.matmul %37, %40, %cst_29 {dimension_numbers = #tpu.dot_dimension_numbers<[1], [0], [0], [1], [0, 0, 1, 1], [], []>} : vector<256x384xf32>, vector<384x128xf32>, vector<256x128xf32> -> vector<256x128xf32>
    %42 = arith.addf %38, %41 : vector<256x128xf32>
    %c0_30 = arith.constant 0 : index
    %c0_31 = arith.constant 0 : index
    %43 = vector.load %arg8[%c0_30, %c0_31] : memref<256x128xf32, #tpu.memory_space<vmem>>, vector<256x128xf32>
    tpu.vector_store %arg8[%c0_30, %c0_31], %42 {strides = array<i32>} : memref<256x128xf32, #tpu.memory_space<vmem>>, vector<256x128xf32>,
    %c1_32 = arith.constant 1 : index
    %c0_33 = arith.constant 0 : index
    %c0_34 = arith.constant 0 : index
    %44 = vector.load %arg7[%c1_32, %c0_33, %c0_34] : memref<18x16x128xf32, #tpu.memory_space<vmem>>, vector<16x16x128xf32>
    %45 = vector.shape_cast %44 : vector<16x16x128xf32> to vector<256x128xf32>
    %c1_i32_35 = arith.constant 1 : i32
    %46 = tpu.dynamic_rotate %45 by %c1_i32_35 dim 0 : vector<256x128xf32>, i32 -> vector<256x128xf32>
    %cst_36 = arith.constant 0.000000e+00 : f32
    %47 = vector.broadcast %cst_36 : f32 to vector<256x128xf32>
    %48 = arith.select %24, %46, %47 : vector<256x128xi1>, vector<256x128xf32>
    %c255_i32_37 = arith.constant 255 : i32
    %49 = tpu.dynamic_rotate %45 by %c255_i32_37 dim 0 : vector<256x128xf32>, i32 -> vector<256x128xf32>
    %cst_38 = arith.constant 0.000000e+00 : f32
    %50 = vector.broadcast %cst_38 : f32 to vector<256x128xf32>
    %51 = arith.select %26, %49, %50 : vector<256x128xi1>, vector<256x128xf32>
    %52 = tpu.concatenate %48, %45, %51 in 1 : vector<256x128xf32>, vector<256x128xf32>, vector<256x128xf32> -> vector<256x384xf32>
    %c0_39 = arith.constant 0 : index
    %c0_40 = arith.constant 0 : index
    %53 = vector.load %arg8[%c0_39, %c0_40] : memref<256x128xf32, #tpu.memory_space<vmem>>, vector<256x128xf32>
    %c1_41 = arith.constant 1 : index
    %c0_42 = arith.constant 0 : index
    %c0_43 = arith.constant 0 : index
    %54 = vector.load %arg4[%c1_41, %c0_42, %c0_43] : memref<3x384x128xf32, #tpu.memory_space<vmem>>, vector<1x384x128xf32>
    %55 = vector.shape_cast %54 : vector<1x384x128xf32> to vector<384x128xf32>
    %cst_44 = arith.constant dense<0.000000e+00> : vector<256x128xf32>
    %56 = tpu.matmul %52, %55, %cst_44 {dimension_numbers = #tpu.dot_dimension_numbers<[1], [0], [0], [1], [0, 0, 1, 1], [], []>} : vector<256x384xf32>, vector<384x128xf32>, vector<256x128xf32> -> vector<256x128xf32>
    %57 = arith.addf %53, %56 : vector<256x128xf32>
    %c0_45 = arith.constant 0 : index
    %c0_46 = arith.constant 0 : index
    %58 = vector.load %arg8[%c0_45, %c0_46] : memref<256x128xf32, #tpu.memory_space<vmem>>, vector<256x128xf32>
    tpu.vector_store %arg8[%c0_45, %c0_46], %57 {strides = array<i32>} : memref<256x128xf32, #tpu.memory_space<vmem>>, vector<256x128xf32>,
    %c2 = arith.constant 2 : index
    %c0_47 = arith.constant 0 : index
    %c0_48 = arith.constant 0 : index
    %59 = vector.load %arg7[%c2, %c0_47, %c0_48] : memref<18x16x128xf32, #tpu.memory_space<vmem>>, vector<16x16x128xf32>
    %60 = vector.shape_cast %59 : vector<16x16x128xf32> to vector<256x128xf32>
    %c1_i32_49 = arith.constant 1 : i32
    %61 = tpu.dynamic_rotate %60 by %c1_i32_49 dim 0 : vector<256x128xf32>, i32 -> vector<256x128xf32>
    %cst_50 = arith.constant 0.000000e+00 : f32
    %62 = vector.broadcast %cst_50 : f32 to vector<256x128xf32>
    %63 = arith.select %24, %61, %62 : vector<256x128xi1>, vector<256x128xf32>
    %c255_i32_51 = arith.constant 255 : i32
    %64 = tpu.dynamic_rotate %60 by %c255_i32_51 dim 0 : vector<256x128xf32>, i32 -> vector<256x128xf32>
    %cst_52 = arith.constant 0.000000e+00 : f32
    %65 = vector.broadcast %cst_52 : f32 to vector<256x128xf32>
    %66 = arith.select %26, %64, %65 : vector<256x128xi1>, vector<256x128xf32>
    %67 = tpu.concatenate %63, %60, %66 in 1 : vector<256x128xf32>, vector<256x128xf32>, vector<256x128xf32> -> vector<256x384xf32>
    %c0_53 = arith.constant 0 : index
    %c0_54 = arith.constant 0 : index
    %68 = vector.load %arg8[%c0_53, %c0_54] : memref<256x128xf32, #tpu.memory_space<vmem>>, vector<256x128xf32>
    %c2_55 = arith.constant 2 : index
    %c0_56 = arith.constant 0 : index
    %c0_57 = arith.constant 0 : index
    %69 = vector.load %arg4[%c2_55, %c0_56, %c0_57] : memref<3x384x128xf32, #tpu.memory_space<vmem>>, vector<1x384x128xf32>
    %70 = vector.shape_cast %69 : vector<1x384x128xf32> to vector<384x128xf32>
    %cst_58 = arith.constant dense<0.000000e+00> : vector<256x128xf32>
    %71 = tpu.matmul %67, %70, %cst_58 {dimension_numbers = #tpu.dot_dimension_numbers<[1], [0], [0], [1], [0, 0, 1, 1], [], []>} : vector<256x384xf32>, vector<384x128xf32>, vector<256x128xf32> -> vector<256x128xf32>
    %72 = arith.addf %68, %71 : vector<256x128xf32>
    %c0_59 = arith.constant 0 : index
    %c0_60 = arith.constant 0 : index
    %73 = vector.load %arg8[%c0_59, %c0_60] : memref<256x128xf32, #tpu.memory_space<vmem>>, vector<256x128xf32>
    tpu.vector_store %arg8[%c0_59, %c0_60], %72 {strides = array<i32>} : memref<256x128xf32, #tpu.memory_space<vmem>>, vector<256x128xf32>,
    %c0_61 = arith.constant 0 : index
    %c0_62 = arith.constant 0 : index
    %74 = vector.load %arg8[%c0_61, %c0_62] : memref<256x128xf32, #tpu.memory_space<vmem>>, vector<256x128xf32>
    %75 = vector.shape_cast %74 : vector<256x128xf32> to vector<1x16x16x128xf32>
    %c0_63 = arith.constant 0 : index
    %c0_64 = arith.constant 0 : index
    %c0_65 = arith.constant 0 : index
    %c0_66 = arith.constant 0 : index
    %76 = vector.load %arg5[%c0_63, %c0_64, %c0_65, %c0_66] : memref<1x16x16x128xf32, #tpu.memory_space<vmem>>, vector<1x16x16x128xf32>
    tpu.vector_store %arg5[%c0_63, %c0_64, %c0_65, %c0_66], %75 {strides = array<i32>} : memref<1x16x16x128xf32, #tpu.memory_space<vmem>>, vector<1x16x16x128xf32>,
    %cst_67 = arith.constant dense<0.000000e+00> : vector<128xf32>
    %77 = vector.multi_reduction <add>, %74, %cst_67 [0] : vector<256x128xf32> to vector<128xf32>
    %78 = vector.shape_cast %77 : vector<128xf32> to vector<1x128xf32>
    %79 = arith.mulf %74, %74 : vector<256x128xf32>
    %cst_68 = arith.constant dense<0.000000e+00> : vector<128xf32>
    %80 = vector.multi_reduction <add>, %79, %cst_68 [0] : vector<256x128xf32> to vector<128xf32>
    %81 = vector.shape_cast %80 : vector<128xf32> to vector<1x128xf32>
    %82 = tpu.concatenate %78, %81 in 0 : vector<1x128xf32>, vector<1x128xf32> -> vector<2x128xf32>
    %83 = vector.shape_cast %82 : vector<2x128xf32> to vector<1x2x128xf32>
    %c0_69 = arith.constant 0 : index
    %c0_70 = arith.constant 0 : index
    %c0_71 = arith.constant 0 : index
    %84 = vector.load %arg6[%c0_69, %c0_70, %c0_71] : memref<1x2x128xf32, #tpu.memory_space<vmem>>, vector<1x2x128xf32>
    tpu.vector_store %arg6[%c0_69, %c0_70, %c0_71], %83 {strides = array<i32>} : memref<1x2x128xf32, #tpu.memory_space<vmem>>, vector<1x2x128xf32>,
    return
  }
  func.func @transform_0(%arg0: i32) -> (i32, i32, i32, i32) {
    %c0_i32 = arith.constant 0 : i32
    %c0_i32_0 = arith.constant 0 : i32
    %c0_i32_1 = arith.constant 0 : i32
    %c0_i32_2 = arith.constant 0 : i32
    return %arg0, %c0_i32, %c0_i32_0, %c0_i32_1 : i32, i32, i32, i32
  }
  func.func @transform_1(%arg0: i32) -> (i32, i32) {
    %c0_i32 = arith.constant 0 : i32
    %c0_i32_0 = arith.constant 0 : i32
    %c0_i32_1 = arith.constant 0 : i32
    return %c0_i32, %c0_i32_0 : i32, i32
  }
  func.func @transform_2(%arg0: i32) -> (i32, i32) {
    %c0_i32 = arith.constant 0 : i32
    %c0_i32_0 = arith.constant 0 : i32
    %c0_i32_1 = arith.constant 0 : i32
    return %c0_i32, %c0_i32_0 : i32, i32
  }
  func.func @transform_3(%arg0: i32) -> (i32, i32, i32) {
    %c0_i32 = arith.constant 0 : i32
    %c0_i32_0 = arith.constant 0 : i32
    %c0_i32_1 = arith.constant 0 : i32
    %c0_i32_2 = arith.constant 0 : i32
    return %c0_i32, %c0_i32_0, %c0_i32_1 : i32, i32, i32
  }
  func.func @transform_4(%arg0: i32) -> (i32, i32, i32, i32) {
    %c0_i32 = arith.constant 0 : i32
    %c0_i32_0 = arith.constant 0 : i32
    %c0_i32_1 = arith.constant 0 : i32
    %c0_i32_2 = arith.constant 0 : i32
    return %arg0, %c0_i32, %c0_i32_0, %c0_i32_1 : i32, i32, i32, i32
  }
  func.func @transform_5(%arg0: i32) -> (i32, i32, i32) {
    %c0_i32 = arith.constant 0 : i32
    %c0_i32_0 = arith.constant 0 : i32
    %c0_i32_1 = arith.constant 0 : i32
    return %arg0, %c0_i32, %c0_i32_0 : i32, i32, i32
  }
}

module attributes {stable_mosaic.version = 11 : i64} {
  func.func @bn_add_relu_kernel(%arg0: i32, %arg1: memref<2x16x16x128xf32, #tpu.memory_space<vmem>>, %arg2: memref<1x128xf32, #tpu.memory_space<vmem>>, %arg3: memref<1x128xf32, #tpu.memory_space<vmem>>, %arg4: memref<2x18x16x128xf32, #tpu.memory_space<vmem>>, %arg5: memref<2x16x16x128xf32, #tpu.memory_space<vmem>>) attributes {dimension_semantics = [#tpu.dimension_semantics<arbitrary>], iteration_bounds = array<i64: 1>, scalar_prefetch = 0 : i64, scratch_operands = 0 : i64, tpu.core_type = #tpu.core_type<tc>, window_params = [{transform_indices = @transform_0, window_bounds = array<i64: 2, 16, 16, 128>}, {pipeline_mode = #tpu.pipeline_mode<synchronous>, transform_indices = @transform_1, window_bounds = array<i64: 1, 128>}, {pipeline_mode = #tpu.pipeline_mode<synchronous>, transform_indices = @transform_2, window_bounds = array<i64: 1, 128>}, {transform_indices = @transform_3, window_bounds = array<i64: 2, 18, 16, 128>}, {transform_indices = @transform_4, window_bounds = array<i64: 2, 16, 16, 128>}]} {
    %c0 = arith.constant 0 : index
    %c0_0 = arith.constant 0 : index
    %0 = vector.load %arg2[%c0, %c0_0] : memref<1x128xf32, #tpu.memory_space<vmem>>, vector<1x128xf32>
    %1 = vector.shape_cast %0 : vector<1x128xf32> to vector<1x1x1x128xf32>
    %c0_1 = arith.constant 0 : index
    %c0_2 = arith.constant 0 : index
    %2 = vector.load %arg3[%c0_1, %c0_2] : memref<1x128xf32, #tpu.memory_space<vmem>>, vector<1x128xf32>
    %3 = vector.shape_cast %2 : vector<1x128xf32> to vector<1x1x1x128xf32>
    %c0_3 = arith.constant 0 : index
    %c0_4 = arith.constant 0 : index
    %c0_5 = arith.constant 0 : index
    %c0_6 = arith.constant 0 : index
    %4 = vector.load %arg1[%c0_3, %c0_4, %c0_5, %c0_6] : memref<2x16x16x128xf32, #tpu.memory_space<vmem>>, vector<2x16x16x128xf32>
    %5 = vector.broadcast %1 : vector<1x1x1x128xf32> to vector<2x16x16x128xf32>
    %6 = arith.mulf %4, %5 : vector<2x16x16x128xf32>
    %7 = vector.broadcast %3 : vector<1x1x1x128xf32> to vector<2x16x16x128xf32>
    %8 = arith.addf %6, %7 : vector<2x16x16x128xf32>
    %c0_7 = arith.constant 0 : index
    %c1 = arith.constant 1 : index
    %c0_8 = arith.constant 0 : index
    %c0_9 = arith.constant 0 : index
    %9 = vector.load %arg4[%c0_7, %c1, %c0_8, %c0_9] : memref<2x18x16x128xf32, #tpu.memory_space<vmem>>, vector<2x16x16x128xf32>
    %10 = arith.addf %8, %9 : vector<2x16x16x128xf32>
    %cst = arith.constant 0.000000e+00 : f32
    %11 = vector.broadcast %cst : f32 to vector<2x16x16x128xf32>
    %12 = arith.maximumf %10, %11 : vector<2x16x16x128xf32>
    %c0_10 = arith.constant 0 : index
    %c0_11 = arith.constant 0 : index
    %c0_12 = arith.constant 0 : index
    %c0_13 = arith.constant 0 : index
    %13 = vector.load %arg5[%c0_10, %c0_11, %c0_12, %c0_13] : memref<2x16x16x128xf32, #tpu.memory_space<vmem>>, vector<2x16x16x128xf32>
    tpu.vector_store %arg5[%c0_10, %c0_11, %c0_12, %c0_13], %12 {strides = array<i32>} : memref<2x16x16x128xf32, #tpu.memory_space<vmem>>, vector<2x16x16x128xf32>,
    return
  }
  func.func @transform_0(%arg0: i32) -> (i32, i32, i32, i32) {
    %c0_i32 = arith.constant 0 : i32
    %c0_i32_0 = arith.constant 0 : i32
    %c0_i32_1 = arith.constant 0 : i32
    %c0_i32_2 = arith.constant 0 : i32
    return %arg0, %c0_i32, %c0_i32_0, %c0_i32_1 : i32, i32, i32, i32
  }
  func.func @transform_1(%arg0: i32) -> (i32, i32) {
    %c0_i32 = arith.constant 0 : i32
    %c0_i32_0 = arith.constant 0 : i32
    %c0_i32_1 = arith.constant 0 : i32
    return %c0_i32, %c0_i32_0 : i32, i32
  }
  func.func @transform_2(%arg0: i32) -> (i32, i32) {
    %c0_i32 = arith.constant 0 : i32
    %c0_i32_0 = arith.constant 0 : i32
    %c0_i32_1 = arith.constant 0 : i32
    return %c0_i32, %c0_i32_0 : i32, i32
  }
  func.func @transform_3(%arg0: i32) -> (i32, i32, i32, i32) {
    %c0_i32 = arith.constant 0 : i32
    %c0_i32_0 = arith.constant 0 : i32
    %c0_i32_1 = arith.constant 0 : i32
    %c0_i32_2 = arith.constant 0 : i32
    return %arg0, %c0_i32, %c0_i32_0, %c0_i32_1 : i32, i32, i32, i32
  }
  func.func @transform_4(%arg0: i32) -> (i32, i32, i32, i32) {
    %c0_i32 = arith.constant 0 : i32
    %c0_i32_0 = arith.constant 0 : i32
    %c0_i32_1 = arith.constant 0 : i32
    %c0_i32_2 = arith.constant 0 : i32
    return %arg0, %c0_i32, %c0_i32_0, %c0_i32_1 : i32, i32, i32, i32
  }
}

</mosaic_0001>

<llo_original>
// kernel: residual_block_forward.5
$region0: #{residual_block_forward.5}
  #allocation0 [shape = 'u32[]', space=smem, size = 0x4, offset = 0x4, fixed_abs, tag = 'smem constant byte address 0x4 - core index']
  #allocation1 [shape = 'u32[144,128]{1,0:T(1,128)}', space=vmem, size = 0x12000, scoped, tag = 'internal scratch']
  %s0 = inlined_call_operand.vmem [shape: f32[2,16,16,128], index: 0, kind: input, shape index: {}, may-alias: {0,4}]
  %s1 = inlined_call_operand.vmem [shape: f32[1,128], index: 1, kind: input, shape index: {}]
  %s2 = inlined_call_operand.vmem [shape: f32[1,128], index: 2, kind: input, shape index: {}]
  %s3 = inlined_call_operand.vmem [shape: f32[2,18,16,128], index: 3, kind: input, shape index: {}]
  %s4 = inlined_call_operand.vmem [shape: f32[2,16,16,128], index: 4, kind: output, shape index: {}, may-alias: {0,4}]
  %s5 = sld [smem:[#allocation0]]
  $region26: #{residual_block_forward.5} parent=0
    _
  %s7 = ssub.s32 1, %s5
  %s8 = scalar_select 0, %s7, %s5
  // Predicated region
  $region2: #{residual_block_forward.5} parent=0 // pred_check
    _
  $region3: #{residual_block_forward.5} parent=0 // pred_check_branch
    %10 = sbr.rel (0) target = $region5
  $region4: #{residual_block_forward.5} parent=0 // pred_region
    _
  $region5: #{residual_block_forward.5} parent=0 // pred_fallthru
    _
  // Predicated region
  $region6: #{residual_block_forward.5} parent=0 // pred_check
    _
  $region7: #{residual_block_forward.5} parent=0 // pred_check_branch
    %12 = sbr.rel (0) target = $region9
  $region8: #{residual_block_forward.5} parent=0 // pred_region
    _
  $region9: #{residual_block_forward.5} parent=0 // pred_fallthru
    _
  // Predicated region
  $region10: #{residual_block_forward.5} parent=0 // pred_check
    _
  $region11: #{residual_block_forward.5} parent=0 // pred_check_branch
    %14 = sbr.rel (0) target = $region13
  $region12: #{residual_block_forward.5} parent=0 // pred_region
    _
  $region13: #{residual_block_forward.5} parent=0 // pred_fallthru
    _
  // Predicated region
  $region14: #{residual_block_forward.5} parent=0 // pred_check
    _
  $region15: #{residual_block_forward.5} parent=0 // pred_check_branch
    %16 = sbr.rel (0) target = $region17
  $region16: #{residual_block_forward.5} parent=0 // pred_region
    _
  $region17: #{residual_block_forward.5} parent=0 // pred_fallthru
    _
  %v17 = vld [vmem:[%s1] sm:$0x1]
  %v18 = vld [vmem:[%s2] sm:$0x1]
  %v19 = vld [vmem:[%s0] sm:$0xff]
  %v20 = vld [vmem:[%s0 + $0x8] sm:$0xff]
  %v21 = vld [vmem:[%s0 + $0x10] sm:$0xff]
  %v22 = vld [vmem:[%s0 + $0x18] sm:$0xff]
  %v23 = vld [vmem:[%s0 + $0x20] sm:$0xff]
  %v24 = vld [vmem:[%s0 + $0x28] sm:$0xff]
  %v25 = vld [vmem:[%s0 + $0x30] sm:$0xff]
  %v26 = vld [vmem:[%s0 + $0x38] sm:$0xff]
  %v27 = vld [vmem:[%s0 + $0x40] sm:$0xff]
  %v28 = vld [vmem:[%s0 + $0x48] sm:$0xff]
  %v29 = vld [vmem:[%s0 + $0x50] sm:$0xff]
  %v30 = vld [vmem:[%s0 + $0x58] sm:$0xff]
  %v31 = vld [vmem:[%s0 + $0x60] sm:$0xff]
  %v32 = vld [vmem:[%s0 + $0x68] sm:$0xff]
  %v33 = vld [vmem:[%s0 + $0x70] sm:$0xff]
  %v34 = vld [vmem:[%s0 + $0x78] sm:$0xff]
  %v35 = vld [vmem:[%s0 + $0x80] sm:$0xff]
  %v36 = vld [vmem:[%s0 + $0x88] sm:$0xff]
  %v37 = vld [vmem:[%s0 + $0x90] sm:$0xff]
  %v38 = vld [vmem:[%s0 + $0x98] sm:$0xff]
  %v39 = vld [vmem:[%s0 + $0xa0] sm:$0xff]
  %v40 = vld [vmem:[%s0 + $0xa8] sm:$0xff]
  %v41 = vld [vmem:[%s0 + $0xb0] sm:$0xff]
  %v42 = vld [vmem:[%s0 + $0xb8] sm:$0xff]
  %v43 = vld [vmem:[%s0 + $0xc0] sm:$0xff]
  %v44 = vld [vmem:[%s0 + $0xc8] sm:$0xff]
  %v45 = vld [vmem:[%s0 + $0xd0] sm:$0xff]
  %v46 = vld [vmem:[%s0 + $0xd8] sm:$0xff]
  %v47 = vld [vmem:[%s0 + $0xe0] sm:$0xff]
  %v48 = vld [vmem:[%s0 + $0xe8] sm:$0xff]
  %v49 = vld [vmem:[%s0 + $0xf0] sm:$0xff]
  %v50 = vld [vmem:[%s0 + $0xf8] sm:$0xff]
  %v51 = vld [vmem:[%s0 + $0x100] sm:$0xff]
  %v52 = vld [vmem:[%s0 + $0x108] sm:$0xff]
  %v53 = vld [vmem:[%s0 + $0x110] sm:$0xff]
  %v54 = vld [vmem:[%s0 + $0x118] sm:$0xff]
  %v55 = vld [vmem:[%s0 + $0x120] sm:$0xff]
  %v56 = vld [vmem:[%s0 + $0x128] sm:$0xff]
  %v57 = vld [vmem:[%s0 + $0x130] sm:$0xff]
  %v58 = vld [vmem:[%s0 + $0x138] sm:$0xff]
  %v59 = vld [vmem:[%s0 + $0x140] sm:$0xff]
  %v60 = vld [vmem:[%s0 + $0x148] sm:$0xff]
  %v61 = vld [vmem:[%s0 + $0x150] sm:$0xff]
  %v62 = vld [vmem:[%s0 + $0x158] sm:$0xff]
  %v63 = vld [vmem:[%s0 + $0x160] sm:$0xff]
  %v64 = vld [vmem:[%s0 + $0x168] sm:$0xff]
  %v65 = vld [vmem:[%s0 + $0x170] sm:$0xff]
  %v66 = vld [vmem:[%s0 + $0x178] sm:$0xff]
  %v67 = vld [vmem:[%s0 + $0x180] sm:$0xff]
  %v68 = vld [vmem:[%s0 + $0x188] sm:$0xff]
  %v69 = vld [vmem:[%s0 + $0x190] sm:$0xff]
  %v70 = vld [vmem:[%s0 + $0x198] sm:$0xff]
  %v71 = vld [vmem:[%s0 + $0x1a0] sm:$0xff]
  %v72 = vld [vmem:[%s0 + $0x1a8] sm:$0xff]
  %v73 = vld [vmem:[%s0 + $0x1b0] sm:$0xff]
  %v74 = vld [vmem:[%s0 + $0x1b8] sm:$0xff]
  %v75 = vld [vmem:[%s0 + $0x1c0] sm:$0xff]
  %v76 = vld [vmem:[%s0 + $0x1c8] sm:$0xff]
  %v77 = vld [vmem:[%s0 + $0x1d0] sm:$0xff]
  %v78 = vld [vmem:[%s0 + $0x1d8] sm:$0xff]
  %v79 = vld [vmem:[%s0 + $0x1e0] sm:$0xff]
  %v80 = vld [vmem:[%s0 + $0x1e8] sm:$0xff]
  %v81 = vld [vmem:[%s0 + $0x1f0] sm:$0xff]
  %v82 = vld [vmem:[%s0 + $0x1f8] sm:$0xff]
  %v84 = vlaneseq
  %v85 = vshrl.u32 %v84, 7
  %v86 = vsub.s32 0, %v85
  %v87 = vrot.slane %v17, %v86
  %v89 = vmul.f32 %v19, %v87
  %v90 = vmul.f32 %v20, %v87
  %v91 = vmul.f32 %v21, %v87
  %v92 = vmul.f32 %v22, %v87
  %v93 = vmul.f32 %v23, %v87
  %v94 = vmul.f32 %v24, %v87
  %v95 = vmul.f32 %v25, %v87
  %v96 = vmul.f32 %v26, %v87
  %v97 = vmul.f32 %v27, %v87
  %v98 = vmul.f32 %v28, %v87
  %v99 = vmul.f32 %v29, %v87
  %v100 = vmul.f32 %v30, %v87
  %v101 = vmul.f32 %v31, %v87
  %v102 = vmul.f32 %v32, %v87
  %v103 = vmul.f32 %v33, %v87
  %v104 = vmul.f32 %v34, %v87
  %v105 = vmul.f32 %v35, %v87
  %v106 = vmul.f32 %v36, %v87
  %v107 = vmul.f32 %v37, %v87
  %v108 = vmul.f32 %v38, %v87
  %v109 = vmul.f32 %v39, %v87
  %v110 = vmul.f32 %v40, %v87
  %v111 = vmul.f32 %v41, %v87
  %v112 = vmul.f32 %v42, %v87
  %v113 = vmul.f32 %v43, %v87
  %v114 = vmul.f32 %v44, %v87
  %v115 = vmul.f32 %v45, %v87
  %v116 = vmul.f32 %v46, %v87
  %v117 = vmul.f32 %v47, %v87
  %v118 = vmul.f32 %v48, %v87
  %v119 = vmul.f32 %v49, %v87
  %v120 = vmul.f32 %v50, %v87
  %v121 = vmul.f32 %v51, %v87
  %v122 = vmul.f32 %v52, %v87
  %v123 = vmul.f32 %v53, %v87
  %v124 = vmul.f32 %v54, %v87
  %v125 = vmul.f32 %v55, %v87
  %v126 = vmul.f32 %v56, %v87
  %v127 = vmul.f32 %v57, %v87
  %v128 = vmul.f32 %v58, %v87
  %v129 = vmul.f32 %v59, %v87
  %v130 = vmul.f32 %v60, %v87
  %v131 = vmul.f32 %v61, %v87
  %v132 = vmul.f32 %v62, %v87
  %v133 = vmul.f32 %v63, %v87
  %v134 = vmul.f32 %v64, %v87
  %v135 = vmul.f32 %v65, %v87
  %v136 = vmul.f32 %v66, %v87
  %v137 = vmul.f32 %v67, %v87
  %v138 = vmul.f32 %v68, %v87
  %v139 = vmul.f32 %v69, %v87
  %v140 = vmul.f32 %v70, %v87
  %v141 = vmul.f32 %v71, %v87
  %v142 = vmul.f32 %v72, %v87
  %v143 = vmul.f32 %v73, %v87
  %v144 = vmul.f32 %v74, %v87
  %v145 = vmul.f32 %v75, %v87
  %v146 = vmul.f32 %v76, %v87
  %v147 = vmul.f32 %v77, %v87
  %v148 = vmul.f32 %v78, %v87
  %v149 = vmul.f32 %v79, %v87
  %v150 = vmul.f32 %v80, %v87
  %v151 = vmul.f32 %v81, %v87
  %v152 = vmul.f32 %v82, %v87
  %v154 = vlaneseq
  %v155 = vshrl.u32 %v154, 7
  %v156 = vsub.s32 0, %v155
  %v157 = vrot.slane %v18, %v156
  %v159 = vadd.f32 %v89, %v157
  %v160 = vadd.f32 %v90, %v157
  %v161 = vadd.f32 %v91, %v157
  %v162 = vadd.f32 %v92, %v157
  %v163 = vadd.f32 %v93, %v157
  %v164 = vadd.f32 %v94, %v157
  %v165 = vadd.f32 %v95, %v157
  %v166 = vadd.f32 %v96, %v157
  %v167 = vadd.f32 %v97, %v157
  %v168 = vadd.f32 %v98, %v157
  %v169 = vadd.f32 %v99, %v157
  %v170 = vadd.f32 %v100, %v157
  %v171 = vadd.f32 %v101, %v157
  %v172 = vadd.f32 %v102, %v157
  %v173 = vadd.f32 %v103, %v157
  %v174 = vadd.f32 %v104, %v157
  %v175 = vadd.f32 %v105, %v157
  %v176 = vadd.f32 %v106, %v157
  %v177 = vadd.f32 %v107, %v157
  %v178 = vadd.f32 %v108, %v157
  %v179 = vadd.f32 %v109, %v157
  %v180 = vadd.f32 %v110, %v157
  %v181 = vadd.f32 %v111, %v157
  %v182 = vadd.f32 %v112, %v157
  %v183 = vadd.f32 %v113, %v157
  %v184 = vadd.f32 %v114, %v157
  %v185 = vadd.f32 %v115, %v157
  %v186 = vadd.f32 %v116, %v157
  %v187 = vadd.f32 %v117, %v157
  %v188 = vadd.f32 %v118, %v157
  %v189 = vadd.f32 %v119, %v157
  %v190 = vadd.f32 %v120, %v157
  %v191 = vadd.f32 %v121, %v157
  %v192 = vadd.f32 %v122, %v157
  %v193 = vadd.f32 %v123, %v157
  %v194 = vadd.f32 %v124, %v157
  %v195 = vadd.f32 %v125, %v157
  %v196 = vadd.f32 %v126, %v157
  %v197 = vadd.f32 %v127, %v157
  %v198 = vadd.f32 %v128, %v157
  %v199 = vadd.f32 %v129, %v157
  %v200 = vadd.f32 %v130, %v157
  %v201 = vadd.f32 %v131, %v157
  %v202 = vadd.f32 %v132, %v157
  %v203 = vadd.f32 %v133, %v157
  %v204 = vadd.f32 %v134, %v157
  %v205 = vadd.f32 %v135, %v157
  %v206 = vadd.f32 %v136, %v157
  %v207 = vadd.f32 %v137, %v157
  %v208 = vadd.f32 %v138, %v157
  %v209 = vadd.f32 %v139, %v157
  %v210 = vadd.f32 %v140, %v157
  %v211 = vadd.f32 %v141, %v157
  %v212 = vadd.f32 %v142, %v157
  %v213 = vadd.f32 %v143, %v157
  %v214 = vadd.f32 %v144, %v157
  %v215 = vadd.f32 %v145, %v157
  %v216 = vadd.f32 %v146, %v157
  %v217 = vadd.f32 %v147, %v157
  %v218 = vadd.f32 %v148, %v157
  %v219 = vadd.f32 %v149, %v157
  %v220 = vadd.f32 %v150, %v157
  %v221 = vadd.f32 %v151, %v157
  %v222 = vadd.f32 %v152, %v157
  %s223 = scalar_lea.vmem %s3, 16
  %v224 = vld [vmem:[%s223] sm:$0xff]
  %v225 = vld [vmem:[%s223 + $0x8] sm:$0xff]
  %v226 = vld [vmem:[%s223 + $0x10] sm:$0xff]
  %v227 = vld [vmem:[%s223 + $0x18] sm:$0xff]
  %v228 = vld [vmem:[%s223 + $0x20] sm:$0xff]
  %v229 = vld [vmem:[%s223 + $0x28] sm:$0xff]
  %v230 = vld [vmem:[%s223 + $0x30] sm:$0xff]
  %v231 = vld [vmem:[%s223 + $0x38] sm:$0xff]
  %v232 = vld [vmem:[%s223 + $0x40] sm:$0xff]
  %v233 = vld [vmem:[%s223 + $0x48] sm:$0xff]
  %v234 = vld [vmem:[%s223 + $0x50] sm:$0xff]
  %v235 = vld [vmem:[%s223 + $0x58] sm:$0xff]
  %v236 = vld [vmem:[%s223 + $0x60] sm:$0xff]
  %v237 = vld [vmem:[%s223 + $0x68] sm:$0xff]
  %v238 = vld [vmem:[%s223 + $0x70] sm:$0xff]
  %v239 = vld [vmem:[%s223 + $0x78] sm:$0xff]
  %v240 = vld [vmem:[%s223 + $0x80] sm:$0xff]
  %v241 = vld [vmem:[%s223 + $0x88] sm:$0xff]
  %v242 = vld [vmem:[%s223 + $0x90] sm:$0xff]
  %v243 = vld [vmem:[%s223 + $0x98] sm:$0xff]
  %v244 = vld [vmem:[%s223 + $0xa0] sm:$0xff]
  %v245 = vld [vmem:[%s223 + $0xa8] sm:$0xff]
  %v246 = vld [vmem:[%s223 + $0xb0] sm:$0xff]
  %v247 = vld [vmem:[%s223 + $0xb8] sm:$0xff]
  %v248 = vld [vmem:[%s223 + $0xc0] sm:$0xff]
  %v249 = vld [vmem:[%s223 + $0xc8] sm:$0xff]
  %v250 = vld [vmem:[%s223 + $0xd0] sm:$0xff]
  %v251 = vld [vmem:[%s223 + $0xd8] sm:$0xff]
  %v252 = vld [vmem:[%s223 + $0xe0] sm:$0xff]
  %v253 = vld [vmem:[%s223 + $0xe8] sm:$0xff]
  %v254 = vld [vmem:[%s223 + $0xf0] sm:$0xff]
  %v255 = vld [vmem:[%s223 + $0xf8] sm:$0xff]
  %v256 = vld [vmem:[%s223 + $0x120] sm:$0xff]
  %v257 = vld [vmem:[%s223 + $0x128] sm:$0xff]
  %v258 = vld [vmem:[%s223 + $0x130] sm:$0xff]
  %v259 = vld [vmem:[%s223 + $0x138] sm:$0xff]
  %v260 = vld [vmem:[%s223 + $0x140] sm:$0xff]
  %v261 = vld [vmem:[%s223 + $0x148] sm:$0xff]
  %v262 = vld [vmem:[%s223 + $0x150] sm:$0xff]
  %v263 = vld [vmem:[%s223 + $0x158] sm:$0xff]
  %v264 = vld [vmem:[%s223 + $0x160] sm:$0xff]
  %v265 = vld [vmem:[%s223 + $0x168] sm:$0xff]
  %v266 = vld [vmem:[%s223 + $0x170] sm:$0xff]
  %v267 = vld [vmem:[%s223 + $0x178] sm:$0xff]
  %v268 = vld [vmem:[%s223 + $0x180] sm:$0xff]
  %v269 = vld [vmem:[%s223 + $0x188] sm:$0xff]
  %v270 = vld [vmem:[%s223 + $0x190] sm:$0xff]
  %v271 = vld [vmem:[%s223 + $0x198] sm:$0xff]
  %v272 = vld [vmem:[%s223 + $0x1a0] sm:$0xff]
  %v273 = vld [vmem:[%s223 + $0x1a8] sm:$0xff]
  %v274 = vld [vmem:[%s223 + $0x1b0] sm:$0xff]
  %v275 = vld [vmem:[%s223 + $0x1b8] sm:$0xff]
  %v276 = vld [vmem:[%s223 + $0x1c0] sm:$0xff]
  %v277 = vld [vmem:[%s223 + $0x1c8] sm:$0xff]
  %v278 = vld [vmem:[%s223 + $0x1d0] sm:$0xff]
  %v279 = vld [vmem:[%s223 + $0x1d8] sm:$0xff]
  %v280 = vld [vmem:[%s223 + $0x1e0] sm:$0xff]
  %v281 = vld [vmem:[%s223 + $0x1e8] sm:$0xff]
  %v282 = vld [vmem:[%s223 + $0x1f0] sm:$0xff]
  %v283 = vld [vmem:[%s223 + $0x1f8] sm:$0xff]
  %v284 = vld [vmem:[%s223 + $0x200] sm:$0xff]
  %v285 = vld [vmem:[%s223 + $0x208] sm:$0xff]
  %v286 = vld [vmem:[%s223 + $0x210] sm:$0xff]
  %v287 = vld [vmem:[%s223 + $0x218] sm:$0xff]
  %v288 = vadd.f32 %v159, %v224
  %v289 = vadd.f32 %v160, %v225
  %v290 = vadd.f32 %v161, %v226
  %v291 = vadd.f32 %v162, %v227
  %v292 = vadd.f32 %v163, %v228
  %v293 = vadd.f32 %v164, %v229
  %v294 = vadd.f32 %v165, %v230
  %v295 = vadd.f32 %v166, %v231
  %v296 = vadd.f32 %v167, %v232
  %v297 = vadd.f32 %v168, %v233
  %v298 = vadd.f32 %v169, %v234
  %v299 = vadd.f32 %v170, %v235
  %v300 = vadd.f32 %v171, %v236
  %v301 = vadd.f32 %v172, %v237
  %v302 = vadd.f32 %v173, %v238
  %v303 = vadd.f32 %v174, %v239
  %v304 = vadd.f32 %v175, %v240
  %v305 = vadd.f32 %v176, %v241
  %v306 = vadd.f32 %v177, %v242
  %v307 = vadd.f32 %v178, %v243
  %v308 = vadd.f32 %v179, %v244
  %v309 = vadd.f32 %v180, %v245
  %v310 = vadd.f32 %v181, %v246
  %v311 = vadd.f32 %v182, %v247
  %v312 = vadd.f32 %v183, %v248
  %v313 = vadd.f32 %v184, %v249
  %v314 = vadd.f32 %v185, %v250
  %v315 = vadd.f32 %v186, %v251
  %v316 = vadd.f32 %v187, %v252
  %v317 = vadd.f32 %v188, %v253
  %v318 = vadd.f32 %v189, %v254
  %v319 = vadd.f32 %v190, %v255
  %v320 = vadd.f32 %v191, %v256
  %v321 = vadd.f32 %v192, %v257
  %v322 = vadd.f32 %v193, %v258
  %v323 = vadd.f32 %v194, %v259
  %v324 = vadd.f32 %v195, %v260
  %v325 = vadd.f32 %v196, %v261
  %v326 = vadd.f32 %v197, %v262
  %v327 = vadd.f32 %v198, %v263
  %v328 = vadd.f32 %v199, %v264
  %v329 = vadd.f32 %v200, %v265
  %v330 = vadd.f32 %v201, %v266
  %v331 = vadd.f32 %v202, %v267
  %v332 = vadd.f32 %v203, %v268
  %v333 = vadd.f32 %v204, %v269
  %v334 = vadd.f32 %v205, %v270
  %v335 = vadd.f32 %v206, %v271
  %v336 = vadd.f32 %v207, %v272
  %v337 = vadd.f32 %v208, %v273
  %v338 = vadd.f32 %v209, %v274
  %v339 = vadd.f32 %v210, %v275
  %v340 = vadd.f32 %v211, %v276
  %v341 = vadd.f32 %v212, %v277
  %v342 = vadd.f32 %v213, %v278
  %v343 = vadd.f32 %v214, %v279
  %v344 = vadd.f32 %v215, %v280
  %v345 = vadd.f32 %v216, %v281
  %v346 = vadd.f32 %v217, %v282
  %v347 = vadd.f32 %v218, %v283
  %v348 = vadd.f32 %v219, %v284
  %v349 = vadd.f32 %v220, %v285
  %v350 = vadd.f32 %v221, %v286
  %v351 = vadd.f32 %v222, %v287
  %v352 = vmax.f32 %v288, 0.0
  %v353 = vmax.f32 %v289, 0.0
  %v354 = vmax.f32 %v290, 0.0
  %v355 = vmax.f32 %v291, 0.0
  %v356 = vmax.f32 %v292, 0.0
  %v357 = vmax.f32 %v293, 0.0
  %v358 = vmax.f32 %v294, 0.0
  %v359 = vmax.f32 %v295, 0.0
  %v360 = vmax.f32 %v296, 0.0
  %v361 = vmax.f32 %v297, 0.0
  %v362 = vmax.f32 %v298, 0.0
  %v363 = vmax.f32 %v299, 0.0
  %v364 = vmax.f32 %v300, 0.0
  %v365 = vmax.f32 %v301, 0.0
  %v366 = vmax.f32 %v302, 0.0
  %v367 = vmax.f32 %v303, 0.0
  %v368 = vmax.f32 %v304, 0.0
  %v369 = vmax.f32 %v305, 0.0
  %v370 = vmax.f32 %v306, 0.0
  %v371 = vmax.f32 %v307, 0.0
  %v372 = vmax.f32 %v308, 0.0
  %v373 = vmax.f32 %v309, 0.0
  %v374 = vmax.f32 %v310, 0.0
  %v375 = vmax.f32 %v311, 0.0
  %v376 = vmax.f32 %v312, 0.0
  %v377 = vmax.f32 %v313, 0.0
  %v378 = vmax.f32 %v314, 0.0
  %v379 = vmax.f32 %v315, 0.0
  %v380 = vmax.f32 %v316, 0.0
  %v381 = vmax.f32 %v317, 0.0
  %v382 = vmax.f32 %v318, 0.0
  %v383 = vmax.f32 %v319, 0.0
  %v384 = vmax.f32 %v320, 0.0
  %v385 = vmax.f32 %v321, 0.0
  %v386 = vmax.f32 %v322, 0.0
  %v387 = vmax.f32 %v323, 0.0
  %v388 = vmax.f32 %v324, 0.0
  %v389 = vmax.f32 %v325, 0.0
  %v390 = vmax.f32 %v326, 0.0
  %v391 = vmax.f32 %v327, 0.0
  %v392 = vmax.f32 %v328, 0.0
  %v393 = vmax.f32 %v329, 0.0
  %v394 = vmax.f32 %v330, 0.0
  %v395 = vmax.f32 %v331, 0.0
  %v396 = vmax.f32 %v332, 0.0
  %v397 = vmax.f32 %v333, 0.0
  %v398 = vmax.f32 %v334, 0.0
  %v399 = vmax.f32 %v335, 0.0
  %v400 = vmax.f32 %v336, 0.0
  %v401 = vmax.f32 %v337, 0.0
  %v402 = vmax.f32 %v338, 0.0
  %v403 = vmax.f32 %v339, 0.0
  %v404 = vmax.f32 %v340, 0.0
  %v405 = vmax.f32 %v341, 0.0
  %v406 = vmax.f32 %v342, 0.0
  %v407 = vmax.f32 %v343, 0.0
  %v408 = vmax.f32 %v344, 0.0
  %v409 = vmax.f32 %v345, 0.0
  %v410 = vmax.f32 %v346, 0.0
  %v411 = vmax.f32 %v347, 0.0
  %v412 = vmax.f32 %v348, 0.0
  %v413 = vmax.f32 %v349, 0.0
  %v414 = vmax.f32 %v350, 0.0
  %v415 = vmax.f32 %v351, 0.0
  %416 = vst [vmem:[%s4] sm:$0xff] %v352
  %417 = vst [vmem:[%s4 + $0x8] sm:$0xff] %v353
  %418 = vst [vmem:[%s4 + $0x10] sm:$0xff] %v354
  %419 = vst [vmem:[%s4 + $0x18] sm:$0xff] %v355
  %420 = vst [vmem:[%s4 + $0x20] sm:$0xff] %v356
  %421 = vst [vmem:[%s4 + $0x28] sm:$0xff] %v357
  %422 = vst [vmem:[%s4 + $0x30] sm:$0xff] %v358
  %423 = vst [vmem:[%s4 + $0x38] sm:$0xff] %v359
  %424 = vst [vmem:[%s4 + $0x40] sm:$0xff] %v360
  %425 = vst [vmem:[%s4 + $0x48] sm:$0xff] %v361
  %426 = vst [vmem:[%s4 + $0x50] sm:$0xff] %v362
  %427 = vst [vmem:[%s4 + $0x58] sm:$0xff] %v363
  %428 = vst [vmem:[%s4 + $0x60] sm:$0xff] %v364
  %429 = vst [vmem:[%s4 + $0x68] sm:$0xff] %v365
  %430 = vst [vmem:[%s4 + $0x70] sm:$0xff] %v366
  %431 = vst [vmem:[%s4 + $0x78] sm:$0xff] %v367
  %432 = vst [vmem:[%s4 + $0x80] sm:$0xff] %v368
  %433 = vst [vmem:[%s4 + $0x88] sm:$0xff] %v369
  %434 = vst [vmem:[%s4 + $0x90] sm:$0xff] %v370
  %435 = vst [vmem:[%s4 + $0x98] sm:$0xff] %v371
  %436 = vst [vmem:[%s4 + $0xa0] sm:$0xff] %v372
  %437 = vst [vmem:[%s4 + $0xa8] sm:$0xff] %v373
  %438 = vst [vmem:[%s4 + $0xb0] sm:$0xff] %v374
  %439 = vst [vmem:[%s4 + $0xb8] sm:$0xff] %v375
  %440 = vst [vmem:[%s4 + $0xc0] sm:$0xff] %v376
  %441 = vst [vmem:[%s4 + $0xc8] sm:$0xff] %v377
  %442 = vst [vmem:[%s4 + $0xd0] sm:$0xff] %v378
  %443 = vst [vmem:[%s4 + $0xd8] sm:$0xff] %v379
  %444 = vst [vmem:[%s4 + $0xe0] sm:$0xff] %v380
  %445 = vst [vmem:[%s4 + $0xe8] sm:$0xff] %v381
  %446 = vst [vmem:[%s4 + $0xf0] sm:$0xff] %v382
  %447 = vst [vmem:[%s4 + $0xf8] sm:$0xff] %v383
  %448 = vst [vmem:[%s4 + $0x100] sm:$0xff] %v384
  %449 = vst [vmem:[%s4 + $0x108] sm:$0xff] %v385
  %450 = vst [vmem:[%s4 + $0x110] sm:$0xff] %v386
  %451 = vst [vmem:[%s4 + $0x118] sm:$0xff] %v387
  %452 = vst [vmem:[%s4 + $0x120] sm:$0xff] %v388
  %453 = vst [vmem:[%s4 + $0x128] sm:$0xff] %v389
  %454 = vst [vmem:[%s4 + $0x130] sm:$0xff] %v390
  %455 = vst [vmem:[%s4 + $0x138] sm:$0xff] %v391
  %456 = vst [vmem:[%s4 + $0x140] sm:$0xff] %v392
  %457 = vst [vmem:[%s4 + $0x148] sm:$0xff] %v393
  %458 = vst [vmem:[%s4 + $0x150] sm:$0xff] %v394
  %459 = vst [vmem:[%s4 + $0x158] sm:$0xff] %v395
  %460 = vst [vmem:[%s4 + $0x160] sm:$0xff] %v396
  %461 = vst [vmem:[%s4 + $0x168] sm:$0xff] %v397
  %462 = vst [vmem:[%s4 + $0x170] sm:$0xff] %v398
  %463 = vst [vmem:[%s4 + $0x178] sm:$0xff] %v399
  %464 = vst [vmem:[%s4 + $0x180] sm:$0xff] %v400
  %465 = vst [vmem:[%s4 + $0x188] sm:$0xff] %v401
  %466 = vst [vmem:[%s4 + $0x190] sm:$0xff] %v402
  %467 = vst [vmem:[%s4 + $0x198] sm:$0xff] %v403
  %468 = vst [vmem:[%s4 + $0x1a0] sm:$0xff] %v404
  %469 = vst [vmem:[%s4 + $0x1a8] sm:$0xff] %v405
  %470 = vst [vmem:[%s4 + $0x1b0] sm:$0xff] %v406
  %471 = vst [vmem:[%s4 + $0x1b8] sm:$0xff] %v407
  %472 = vst [vmem:[%s4 + $0x1c0] sm:$0xff] %v408
  %473 = vst [vmem:[%s4 + $0x1c8] sm:$0xff] %v409
  %474 = vst [vmem:[%s4 + $0x1d0] sm:$0xff] %v410
  %475 = vst [vmem:[%s4 + $0x1d8] sm:$0xff] %v411
  %476 = vst [vmem:[%s4 + $0x1e0] sm:$0xff] %v412
  %477 = vst [vmem:[%s4 + $0x1e8] sm:$0xff] %v413
  %478 = vst [vmem:[%s4 + $0x1f0] sm:$0xff] %v414
  %479 = vst [vmem:[%s4 + $0x1f8] sm:$0xff] %v415
  // Predicated region
  $region18: #{residual_block_forward.5} parent=0 // pred_check
    _
  $region19: #{residual_block_forward.5} parent=0 // pred_check_branch
    %481 = sbr.rel (0) target = $region21
  $region20: #{residual_block_forward.5} parent=0 // pred_region
    _
  $region21: #{residual_block_forward.5} parent=0 // pred_fallthru
    _
  // Predicated region
  $region22: #{residual_block_forward.5} parent=0 // pred_check
    _
  $region23: #{residual_block_forward.5} parent=0 // pred_check_branch
    %483 = sbr.rel (0) target = $region25
  $region24: #{residual_block_forward.5} parent=0 // pred_region
    _
  $region25: #{residual_block_forward.5} parent=0 // pred_fallthru
    _

// kernel: residual_block_forward.3
$region0: #{residual_block_forward.3}
  #allocation0 [shape = 'u32[]', space=smem, size = 0x4, offset = 0x4, fixed_abs, tag = 'smem constant byte address 0x4 - core index']
  #allocation1 [shape = 'u32[144,128]{1,0:T(1,128)}', space=vmem, size = 0x12000, scoped, tag = 'internal scratch']
  #allocation2 [shape = 'f32[256,128]{1,0:T(8,128)}', space=vmem, size = 0x20000, scoped, tag = 'scratch operand']
  %s0 = inlined_call_operand.vmem [shape: f32[2,18,16,128], index: 0, kind: input, shape index: {}]
  %s1 = inlined_call_operand.vmem [shape: f32[3,384,128], index: 1, kind: input, shape index: {}]
  %s2 = inlined_call_operand.vmem [shape: f32[2,16,16,128], index: 2, kind: output, shape index: {0}]
  %s3 = inlined_call_operand.vmem [shape: f32[2,2,128], index: 3, kind: output, shape index: {1}]
  %4 = xla_tuple %s2, %s3
  %s5 = sld [smem:[#allocation0]]
  $region49: #{residual_block_forward.3} parent=0
    _
  %s7 = ssub.s32 1, %s5
  %s8 = scalar_select 0, %s7, %s5
  loop: start=0, step=1, limit=4
  $region2: #{residual_block_forward.3} parent=0 // loop_pre_header
    _
  $region3: #{residual_block_forward.3} parent=0 // loop_header
    %s10 = sphi 0, %s14
    %p11 = scmp.ge.s32.totalorder %s10, 4
    %s20 = sphi 0, %s22
    %s23 = sphi 0, %s20
    %s24 = sphi 0, %s23
    %s40 = sphi 0, %s24
    %s44 = sphi 0, %s44
    %s46 = sphi 0, %s44
    %s47 = sphi 0, %s46
    %s61 = sphi 0, %s47
    %s67 = sphi 0, %s69
    %s70 = sphi 0, %s67
    %s71 = sphi 0, %s70
    %s87 = sphi 0, %s71
    %s93 = sphi 0, %s95
    %s96 = sphi 0, %s93
    %s97 = sphi 0, %s96
    %s113 = sphi 0, %s97
  $region4: #{residual_block_forward.3} parent=0 // loop_header_branch
    %13 = sbr.rel (%p11) target = $region8
  $region5: #{residual_block_forward.3} parent=0 // loop_body
    %s15 = ssub.s32 %s10, 1
    %s16 = ssub.s32 %s10, 2
    %s17 = sadd.s32 %s10, 1
    %s18 = ssub.s32 %s10, %s17
    %p19 = scmp.eq.s32.totalorder %s18, 0
    %s21 = sadd.s32 %s20, 1
    %s22 = scalar_select %p19, %s20, %s21
    %p25 = pneg %p19
    %p26 = scmp.eq.s32.totalorder %s10, 1
    %p27 = por %p25, %p26
    %p28 = scmp.ne.s32.totalorder %s20, %s23
    %p29 = scmp.eq.s32.totalorder %s10, 0
    %p30 = por %p28, %p29
    %p31 = scmp.ne.s32.totalorder %s20, %s23
    %p32 = scmp.eq.s32.totalorder %s15, 1
    %p33 = por %p31, %p32
    %p34 = scmp.ne.s32.totalorder %s23, %s24
    %p35 = scmp.eq.s32.totalorder %s15, 0
    %p36 = por %p34, %p35
    %p37 = scmp.ne.s32.totalorder %s23, %s24
    %p38 = scmp.eq.s32.totalorder %s16, 1
    %p39 = por %p37, %p38
    %p41 = scmp.ne.s32.totalorder %s24, %s40
    %p42 = scmp.eq.s32.totalorder %s16, 0
    %p43 = por %p41, %p42
    %s45 = sadd.s32 %s44, 1
    %p48 = scmp.eq.s32.totalorder %s10, 1
    %p49 = scmp.ne.s32.totalorder %s44, %s46
    %p50 = scmp.eq.s32.totalorder %s10, 0
    %p51 = por %p49, %p50
    %p52 = scmp.ne.s32.totalorder %s44, %s46
    %p53 = scmp.eq.s32.totalorder %s15, 1
    %p54 = por %p52, %p53
    %p55 = scmp.ne.s32.totalorder %s46, %s47
    %p56 = scmp.eq.s32.totalorder %s15, 0
    %p57 = por %p55, %p56
    %p58 = scmp.ne.s32.totalorder %s46, %s47
    %p59 = scmp.eq.s32.totalorder %s16, 1
    %p60 = por %p58, %p59
    %p62 = scmp.ne.s32.totalorder %s47, %s61
    %p63 = scmp.eq.s32.totalorder %s16, 0
    %p64 = por %p62, %p63
    %s65 = ssub.s32 %s10, %s17
    %p66 = scmp.eq.s32.totalorder %s65, 0
    %s68 = sadd.s32 %s67, 1
    %s69 = scalar_select %p66, %s67, %s68
    %p72 = pneg %p66
    %p73 = scmp.eq.s32.totalorder %s10, 1
    %p74 = por %p72, %p73
    %p75 = scmp.ne.s32.totalorder %s67, %s70
    %p76 = scmp.eq.s32.totalorder %s10, 0
    %p77 = por %p75, %p76
    %p78 = scmp.ne.s32.totalorder %s67, %s70
    %p79 = scmp.eq.s32.totalorder %s15, 1
    %p80 = por %p78, %p79
    %p81 = scmp.ne.s32.totalorder %s70, %s71
    %p82 = scmp.eq.s32.totalorder %s15, 0
    %p83 = por %p81, %p82
    %p84 = scmp.ne.s32.totalorder %s70, %s71
    %p85 = scmp.eq.s32.totalorder %s16, 1
    %p86 = por %p84, %p85
    %p88 = scmp.ne.s32.totalorder %s71, %s87
    %p89 = scmp.eq.s32.totalorder %s16, 0
    %p90 = por %p88, %p89
    %s91 = ssub.s32 %s10, %s17
    %p92 = scmp.eq.s32.totalorder %s91, 0
    %s94 = sadd.s32 %s93, 1
    %s95 = scalar_select %p92, %s93, %s94
    %p98 = pneg %p92
    %p99 = scmp.eq.s32.totalorder %s10, 1
    %p100 = por %p98, %p99
    %p101 = scmp.ne.s32.totalorder %s93, %s96
    %p102 = scmp.eq.s32.totalorder %s10, 0
    %p103 = por %p101, %p102
    %p104 = scmp.ne.s32.totalorder %s93, %s96
    %p105 = scmp.eq.s32.totalorder %s15, 1
    %p106 = por %p104, %p105
    %p107 = scmp.ne.s32.totalorder %s96, %s97
    %p108 = scmp.eq.s32.totalorder %s15, 0
    %p109 = por %p107, %p108
    %p110 = scmp.ne.s32.totalorder %s96, %s97
    %p111 = scmp.eq.s32.totalorder %s16, 1
    %p112 = por %p110, %p111
    %p114 = scmp.ne.s32.totalorder %s97, %s113
    %p115 = scmp.eq.s32.totalorder %s16, 0
    %p116 = por %p114, %p115
    %p117 = scmp.le.s32.totalorder 1, %s10
    %p118 = scmp.lt.s32.totalorder %s10, 3
    %p119 = pnand %p117, %p118
    %p120 = pneg %p119
    // Predicated region
    $region9: #{residual_block_forward.3} parent=5 // pred_check
      _
    $region10: #{residual_block_forward.3} parent=5 // pred_check_branch
      %122 = sbr.rel (%p119) target = $region12
    $region11: #{residual_block_forward.3} parent=5 // pred_region
      %s123 = ssub.s32 %s10, 1
      // Predicated region
      $region13: #{residual_block_forward.3} parent=11 // pred_check
        %p124 = pneg %p57
      $region14: #{residual_block_forward.3} parent=11 // pred_check_branch
        %126 = sbr.rel (%p124) target = $region16
      $region15: #{residual_block_forward.3} parent=11 // pred_region
        _
      $region16: #{residual_block_forward.3} parent=11 // pred_fallthru
        _
    $region12: #{residual_block_forward.3} parent=5 // pred_fallthru
      _
    %p127 = scmp.lt.s32.totalorder %s10, 2
    // Predicated region
    $region17: #{residual_block_forward.3} parent=5 // pred_check
      %p128 = pneg %p127
    $region18: #{residual_block_forward.3} parent=5 // pred_check_branch
      %130 = sbr.rel (%p128) target = $region20
    $region19: #{residual_block_forward.3} parent=5 // pred_region
      // Predicated region
      $region21: #{residual_block_forward.3} parent=19 // pred_check
        %p131 = pneg %p30
      $region22: #{residual_block_forward.3} parent=19 // pred_check_branch
        %133 = sbr.rel (%p131) target = $region24
      $region23: #{residual_block_forward.3} parent=19 // pred_region
        %p134 = scmp.lt.s32.totalorder %s10, 1
        %s135 = scalar_select %p134, %s10, 1
        %s136 = smul.addr %s135, 36
        %s137 = smul.addr %s136, 8
        %s138 = scalar_lea.vmem %s0, %s137
      $region24: #{residual_block_forward.3} parent=19 // pred_fallthru
        _
    $region20: #{residual_block_forward.3} parent=5 // pred_fallthru
      _
    %p139 = scmp.le.s32.totalorder 1, %s10
    %p140 = scmp.lt.s32.totalorder %s10, 3
    %p141 = pnand %p139, %p140
    %p142 = pneg %p141
    // Predicated region
    $region25: #{residual_block_forward.3} parent=5 // pred_check
      _
    $region26: #{residual_block_forward.3} parent=5 // pred_check_branch
      %144 = sbr.rel (%p141) target = $region28
    $region27: #{residual_block_forward.3} parent=5 // pred_region
      %s145 = ssub.s32 %s10, 1
      %p146 = scmp.lt.s32.totalorder %s15, 1
      %s147 = scalar_select %p146, %s15, 1
      %s148 = smul.addr %s147, 36
      %s149 = smul.addr %s148, 8
      %s150 = scalar_lea.vmem %s0, %s149
      %p151 = pneg %p36
      %p152 = pneg %p33
      %p153 = pneg %p57
      %p154 = pneg %p54
      %p155 = pneg %p83
      %p156 = pneg %p80
      %p157 = scmp.lt.s32.totalorder %s15, 1
      %s158 = scalar_select %p157, %s15, 1
      %s159 = smul.addr %s158, 32
      %s160 = smul.addr %s159, 8
      %s161 = scalar_lea.vmem %s2, %s160
      %p162 = pneg %p109
      %p163 = pneg %p106
      %p164 = scmp.lt.s32.totalorder %s15, 1
      %s165 = scalar_select %p164, %s15, 1
      %s166 = smul.addr %s165, 2
      %s167 = scalar_lea.vmem %s3, %s166
      %p168 = scmp.lt.s32.totalorder %s15, 1
      %s169 = scalar_select %p168, %s15, 1
      %s170 = smul.addr %s169, 36
      %s171 = smul.addr %s170, 8
      %s172 = scalar_lea.vmem %s0, %s171
      %p173 = scmp.lt.s32.totalorder %s15, 1
      %s174 = scalar_select %p173, %s15, 1
      %s175 = smul.addr %s174, 32
      %s176 = smul.addr %s175, 8
      %s177 = scalar_lea.vmem %s2, %s176
      %p178 = scmp.lt.s32.totalorder %s15, 1
      %s179 = scalar_select %p178, %s15, 1
      %s180 = smul.addr %s179, 2
      %s181 = scalar_lea.vmem %s3, %s180
      %v182 = vlaneseq
      %v183 = vshrl.u32 %v182, 7
      %v184 = vadd.s32 %v183, 8
      %vm185 = vcmp.gt.s32.totalorder %v183, 0
      %vm186 = vcmp.gt.s32.totalorder %v184, 0
      %vm187 = vcmp.lt.s32.totalorder %v183, 15
      %vm188 = vcmp.lt.s32.totalorder %v184, 15
      %189 = vst [vmem:[#allocation2] sm:$0xff] 0.0
      %190 = vst [vmem:[#allocation2 + $0x8] sm:$0xff] 0.0
      %191 = vst [vmem:[#allocation2 + $0x10] sm:$0xff] 0.0
      %192 = vst [vmem:[#allocation2 + $0x18] sm:$0xff] 0.0
      %193 = vst [vmem:[#allocation2 + $0x20] sm:$0xff] 0.0
      %194 = vst [vmem:[#allocation2 + $0x28] sm:$0xff] 0.0
      %195 = vst [vmem:[#allocation2 + $0x30] sm:$0xff] 0.0
      %196 = vst [vmem:[#allocation2 + $0x38] sm:$0xff] 0.0
      %197 = vst [vmem:[#allocation2 + $0x40] sm:$0xff] 0.0
      %198 = vst [vmem:[#allocation2 + $0x48] sm:$0xff] 0.0
      %199 = vst [vmem:[#allocation2 + $0x50] sm:$0xff] 0.0
      %200 = vst [vmem:[#allocation2 + $0x58] sm:$0xff] 0.0
      %201 = vst [vmem:[#allocation2 + $0x60] sm:$0xff] 0.0
      %202 = vst [vmem:[#allocation2 + $0x68] sm:$0xff] 0.0
      %203 = vst [vmem:[#allocation2 + $0x70] sm:$0xff] 0.0
      %204 = vst [vmem:[#allocation2 + $0x78] sm:$0xff] 0.0
      %205 = vst [vmem:[#allocation2 + $0x80] sm:$0xff] 0.0
      %206 = vst [vmem:[#allocation2 + $0x88] sm:$0xff] 0.0
      %207 = vst [vmem:[#allocation2 + $0x90] sm:$0xff] 0.0
      %208 = vst [vmem:[#allocation2 + $0x98] sm:$0xff] 0.0
      %209 = vst [vmem:[#allocation2 + $0xa0] sm:$0xff] 0.0
      %210 = vst [vmem:[#allocation2 + $0xa8] sm:$0xff] 0.0
      %211 = vst [vmem:[#allocation2 + $0xb0] sm:$0xff] 0.0
      %212 = vst [vmem:[#allocation2 + $0xb8] sm:$0xff] 0.0
      %213 = vst [vmem:[#allocation2 + $0xc0] sm:$0xff] 0.0
      %214 = vst [vmem:[#allocation2 + $0xc8] sm:$0xff] 0.0
      %215 = vst [vmem:[#allocation2 + $0xd0] sm:$0xff] 0.0
      %216 = vst [vmem:[#allocation2 + $0xd8] sm:$0xff] 0.0
      %217 = vst [vmem:[#allocation2 + $0xe0] sm:$0xff] 0.0
      %218 = vst [vmem:[#allocation2 + $0xe8] sm:$0xff] 0.0
      %219 = vst [vmem:[#allocation2 + $0xf0] sm:$0xff] 0.0
      %220 = vst [vmem:[#allocation2 + $0xf8] sm:$0xff] 0.0
      %v221 = vld [vmem:[%s172] sm:$0xff]
      %v222 = vld [vmem:[%s172 + $0x8] sm:$0xff]
      %v223 = vld [vmem:[%s172 + $0x10] sm:$0xff]
      %v224 = vld [vmem:[%s172 + $0x18] sm:$0xff]
      %v225 = vld [vmem:[%s172 + $0x20] sm:$0xff]
      %v226 = vld [vmem:[%s172 + $0x28] sm:$0xff]
      %v227 = vld [vmem:[%s172 + $0x30] sm:$0xff]
      %v228 = vld [vmem:[%s172 + $0x38] sm:$0xff]
      %v229 = vld [vmem:[%s172 + $0x40] sm:$0xff]
      %v230 = vld [vmem:[%s172 + $0x48] sm:$0xff]
      %v231 = vld [vmem:[%s172 + $0x50] sm:$0xff]
      %v232 = vld [vmem:[%s172 + $0x58] sm:$0xff]
      %v233 = vld [vmem:[%s172 + $0x60] sm:$0xff]
      %v234 = vld [vmem:[%s172 + $0x68] sm:$0xff]
      %v235 = vld [vmem:[%s172 + $0x70] sm:$0xff]
      %v236 = vld [vmem:[%s172 + $0x78] sm:$0xff]
      %v237 = vld [vmem:[%s172 + $0x80] sm:$0xff]
      %v238 = vld [vmem:[%s172 + $0x88] sm:$0xff]
      %v239 = vld [vmem:[%s172 + $0x90] sm:$0xff]
      %v240 = vld [vmem:[%s172 + $0x98] sm:$0xff]
      %v241 = vld [vmem:[%s172 + $0xa0] sm:$0xff]
      %v242 = vld [vmem:[%s172 + $0xa8] sm:$0xff]
      %v243 = vld [vmem:[%s172 + $0xb0] sm:$0xff]
      %v244 = vld [vmem:[%s172 + $0xb8] sm:$0xff]
      %v245 = vld [vmem:[%s172 + $0xc0] sm:$0xff]
      %v246 = vld [vmem:[%s172 + $0xc8] sm:$0xff]
      %v247 = vld [vmem:[%s172 + $0xd0] sm:$0xff]
      %v248 = vld [vmem:[%s172 + $0xd8] sm:$0xff]
      %v249 = vld [vmem:[%s172 + $0xe0] sm:$0xff]
      %v250 = vld [vmem:[%s172 + $0xe8] sm:$0xff]
      %v251 = vld [vmem:[%s172 + $0xf0] sm:$0xff]
      %v252 = vld [vmem:[%s172 + $0xf8] sm:$0xff]
      %v253 = vrot.slane %v221, 7
      %v254 = vrot.slane %v222, 7
      %v255 = vrot.slane %v223, 7
      %v256 = vrot.slane %v224, 7
      %v257 = vrot.slane %v225, 7
      %v258 = vrot.slane %v226, 7
      %v259 = vrot.slane %v227, 7
      %v260 = vrot.slane %v228, 7
      %v261 = vrot.slane %v229, 7
      %v262 = vrot.slane %v230, 7
      %v263 = vrot.slane %v231, 7
      %v264 = vrot.slane %v232, 7
      %v265 = vrot.slane %v233, 7
      %v266 = vrot.slane %v234, 7
      %v267 = vrot.slane %v235, 7
      %v268 = vrot.slane %v236, 7
      %v269 = vrot.slane %v237, 7
      %v270 = vrot.slane %v238, 7
      %v271 = vrot.slane %v239, 7
      %v272 = vrot.slane %v240, 7
      %v273 = vrot.slane %v241, 7
      %v274 = vrot.slane %v242, 7
      %v275 = vrot.slane %v243, 7
      %v276 = vrot.slane %v244, 7
      %v277 = vrot.slane %v245, 7
      %v278 = vrot.slane %v246, 7
      %v279 = vrot.slane %v247, 7
      %v280 = vrot.slane %v248, 7
      %v281 = vrot.slane %v249, 7
      %v282 = vrot.slane %v250, 7
      %v283 = vrot.slane %v251, 7
      %v284 = vrot.slane %v252, 7
      %vm285 = vcmp.lt.s32.totalorder %v183, 1
      %v286 = vsel %vm285, %v283, %v284
      %v287 = vsel %vm285, %v282, %v283
      %v288 = vsel %vm285, %v281, %v282
      %v289 = vsel %vm285, %v280, %v281
      %v290 = vsel %vm285, %v279, %v280
      %v291 = vsel %vm285, %v278, %v279
      %v292 = vsel %vm285, %v277, %v278
      %v293 = vsel %vm285, %v276, %v277
      %v294 = vsel %vm285, %v275, %v276
      %v295 = vsel %vm285, %v274, %v275
      %v296 = vsel %vm285, %v273, %v274
      %v297 = vsel %vm285, %v272, %v273
      %v298 = vsel %vm285, %v271, %v272
      %v299 = vsel %vm285, %v270, %v271
      %v300 = vsel %vm285, %v269, %v270
      %v301 = vsel %vm285, %v268, %v269
      %v302 = vsel %vm285, %v267, %v268
      %v303 = vsel %vm285, %v266, %v267
      %v304 = vsel %vm285, %v265, %v266
      %v305 = vsel %vm285, %v264, %v265
      %v306 = vsel %vm285, %v263, %v264
      %v307 = vsel %vm285, %v262, %v263
      %v308 = vsel %vm285, %v261, %v262
      %v309 = vsel %vm285, %v260, %v261
      %v310 = vsel %vm285, %v259, %v260
      %v311 = vsel %vm285, %v258, %v259
      %v312 = vsel %vm285, %v257, %v258
      %v313 = vsel %vm285, %v256, %v257
      %v314 = vsel %vm285, %v255, %v256
      %v315 = vsel %vm285, %v254, %v255
      %v316 = vsel %vm285, %v253, %v254
      %v317 = vsel %vm285, %v284, %v253
      %v318 = vsel %vm185, %v317, 0.0
      %v319 = vsel %vm186, %v316, 0.0
      %v320 = vsel %vm185, %v315, 0.0
      %v321 = vsel %vm186, %v314, 0.0
      %v322 = vsel %vm185, %v313, 0.0
      %v323 = vsel %vm186, %v312, 0.0
      %v324 = vsel %vm185, %v311, 0.0
      %v325 = vsel %vm186, %v310, 0.0
      %v326 = vsel %vm185, %v309, 0.0
      %v327 = vsel %vm186, %v308, 0.0
      %v328 = vsel %vm185, %v307, 0.0
      %v329 = vsel %vm186, %v306, 0.0
      %v330 = vsel %vm185, %v305, 0.0
      %v331 = vsel %vm186, %v304, 0.0
      %v332 = vsel %vm185, %v303, 0.0
      %v333 = vsel %vm186, %v302, 0.0
      %v334 = vsel %vm185, %v301, 0.0
      %v335 = vsel %vm186, %v300, 0.0
      %v336 = vsel %vm185, %v299, 0.0
      %v337 = vsel %vm186, %v298, 0.0
      %v338 = vsel %vm185, %v297, 0.0
      %v339 = vsel %vm186, %v296, 0.0
      %v340 = vsel %vm185, %v295, 0.0
      %v341 = vsel %vm186, %v294, 0.0
      %v342 = vsel %vm185, %v293, 0.0
      %v343 = vsel %vm186, %v292, 0.0
      %v344 = vsel %vm185, %v291, 0.0
      %v345 = vsel %vm186, %v290, 0.0
      %v346 = vsel %vm185, %v289, 0.0
      %v347 = vsel %vm186, %v288, 0.0
      %v348 = vsel %vm185, %v287, 0.0
      %v349 = vsel %vm186, %v286, 0.0
      %v350 = vrot.slane %v221, 1
      %v351 = vrot.slane %v222, 1
      %v352 = vrot.slane %v223, 1
      %v353 = vrot.slane %v224, 1
      %v354 = vrot.slane %v225, 1
      %v355 = vrot.slane %v226, 1
      %v356 = vrot.slane %v227, 1
      %v357 = vrot.slane %v228, 1
      %v358 = vrot.slane %v229, 1
      %v359 = vrot.slane %v230, 1
      %v360 = vrot.slane %v231, 1
      %v361 = vrot.slane %v232, 1
      %v362 = vrot.slane %v233, 1
      %v363 = vrot.slane %v234, 1
      %v364 = vrot.slane %v235, 1
      %v365 = vrot.slane %v236, 1
      %v366 = vrot.slane %v237, 1
      %v367 = vrot.slane %v238, 1
      %v368 = vrot.slane %v239, 1
      %v369 = vrot.slane %v240, 1
      %v370 = vrot.slane %v241, 1
      %v371 = vrot.slane %v242, 1
      %v372 = vrot.slane %v243, 1
      %v373 = vrot.slane %v244, 1
      %v374 = vrot.slane %v245, 1
      %v375 = vrot.slane %v246, 1
      %v376 = vrot.slane %v247, 1
      %v377 = vrot.slane %v248, 1
      %v378 = vrot.slane %v249, 1
      %v379 = vrot.slane %v250, 1
      %v380 = vrot.slane %v251, 1
      %v381 = vrot.slane %v252, 1
      %vm382 = vcmp.lt.s32.totalorder %v183, 7
      %v383 = vsel %vm382, %v380, %v381
      %v384 = vsel %vm382, %v379, %v380
      %v385 = vsel %vm382, %v378, %v379
      %v386 = vsel %vm382, %v377, %v378
      %v387 = vsel %vm382, %v376, %v377
      %v388 = vsel %vm382, %v375, %v376
      %v389 = vsel %vm382, %v374, %v375
      %v390 = vsel %vm382, %v373, %v374
      %v391 = vsel %vm382, %v372, %v373
      %v392 = vsel %vm382, %v371, %v372
      %v393 = vsel %vm382, %v370, %v371
      %v394 = vsel %vm382, %v369, %v370
      %v395 = vsel %vm382, %v368, %v369
      %v396 = vsel %vm382, %v367, %v368
      %v397 = vsel %vm382, %v366, %v367
      %v398 = vsel %vm382, %v365, %v366
      %v399 = vsel %vm382, %v364, %v365
      %v400 = vsel %vm382, %v363, %v364
      %v401 = vsel %vm382, %v362, %v363
      %v402 = vsel %vm382, %v361, %v362
      %v403 = vsel %vm382, %v360, %v361
      %v404 = vsel %vm382, %v359, %v360
      %v405 = vsel %vm382, %v358, %v359
      %v406 = vsel %vm382, %v357, %v358
      %v407 = vsel %vm382, %v356, %v357
      %v408 = vsel %vm382, %v355, %v356
      %v409 = vsel %vm382, %v354, %v355
      %v410 = vsel %vm382, %v353, %v354
      %v411 = vsel %vm382, %v352, %v353
      %v412 = vsel %vm382, %v351, %v352
      %v413 = vsel %vm382, %v350, %v351
      %v414 = vsel %vm382, %v381, %v350
      %v415 = vsel %vm187, %v413, 0.0
      %v416 = vsel %vm188, %v412, 0.0
      %v417 = vsel %vm187, %v411, 0.0
      %v418 = vsel %vm188, %v410, 0.0
      %v419 = vsel %vm187, %v409, 0.0
      %v420 = vsel %vm188, %v408, 0.0
      %v421 = vsel %vm187, %v407, 0.0
      %v422 = vsel %vm188, %v406, 0.0
      %v423 = vsel %vm187, %v405, 0.0
      %v424 = vsel %vm188, %v404, 0.0
      %v425 = vsel %vm187, %v403, 0.0
      %v426 = vsel %vm188, %v402, 0.0
      %v427 = vsel %vm187, %v401, 0.0
      %v428 = vsel %vm188, %v400, 0.0
      %v429 = vsel %vm187, %v399, 0.0
      %v430 = vsel %vm188, %v398, 0.0
      %v431 = vsel %vm187, %v397, 0.0
      %v432 = vsel %vm188, %v396, 0.0
      %v433 = vsel %vm187, %v395, 0.0
      %v434 = vsel %vm188, %v394, 0.0
      %v435 = vsel %vm187, %v393, 0.0
      %v436 = vsel %vm188, %v392, 0.0
      %v437 = vsel %vm187, %v391, 0.0
      %v438 = vsel %vm188, %v390, 0.0
      %v439 = vsel %vm187, %v389, 0.0
      %v440 = vsel %vm188, %v388, 0.0
      %v441 = vsel %vm187, %v387, 0.0
      %v442 = vsel %vm188, %v386, 0.0
      %v443 = vsel %vm187, %v385, 0.0
      %v444 = vsel %vm188, %v384, 0.0
      %v445 = vsel %vm187, %v383, 0.0
      %v446 = vsel %vm188, %v414, 0.0
      %v447 = vld [vmem:[#allocation2] sm:$0xff]
      %v448 = vld [vmem:[#allocation2 + $0x8] sm:$0xff]
      %v449 = vld [vmem:[#allocation2 + $0x10] sm:$0xff]
      %v450 = vld [vmem:[#allocation2 + $0x18] sm:$0xff]
      %v451 = vld [vmem:[#allocation2 + $0x20] sm:$0xff]
      %v452 = vld [vmem:[#allocation2 + $0x28] sm:$0xff]
      %v453 = vld [vmem:[#allocation2 + $0x30] sm:$0xff]
      %v454 = vld [vmem:[#allocation2 + $0x38] sm:$0xff]
      %v455 = vld [vmem:[#allocation2 + $0x40] sm:$0xff]
      %v456 = vld [vmem:[#allocation2 + $0x48] sm:$0xff]
      %v457 = vld [vmem:[#allocation2 + $0x50] sm:$0xff]
      %v458 = vld [vmem:[#allocation2 + $0x58] sm:$0xff]
      %v459 = vld [vmem:[#allocation2 + $0x60] sm:$0xff]
      %v460 = vld [vmem:[#allocation2 + $0x68] sm:$0xff]
      %v461 = vld [vmem:[#allocation2 + $0x70] sm:$0xff]
      %v462 = vld [vmem:[#allocation2 + $0x78] sm:$0xff]
      %v463 = vld [vmem:[#allocation2 + $0x80] sm:$0xff]
      %v464 = vld [vmem:[#allocation2 + $0x88] sm:$0xff]
      %v465 = vld [vmem:[#allocation2 + $0x90] sm:$0xff]
      %v466 = vld [vmem:[#allocation2 + $0x98] sm:$0xff]
      %v467 = vld [vmem:[#allocation2 + $0xa0] sm:$0xff]
      %v468 = vld [vmem:[#allocation2 + $0xa8] sm:$0xff]
      %v469 = vld [vmem:[#allocation2 + $0xb0] sm:$0xff]
      %v470 = vld [vmem:[#allocation2 + $0xb8] sm:$0xff]
      %v471 = vld [vmem:[#allocation2 + $0xc0] sm:$0xff]
      %v472 = vld [vmem:[#allocation2 + $0xc8] sm:$0xff]
      %v473 = vld [vmem:[#allocation2 + $0xd0] sm:$0xff]
      %v474 = vld [vmem:[#allocation2 + $0xd8] sm:$0xff]
      %v475 = vld [vmem:[#allocation2 + $0xe0] sm:$0xff]
      %v476 = vld [vmem:[#allocation2 + $0xe8] sm:$0xff]
      %v477 = vld [vmem:[#allocation2 + $0xf0] sm:$0xff]
      %v478 = vld [vmem:[#allocation2 + $0xf8] sm:$0xff]
      %v479 = vld [vmem:[%s1] sm:$0xff]
      %v480 = vld [vmem:[%s1 + $0x8] sm:$0xff]
      %v481 = vld [vmem:[%s1 + $0x10] sm:$0xff]
      %v482 = vld [vmem:[%s1 + $0x18] sm:$0xff]
      %v483 = vld [vmem:[%s1 + $0x20] sm:$0xff]
      %v484 = vld [vmem:[%s1 + $0x28] sm:$0xff]
      %v485 = vld [vmem:[%s1 + $0x30] sm:$0xff]
      %v486 = vld [vmem:[%s1 + $0x38] sm:$0xff]
      %v487 = vld [vmem:[%s1 + $0x40] sm:$0xff]
      %v488 = vld [vmem:[%s1 + $0x48] sm:$0xff]
      %v489 = vld [vmem:[%s1 + $0x50] sm:$0xff]
      %v490 = vld [vmem:[%s1 + $0x58] sm:$0xff]
      %v491 = vld [vmem:[%s1 + $0x60] sm:$0xff]
      %v492 = vld [vmem:[%s1 + $0x68] sm:$0xff]
      %v493 = vld [vmem:[%s1 + $0x70] sm:$0xff]
      %v494 = vld [vmem:[%s1 + $0x78] sm:$0xff]
      %v495 = vld [vmem:[%s1 + $0x80] sm:$0xff]
      %v496 = vld [vmem:[%s1 + $0x88] sm:$0xff]
      %v497 = vld [vmem:[%s1 + $0x90] sm:$0xff]
      %v498 = vld [vmem:[%s1 + $0x98] sm:$0xff]
      %v499 = vld [vmem:[%s1 + $0xa0] sm:$0xff]
      %v500 = vld [vmem:[%s1 + $0xa8] sm:$0xff]
      %v501 = vld [vmem:[%s1 + $0xb0] sm:$0xff]
      %v502 = vld [vmem:[%s1 + $0xb8] sm:$0xff]
      %v503 = vld [vmem:[%s1 + $0xc0] sm:$0xff]
      %v504 = vld [vmem:[%s1 + $0xc8] sm:$0xff]
      %v505 = vld [vmem:[%s1 + $0xd0] sm:$0xff]
      %v506 = vld [vmem:[%s1 + $0xd8] sm:$0xff]
      %v507 = vld [vmem:[%s1 + $0xe0] sm:$0xff]
      %v508 = vld [vmem:[%s1 + $0xe8] sm:$0xff]
      %v509 = vld [vmem:[%s1 + $0xf0] sm:$0xff]
      %v510 = vld [vmem:[%s1 + $0xf8] sm:$0xff]
      %v511 = vld [vmem:[%s1 + $0x100] sm:$0xff]
      %v512 = vld [vmem:[%s1 + $0x108] sm:$0xff]
      %v513 = vld [vmem:[%s1 + $0x110] sm:$0xff]
      %v514 = vld [vmem:[%s1 + $0x118] sm:$0xff]
      %v515 = vld [vmem:[%s1 + $0x120] sm:$0xff]
      %v516 = vld [vmem:[%s1 + $0x128] sm:$0xff]
      %v517 = vld [vmem:[%s1 + $0x130] sm:$0xff]
      %v518 = vld [vmem:[%s1 + $0x138] sm:$0xff]
      %v519 = vld [vmem:[%s1 + $0x140] sm:$0xff]
      %v520 = vld [vmem:[%s1 + $0x148] sm:$0xff]
      %v521 = vld [vmem:[%s1 + $0x150] sm:$0xff]
      %v522 = vld [vmem:[%s1 + $0x158] sm:$0xff]
      %v523 = vld [vmem:[%s1 + $0x160] sm:$0xff]
      %v524 = vld [vmem:[%s1 + $0x168] sm:$0xff]
      %v525 = vld [vmem:[%s1 + $0x170] sm:$0xff]
      %v526 = vld [vmem:[%s1 + $0x178] sm:$0xff]
      %527 = vmatprep.subr.mxu0 0.0
      %528 = vmatpush1.msra.mxu0 %v479
      %529 = vmatprep.subr.mxu0 0.0
      %530 = vmatpush1.msra.mxu0 %v480
      %531 = vmatprep.subr.mxu0 0.0
      %532 = vmatpush1.msra.mxu0 %v481
      %533 = vmatprep.subr.mxu0 0.0
      %534 = vmatpush1.msra.mxu0 %v482
      %535 = vmatprep.subr.mxu0 0.0
      %536 = vmatpush1.msra.mxu0 %v483
      %537 = vmatprep.subr.mxu0 0.0
      %538 = vmatpush1.msra.mxu0 %v484
      %539 = vmatprep.subr.mxu0 0.0
      %540 = vmatpush1.msra.mxu0 %v485
      %541 = vmatprep.subr.mxu0 0.0
      %542 = vmatpush1.msra.mxu0 %v486
      %543 = vmatprep.subr.mxu0 0.0
      %544 = vmatpush1.msra.mxu0 %v487
      %545 = vmatprep.subr.mxu0 0.0
      %546 = vmatpush1.msra.mxu0 %v488
      %547 = vmatprep.subr.mxu0 0.0
      %548 = vmatpush1.msra.mxu0 %v489
      %549 = vmatprep.subr.mxu0 0.0
      %550 = vmatpush1.msra.mxu0 %v490
      %551 = vmatprep.subr.mxu0 0.0
      %552 = vmatpush1.msra.mxu0 %v491
      %553 = vmatprep.subr.mxu0 0.0
      %554 = vmatpush1.msra.mxu0 %v492
      %555 = vmatprep.subr.mxu0 0.0
      %556 = vmatpush1.msra.mxu0 %v493
      %557 = vmatprep.subr.mxu0 0.0
      %558 = vmatpush1.msra.mxu0 %v494
      %559 = vmatprep.subr.mxu0 0.0
      %560 = vmatpush1.msra.mxu0 %v495
      %561 = vmatprep.subr.mxu0 0.0
      %562 = vmatpush1.msra.mxu0 %v496
      %563 = vmatprep.subr.mxu0 0.0
      %564 = vmatpush1.msra.mxu0 %v497
      %565 = vmatprep.subr.mxu0 0.0
      %566 = vmatpush1.msra.mxu0 %v498
      %567 = vmatprep.subr.mxu0 0.0
      %568 = vmatpush1.msra.mxu0 %v499
      %569 = vmatprep.subr.mxu0 0.0
      %570 = vmatpush1.msra.mxu0 %v500
      %571 = vmatprep.subr.mxu0 0.0
      %572 = vmatpush1.msra.mxu0 %v501
      %573 = vmatprep.subr.mxu0 0.0
      %574 = vmatpush1.msra.mxu0 %v502
      %575 = vmatprep.subr.mxu0 0.0
      %576 = vmatpush1.msra.mxu0 %v503
      %577 = vmatprep.subr.mxu0 0.0
      %578 = vmatpush1.msra.mxu0 %v504
      %579 = vmatprep.subr.mxu0 0.0
      %580 = vmatpush1.msra.mxu0 %v505
      %581 = vmatprep.subr.mxu0 0.0
      %582 = vmatpush1.msra.mxu0 %v506
      %583 = vmatprep.subr.mxu0 0.0
      %584 = vmatpush1.msra.mxu0 %v507
      %585 = vmatprep.subr.mxu0 0.0
      %586 = vmatpush1.msra.mxu0 %v508
      %587 = vmatprep.subr.mxu0 0.0
      %588 = vmatpush1.msra.mxu0 %v509
      %589 = vmatprep.subr.mxu0 0.0
      %590 = vmatpush1.msra.mxu0 %v510
      %591 = vmatprep.mubr.f32.mxu0 %v221
      %592 = vmatmul.mubr.f32.gmra.mrb[0].mxu0 %v318
      %v593 = vpop.f32.mrb[0].mxu0
      %v594 = vadd.f32 0.0, %v593
      %v595 = vpop.f32.mrb[0].mxu0
      %596 = vmatprep.mubr.f32.mxu0 %v222
      %597 = vmatmul.mubr.f32.gmra.mrb[0].mxu0 %v319
      %v598 = vpop.f32.mrb[0].mxu0
      %v599 = vadd.f32 0.0, %v598
      %v600 = vpop.f32.mrb[0].mxu0
      %601 = vmatprep.mubr.f32.mxu0 %v223
      %602 = vmatmul.mubr.f32.gmra.mrb[0].mxu0 %v320
      %v603 = vpop.f32.mrb[0].mxu0
      %v604 = vadd.f32 0.0, %v603
      %v605 = vpop.f32.mrb[0].mxu0
      %606 = vmatprep.mubr.f32.mxu0 %v224
      %607 = vmatmul.mubr.f32.gmra.mrb[0].mxu0 %v321
      %v608 = vpop.f32.mrb[0].mxu0
      %v609 = vadd.f32 0.0, %v608
      %v610 = vpop.f32.mrb[0].mxu0
      %611 = vmatprep.mubr.f32.mxu0 %v225
      %612 = vmatmul.mubr.f32.gmra.mrb[0].mxu0 %v322
      %v613 = vpop.f32.mrb[0].mxu0
      %v614 = vadd.f32 0.0, %v613
      %v615 = vpop.f32.mrb[0].mxu0
      %616 = vmatprep.mubr.f32.mxu0 %v226
      %617 = vmatmul.mubr.f32.gmra.mrb[0].mxu0 %v323
      %v618 = vpop.f32.mrb[0].mxu0
      %v619 = vadd.f32 0.0, %v618
      %v620 = vpop.f32.mrb[0].mxu0
      %621 = vmatprep.mubr.f32.mxu0 %v227
      %622 = vmatmul.mubr.f32.gmra.mrb[0].mxu0 %v324
      %v623 = vpop.f32.mrb[0].mxu0
      %v624 = vadd.f32 0.0, %v623
      %v625 = vpop.f32.mrb[0].mxu0
      %626 = vmatprep.mubr.f32.mxu0 %v228
      %627 = vmatmul.mubr.f32.gmra.mrb[0].mxu0 %v325
      %v628 = vpop.f32.mrb[0].mxu0
      %v629 = vadd.f32 0.0, %v628
      %v630 = vpop.f32.mrb[0].mxu0
      %631 = vmatprep.mubr.f32.mxu0 %v229
      %632 = vmatmul.mubr.f32.gmra.mrb[0].mxu0 %v326
      %v633 = vpop.f32.mrb[0].mxu0
      %v634 = vadd.f32 0.0, %v633
      %v635 = vpop.f32.mrb[0].mxu0
      %636 = vmatprep.mubr.f32.mxu0 %v230
      %637 = vmatmul.mubr.f32.gmra.mrb[0].mxu0 %v327
      %v638 = vpop.f32.mrb[0].mxu0
      %v639 = vadd.f32 0.0, %v638
      %v640 = vpop.f32.mrb[0].mxu0
      %641 = vmatprep.mubr.f32.mxu0 %v231
      %642 = vmatmul.mubr.f32.gmra.mrb[0].mxu0 %v328
      %v643 = vpop.f32.mrb[0].mxu0
      %v644 = vadd.f32 0.0, %v643
      %v645 = vpop.f32.mrb[0].mxu0
      %646 = vmatprep.mubr.f32.mxu0 %v232
      %647 = vmatmul.mubr.f32.gmra.mrb[0].mxu0 %v329
      %v648 = vpop.f32.mrb[0].mxu0
      %v649 = vadd.f32 0.0, %v648
      %v650 = vpop.f32.mrb[0].mxu0
      %651 = vmatprep.mubr.f32.mxu0 %v233
      %652 = vmatmul.mubr.f32.gmra.mrb[0].mxu0 %v330
      %v653 = vpop.f32.mrb[0].mxu0
      %v654 = vadd.f32 0.0, %v653
      %v655 = vpop.f32.mrb[0].mxu0
      %656 = vmatprep.mubr.f32.mxu0 %v234
      %657 = vmatmul.mubr.f32.gmra.mrb[0].mxu0 %v331
      %v658 = vpop.f32.mrb[0].mxu0
      %v659 = vadd.f32 0.0, %v658
      %v660 = vpop.f32.mrb[0].mxu0
      %661 = vmatprep.mubr.f32.mxu0 %v235
      %662 = vmatmul.mubr.f32.gmra.mrb[0].mxu0 %v332
      %v663 = vpop.f32.mrb[0].mxu0
      %v664 = vadd.f32 0.0, %v663
      %v665 = vpop.f32.mrb[0].mxu0
      %666 = vmatprep.mubr.f32.mxu0 %v236
      %667 = vmatmul.mubr.f32.gmra.mrb[0].mxu0 %v333
      %v668 = vpop.f32.mrb[0].mxu0
      %v669 = vadd.f32 0.0, %v668
      %v670 = vpop.f32.mrb[0].mxu0
      %671 = vmatprep.mubr.f32.mxu0 %v237
      %672 = vmatmul.mubr.f32.gmra.mrb[0].mxu0 %v334
      %v673 = vpop.f32.mrb[0].mxu0
      %v674 = vadd.f32 0.0, %v673
      %v675 = vpop.f32.mrb[0].mxu0
      %676 = vmatprep.mubr.f32.mxu0 %v238
      %677 = vmatmul.mubr.f32.gmra.mrb[0].mxu0 %v335
      %v678 = vpop.f32.mrb[0].mxu0
      %v679 = vadd.f32 0.0, %v678
      %v680 = vpop.f32.mrb[0].mxu0
      %681 = vmatprep.mubr.f32.mxu0 %v239
      %682 = vmatmul.mubr.f32.gmra.mrb[0].mxu0 %v336
      %v683 = vpop.f32.mrb[0].mxu0
      %v684 = vadd.f32 0.0, %v683
      %v685 = vpop.f32.mrb[0].mxu0
      %686 = vmatprep.mubr.f32.mxu0 %v240
      %687 = vmatmul.mubr.f32.gmra.mrb[0].mxu0 %v337
      %v688 = vpop.f32.mrb[0].mxu0
      %v689 = vadd.f32 0.0, %v688
      %v690 = vpop.f32.mrb[0].mxu0
      %691 = vmatprep.mubr.f32.mxu0 %v241
      %692 = vmatmul.mubr.f32.gmra.mrb[0].mxu0 %v338
      %v693 = vpop.f32.mrb[0].mxu0
      %v694 = vadd.f32 0.0, %v693
      %v695 = vpop.f32.mrb[0].mxu0
      %696 = vmatprep.mubr.f32.mxu0 %v242
      %697 = vmatmul.mubr.f32.gmra.mrb[0].mxu0 %v339
      %v698 = vpop.f32.mrb[0].mxu0
      %v699 = vadd.f32 0.0, %v698
      %v700 = vpop.f32.mrb[0].mxu0
      %701 = vmatprep.mubr.f32.mxu0 %v243
      %702 = vmatmul.mubr.f32.gmra.mrb[0].mxu0 %v340
      %v703 = vpop.f32.mrb[0].mxu0
      %v704 = vadd.f32 0.0, %v703
      %v705 = vpop.f32.mrb[0].mxu0
      %706 = vmatprep.mubr.f32.mxu0 %v244
      %707 = vmatmul.mubr.f32.gmra.mrb[0].mxu0 %v341
      %v708 = vpop.f32.mrb[0].mxu0
      %v709 = vadd.f32 0.0, %v708
      %v710 = vpop.f32.mrb[0].mxu0
      %711 = vmatprep.mubr.f32.mxu0 %v245
      %712 = vmatmul.mubr.f32.gmra.mrb[0].mxu0 %v342
      %v713 = vpop.f32.mrb[0].mxu0
      %v714 = vadd.f32 0.0, %v713
      %v715 = vpop.f32.mrb[0].mxu0
      %716 = vmatprep.mubr.f32.mxu0 %v246
      %717 = vmatmul.mubr.f32.gmra.mrb[0].mxu0 %v343
      %v718 = vpop.f32.mrb[0].mxu0
      %v719 = vadd.f32 0.0, %v718
      %v720 = vpop.f32.mrb[0].mxu0
      %721 = vmatprep.mubr.f32.mxu0 %v247
      %722 = vmatmul.mubr.f32.gmra.mrb[0].mxu0 %v344
      %v723 = vpop.f32.mrb[0].mxu0
      %v724 = vadd.f32 0.0, %v723
      %v725 = vpop.f32.mrb[0].mxu0
      %726 = vmatprep.mubr.f32.mxu0 %v248
      %727 = vmatmul.mubr.f32.gmra.mrb[0].mxu0 %v345
      %v728 = vpop.f32.mrb[0].mxu0
      %v729 = vadd.f32 0.0, %v728
      %v730 = vpop.f32.mrb[0].mxu0
      %731 = vmatprep.mubr.f32.mxu0 %v249
      %732 = vmatmul.mubr.f32.gmra.mrb[0].mxu0 %v346
      %v733 = vpop.f32.mrb[0].mxu0
      %v734 = vadd.f32 0.0, %v733
      %v735 = vpop.f32.mrb[0].mxu0
      %736 = vmatprep.mubr.f32.mxu0 %v250
      %737 = vmatmul.mubr.f32.gmra.mrb[0].mxu0 %v347
      %v738 = vpop.f32.mrb[0].mxu0
      %v739 = vadd.f32 0.0, %v738
      %v740 = vpop.f32.mrb[0].mxu0
      %741 = vmatprep.mubr.f32.mxu0 %v251
      %742 = vmatmul.mubr.f32.gmra.mrb[0].mxu0 %v348
      %v743 = vpop.f32.mrb[0].mxu0
      %v744 = vadd.f32 0.0, %v743
      %v745 = vpop.f32.mrb[0].mxu0
      %746 = vmatprep.mubr.f32.mxu0 %v252
      %747 = vmatmul.mubr.f32.gmra.mrb[0].mxu0 %v349
      %v748 = vpop.f32.mrb[0].mxu0
      %v749 = vadd.f32 0.0, %v748
      %v750 = vpop.f32.mrb[0].mxu0
      %751 = vdwg.mxu0
      %752 = vmatprep.subr.mxu0 0.0
      %753 = vmatpush1.msra.mxu0 %v511
      %754 = vmatprep.subr.mxu0 0.0
      %755 = vmatpush1.msra.mxu0 %v512
      %756 = vmatprep.subr.mxu0 0.0
      %757 = vmatpush1.msra.mxu0 %v513
      %758 = vmatprep.subr.mxu0 0.0
      %759 = vmatpush1.msra.mxu0 %v514
      %760 = vmatprep.subr.mxu0 0.0
      %761 = vmatpush1.msra.mxu0 %v515
      %762 = vmatprep.subr.mxu0 0.0
      %763 = vmatpush1.msra.mxu0 %v516
      %764 = vmatprep.subr.mxu0 0.0
      %765 = vmatpush1.msra.mxu0 %v517
      %766 = vmatprep.subr.mxu0 0.0
      %767 = vmatpush1.msra.mxu0 %v518
      %768 = vmatprep.subr.mxu0 0.0
      %769 = vmatpush1.msra.mxu0 %v519
      %770 = vmatprep.subr.mxu0 0.0
      %771 = vmatpush1.msra.mxu0 %v520
      %772 = vmatprep.subr.mxu0 0.0
      %773 = vmatpush1.msra.mxu0 %v521
      %774 = vmatprep.subr.mxu0 0.0
      %775 = vmatpush1.msra.mxu0 %v522
      %776 = vmatprep.subr.mxu0 0.0
      %777 = vmatpush1.msra.mxu0 %v523
      %778 = vmatprep.subr.mxu0 0.0
      %779 = vmatpush1.msra.mxu0 %v524
      %780 = vmatprep.subr.mxu0 0.0
      %781 = vmatpush1.msra.mxu0 %v525
      %782 = vmatprep.subr.mxu0 0.0
      %783 = vmatpush1.msra.mxu0 %v526
      %784 = vmatprep.subr.mxu0 0.0
      %785 = vmatpush1.msra.mxu0 0.0
      %786 = vmatprep.subr.mxu0 0.0
      %787 = vmatpush1.msra.mxu0 0.0
      %788 = vmatprep.subr.mxu0 0.0
      %789 = vmatpush1.msra.mxu0 0.0
      %790 = vmatprep.subr.mxu0 0.0
      %791 = vmatpush1.msra.mxu0 0.0
      %792 = vmatprep.subr.mxu0 0.0
      %793 = vmatpush1.msra.mxu0 0.0
      %794 = vmatprep.subr.mxu0 0.0
      %795 = vmatpush1.msra.mxu0 0.0
      %796 = vmatprep.subr.mxu0 0.0
      %797 = vmatpush1.msra.mxu0 0.0
      %798 = vmatprep.subr.mxu0 0.0
      %799 = vmatpush1.msra.mxu0 0.0
      %800 = vmatprep.subr.mxu0 0.0
      %801 = vmatpush1.msra.mxu0 0.0
      %802 = vmatprep.subr.mxu0 0.0
      %803 = vmatpush1.msra.mxu0 0.0
      %804 = vmatprep.subr.mxu0 0.0
      %805 = vmatpush1.msra.mxu0 0.0
      %806 = vmatprep.subr.mxu0 0.0
      %807 = vmatpush1.msra.mxu0 0.0
      %808 = vmatprep.subr.mxu0 0.0
      %809 = vmatpush1.msra.mxu0 0.0
      %810 = vmatprep.subr.mxu0 0.0
      %811 = vmatpush1.msra.mxu0 0.0
      %812 = vmatprep.subr.mxu0 0.0
      %813 = vmatpush1.msra.mxu0 0.0
      %814 = vmatprep.subr.mxu0 0.0
      %815 = vmatpush1.msra.mxu0 0.0
      %816 = vmatprep.mubr.f32.mxu0 0.0
      %817 = vmatmul.mubr.f32.gmra.mrb[0].mxu0 %v415
      %v818 = vpop.f32.mrb[0].mxu0
      %v819 = vadd.f32 %v594, %v818
      %v820 = vpop.f32.mrb[0].mxu0
      %821 = vmatprep.mubr.f32.mxu0 0.0
      %822 = vmatmul.mubr.f32.gmra.mrb[0].mxu0 %v416
      %v823 = vpop.f32.mrb[0].mxu0
      %v824 = vadd.f32 %v599, %v823
      %v825 = vpop.f32.mrb[0].mxu0
      %826 = vmatprep.mubr.f32.mxu0 0.0
      %827 = vmatmul.mubr.f32.gmra.mrb[0].mxu0 %v417
      %v828 = vpop.f32.mrb[0].mxu0
      %v829 = vadd.f32 %v604, %v828
      %v830 = vpop.f32.mrb[0].mxu0
      %831 = vmatprep.mubr.f32.mxu0 0.0
      %832 = vmatmul.mubr.f32.gmra.mrb[0].mxu0 %v418
      %v833 = vpop.f32.mrb[0].mxu0
      %v834 = vadd.f32 %v609, %v833
      %v835 = vpop.f32.mrb[0].mxu0
      %836 = vmatprep.mubr.f32.mxu0 0.0
      %837 = vmatmul.mubr.f32.gmra.mrb[0].mxu0 %v419
      %v838 = vpop.f32.mrb[0].mxu0
      %v839 = vadd.f32 %v614, %v838
      %v840 = vpop.f32.mrb[0].mxu0
      %841 = vmatprep.mubr.f32.mxu0 0.0
      %842 = vmatmul.mubr.f32.gmra.mrb[0].mxu0 %v420
      %v843 = vpop.f32.mrb[0].mxu0
      %v844 = vadd.f32 %v619, %v843
      %v845 = vpop.f32.mrb[0].mxu0
      %846 = vmatprep.mubr.f32.mxu0 0.0
      %847 = vmatmul.mubr.f32.gmra.mrb[0].mxu0 %v421
      %v848 = vpop.f32.mrb[0].mxu0
      %v849 = vadd.f32 %v624, %v848
      %v850 = vpop.f32.mrb[0].mxu0
      %851 = vmatprep.mubr.f32.mxu0 0.0
      %852 = vmatmul.mubr.f32.gmra.mrb[0].mxu0 %v422
      %v853 = vpop.f32.mrb[0].mxu0
      %v854 = vadd.f32 %v629, %v853
      %v855 = vpop.f32.mrb[0].mxu0
      %856 = vmatprep.mubr.f32.mxu0 0.0
      %857 = vmatmul.mubr.f32.gmra.mrb[0].mxu0 %v423
      %v858 = vpop.f32.mrb[0].mxu0
      %v859 = vadd.f32 %v634, %v858
      %v860 = vpop.f32.mrb[0].mxu0
      %861 = vmatprep.mubr.f32.mxu0 0.0
      %862 = vmatmul.mubr.f32.gmra.mrb[0].mxu0 %v424
      %v863 = vpop.f32.mrb[0].mxu0
      %v864 = vadd.f32 %v639, %v863
      %v865 = vpop.f32.mrb[0].mxu0
      %866 = vmatprep.mubr.f32.mxu0 0.0
      %867 = vmatmul.mubr.f32.gmra.mrb[0].mxu0 %v425
      %v868 = vpop.f32.mrb[0].mxu0
      %v869 = vadd.f32 %v644, %v868
      %v870 = vpop.f32.mrb[0].mxu0
      %871 = vmatprep.mubr.f32.mxu0 0.0
      %872 = vmatmul.mubr.f32.gmra.mrb[0].mxu0 %v426
      %v873 = vpop.f32.mrb[0].mxu0
      %v874 = vadd.f32 %v649, %v873
      %v875 = vpop.f32.mrb[0].mxu0
      %876 = vmatprep.mubr.f32.mxu0 0.0
      %877 = vmatmul.mubr.f32.gmra.mrb[0].mxu0 %v427
      %v878 = vpop.f32.mrb[0].mxu0
      %v879 = vadd.f32 %v654, %v878
      %v880 = vpop.f32.mrb[0].mxu0
      %881 = vmatprep.mubr.f32.mxu0 0.0
      %882 = vmatmul.mubr.f32.gmra.mrb[0].mxu0 %v428
      %v883 = vpop.f32.mrb[0].mxu0
      %v884 = vadd.f32 %v659, %v883
      %v885 = vpop.f32.mrb[0].mxu0
      %886 = vmatprep.mubr.f32.mxu0 0.0
      %887 = vmatmul.mubr.f32.gmra.mrb[0].mxu0 %v429
      %v888 = vpop.f32.mrb[0].mxu0
      %v889 = vadd.f32 %v664, %v888
      %v890 = vpop.f32.mrb[0].mxu0
      %891 = vmatprep.mubr.f32.mxu0 0.0
      %892 = vmatmul.mubr.f32.gmra.mrb[0].mxu0 %v430
      %v893 = vpop.f32.mrb[0].mxu0
      %v894 = vadd.f32 %v669, %v893
      %v895 = vpop.f32.mrb[0].mxu0
      %896 = vmatprep.mubr.f32.mxu0 0.0
      %897 = vmatmul.mubr.f32.gmra.mrb[0].mxu0 %v431
      %v898 = vpop.f32.mrb[0].mxu0
      %v899 = vadd.f32 %v674, %v898
      %v900 = vpop.f32.mrb[0].mxu0
      %901 = vmatprep.mubr.f32.mxu0 0.0
      %902 = vmatmul.mubr.f32.gmra.mrb[0].mxu0 %v432
      %v903 = vpop.f32.mrb[0].mxu0
      %v904 = vadd.f32 %v679, %v903
      %v905 = vpop.f32.mrb[0].mxu0
      %906 = vmatprep.mubr.f32.mxu0 0.0
      %907 = vmatmul.mubr.f32.gmra.mrb[0].mxu0 %v433
      %v908 = vpop.f32.mrb[0].mxu0
      %v909 = vadd.f32 %v684, %v908
      %v910 = vpop.f32.mrb[0].mxu0
      %911 = vmatprep.mubr.f32.mxu0 0.0
      %912 = vmatmul.mubr.f32.gmra.mrb[0].mxu0 %v434
      %v913 = vpop.f32.mrb[0].mxu0
      %v914 = vadd.f32 %v689, %v913
      %v915 = vpop.f32.mrb[0].mxu0
      %916 = vmatprep.mubr.f32.mxu0 0.0
      %917 = vmatmul.mubr.f32.gmra.mrb[0].mxu0 %v435
      %v918 = vpop.f32.mrb[0].mxu0
      %v919 = vadd.f32 %v694, %v918
      %v920 = vpop.f32.mrb[0].mxu0
      %921 = vmatprep.mubr.f32.mxu0 0.0
      %922 = vmatmul.mubr.f32.gmra.mrb[0].mxu0 %v436
      %v923 = vpop.f32.mrb[0].mxu0
      %v924 = vadd.f32 %v699, %v923
      %v925 = vpop.f32.mrb[0].mxu0
      %926 = vmatprep.mubr.f32.mxu0 0.0
      %927 = vmatmul.mubr.f32.gmra.mrb[0].mxu0 %v437
      %v928 = vpop.f32.mrb[0].mxu0
      %v929 = vadd.f32 %v704, %v928
      %v930 = vpop.f32.mrb[0].mxu0
      %931 = vmatprep.mubr.f32.mxu0 0.0
      %932 = vmatmul.mubr.f32.gmra.mrb[0].mxu0 %v438
      %v933 = vpop.f32.mrb[0].mxu0
      %v934 = vadd.f32 %v709, %v933
      %v935 = vpop.f32.mrb[0].mxu0
      %936 = vmatprep.mubr.f32.mxu0 0.0
      %937 = vmatmul.mubr.f32.gmra.mrb[0].mxu0 %v439
      %v938 = vpop.f32.mrb[0].mxu0
      %v939 = vadd.f32 %v714, %v938
      %v940 = vpop.f32.mrb[0].mxu0
      %941 = vmatprep.mubr.f32.mxu0 0.0
      %942 = vmatmul.mubr.f32.gmra.mrb[0].mxu0 %v440
      %v943 = vpop.f32.mrb[0].mxu0
      %v944 = vadd.f32 %v719, %v943
      %v945 = vpop.f32.mrb[0].mxu0
      %946 = vmatprep.mubr.f32.mxu0 0.0
      %947 = vmatmul.mubr.f32.gmra.mrb[0].mxu0 %v441
      %v948 = vpop.f32.mrb[0].mxu0
      %v949 = vadd.f32 %v724, %v948
      %v950 = vpop.f32.mrb[0].mxu0
      %951 = vmatprep.mubr.f32.mxu0 0.0
      %952 = vmatmul.mubr.f32.gmra.mrb[0].mxu0 %v442
      %v953 = vpop.f32.mrb[0].mxu0
      %v954 = vadd.f32 %v729, %v953
      %v955 = vpop.f32.mrb[0].mxu0
      %956 = vmatprep.mubr.f32.mxu0 0.0
      %957 = vmatmul.mubr.f32.gmra.mrb[0].mxu0 %v443
      %v958 = vpop.f32.mrb[0].mxu0
      %v959 = vadd.f32 %v734, %v958
      %v960 = vpop.f32.mrb[0].mxu0
      %961 = vmatprep.mubr.f32.mxu0 0.0
      %962 = vmatmul.mubr.f32.gmra.mrb[0].mxu0 %v444
      %v963 = vpop.f32.mrb[0].mxu0
      %v964 = vadd.f32 %v739, %v963
      %v965 = vpop.f32.mrb[0].mxu0
      %966 = vmatprep.mubr.f32.mxu0 0.0
      %967 = vmatmul.mubr.f32.gmra.mrb[0].mxu0 %v445
      %v968 = vpop.f32.mrb[0].mxu0
      %v969 = vadd.f32 %v744, %v968
      %v970 = vpop.f32.mrb[0].mxu0
      %971 = vmatprep.mubr.f32.mxu0 0.0
      %972 = vmatmul.mubr.f32.gmra.mrb[0].mxu0 %v446
      %v973 = vpop.f32.mrb[0].mxu0
      %v974 = vadd.f32 %v749, %v973
      %v975 = vpop.f32.mrb[0].mxu0
      %976 = vdwg.mxu0
      %v977 = vadd.f32 %v447, %v819
      %v978 = vadd.f32 %v448, %v824
      %v979 = vadd.f32 %v449, %v829
      %v980 = vadd.f32 %v450, %v834
      %v981 = vadd.f32 %v451, %v839
      %v982 = vadd.f32 %v452, %v844
      %v983 = vadd.f32 %v453, %v849
      %v984 = vadd.f32 %v454, %v854
      %v985 = vadd.f32 %v455, %v859
      %v986 = vadd.f32 %v456, %v864
      %v987 = vadd.f32 %v457, %v869
      %v988 = vadd.f32 %v458, %v874
      %v989 = vadd.f32 %v459, %v879
      %v990 = vadd.f32 %v460, %v884
      %v991 = vadd.f32 %v461, %v889
      %v992 = vadd.f32 %v462, %v894
      %v993 = vadd.f32 %v463, %v899
      %v994 = vadd.f32 %v464, %v904
      %v995 = vadd.f32 %v465, %v909
      %v996 = vadd.f32 %v466, %v914
      %v997 = vadd.f32 %v467, %v919
      %v998 = vadd.f32 %v468, %v924
      %v999 = vadd.f32 %v469, %v929
      %v1000 = vadd.f32 %v470, %v934
      %v1001 = vadd.f32 %v471, %v939
      %v1002 = vadd.f32 %v472, %v944
      %v1003 = vadd.f32 %v473, %v949
      %v1004 = vadd.f32 %v474, %v954
      %v1005 = vadd.f32 %v475, %v959
      %v1006 = vadd.f32 %v476, %v964
      %v1007 = vadd.f32 %v477, %v969
      %v1008 = vadd.f32 %v478, %v974
      %1009 = vst [vmem:[#allocation2] sm:$0xff] %v977
      %1010 = vst [vmem:[#allocation2 + $0x8] sm:$0xff] %v978
      %1011 = vst [vmem:[#allocation2 + $0x10] sm:$0xff] %v979
      %1012 = vst [vmem:[#allocation2 + $0x18] sm:$0xff] %v980
      %1013 = vst [vmem:[#allocation2 + $0x20] sm:$0xff] %v981
      %1014 = vst [vmem:[#allocation2 + $0x28] sm:$0xff] %v982
      %1015 = vst [vmem:[#allocation2 + $0x30] sm:$0xff] %v983
      %1016 = vst [vmem:[#allocation2 + $0x38] sm:$0xff] %v984
      %1017 = vst [vmem:[#allocation2 + $0x40] sm:$0xff] %v985
      %1018 = vst [vmem:[#allocation2 + $0x48] sm:$0xff] %v986
      %1019 = vst [vmem:[#allocation2 + $0x50] sm:$0xff] %v987
      %1020 = vst [vmem:[#allocation2 + $0x58] sm:$0xff] %v988
      %1021 = vst [vmem:[#allocation2 + $0x60] sm:$0xff] %v989
      %1022 = vst [vmem:[#allocation2 + $0x68] sm:$0xff] %v990
      %1023 = vst [vmem:[#allocation2 + $0x70] sm:$0xff] %v991
      %1024 = vst [vmem:[#allocation2 + $0x78] sm:$0xff] %v992
      %1025 = vst [vmem:[#allocation2 + $0x80] sm:$0xff] %v993
      %1026 = vst [vmem:[#allocation2 + $0x88] sm:$0xff] %v994
      %1027 = vst [vmem:[#allocation2 + $0x90] sm:$0xff] %v995
      %1028 = vst [vmem:[#allocation2 + $0x98] sm:$0xff] %v996
      %1029 = vst [vmem:[#allocation2 + $0xa0] sm:$0xff] %v997
      %1030 = vst [vmem:[#allocation2 + $0xa8] sm:$0xff] %v998
      %1031 = vst [vmem:[#allocation2 + $0xb0] sm:$0xff] %v999
      %1032 = vst [vmem:[#allocation2 + $0xb8] sm:$0xff] %v1000
      %1033 = vst [vmem:[#allocation2 + $0xc0] sm:$0xff] %v1001
      %1034 = vst [vmem:[#allocation2 + $0xc8] sm:$0xff] %v1002
      %1035 = vst [vmem:[#allocation2 + $0xd0] sm:$0xff] %v1003
      %1036 = vst [vmem:[#allocation2 + $0xd8] sm:$0xff] %v1004
      %1037 = vst [vmem:[#allocation2 + $0xe0] sm:$0xff] %v1005
      %1038 = vst [vmem:[#allocation2 + $0xe8] sm:$0xff] %v1006
      %1039 = vst [vmem:[#allocation2 + $0xf0] sm:$0xff] %v1007
      %1040 = vst [vmem:[#allocation2 + $0xf8] sm:$0xff] %v1008
      %s1041 = scalar_lea.vmem %s172, 16
      %v1042 = vld [vmem:[%s1041] sm:$0xff]
      %v1043 = vld [vmem:[%s1041 + $0x8] sm:$0xff]
      %v1044 = vld [vmem:[%s1041 + $0x10] sm:$0xff]
      %v1045 = vld [vmem:[%s1041 + $0x18] sm:$0xff]
      %v1046 = vld [vmem:[%s1041 + $0x20] sm:$0xff]
      %v1047 = vld [vmem:[%s1041 + $0x28] sm:$0xff]
      %v1048 = vld [vmem:[%s1041 + $0x30] sm:$0xff]
      %v1049 = vld [vmem:[%s1041 + $0x38] sm:$0xff]
      %v1050 = vld [vmem:[%s1041 + $0x40] sm:$0xff]
      %v1051 = vld [vmem:[%s1041 + $0x48] sm:$0xff]
      %v1052 = vld [vmem:[%s1041 + $0x50] sm:$0xff]
      %v1053 = vld [vmem:[%s1041 + $0x58] sm:$0xff]
      %v1054 = vld [vmem:[%s1041 + $0x60] sm:$0xff]
      %v1055 = vld [vmem:[%s1041 + $0x68] sm:$0xff]
      %v1056 = vld [vmem:[%s1041 + $0x70] sm:$0xff]
      %v1057 = vld [vmem:[%s1041 + $0x78] sm:$0xff]
      %v1058 = vld [vmem:[%s1041 + $0x80] sm:$0xff]
      %v1059 = vld [vmem:[%s1041 + $0x88] sm:$0xff]
      %v1060 = vld [vmem:[%s1041 + $0x90] sm:$0xff]
      %v1061 = vld [vmem:[%s1041 + $0x98] sm:$0xff]
      %v1062 = vld [vmem:[%s1041 + $0xa0] sm:$0xff]
      %v1063 = vld [vmem:[%s1041 + $0xa8] sm:$0xff]
      %v1064 = vld [vmem:[%s1041 + $0xb0] sm:$0xff]
      %v1065 = vld [vmem:[%s1041 + $0xb8] sm:$0xff]
      %v1066 = vld [vmem:[%s1041 + $0xc0] sm:$0xff]
      %v1067 = vld [vmem:[%s1041 + $0xc8] sm:$0xff]
      %v1068 = vld [vmem:[%s1041 + $0xd0] sm:$0xff]
      %v1069 = vld [vmem:[%s1041 + $0xd8] sm:$0xff]
      %v1070 = vld [vmem:[%s1041 + $0xe0] sm:$0xff]
      %v1071 = vld [vmem:[%s1041 + $0xe8] sm:$0xff]
      %v1072 = vld [vmem:[%s1041 + $0xf0] sm:$0xff]
      %v1073 = vld [vmem:[%s1041 + $0xf8] sm:$0xff]
      %v1074 = vrot.slane %v1042, 7
      %v1075 = vrot.slane %v1043, 7
      %v1076 = vrot.slane %v1044, 7
      %v1077 = vrot.slane %v1045, 7
      %v1078 = vrot.slane %v1046, 7
      %v1079 = vrot.slane %v1047, 7
      %v1080 = vrot.slane %v1048, 7
      %v1081 = vrot.slane %v1049, 7
      %v1082 = vrot.slane %v1050, 7
      %v1083 = vrot.slane %v1051, 7
      %v1084 = vrot.slane %v1052, 7
      %v1085 = vrot.slane %v1053, 7
      %v1086 = vrot.slane %v1054, 7
      %v1087 = vrot.slane %v1055, 7
      %v1088 = vrot.slane %v1056, 7
      %v1089 = vrot.slane %v1057, 7
      %v1090 = vrot.slane %v1058, 7
      %v1091 = vrot.slane %v1059, 7
      %v1092 = vrot.slane %v1060, 7
      %v1093 = vrot.slane %v1061, 7
      %v1094 = vrot.slane %v1062, 7
      %v1095 = vrot.slane %v1063, 7
      %v1096 = vrot.slane %v1064, 7
      %v1097 = vrot.slane %v1065, 7
      %v1098 = vrot.slane %v1066, 7
      %v1099 = vrot.slane %v1067, 7
      %v1100 = vrot.slane %v1068, 7
      %v1101 = vrot.slane %v1069, 7
      %v1102 = vrot.slane %v1070, 7
      %v1103 = vrot.slane %v1071, 7
      %v1104 = vrot.slane %v1072, 7
      %v1105 = vrot.slane %v1073, 7
      %v1106 = vsel %vm285, %v1104, %v1105
      %v1107 = vsel %vm285, %v1103, %v1104
      %v1108 = vsel %vm285, %v1102, %v1103
      %v1109 = vsel %vm285, %v1101, %v1102
      %v1110 = vsel %vm285, %v1100, %v1101
      %v1111 = vsel %vm285, %v1099, %v1100
      %v1112 = vsel %vm285, %v1098, %v1099
      %v1113 = vsel %vm285, %v1097, %v1098
      %v1114 = vsel %vm285, %v1096, %v1097
      %v1115 = vsel %vm285, %v1095, %v1096
      %v1116 = vsel %vm285, %v1094, %v1095
      %v1117 = vsel %vm285, %v1093, %v1094
      %v1118 = vsel %vm285, %v1092, %v1093
      %v1119 = vsel %vm285, %v1091, %v1092
      %v1120 = vsel %vm285, %v1090, %v1091
      %v1121 = vsel %vm285, %v1089, %v1090
      %v1122 = vsel %vm285, %v1088, %v1089
      %v1123 = vsel %vm285, %v1087, %v1088
      %v1124 = vsel %vm285, %v1086, %v1087
      %v1125 = vsel %vm285, %v1085, %v1086
      %v1126 = vsel %vm285, %v1084, %v1085
      %v1127 = vsel %vm285, %v1083, %v1084
      %v1128 = vsel %vm285, %v1082, %v1083
      %v1129 = vsel %vm285, %v1081, %v1082
      %v1130 = vsel %vm285, %v1080, %v1081
      %v1131 = vsel %vm285, %v1079, %v1080
      %v1132 = vsel %vm285, %v1078, %v1079
      %v1133 = vsel %vm285, %v1077, %v1078
      %v1134 = vsel %vm285, %v1076, %v1077
      %v1135 = vsel %vm285, %v1075, %v1076
      %v1136 = vsel %vm285, %v1074, %v1075
      %v1137 = vsel %vm285, %v1105, %v1074
      %v1138 = vsel %vm185, %v1137, 0.0
      %v1139 = vsel %vm186, %v1136, 0.0
      %v1140 = vsel %vm185, %v1135, 0.0
      %v1141 = vsel %vm186, %v1134, 0.0
      %v1142 = vsel %vm185, %v1133, 0.0
      %v1143 = vsel %vm186, %v1132, 0.0
      %v1144 = vsel %vm185, %v1131, 0.0
      %v1145 = vsel %vm186, %v1130, 0.0
      %v1146 = vsel %vm185, %v1129, 0.0
      %v1147 = vsel %vm186, %v1128, 0.0
      %v1148 = vsel %vm185, %v1127, 0.0
      %v1149 = vsel %vm186, %v1126, 0.0
      %v1150 = vsel %vm185, %v1125, 0.0
      %v1151 = vsel %vm186, %v1124, 0.0
      %v1152 = vsel %vm185, %v1123, 0.0
      %v1153 = vsel %vm186, %v1122, 0.0
      %v1154 = vsel %vm185, %v1121, 0.0
      %v1155 = vsel %vm186, %v1120, 0.0
      %v1156 = vsel %vm185, %v1119, 0.0
      %v1157 = vsel %vm186, %v1118, 0.0
      %v1158 = vsel %vm185, %v1117, 0.0
      %v1159 = vsel %vm186, %v1116, 0.0
      %v1160 = vsel %vm185, %v1115, 0.0
      %v1161 = vsel %vm186, %v1114, 0.0
      %v1162 = vsel %vm185, %v1113, 0.0
      %v1163 = vsel %vm186, %v1112, 0.0
      %v1164 = vsel %vm185, %v1111, 0.0
      %v1165 = vsel %vm186, %v1110, 0.0
      %v1166 = vsel %vm185, %v1109, 0.0
      %v1167 = vsel %vm186, %v1108, 0.0
      %v1168 = vsel %vm185, %v1107, 0.0
      %v1169 = vsel %vm186, %v1106, 0.0
      %v1170 = vrot.slane %v1042, 1
      %v1171 = vrot.slane %v1043, 1
      %v1172 = vrot.slane %v1044, 1
      %v1173 = vrot.slane %v1045, 1
      %v1174 = vrot.slane %v1046, 1
      %v1175 = vrot.slane %v1047, 1
      %v1176 = vrot.slane %v1048, 1
      %v1177 = vrot.slane %v1049, 1
      %v1178 = vrot.slane %v1050, 1
      %v1179 = vrot.slane %v1051, 1
      %v1180 = vrot.slane %v1052, 1
      %v1181 = vrot.slane %v1053, 1
      %v1182 = vrot.slane %v1054, 1
      %v1183 = vrot.slane %v1055, 1
      %v1184 = vrot.slane %v1056, 1
      %v1185 = vrot.slane %v1057, 1
      %v1186 = vrot.slane %v1058, 1
      %v1187 = vrot.slane %v1059, 1
      %v1188 = vrot.slane %v1060, 1
      %v1189 = vrot.slane %v1061, 1
      %v1190 = vrot.slane %v1062, 1
      %v1191 = vrot.slane %v1063, 1
      %v1192 = vrot.slane %v1064, 1
      %v1193 = vrot.slane %v1065, 1
      %v1194 = vrot.slane %v1066, 1
      %v1195 = vrot.slane %v1067, 1
      %v1196 = vrot.slane %v1068, 1
      %v1197 = vrot.slane %v1069, 1
      %v1198 = vrot.slane %v1070, 1
      %v1199 = vrot.slane %v1071, 1
      %v1200 = vrot.slane %v1072, 1
      %v1201 = vrot.slane %v1073, 1
      %v1202 = vsel %vm382, %v1200, %v1201
      %v1203 = vsel %vm382, %v1199, %v1200
      %v1204 = vsel %vm382, %v1198, %v1199
      %v1205 = vsel %vm382, %v1197, %v1198
      %v1206 = vsel %vm382, %v1196, %v1197
      %v1207 = vsel %vm382, %v1195, %v1196
      %v1208 = vsel %vm382, %v1194, %v1195
      %v1209 = vsel %vm382, %v1193, %v1194
      %v1210 = vsel %vm382, %v1192, %v1193
      %v1211 = vsel %vm382, %v1191, %v1192
      %v1212 = vsel %vm382, %v1190, %v1191
      %v1213 = vsel %vm382, %v1189, %v1190
      %v1214 = vsel %vm382, %v1188, %v1189
      %v1215 = vsel %vm382, %v1187, %v1188
      %v1216 = vsel %vm382, %v1186, %v1187
      %v1217 = vsel %vm382, %v1185, %v1186
      %v1218 = vsel %vm382, %v1184, %v1185
      %v1219 = vsel %vm382, %v1183, %v1184
      %v1220 = vsel %vm382, %v1182, %v1183
      %v1221 = vsel %vm382, %v1181, %v1182
      %v1222 = vsel %vm382, %v1180, %v1181
      %v1223 = vsel %vm382, %v1179, %v1180
      %v1224 = vsel %vm382, %v1178, %v1179
      %v1225 = vsel %vm382, %v1177, %v1178
      %v1226 = vsel %vm382, %v1176, %v1177
      %v1227 = vsel %vm382, %v1175, %v1176
      %v1228 = vsel %vm382, %v1174, %v1175
      %v1229 = vsel %vm382, %v1173, %v1174
      %v1230 = vsel %vm382, %v1172, %v1173
      %v1231 = vsel %vm382, %v1171, %v1172
      %v1232 = vsel %vm382, %v1170, %v1171
      %v1233 = vsel %vm382, %v1201, %v1170
      %v1234 = vsel %vm187, %v1232, 0.0
      %v1235 = vsel %vm188, %v1231, 0.0
      %v1236 = vsel %vm187, %v1230, 0.0
      %v1237 = vsel %vm188, %v1229, 0.0
      %v1238 = vsel %vm187, %v1228, 0.0
      %v1239 = vsel %vm188, %v1227, 0.0
      %v1240 = vsel %vm187, %v1226, 0.0
      %v1241 = vsel %vm188, %v1225, 0.0
      %v1242 = vsel %vm187, %v1224, 0.0
      %v1243 = vsel %vm188, %v1223, 0.0
      %v1244 = vsel %vm187, %v1222, 0.0
      %v1245 = vsel %vm188, %v1221, 0.0
      %v1246 = vsel %vm187, %v1220, 0.0
      %v1247 = vsel %vm188, %v1219, 0.0
      %v1248 = vsel %vm187, %v1218, 0.0
      %v1249 = vsel %vm188, %v1217, 0.0
      %v1250 = vsel %vm187, %v1216, 0.0
      %v1251 = vsel %vm188, %v1215, 0.0
      %v1252 = vsel %vm187, %v1214, 0.0
      %v1253 = vsel %vm188, %v1213, 0.0
      %v1254 = vsel %vm187, %v1212, 0.0
      %v1255 = vsel %vm188, %v1211, 0.0
      %v1256 = vsel %vm187, %v1210, 0.0
      %v1257 = vsel %vm188, %v1209, 0.0
      %v1258 = vsel %vm187, %v1208, 0.0
      %v1259 = vsel %vm188, %v1207, 0.0
      %v1260 = vsel %vm187, %v1206, 0.0
      %v1261 = vsel %vm188, %v1205, 0.0
      %v1262 = vsel %vm187, %v1204, 0.0
      %v1263 = vsel %vm188, %v1203, 0.0
      %v1264 = vsel %vm187, %v1202, 0.0
      %v1265 = vsel %vm188, %v1233, 0.0
      %v1266 = vld [vmem:[#allocation2] sm:$0xff]
      %v1267 = vld [vmem:[#allocation2 + $0x8] sm:$0xff]
      %v1268 = vld [vmem:[#allocation2 + $0x10] sm:$0xff]
      %v1269 = vld [vmem:[#allocation2 + $0x18] sm:$0xff]
      %v1270 = vld [vmem:[#allocation2 + $0x20] sm:$0xff]
      %v1271 = vld [vmem:[#allocation2 + $0x28] sm:$0xff]
      %v1272 = vld [vmem:[#allocation2 + $0x30] sm:$0xff]
      %v1273 = vld [vmem:[#allocation2 + $0x38] sm:$0xff]
      %v1274 = vld [vmem:[#allocation2 + $0x40] sm:$0xff]
      %v1275 = vld [vmem:[#allocation2 + $0x48] sm:$0xff]
      %v1276 = vld [vmem:[#allocation2 + $0x50] sm:$0xff]
      %v1277 = vld [vmem:[#allocation2 + $0x58] sm:$0xff]
      %v1278 = vld [vmem:[#allocation2 + $0x60] sm:$0xff]
      %v1279 = vld [vmem:[#allocation2 + $0x68] sm:$0xff]
      %v1280 = vld [vmem:[#allocation2 + $0x70] sm:$0xff]
      %v1281 = vld [vmem:[#allocation2 + $0x78] sm:$0xff]
      %v1282 = vld [vmem:[#allocation2 + $0x80] sm:$0xff]
      %v1283 = vld [vmem:[#allocation2 + $0x88] sm:$0xff]
      %v1284 = vld [vmem:[#allocation2 + $0x90] sm:$0xff]
      %v1285 = vld [vmem:[#allocation2 + $0x98] sm:$0xff]
      %v1286 = vld [vmem:[#allocation2 + $0xa0] sm:$0xff]
      %v1287 = vld [vmem:[#allocation2 + $0xa8] sm:$0xff]
      %v1288 = vld [vmem:[#allocation2 + $0xb0] sm:$0xff]
      %v1289 = vld [vmem:[#allocation2 + $0xb8] sm:$0xff]
      %v1290 = vld [vmem:[#allocation2 + $0xc0] sm:$0xff]
      %v1291 = vld [vmem:[#allocation2 + $0xc8] sm:$0xff]
      %v1292 = vld [vmem:[#allocation2 + $0xd0] sm:$0xff]
      %v1293 = vld [vmem:[#allocation2 + $0xd8] sm:$0xff]
      %v1294 = vld [vmem:[#allocation2 + $0xe0] sm:$0xff]
      %v1295 = vld [vmem:[#allocation2 + $0xe8] sm:$0xff]
      %v1296 = vld [vmem:[#allocation2 + $0xf0] sm:$0xff]
      %v1297 = vld [vmem:[#allocation2 + $0xf8] sm:$0xff]
      %s1298 = scalar_lea.vmem %s1, 384
      %v1299 = vld [vmem:[%s1298] sm:$0xff]
      %v1300 = vld [vmem:[%s1298 + $0x8] sm:$0xff]
      %v1301 = vld [vmem:[%s1298 + $0x10] sm:$0xff]
      %v1302 = vld [vmem:[%s1298 + $0x18] sm:$0xff]
      %v1303 = vld [vmem:[%s1298 + $0x20] sm:$0xff]
      %v1304 = vld [vmem:[%s1298 + $0x28] sm:$0xff]
      %v1305 = vld [vmem:[%s1298 + $0x30] sm:$0xff]
      %v1306 = vld [vmem:[%s1298 + $0x38] sm:$0xff]
      %v1307 = vld [vmem:[%s1298 + $0x40] sm:$0xff]
      %v1308 = vld [vmem:[%s1298 + $0x48] sm:$0xff]
      %v1309 = vld [vmem:[%s1298 + $0x50] sm:$0xff]
      %v1310 = vld [vmem:[%s1298 + $0x58] sm:$0xff]
      %v1311 = vld [vmem:[%s1298 + $0x60] sm:$0xff]
      %v1312 = vld [vmem:[%s1298 + $0x68] sm:$0xff]
      %v1313 = vld [vmem:[%s1298 + $0x70] sm:$0xff]
      %v1314 = vld [vmem:[%s1298 + $0x78] sm:$0xff]
      %v1315 = vld [vmem:[%s1298 + $0x80] sm:$0xff]
      %v1316 = vld [vmem:[%s1298 + $0x88] sm:$0xff]
      %v1317 = vld [vmem:[%s1298 + $0x90] sm:$0xff]
      %v1318 = vld [vmem:[%s1298 + $0x98] sm:$0xff]
      %v1319 = vld [vmem:[%s1298 + $0xa0] sm:$0xff]
      %v1320 = vld [vmem:[%s1298 + $0xa8] sm:$0xff]
      %v1321 = vld [vmem:[%s1298 + $0xb0] sm:$0xff]
      %v1322 = vld [vmem:[%s1298 + $0xb8] sm:$0xff]
      %v1323 = vld [vmem:[%s1298 + $0xc0] sm:$0xff]
      %v1324 = vld [vmem:[%s1298 + $0xc8] sm:$0xff]
      %v1325 = vld [vmem:[%s1298 + $0xd0] sm:$0xff]
      %v1326 = vld [vmem:[%s1298 + $0xd8] sm:$0xff]
      %v1327 = vld [vmem:[%s1298 + $0xe0] sm:$0xff]
      %v1328 = vld [vmem:[%s1298 + $0xe8] sm:$0xff]
      %v1329 = vld [vmem:[%s1298 + $0xf0] sm:$0xff]
      %v1330 = vld [vmem:[%s1298 + $0xf8] sm:$0xff]
      %v1331 = vld [vmem:[%s1298 + $0x100] sm:$0xff]
      %v1332 = vld [vmem:[%s1298 + $0x108] sm:$0xff]
      %v1333 = vld [vmem:[%s1298 + $0x110] sm:$0xff]
      %v1334 = vld [vmem:[%s1298 + $0x118] sm:$0xff]
      %v1335 = vld [vmem:[%s1298 + $0x120] sm:$0xff]
      %v1336 = vld [vmem:[%s1298 + $0x128] sm:$0xff]
      %v1337 = vld [vmem:[%s1298 + $0x130] sm:$0xff]
      %v1338 = vld [vmem:[%s1298 + $0x138] sm:$0xff]
      %v1339 = vld [vmem:[%s1298 + $0x140] sm:$0xff]
      %v1340 = vld [vmem:[%s1298 + $0x148] sm:$0xff]
      %v1341 = vld [vmem:[%s1298 + $0x150] sm:$0xff]
      %v1342 = vld [vmem:[%s1298 + $0x158] sm:$0xff]
      %v1343 = vld [vmem:[%s1298 + $0x160] sm:$0xff]
      %v1344 = vld [vmem:[%s1298 + $0x168] sm:$0xff]
      %v1345 = vld [vmem:[%s1298 + $0x170] sm:$0xff]
      %v1346 = vld [vmem:[%s1298 + $0x178] sm:$0xff]
      %1347 = vmatprep.subr.mxu0 0.0
      %1348 = vmatpush1.msra.mxu0 %v1299
      %1349 = vmatprep.subr.mxu0 0.0
      %1350 = vmatpush1.msra.mxu0 %v1300
      %1351 = vmatprep.subr.mxu0 0.0
      %1352 = vmatpush1.msra.mxu0 %v1301
      %1353 = vmatprep.subr.mxu0 0.0
      %1354 = vmatpush1.msra.mxu0 %v1302
      %1355 = vmatprep.subr.mxu0 0.0
      %1356 = vmatpush1.msra.mxu0 %v1303
      %1357 = vmatprep.subr.mxu0 0.0
      %1358 = vmatpush1.msra.mxu0 %v1304
      %1359 = vmatprep.subr.mxu0 0.0
      %1360 = vmatpush1.msra.mxu0 %v1305
      %1361 = vmatprep.subr.mxu0 0.0
      %1362 = vmatpush1.msra.mxu0 %v1306
      %1363 = vmatprep.subr.mxu0 0.0
      %1364 = vmatpush1.msra.mxu0 %v1307
      %1365 = vmatprep.subr.mxu0 0.0
      %1366 = vmatpush1.msra.mxu0 %v1308
      %1367 = vmatprep.subr.mxu0 0.0
      %1368 = vmatpush1.msra.mxu0 %v1309
      %1369 = vmatprep.subr.mxu0 0.0
      %1370 = vmatpush1.msra.mxu0 %v1310
      %1371 = vmatprep.subr.mxu0 0.0
      %1372 = vmatpush1.msra.mxu0 %v1311
      %1373 = vmatprep.subr.mxu0 0.0
      %1374 = vmatpush1.msra.mxu0 %v1312
      %1375 = vmatprep.subr.mxu0 0.0
      %1376 = vmatpush1.msra.mxu0 %v1313
      %1377 = vmatprep.subr.mxu0 0.0
      %1378 = vmatpush1.msra.mxu0 %v1314
      %1379 = vmatprep.subr.mxu0 0.0
      %1380 = vmatpush1.msra.mxu0 %v1315
      %1381 = vmatprep.subr.mxu0 0.0
      %1382 = vmatpush1.msra.mxu0 %v1316
      %1383 = vmatprep.subr.mxu0 0.0
      %1384 = vmatpush1.msra.mxu0 %v1317
      %1385 = vmatprep.subr.mxu0 0.0
      %1386 = vmatpush1.msra.mxu0 %v1318
      %1387 = vmatprep.subr.mxu0 0.0
      %1388 = vmatpush1.msra.mxu0 %v1319
      %1389 = vmatprep.subr.mxu0 0.0
      %1390 = vmatpush1.msra.mxu0 %v1320
      %1391 = vmatprep.subr.mxu0 0.0
      %1392 = vmatpush1.msra.mxu0 %v1321
      %1393 = vmatprep.subr.mxu0 0.0
      %1394 = vmatpush1.msra.mxu0 %v1322
      %1395 = vmatprep.subr.mxu0 0.0
      %1396 = vmatpush1.msra.mxu0 %v1323
      %1397 = vmatprep.subr.mxu0 0.0
      %1398 = vmatpush1.msra.mxu0 %v1324
      %1399 = vmatprep.subr.mxu0 0.0
      %1400 = vmatpush1.msra.mxu0 %v1325
      %1401 = vmatprep.subr.mxu0 0.0
      %1402 = vmatpush1.msra.mxu0 %v1326
      %1403 = vmatprep.subr.mxu0 0.0
      %1404 = vmatpush1.msra.mxu0 %v1327
      %1405 = vmatprep.subr.mxu0 0.0
      %1406 = vmatpush1.msra.mxu0 %v1328
      %1407 = vmatprep.subr.mxu0 0.0
      %1408 = vmatpush1.msra.mxu0 %v1329
      %1409 = vmatprep.subr.mxu0 0.0
      %1410 = vmatpush1.msra.mxu0 %v1330
      %1411 = vmatprep.mubr.f32.mxu0 %v1042
      %1412 = vmatmul.mubr.f32.gmra.mrb[0].mxu0 %v1138
      %v1413 = vpop.f32.mrb[0].mxu0
      %v1414 = vadd.f32 0.0, %v1413
      %v1415 = vpop.f32.mrb[0].mxu0
      %1416 = vmatprep.mubr.f32.mxu0 %v1043
      %1417 = vmatmul.mubr.f32.gmra.mrb[0].mxu0 %v1139
      %v1418 = vpop.f32.mrb[0].mxu0
      %v1419 = vadd.f32 0.0, %v1418
      %v1420 = vpop.f32.mrb[0].mxu0
      %1421 = vmatprep.mubr.f32.mxu0 %v1044
      %1422 = vmatmul.mubr.f32.gmra.mrb[0].mxu0 %v1140
      %v1423 = vpop.f32.mrb[0].mxu0
      %v1424 = vadd.f32 0.0, %v1423
      %v1425 = vpop.f32.mrb[0].mxu0
      %1426 = vmatprep.mubr.f32.mxu0 %v1045
      %1427 = vmatmul.mubr.f32.gmra.mrb[0].mxu0 %v1141
      %v1428 = vpop.f32.mrb[0].mxu0
      %v1429 = vadd.f32 0.0, %v1428
      %v1430 = vpop.f32.mrb[0].mxu0
      %1431 = vmatprep.mubr.f32.mxu0 %v1046
      %1432 = vmatmul.mubr.f32.gmra.mrb[0].mxu0 %v1142
      %v1433 = vpop.f32.mrb[0].mxu0
      %v1434 = vadd.f32 0.0, %v1433
      %v1435 = vpop.f32.mrb[0].mxu0
      %1436 = vmatprep.mubr.f32.mxu0 %v1047
      %1437 = vmatmul.mubr.f32.gmra.mrb[0].mxu0 %v1143
      %v1438 = vpop.f32.mrb[0].mxu0
      %v1439 = vadd.f32 0.0, %v1438
      %v1440 = vpop.f32.mrb[0].mxu0
      %1441 = vmatprep.mubr.f32.mxu0 %v1048
      %1442 = vmatmul.mubr.f32.gmra.mrb[0].mxu0 %v1144
      %v1443 = vpop.f32.mrb[0].mxu0
      %v1444 = vadd.f32 0.0, %v1443
      %v1445 = vpop.f32.mrb[0].mxu0
      %1446 = vmatprep.mubr.f32.mxu0 %v1049
      %1447 = vmatmul.mubr.f32.gmra.mrb[0].mxu0 %v1145
      %v1448 = vpop.f32.mrb[0].mxu0
      %v1449 = vadd.f32 0.0, %v1448
      %v1450 = vpop.f32.mrb[0].mxu0
      %1451 = vmatprep.mubr.f32.mxu0 %v1050
      %1452 = vmatmul.mubr.f32.gmra.mrb[0].mxu0 %v1146
      %v1453 = vpop.f32.mrb[0].mxu0
      %v1454 = vadd.f32 0.0, %v1453
      %v1455 = vpop.f32.mrb[0].mxu0
      %1456 = vmatprep.mubr.f32.mxu0 %v1051
      %1457 = vmatmul.mubr.f32.gmra.mrb[0].mxu0 %v1147
      %v1458 = vpop.f32.mrb[0].mxu0
      %v1459 = vadd.f32 0.0, %v1458
      %v1460 = vpop.f32.mrb[0].mxu0
      %1461 = vmatprep.mubr.f32.mxu0 %v1052
      %1462 = vmatmul.mubr.f32.gmra.mrb[0].mxu0 %v1148
      %v1463 = vpop.f32.mrb[0].mxu0
      %v1464 = vadd.f32 0.0, %v1463
      %v1465 = vpop.f32.mrb[0].mxu0
      %1466 = vmatprep.mubr.f32.mxu0 %v1053
      %1467 = vmatmul.mubr.f32.gmra.mrb[0].mxu0 %v1149
      %v1468 = vpop.f32.mrb[0].mxu0
      %v1469 = vadd.f32 0.0, %v1468
      %v1470 = vpop.f32.mrb[0].mxu0
      %1471 = vmatprep.mubr.f32.mxu0 %v1054
      %1472 = vmatmul.mubr.f32.gmra.mrb[0].mxu0 %v1150
      %v1473 = vpop.f32.mrb[0].mxu0
      %v1474 = vadd.f32 0.0, %v1473
      %v1475 = vpop.f32.mrb[0].mxu0
      %1476 = vmatprep.mubr.f32.mxu0 %v1055
      %1477 = vmatmul.mubr.f32.gmra.mrb[0].mxu0 %v1151
      %v1478 = vpop.f32.mrb[0].mxu0
      %v1479 = vadd.f32 0.0, %v1478
      %v1480 = vpop.f32.mrb[0].mxu0
      %1481 = vmatprep.mubr.f32.mxu0 %v1056
      %1482 = vmatmul.mubr.f32.gmra.mrb[0].mxu0 %v1152
      %v1483 = vpop.f32.mrb[0].mxu0
      %v1484 = vadd.f32 0.0, %v1483
      %v1485 = vpop.f32.mrb[0].mxu0
      %1486 = vmatprep.mubr.f32.mxu0 %v1057
      %1487 = vmatmul.mubr.f32.gmra.mrb[0].mxu0 %v1153
      %v1488 = vpop.f32.mrb[0].mxu0
      %v1489 = vadd.f32 0.0, %v1488
      %v1490 = vpop.f32.mrb[0].mxu0
      %1491 = vmatprep.mubr.f32.mxu0 %v1058
      %1492 = vmatmul.mubr.f32.gmra.mrb[0].mxu0 %v1154
      %v1493 = vpop.f32.mrb[0].mxu0
      %v1494 = vadd.f32 0.0, %v1493
      %v1495 = vpop.f32.mrb[0].mxu0
      %1496 = vmatprep.mubr.f32.mxu0 %v1059
      %1497 = vmatmul.mubr.f32.gmra.mrb[0].mxu0 %v1155
      %v1498 = vpop.f32.mrb[0].mxu0
      %v1499 = vadd.f32 0.0, %v1498
      %v1500 = vpop.f32.mrb[0].mxu0
      %1501 = vmatprep.mubr.f32.mxu0 %v1060
      %1502 = vmatmul.mubr.f32.gmra.mrb[0].mxu0 %v1156
      %v1503 = vpop.f32.mrb[0].mxu0
      %v1504 = vadd.f32 0.0, %v1503
      %v1505 = vpop.f32.mrb[0].mxu0
      %1506 = vmatprep.mubr.f32.mxu0 %v1061
      %1507 = vmatmul.mubr.f32.gmra.mrb[0].mxu0 %v1157
      %v1508 = vpop.f32.mrb[0].mxu0
      %v1509 = vadd.f32 0.0, %v1508
      %v1510 = vpop.f32.mrb[0].mxu0
      %1511 = vmatprep.mubr.f32.mxu0 %v1062
      %1512 = vmatmul.mubr.f32.gmra.mrb[0].mxu0 %v1158
      %v1513 = vpop.f32.mrb[0].mxu0
      %v1514 = vadd.f32 0.0, %v1513
      %v1515 = vpop.f32.mrb[0].mxu0
      %1516 = vmatprep.mubr.f32.mxu0 %v1063
      %1517 = vmatmul.mubr.f32.gmra.mrb[0].mxu0 %v1159
      %v1518 = vpop.f32.mrb[0].mxu0
      %v1519 = vadd.f32 0.0, %v1518
      %v1520 = vpop.f32.mrb[0].mxu0
      %1521 = vmatprep.mubr.f32.mxu0 %v1064
      %1522 = vmatmul.mubr.f32.gmra.mrb[0].mxu0 %v1160
      %v1523 = vpop.f32.mrb[0].mxu0
      %v1524 = vadd.f32 0.0, %v1523
      %v1525 = vpop.f32.mrb[0].mxu0
      %1526 = vmatprep.mubr.f32.mxu0 %v1065
      %1527 = vmatmul.mubr.f32.gmra.mrb[0].mxu0 %v1161
      %v1528 = vpop.f32.mrb[0].mxu0
      %v1529 = vadd.f32 0.0, %v1528
      %v1530 = vpop.f32.mrb[0].mxu0
      %1531 = vmatprep.mubr.f32.mxu0 %v1066
      %1532 = vmatmul.mubr.f32.gmra.mrb[0].mxu0 %v1162
      %v1533 = vpop.f32.mrb[0].mxu0
      %v1534 = vadd.f32 0.0, %v1533
      %v1535 = vpop.f32.mrb[0].mxu0
      %1536 = vmatprep.mubr.f32.mxu0 %v1067
      %1537 = vmatmul.mubr.f32.gmra.mrb[0].mxu0 %v1163
      %v1538 = vpop.f32.mrb[0].mxu0
      %v1539 = vadd.f32 0.0, %v1538
      %v1540 = vpop.f32.mrb[0].mxu0
      %1541 = vmatprep.mubr.f32.mxu0 %v1068
      %1542 = vmatmul.mubr.f32.gmra.mrb[0].mxu0 %v1164
      %v1543 = vpop.f32.mrb[0].mxu0
      %v1544 = vadd.f32 0.0, %v1543
      %v1545 = vpop.f32.mrb[0].mxu0
      %1546 = vmatprep.mubr.f32.mxu0 %v1069
      %1547 = vmatmul.mubr.f32.gmra.mrb[0].mxu0 %v1165
      %v1548 = vpop.f32.mrb[0].mxu0
      %v1549 = vadd.f32 0.0, %v1548
      %v1550 = vpop.f32.mrb[0].mxu0
      %1551 = vmatprep.mubr.f32.mxu0 %v1070
      %1552 = vmatmul.mubr.f32.gmra.mrb[0].mxu0 %v1166
      %v1553 = vpop.f32.mrb[0].mxu0
      %v1554 = vadd.f32 0.0, %v1553
      %v1555 = vpop.f32.mrb[0].mxu0
      %1556 = vmatprep.mubr.f32.mxu0 %v1071
      %1557 = vmatmul.mubr.f32.gmra.mrb[0].mxu0 %v1167
      %v1558 = vpop.f32.mrb[0].mxu0
      %v1559 = vadd.f32 0.0, %v1558
      %v1560 = vpop.f32.mrb[0].mxu0
      %1561 = vmatprep.mubr.f32.mxu0 %v1072
      %1562 = vmatmul.mubr.f32.gmra.mrb[0].mxu0 %v1168
      %v1563 = vpop.f32.mrb[0].mxu0
      %v1564 = vadd.f32 0.0, %v1563
      %v1565 = vpop.f32.mrb[0].mxu0
      %1566 = vmatprep.mubr.f32.mxu0 %v1073
      %1567 = vmatmul.mubr.f32.gmra.mrb[0].mxu0 %v1169
      %v1568 = vpop.f32.mrb[0].mxu0
      %v1569 = vadd.f32 0.0, %v1568
      %v1570 = vpop.f32.mrb[0].mxu0
      %1571 = vdwg.mxu0
      %1572 = vmatprep.subr.mxu0 0.0
      %1573 = vmatpush1.msra.mxu0 %v1331
      %1574 = vmatprep.subr.mxu0 0.0
      %1575 = vmatpush1.msra.mxu0 %v1332
      %1576 = vmatprep.subr.mxu0 0.0
      %1577 = vmatpush1.msra.mxu0 %v1333
      %1578 = vmatprep.subr.mxu0 0.0
      %1579 = vmatpush1.msra.mxu0 %v1334
      %1580 = vmatprep.subr.mxu0 0.0
      %1581 = vmatpush1.msra.mxu0 %v1335
      %1582 = vmatprep.subr.mxu0 0.0
      %1583 = vmatpush1.msra.mxu0 %v1336
      %1584 = vmatprep.subr.mxu0 0.0
      %1585 = vmatpush1.msra.mxu0 %v1337
      %1586 = vmatprep.subr.mxu0 0.0
      %1587 = vmatpush1.msra.mxu0 %v1338
      %1588 = vmatprep.subr.mxu0 0.0
      %1589 = vmatpush1.msra.mxu0 %v1339
      %1590 = vmatprep.subr.mxu0 0.0
      %1591 = vmatpush1.msra.mxu0 %v1340
      %1592 = vmatprep.subr.mxu0 0.0
      %1593 = vmatpush1.msra.mxu0 %v1341
      %1594 = vmatprep.subr.mxu0 0.0
      %1595 = vmatpush1.msra.mxu0 %v1342
      %1596 = vmatprep.subr.mxu0 0.0
      %1597 = vmatpush1.msra.mxu0 %v1343
      %1598 = vmatprep.subr.mxu0 0.0
      %1599 = vmatpush1.msra.mxu0 %v1344
      %1600 = vmatprep.subr.mxu0 0.0
      %1601 = vmatpush1.msra.mxu0 %v1345
      %1602 = vmatprep.subr.mxu0 0.0
      %1603 = vmatpush1.msra.mxu0 %v1346
      %1604 = vmatprep.subr.mxu0 0.0
      %1605 = vmatpush1.msra.mxu0 0.0
      %1606 = vmatprep.subr.mxu0 0.0
      %1607 = vmatpush1.msra.mxu0 0.0
      %1608 = vmatprep.subr.mxu0 0.0
      %1609 = vmatpush1.msra.mxu0 0.0
      %1610 = vmatprep.subr.mxu0 0.0
      %1611 = vmatpush1.msra.mxu0 0.0
      %1612 = vmatprep.subr.mxu0 0.0
      %1613 = vmatpush1.msra.mxu0 0.0
      %1614 = vmatprep.subr.mxu0 0.0
      %1615 = vmatpush1.msra.mxu0 0.0
      %1616 = vmatprep.subr.mxu0 0.0
      %1617 = vmatpush1.msra.mxu0 0.0
      %1618 = vmatprep.subr.mxu0 0.0
      %1619 = vmatpush1.msra.mxu0 0.0
      %1620 = vmatprep.subr.mxu0 0.0
      %1621 = vmatpush1.msra.mxu0 0.0
      %1622 = vmatprep.subr.mxu0 0.0
      %1623 = vmatpush1.msra.mxu0 0.0
      %1624 = vmatprep.subr.mxu0 0.0
      %1625 = vmatpush1.msra.mxu0 0.0
      %1626 = vmatprep.subr.mxu0 0.0
      %1627 = vmatpush1.msra.mxu0 0.0
      %1628 = vmatprep.subr.mxu0 0.0
      %1629 = vmatpush1.msra.mxu0 0.0
      %1630 = vmatprep.subr.mxu0 0.0
      %1631 = vmatpush1.msra.mxu0 0.0
      %1632 = vmatprep.subr.mxu0 0.0
      %1633 = vmatpush1.msra.mxu0 0.0
      %1634 = vmatprep.subr.mxu0 0.0
      %1635 = vmatpush1.msra.mxu0 0.0
      %1636 = vmatprep.mubr.f32.mxu0 0.0
      %1637 = vmatmul.mubr.f32.gmra.mrb[0].mxu0 %v1234
      %v1638 = vpop.f32.mrb[0].mxu0
      %v1639 = vadd.f32 %v1414, %v1638
      %v1640 = vpop.f32.mrb[0].mxu0
      %1641 = vmatprep.mubr.f32.mxu0 0.0
      %1642 = vmatmul.mubr.f32.gmra.mrb[0].mxu0 %v1235
      %v1643 = vpop.f32.mrb[0].mxu0
      %v1644 = vadd.f32 %v1419, %v1643
      %v1645 = vpop.f32.mrb[0].mxu0
      %1646 = vmatprep.mubr.f32.mxu0 0.0
      %1647 = vmatmul.mubr.f32.gmra.mrb[0].mxu0 %v1236
      %v1648 = vpop.f32.mrb[0].mxu0
      %v1649 = vadd.f32 %v1424, %v1648
      %v1650 = vpop.f32.mrb[0].mxu0
      %1651 = vmatprep.mubr.f32.mxu0 0.0
      %1652 = vmatmul.mubr.f32.gmra.mrb[0].mxu0 %v1237
      %v1653 = vpop.f32.mrb[0].mxu0
      %v1654 = vadd.f32 %v1429, %v1653
      %v1655 = vpop.f32.mrb[0].mxu0
      %1656 = vmatprep.mubr.f32.mxu0 0.0
      %1657 = vmatmul.mubr.f32.gmra.mrb[0].mxu0 %v1238
      %v1658 = vpop.f32.mrb[0].mxu0
      %v1659 = vadd.f32 %v1434, %v1658
      %v1660 = vpop.f32.mrb[0].mxu0
      %1661 = vmatprep.mubr.f32.mxu0 0.0
      %1662 = vmatmul.mubr.f32.gmra.mrb[0].mxu0 %v1239
      %v1663 = vpop.f32.mrb[0].mxu0
      %v1664 = vadd.f32 %v1439, %v1663
      %v1665 = vpop.f32.mrb[0].mxu0
      %1666 = vmatprep.mubr.f32.mxu0 0.0
      %1667 = vmatmul.mubr.f32.gmra.mrb[0].mxu0 %v1240
      %v1668 = vpop.f32.mrb[0].mxu0
      %v1669 = vadd.f32 %v1444, %v1668
      %v1670 = vpop.f32.mrb[0].mxu0
      %1671 = vmatprep.mubr.f32.mxu0 0.0
      %1672 = vmatmul.mubr.f32.gmra.mrb[0].mxu0 %v1241
      %v1673 = vpop.f32.mrb[0].mxu0
      %v1674 = vadd.f32 %v1449, %v1673
      %v1675 = vpop.f32.mrb[0].mxu0
      %1676 = vmatprep.mubr.f32.mxu0 0.0
      %1677 = vmatmul.mubr.f32.gmra.mrb[0].mxu0 %v1242
      %v1678 = vpop.f32.mrb[0].mxu0
      %v1679 = vadd.f32 %v1454, %v1678
      %v1680 = vpop.f32.mrb[0].mxu0
      %1681 = vmatprep.mubr.f32.mxu0 0.0
      %1682 = vmatmul.mubr.f32.gmra.mrb[0].mxu0 %v1243
      %v1683 = vpop.f32.mrb[0].mxu0
      %v1684 = vadd.f32 %v1459, %v1683
      %v1685 = vpop.f32.mrb[0].mxu0
      %1686 = vmatprep.mubr.f32.mxu0 0.0
      %1687 = vmatmul.mubr.f32.gmra.mrb[0].mxu0 %v1244
      %v1688 = vpop.f32.mrb[0].mxu0
      %v1689 = vadd.f32 %v1464, %v1688
      %v1690 = vpop.f32.mrb[0].mxu0
      %1691 = vmatprep.mubr.f32.mxu0 0.0
      %1692 = vmatmul.mubr.f32.gmra.mrb[0].mxu0 %v1245
      %v1693 = vpop.f32.mrb[0].mxu0
      %v1694 = vadd.f32 %v1469, %v1693
      %v1695 = vpop.f32.mrb[0].mxu0
      %1696 = vmatprep.mubr.f32.mxu0 0.0
      %1697 = vmatmul.mubr.f32.gmra.mrb[0].mxu0 %v1246
      %v1698 = vpop.f32.mrb[0].mxu0
      %v1699 = vadd.f32 %v1474, %v1698
      %v1700 = vpop.f32.mrb[0].mxu0
      %1701 = vmatprep.mubr.f32.mxu0 0.0
      %1702 = vmatmul.mubr.f32.gmra.mrb[0].mxu0 %v1247
      %v1703 = vpop.f32.mrb[0].mxu0
      %v1704 = vadd.f32 %v1479, %v1703
      %v1705 = vpop.f32.mrb[0].mxu0
      %1706 = vmatprep.mubr.f32.mxu0 0.0
      %1707 = vmatmul.mubr.f32.gmra.mrb[0].mxu0 %v1248
      %v1708 = vpop.f32.mrb[0].mxu0
      %v1709 = vadd.f32 %v1484, %v1708
      %v1710 = vpop.f32.mrb[0].mxu0
      %1711 = vmatprep.mubr.f32.mxu0 0.0
      %1712 = vmatmul.mubr.f32.gmra.mrb[0].mxu0 %v1249
      %v1713 = vpop.f32.mrb[0].mxu0
      %v1714 = vadd.f32 %v1489, %v1713
      %v1715 = vpop.f32.mrb[0].mxu0
      %1716 = vmatprep.mubr.f32.mxu0 0.0
      %1717 = vmatmul.mubr.f32.gmra.mrb[0].mxu0 %v1250
      %v1718 = vpop.f32.mrb[0].mxu0
      %v1719 = vadd.f32 %v1494, %v1718
      %v1720 = vpop.f32.mrb[0].mxu0
      %1721 = vmatprep.mubr.f32.mxu0 0.0
      %1722 = vmatmul.mubr.f32.gmra.mrb[0].mxu0 %v1251
      %v1723 = vpop.f32.mrb[0].mxu0
      %v1724 = vadd.f32 %v1499, %v1723
      %v1725 = vpop.f32.mrb[0].mxu0
      %1726 = vmatprep.mubr.f32.mxu0 0.0
      %1727 = vmatmul.mubr.f32.gmra.mrb[0].mxu0 %v1252
      %v1728 = vpop.f32.mrb[0].mxu0
      %v1729 = vadd.f32 %v1504, %v1728
      %v1730 = vpop.f32.mrb[0].mxu0
      %1731 = vmatprep.mubr.f32.mxu0 0.0
      %1732 = vmatmul.mubr.f32.gmra.mrb[0].mxu0 %v1253
      %v1733 = vpop.f32.mrb[0].mxu0
      %v1734 = vadd.f32 %v1509, %v1733
      %v1735 = vpop.f32.mrb[0].mxu0
      %1736 = vmatprep.mubr.f32.mxu0 0.0
      %1737 = vmatmul.mubr.f32.gmra.mrb[0].mxu0 %v1254
      %v1738 = vpop.f32.mrb[0].mxu0
      %v1739 = vadd.f32 %v1514, %v1738
      %v1740 = vpop.f32.mrb[0].mxu0
      %1741 = vmatprep.mubr.f32.mxu0 0.0
      %1742 = vmatmul.mubr.f32.gmra.mrb[0].mxu0 %v1255
      %v1743 = vpop.f32.mrb[0].mxu0
      %v1744 = vadd.f32 %v1519, %v1743
      %v1745 = vpop.f32.mrb[0].mxu0
      %1746 = vmatprep.mubr.f32.mxu0 0.0
      %1747 = vmatmul.mubr.f32.gmra.mrb[0].mxu0 %v1256
      %v1748 = vpop.f32.mrb[0].mxu0
      %v1749 = vadd.f32 %v1524, %v1748
      %v1750 = vpop.f32.mrb[0].mxu0
      %1751 = vmatprep.mubr.f32.mxu0 0.0
      %1752 = vmatmul.mubr.f32.gmra.mrb[0].mxu0 %v1257
      %v1753 = vpop.f32.mrb[0].mxu0
      %v1754 = vadd.f32 %v1529, %v1753
      %v1755 = vpop.f32.mrb[0].mxu0
      %1756 = vmatprep.mubr.f32.mxu0 0.0
      %1757 = vmatmul.mubr.f32.gmra.mrb[0].mxu0 %v1258
      %v1758 = vpop.f32.mrb[0].mxu0
      %v1759 = vadd.f32 %v1534, %v1758
      %v1760 = vpop.f32.mrb[0].mxu0
      %1761 = vmatprep.mubr.f32.mxu0 0.0
      %1762 = vmatmul.mubr.f32.gmra.mrb[0].mxu0 %v1259
      %v1763 = vpop.f32.mrb[0].mxu0
      %v1764 = vadd.f32 %v1539, %v1763
      %v1765 = vpop.f32.mrb[0].mxu0
      %1766 = vmatprep.mubr.f32.mxu0 0.0
      %1767 = vmatmul.mubr.f32.gmra.mrb[0].mxu0 %v1260
      %v1768 = vpop.f32.mrb[0].mxu0
      %v1769 = vadd.f32 %v1544, %v1768
      %v1770 = vpop.f32.mrb[0].mxu0
      %1771 = vmatprep.mubr.f32.mxu0 0.0
      %1772 = vmatmul.mubr.f32.gmra.mrb[0].mxu0 %v1261
      %v1773 = vpop.f32.mrb[0].mxu0
      %v1774 = vadd.f32 %v1549, %v1773
      %v1775 = vpop.f32.mrb[0].mxu0
      %1776 = vmatprep.mubr.f32.mxu0 0.0
      %1777 = vmatmul.mubr.f32.gmra.mrb[0].mxu0 %v1262
      %v1778 = vpop.f32.mrb[0].mxu0
      %v1779 = vadd.f32 %v1554, %v1778
      %v1780 = vpop.f32.mrb[0].mxu0
      %1781 = vmatprep.mubr.f32.mxu0 0.0
      %1782 = vmatmul.mubr.f32.gmra.mrb[0].mxu0 %v1263
      %v1783 = vpop.f32.mrb[0].mxu0
      %v1784 = vadd.f32 %v1559, %v1783
      %v1785 = vpop.f32.mrb[0].mxu0
      %1786 = vmatprep.mubr.f32.mxu0 0.0
      %1787 = vmatmul.mubr.f32.gmra.mrb[0].mxu0 %v1264
      %v1788 = vpop.f32.mrb[0].mxu0
      %v1789 = vadd.f32 %v1564, %v1788
      %v1790 = vpop.f32.mrb[0].mxu0
      %1791 = vmatprep.mubr.f32.mxu0 0.0
      %1792 = vmatmul.mubr.f32.gmra.mrb[0].mxu0 %v1265
      %v1793 = vpop.f32.mrb[0].mxu0
      %v1794 = vadd.f32 %v1569, %v1793
      %v1795 = vpop.f32.mrb[0].mxu0
      %1796 = vdwg.mxu0
      %v1797 = vadd.f32 %v1266, %v1639
      %v1798 = vadd.f32 %v1267, %v1644
      %v1799 = vadd.f32 %v1268, %v1649
      %v1800 = vadd.f32 %v1269, %v1654
      %v1801 = vadd.f32 %v1270, %v1659
      %v1802 = vadd.f32 %v1271, %v1664
      %v1803 = vadd.f32 %v1272, %v1669
      %v1804 = vadd.f32 %v1273, %v1674
      %v1805 = vadd.f32 %v1274, %v1679
      %v1806 = vadd.f32 %v1275, %v1684
      %v1807 = vadd.f32 %v1276, %v1689
      %v1808 = vadd.f32 %v1277, %v1694
      %v1809 = vadd.f32 %v1278, %v1699
      %v1810 = vadd.f32 %v1279, %v1704
      %v1811 = vadd.f32 %v1280, %v1709
      %v1812 = vadd.f32 %v1281, %v1714
      %v1813 = vadd.f32 %v1282, %v1719
      %v1814 = vadd.f32 %v1283, %v1724
      %v1815 = vadd.f32 %v1284, %v1729
      %v1816 = vadd.f32 %v1285, %v1734
      %v1817 = vadd.f32 %v1286, %v1739
      %v1818 = vadd.f32 %v1287, %v1744
      %v1819 = vadd.f32 %v1288, %v1749
      %v1820 = vadd.f32 %v1289, %v1754
      %v1821 = vadd.f32 %v1290, %v1759
      %v1822 = vadd.f32 %v1291, %v1764
      %v1823 = vadd.f32 %v1292, %v1769
      %v1824 = vadd.f32 %v1293, %v1774
      %v1825 = vadd.f32 %v1294, %v1779
      %v1826 = vadd.f32 %v1295, %v1784
      %v1827 = vadd.f32 %v1296, %v1789
      %v1828 = vadd.f32 %v1297, %v1794
      %1829 = vst [vmem:[#allocation2] sm:$0xff] %v1797
      %1830 = vst [vmem:[#allocation2 + $0x8] sm:$0xff] %v1798
      %1831 = vst [vmem:[#allocation2 + $0x10] sm:$0xff] %v1799
      %1832 = vst [vmem:[#allocation2 + $0x18] sm:$0xff] %v1800
      %1833 = vst [vmem:[#allocation2 + $0x20] sm:$0xff] %v1801
      %1834 = vst [vmem:[#allocation2 + $0x28] sm:$0xff] %v1802
      %1835 = vst [vmem:[#allocation2 + $0x30] sm:$0xff] %v1803
      %1836 = vst [vmem:[#allocation2 + $0x38] sm:$0xff] %v1804
      %1837 = vst [vmem:[#allocation2 + $0x40] sm:$0xff] %v1805
      %1838 = vst [vmem:[#allocation2 + $0x48] sm:$0xff] %v1806
      %1839 = vst [vmem:[#allocation2 + $0x50] sm:$0xff] %v1807
      %1840 = vst [vmem:[#allocation2 + $0x58] sm:$0xff] %v1808
      %1841 = vst [vmem:[#allocation2 + $0x60] sm:$0xff] %v1809
      %1842 = vst [vmem:[#allocation2 + $0x68] sm:$0xff] %v1810
      %1843 = vst [vmem:[#allocation2 + $0x70] sm:$0xff] %v1811
      %1844 = vst [vmem:[#allocation2 + $0x78] sm:$0xff] %v1812
      %1845 = vst [vmem:[#allocation2 + $0x80] sm:$0xff] %v1813
      %1846 = vst [vmem:[#allocation2 + $0x88] sm:$0xff] %v1814
      %1847 = vst [vmem:[#allocation2 + $0x90] sm:$0xff] %v1815
      %1848 = vst [vmem:[#allocation2 + $0x98] sm:$0xff] %v1816
      %1849 = vst [vmem:[#allocation2 + $0xa0] sm:$0xff] %v1817
      %1850 = vst [vmem:[#allocation2 + $0xa8] sm:$0xff] %v1818
      %1851 = vst [vmem:[#allocation2 + $0xb0] sm:$0xff] %v1819
      %1852 = vst [vmem:[#allocation2 + $0xb8] sm:$0xff] %v1820
      %1853 = vst [vmem:[#allocation2 + $0xc0] sm:$0xff] %v1821
      %1854 = vst [vmem:[#allocation2 + $0xc8] sm:$0xff] %v1822
      %1855 = vst [vmem:[#allocation2 + $0xd0] sm:$0xff] %v1823
      %1856 = vst [vmem:[#allocation2 + $0xd8] sm:$0xff] %v1824
      %1857 = vst [vmem:[#allocation2 + $0xe0] sm:$0xff] %v1825
      %1858 = vst [vmem:[#allocation2 + $0xe8] sm:$0xff] %v1826
      %1859 = vst [vmem:[#allocation2 + $0xf0] sm:$0xff] %v1827
      %1860 = vst [vmem:[#allocation2 + $0xf8] sm:$0xff] %v1828
      %s1861 = scalar_lea.vmem %s172, 32
      %v1862 = vld [vmem:[%s1861] sm:$0xff]
      %v1863 = vld [vmem:[%s1861 + $0x8] sm:$0xff]
      %v1864 = vld [vmem:[%s1861 + $0x10] sm:$0xff]
      %v1865 = vld [vmem:[%s1861 + $0x18] sm:$0xff]
      %v1866 = vld [vmem:[%s1861 + $0x20] sm:$0xff]
      %v1867 = vld [vmem:[%s1861 + $0x28] sm:$0xff]
      %v1868 = vld [vmem:[%s1861 + $0x30] sm:$0xff]
      %v1869 = vld [vmem:[%s1861 + $0x38] sm:$0xff]
      %v1870 = vld [vmem:[%s1861 + $0x40] sm:$0xff]
      %v1871 = vld [vmem:[%s1861 + $0x48] sm:$0xff]
      %v1872 = vld [vmem:[%s1861 + $0x50] sm:$0xff]
      %v1873 = vld [vmem:[%s1861 + $0x58] sm:$0xff]
      %v1874 = vld [vmem:[%s1861 + $0x60] sm:$0xff]
      %v1875 = vld [vmem:[%s1861 + $0x68] sm:$0xff]
      %v1876 = vld [vmem:[%s1861 + $0x70] sm:$0xff]
      %v1877 = vld [vmem:[%s1861 + $0x78] sm:$0xff]
      %v1878 = vld [vmem:[%s1861 + $0x80] sm:$0xff]
      %v1879 = vld [vmem:[%s1861 + $0x88] sm:$0xff]
      %v1880 = vld [vmem:[%s1861 + $0x90] sm:$0xff]
      %v1881 = vld [vmem:[%s1861 + $0x98] sm:$0xff]
      %v1882 = vld [vmem:[%s1861 + $0xa0] sm:$0xff]
      %v1883 = vld [vmem:[%s1861 + $0xa8] sm:$0xff]
      %v1884 = vld [vmem:[%s1861 + $0xb0] sm:$0xff]
      %v1885 = vld [vmem:[%s1861 + $0xb8] sm:$0xff]
      %v1886 = vld [vmem:[%s1861 + $0xc0] sm:$0xff]
      %v1887 = vld [vmem:[%s1861 + $0xc8] sm:$0xff]
      %v1888 = vld [vmem:[%s1861 + $0xd0] sm:$0xff]
      %v1889 = vld [vmem:[%s1861 + $0xd8] sm:$0xff]
      %v1890 = vld [vmem:[%s1861 + $0xe0] sm:$0xff]
      %v1891 = vld [vmem:[%s1861 + $0xe8] sm:$0xff]
      %v1892 = vld [vmem:[%s1861 + $0xf0] sm:$0xff]
      %v1893 = vld [vmem:[%s1861 + $0xf8] sm:$0xff]
      %v1894 = vrot.slane %v1862, 7
      %v1895 = vrot.slane %v1863, 7
      %v1896 = vrot.slane %v1864, 7
      %v1897 = vrot.slane %v1865, 7
      %v1898 = vrot.slane %v1866, 7
      %v1899 = vrot.slane %v1867, 7
      %v1900 = vrot.slane %v1868, 7
      %v1901 = vrot.slane %v1869, 7
      %v1902 = vrot.slane %v1870, 7
      %v1903 = vrot.slane %v1871, 7
      %v1904 = vrot.slane %v1872, 7
      %v1905 = vrot.slane %v1873, 7
      %v1906 = vrot.slane %v1874, 7
      %v1907 = vrot.slane %v1875, 7
      %v1908 = vrot.slane %v1876, 7
      %v1909 = vrot.slane %v1877, 7
      %v1910 = vrot.slane %v1878, 7
      %v1911 = vrot.slane %v1879, 7
      %v1912 = vrot.slane %v1880, 7
      %v1913 = vrot.slane %v1881, 7
      %v1914 = vrot.slane %v1882, 7
      %v1915 = vrot.slane %v1883, 7
      %v1916 = vrot.slane %v1884, 7
      %v1917 = vrot.slane %v1885, 7
      %v1918 = vrot.slane %v1886, 7
      %v1919 = vrot.slane %v1887, 7
      %v1920 = vrot.slane %v1888, 7
      %v1921 = vrot.slane %v1889, 7
      %v1922 = vrot.slane %v1890, 7
      %v1923 = vrot.slane %v1891, 7
      %v1924 = vrot.slane %v1892, 7
      %v1925 = vrot.slane %v1893, 7
      %v1926 = vsel %vm285, %v1924, %v1925
      %v1927 = vsel %vm285, %v1923, %v1924
      %v1928 = vsel %vm285, %v1922, %v1923
      %v1929 = vsel %vm285, %v1921, %v1922
      %v1930 = vsel %vm285, %v1920, %v1921
      %v1931 = vsel %vm285, %v1919, %v1920
      %v1932 = vsel %vm285, %v1918, %v1919
      %v1933 = vsel %vm285, %v1917, %v1918
      %v1934 = vsel %vm285, %v1916, %v1917
      %v1935 = vsel %vm285, %v1915, %v1916
      %v1936 = vsel %vm285, %v1914, %v1915
      %v1937 = vsel %vm285, %v1913, %v1914
      %v1938 = vsel %vm285, %v1912, %v1913
      %v1939 = vsel %vm285, %v1911, %v1912
      %v1940 = vsel %vm285, %v1910, %v1911
      %v1941 = vsel %vm285, %v1909, %v1910
      %v1942 = vsel %vm285, %v1908, %v1909
      %v1943 = vsel %vm285, %v1907, %v1908
      %v1944 = vsel %vm285, %v1906, %v1907
      %v1945 = vsel %vm285, %v1905, %v1906
      %v1946 = vsel %vm285, %v1904, %v1905
      %v1947 = vsel %vm285, %v1903, %v1904
      %v1948 = vsel %vm285, %v1902, %v1903
      %v1949 = vsel %vm285, %v1901, %v1902
      %v1950 = vsel %vm285, %v1900, %v1901
      %v1951 = vsel %vm285, %v1899, %v1900
      %v1952 = vsel %vm285, %v1898, %v1899
      %v1953 = vsel %vm285, %v1897, %v1898
      %v1954 = vsel %vm285, %v1896, %v1897
      %v1955 = vsel %vm285, %v1895, %v1896
      %v1956 = vsel %vm285, %v1894, %v1895
      %v1957 = vsel %vm285, %v1925, %v1894
      %v1958 = vsel %vm185, %v1957, 0.0
      %v1959 = vsel %vm186, %v1956, 0.0
      %v1960 = vsel %vm185, %v1955, 0.0
      %v1961 = vsel %vm186, %v1954, 0.0
      %v1962 = vsel %vm185, %v1953, 0.0
      %v1963 = vsel %vm186, %v1952, 0.0
      %v1964 = vsel %vm185, %v1951, 0.0
      %v1965 = vsel %vm186, %v1950, 0.0
      %v1966 = vsel %vm185, %v1949, 0.0
      %v1967 = vsel %vm186, %v1948, 0.0
      %v1968 = vsel %vm185, %v1947, 0.0
      %v1969 = vsel %vm186, %v1946, 0.0
      %v1970 = vsel %vm185, %v1945, 0.0
      %v1971 = vsel %vm186, %v1944, 0.0
      %v1972 = vsel %vm185, %v1943, 0.0
      %v1973 = vsel %vm186, %v1942, 0.0
      %v1974 = vsel %vm185, %v1941, 0.0
      %v1975 = vsel %vm186, %v1940, 0.0
      %v1976 = vsel %vm185, %v1939, 0.0
      %v1977 = vsel %vm186, %v1938, 0.0
      %v1978 = vsel %vm185, %v1937, 0.0
      %v1979 = vsel %vm186, %v1936, 0.0
      %v1980 = vsel %vm185, %v1935, 0.0
      %v1981 = vsel %vm186, %v1934, 0.0
      %v1982 = vsel %vm185, %v1933, 0.0
      %v1983 = vsel %vm186, %v1932, 0.0
      %v1984 = vsel %vm185, %v1931, 0.0
      %v1985 = vsel %vm186, %v1930, 0.0
      %v1986 = vsel %vm185, %v1929, 0.0
      %v1987 = vsel %vm186, %v1928, 0.0
      %v1988 = vsel %vm185, %v1927, 0.0
      %v1989 = vsel %vm186, %v1926, 0.0
      %v1990 = vrot.slane %v1862, 1
      %v1991 = vrot.slane %v1863, 1
      %v1992 = vrot.slane %v1864, 1
      %v1993 = vrot.slane %v1865, 1
      %v1994 = vrot.slane %v1866, 1
      %v1995 = vrot.slane %v1867, 1
      %v1996 = vrot.slane %v1868, 1
      %v1997 = vrot.slane %v1869, 1
      %v1998 = vrot.slane %v1870, 1
      %v1999 = vrot.slane %v1871, 1
      %v2000 = vrot.slane %v1872, 1
      %v2001 = vrot.slane %v1873, 1
      %v2002 = vrot.slane %v1874, 1
      %v2003 = vrot.slane %v1875, 1
      %v2004 = vrot.slane %v1876, 1
      %v2005 = vrot.slane %v1877, 1
      %v2006 = vrot.slane %v1878, 1
      %v2007 = vrot.slane %v1879, 1
      %v2008 = vrot.slane %v1880, 1
      %v2009 = vrot.slane %v1881, 1
      %v2010 = vrot.slane %v1882, 1
      %v2011 = vrot.slane %v1883, 1
      %v2012 = vrot.slane %v1884, 1
      %v2013 = vrot.slane %v1885, 1
      %v2014 = vrot.slane %v1886, 1
      %v2015 = vrot.slane %v1887, 1
      %v2016 = vrot.slane %v1888, 1
      %v2017 = vrot.slane %v1889, 1
      %v2018 = vrot.slane %v1890, 1
      %v2019 = vrot.slane %v1891, 1
      %v2020 = vrot.slane %v1892, 1
      %v2021 = vrot.slane %v1893, 1
      %v2022 = vsel %vm382, %v2020, %v2021
      %v2023 = vsel %vm382, %v2019, %v2020
      %v2024 = vsel %vm382, %v2018, %v2019
      %v2025 = vsel %vm382, %v2017, %v2018
      %v2026 = vsel %vm382, %v2016, %v2017
      %v2027 = vsel %vm382, %v2015, %v2016
      %v2028 = vsel %vm382, %v2014, %v2015
      %v2029 = vsel %vm382, %v2013, %v2014
      %v2030 = vsel %vm382, %v2012, %v2013
      %v2031 = vsel %vm382, %v2011, %v2012
      %v2032 = vsel %vm382, %v2010, %v2011
      %v2033 = vsel %vm382, %v2009, %v2010
      %v2034 = vsel %vm382, %v2008, %v2009
      %v2035 = vsel %vm382, %v2007, %v2008
      %v2036 = vsel %vm382, %v2006, %v2007
      %v2037 = vsel %vm382, %v2005, %v2006
      %v2038 = vsel %vm382, %v2004, %v2005
      %v2039 = vsel %vm382, %v2003, %v2004
      %v2040 = vsel %vm382, %v2002, %v2003
      %v2041 = vsel %vm382, %v2001, %v2002
      %v2042 = vsel %vm382, %v2000, %v2001
      %v2043 = vsel %vm382, %v1999, %v2000
      %v2044 = vsel %vm382, %v1998, %v1999
      %v2045 = vsel %vm382, %v1997, %v1998
      %v2046 = vsel %vm382, %v1996, %v1997
      %v2047 = vsel %vm382, %v1995, %v1996
      %v2048 = vsel %vm382, %v1994, %v1995
      %v2049 = vsel %vm382, %v1993, %v1994
      %v2050 = vsel %vm382, %v1992, %v1993
      %v2051 = vsel %vm382, %v1991, %v1992
      %v2052 = vsel %vm382, %v1990, %v1991
      %v2053 = vsel %vm382, %v2021, %v1990
      %v2054 = vsel %vm187, %v2052, 0.0
      %v2055 = vsel %vm188, %v2051, 0.0
      %v2056 = vsel %vm187, %v2050, 0.0
      %v2057 = vsel %vm188, %v2049, 0.0
      %v2058 = vsel %vm187, %v2048, 0.0
      %v2059 = vsel %vm188, %v2047, 0.0
      %v2060 = vsel %vm187, %v2046, 0.0
      %v2061 = vsel %vm188, %v2045, 0.0
      %v2062 = vsel %vm187, %v2044, 0.0
      %v2063 = vsel %vm188, %v2043, 0.0
      %v2064 = vsel %vm187, %v2042, 0.0
      %v2065 = vsel %vm188, %v2041, 0.0
      %v2066 = vsel %vm187, %v2040, 0.0
      %v2067 = vsel %vm188, %v2039, 0.0
      %v2068 = vsel %vm187, %v2038, 0.0
      %v2069 = vsel %vm188, %v2037, 0.0
      %v2070 = vsel %vm187, %v2036, 0.0
      %v2071 = vsel %vm188, %v2035, 0.0
      %v2072 = vsel %vm187, %v2034, 0.0
      %v2073 = vsel %vm188, %v2033, 0.0
      %v2074 = vsel %vm187, %v2032, 0.0
      %v2075 = vsel %vm188, %v2031, 0.0
      %v2076 = vsel %vm187, %v2030, 0.0
      %v2077 = vsel %vm188, %v2029, 0.0
      %v2078 = vsel %vm187, %v2028, 0.0
      %v2079 = vsel %vm188, %v2027, 0.0
      %v2080 = vsel %vm187, %v2026, 0.0
      %v2081 = vsel %vm188, %v2025, 0.0
      %v2082 = vsel %vm187, %v2024, 0.0
      %v2083 = vsel %vm188, %v2023, 0.0
      %v2084 = vsel %vm187, %v2022, 0.0
      %v2085 = vsel %vm188, %v2053, 0.0
      %v2086 = vld [vmem:[#allocation2] sm:$0xff]
      %v2087 = vld [vmem:[#allocation2 + $0x8] sm:$0xff]
      %v2088 = vld [vmem:[#allocation2 + $0x10] sm:$0xff]
      %v2089 = vld [vmem:[#allocation2 + $0x18] sm:$0xff]
      %v2090 = vld [vmem:[#allocation2 + $0x20] sm:$0xff]
      %v2091 = vld [vmem:[#allocation2 + $0x28] sm:$0xff]
      %v2092 = vld [vmem:[#allocation2 + $0x30] sm:$0xff]
      %v2093 = vld [vmem:[#allocation2 + $0x38] sm:$0xff]
      %v2094 = vld [vmem:[#allocation2 + $0x40] sm:$0xff]
      %v2095 = vld [vmem:[#allocation2 + $0x48] sm:$0xff]
      %v2096 = vld [vmem:[#allocation2 + $0x50] sm:$0xff]
      %v2097 = vld [vmem:[#allocation2 + $0x58] sm:$0xff]
      %v2098 = vld [vmem:[#allocation2 + $0x60] sm:$0xff]
      %v2099 = vld [vmem:[#allocation2 + $0x68] sm:$0xff]
      %v2100 = vld [vmem:[#allocation2 + $0x70] sm:$0xff]
      %v2101 = vld [vmem:[#allocation2 + $0x78] sm:$0xff]
      %v2102 = vld [vmem:[#allocation2 + $0x80] sm:$0xff]
      %v2103 = vld [vmem:[#allocation2 + $0x88] sm:$0xff]
      %v2104 = vld [vmem:[#allocation2 + $0x90] sm:$0xff]
      %v2105 = vld [vmem:[#allocation2 + $0x98] sm:$0xff]
      %v2106 = vld [vmem:[#allocation2 + $0xa0] sm:$0xff]
      %v2107 = vld [vmem:[#allocation2 + $0xa8] sm:$0xff]
      %v2108 = vld [vmem:[#allocation2 + $0xb0] sm:$0xff]
      %v2109 = vld [vmem:[#allocation2 + $0xb8] sm:$0xff]
      %v2110 = vld [vmem:[#allocation2 + $0xc0] sm:$0xff]
      %v2111 = vld [vmem:[#allocation2 + $0xc8] sm:$0xff]
      %v2112 = vld [vmem:[#allocation2 + $0xd0] sm:$0xff]
      %v2113 = vld [vmem:[#allocation2 + $0xd8] sm:$0xff]
      %v2114 = vld [vmem:[#allocation2 + $0xe0] sm:$0xff]
      %v2115 = vld [vmem:[#allocation2 + $0xe8] sm:$0xff]
      %v2116 = vld [vmem:[#allocation2 + $0xf0] sm:$0xff]
      %v2117 = vld [vmem:[#allocation2 + $0xf8] sm:$0xff]
      %s2118 = scalar_lea.vmem %s1, 768
      %v2119 = vld [vmem:[%s2118] sm:$0xff]
      %v2120 = vld [vmem:[%s2118 + $0x8] sm:$0xff]
      %v2121 = vld [vmem:[%s2118 + $0x10] sm:$0xff]
      %v2122 = vld [vmem:[%s2118 + $0x18] sm:$0xff]
      %v2123 = vld [vmem:[%s2118 + $0x20] sm:$0xff]
      %v2124 = vld [vmem:[%s2118 + $0x28] sm:$0xff]
      %v2125 = vld [vmem:[%s2118 + $0x30] sm:$0xff]
      %v2126 = vld [vmem:[%s2118 + $0x38] sm:$0xff]
      %v2127 = vld [vmem:[%s2118 + $0x40] sm:$0xff]
      %v2128 = vld [vmem:[%s2118 + $0x48] sm:$0xff]
      %v2129 = vld [vmem:[%s2118 + $0x50] sm:$0xff]
      %v2130 = vld [vmem:[%s2118 + $0x58] sm:$0xff]
      %v2131 = vld [vmem:[%s2118 + $0x60] sm:$0xff]
      %v2132 = vld [vmem:[%s2118 + $0x68] sm:$0xff]
      %v2133 = vld [vmem:[%s2118 + $0x70] sm:$0xff]
      %v2134 = vld [vmem:[%s2118 + $0x78] sm:$0xff]
      %v2135 = vld [vmem:[%s2118 + $0x80] sm:$0xff]
      %v2136 = vld [vmem:[%s2118 + $0x88] sm:$0xff]
      %v2137 = vld [vmem:[%s2118 + $0x90] sm:$0xff]
      %v2138 = vld [vmem:[%s2118 + $0x98] sm:$0xff]
      %v2139 = vld [vmem:[%s2118 + $0xa0] sm:$0xff]
      %v2140 = vld [vmem:[%s2118 + $0xa8] sm:$0xff]
      %v2141 = vld [vmem:[%s2118 + $0xb0] sm:$0xff]
      %v2142 = vld [vmem:[%s2118 + $0xb8] sm:$0xff]
      %v2143 = vld [vmem:[%s2118 + $0xc0] sm:$0xff]
      %v2144 = vld [vmem:[%s2118 + $0xc8] sm:$0xff]
      %v2145 = vld [vmem:[%s2118 + $0xd0] sm:$0xff]
      %v2146 = vld [vmem:[%s2118 + $0xd8] sm:$0xff]
      %v2147 = vld [vmem:[%s2118 + $0xe0] sm:$0xff]
      %v2148 = vld [vmem:[%s2118 + $0xe8] sm:$0xff]
      %v2149 = vld [vmem:[%s2118 + $0xf0] sm:$0xff]
      %v2150 = vld [vmem:[%s2118 + $0xf8] sm:$0xff]
      %v2151 = vld [vmem:[%s2118 + $0x100] sm:$0xff]
      %v2152 = vld [vmem:[%s2118 + $0x108] sm:$0xff]
      %v2153 = vld [vmem:[%s2118 + $0x110] sm:$0xff]
      %v2154 = vld [vmem:[%s2118 + $0x118] sm:$0xff]
      %v2155 = vld [vmem:[%s2118 + $0x120] sm:$0xff]
      %v2156 = vld [vmem:[%s2118 + $0x128] sm:$0xff]
      %v2157 = vld [vmem:[%s2118 + $0x130] sm:$0xff]
      %v2158 = vld [vmem:[%s2118 + $0x138] sm:$0xff]
      %v2159 = vld [vmem:[%s2118 + $0x140] sm:$0xff]
      %v2160 = vld [vmem:[%s2118 + $0x148] sm:$0xff]
      %v2161 = vld [vmem:[%s2118 + $0x150] sm:$0xff]
      %v2162 = vld [vmem:[%s2118 + $0x158] sm:$0xff]
      %v2163 = vld [vmem:[%s2118 + $0x160] sm:$0xff]
      %v2164 = vld [vmem:[%s2118 + $0x168] sm:$0xff]
      %v2165 = vld [vmem:[%s2118 + $0x170] sm:$0xff]
      %v2166 = vld [vmem:[%s2118 + $0x178] sm:$0xff]
      %2167 = vmatprep.subr.mxu0 0.0
      %2168 = vmatpush1.msra.mxu0 %v2119
      %2169 = vmatprep.subr.mxu0 0.0
      %2170 = vmatpush1.msra.mxu0 %v2120
      %2171 = vmatprep.subr.mxu0 0.0
      %2172 = vmatpush1.msra.mxu0 %v2121
      %2173 = vmatprep.subr.mxu0 0.0
      %2174 = vmatpush1.msra.mxu0 %v2122
      %2175 = vmatprep.subr.mxu0 0.0
      %2176 = vmatpush1.msra.mxu0 %v2123
      %2177 = vmatprep.subr.mxu0 0.0
      %2178 = vmatpush1.msra.mxu0 %v2124
      %2179 = vmatprep.subr.mxu0 0.0
      %2180 = vmatpush1.msra.mxu0 %v2125
      %2181 = vmatprep.subr.mxu0 0.0
      %2182 = vmatpush1.msra.mxu0 %v2126
      %2183 = vmatprep.subr.mxu0 0.0
      %2184 = vmatpush1.msra.mxu0 %v2127
      %2185 = vmatprep.subr.mxu0 0.0
      %2186 = vmatpush1.msra.mxu0 %v2128
      %2187 = vmatprep.subr.mxu0 0.0
      %2188 = vmatpush1.msra.mxu0 %v2129
      %2189 = vmatprep.subr.mxu0 0.0
      %2190 = vmatpush1.msra.mxu0 %v2130
      %2191 = vmatprep.subr.mxu0 0.0
      %2192 = vmatpush1.msra.mxu0 %v2131
      %2193 = vmatprep.subr.mxu0 0.0
      %2194 = vmatpush1.msra.mxu0 %v2132
      %2195 = vmatprep.subr.mxu0 0.0
      %2196 = vmatpush1.msra.mxu0 %v2133
      %2197 = vmatprep.subr.mxu0 0.0
      %2198 = vmatpush1.msra.mxu0 %v2134
      %2199 = vmatprep.subr.mxu0 0.0
      %2200 = vmatpush1.msra.mxu0 %v2135
      %2201 = vmatprep.subr.mxu0 0.0
      %2202 = vmatpush1.msra.mxu0 %v2136
      %2203 = vmatprep.subr.mxu0 0.0
      %2204 = vmatpush1.msra.mxu0 %v2137
      %2205 = vmatprep.subr.mxu0 0.0
      %2206 = vmatpush1.msra.mxu0 %v2138
      %2207 = vmatprep.subr.mxu0 0.0
      %2208 = vmatpush1.msra.mxu0 %v2139
      %2209 = vmatprep.subr.mxu0 0.0
      %2210 = vmatpush1.msra.mxu0 %v2140
      %2211 = vmatprep.subr.mxu0 0.0
      %2212 = vmatpush1.msra.mxu0 %v2141
      %2213 = vmatprep.subr.mxu0 0.0
      %2214 = vmatpush1.msra.mxu0 %v2142
      %2215 = vmatprep.subr.mxu0 0.0
      %2216 = vmatpush1.msra.mxu0 %v2143
      %2217 = vmatprep.subr.mxu0 0.0
      %2218 = vmatpush1.msra.mxu0 %v2144
      %2219 = vmatprep.subr.mxu0 0.0
      %2220 = vmatpush1.msra.mxu0 %v2145
      %2221 = vmatprep.subr.mxu0 0.0
      %2222 = vmatpush1.msra.mxu0 %v2146
      %2223 = vmatprep.subr.mxu0 0.0
      %2224 = vmatpush1.msra.mxu0 %v2147
      %2225 = vmatprep.subr.mxu0 0.0
      %2226 = vmatpush1.msra.mxu0 %v2148
      %2227 = vmatprep.subr.mxu0 0.0
      %2228 = vmatpush1.msra.mxu0 %v2149
      %2229 = vmatprep.subr.mxu0 0.0
      %2230 = vmatpush1.msra.mxu0 %v2150
      %2231 = vmatprep.mubr.f32.mxu0 %v1862
      %2232 = vmatmul.mubr.f32.gmra.mrb[0].mxu0 %v1958
      %v2233 = vpop.f32.mrb[0].mxu0
      %v2234 = vadd.f32 0.0, %v2233
      %v2235 = vpop.f32.mrb[0].mxu0
      %2236 = vmatprep.mubr.f32.mxu0 %v1863
      %2237 = vmatmul.mubr.f32.gmra.mrb[0].mxu0 %v1959
      %v2238 = vpop.f32.mrb[0].mxu0
      %v2239 = vadd.f32 0.0, %v2238
      %v2240 = vpop.f32.mrb[0].mxu0
      %2241 = vmatprep.mubr.f32.mxu0 %v1864
      %2242 = vmatmul.mubr.f32.gmra.mrb[0].mxu0 %v1960
      %v2243 = vpop.f32.mrb[0].mxu0
      %v2244 = vadd.f32 0.0, %v2243
      %v2245 = vpop.f32.mrb[0].mxu0
      %2246 = vmatprep.mubr.f32.mxu0 %v1865
      %2247 = vmatmul.mubr.f32.gmra.mrb[0].mxu0 %v1961
      %v2248 = vpop.f32.mrb[0].mxu0
      %v2249 = vadd.f32 0.0, %v2248
      %v2250 = vpop.f32.mrb[0].mxu0
      %2251 = vmatprep.mubr.f32.mxu0 %v1866
      %2252 = vmatmul.mubr.f32.gmra.mrb[0].mxu0 %v1962
      %v2253 = vpop.f32.mrb[0].mxu0
      %v2254 = vadd.f32 0.0, %v2253
      %v2255 = vpop.f32.mrb[0].mxu0
      %2256 = vmatprep.mubr.f32.mxu0 %v1867
      %2257 = vmatmul.mubr.f32.gmra.mrb[0].mxu0 %v1963
      %v2258 = vpop.f32.mrb[0].mxu0
      %v2259 = vadd.f32 0.0, %v2258
      %v2260 = vpop.f32.mrb[0].mxu0
      %2261 = vmatprep.mubr.f32.mxu0 %v1868
      %2262 = vmatmul.mubr.f32.gmra.mrb[0].mxu0 %v1964
      %v2263 = vpop.f32.mrb[0].mxu0
      %v2264 = vadd.f32 0.0, %v2263
      %v2265 = vpop.f32.mrb[0].mxu0
      %2266 = vmatprep.mubr.f32.mxu0 %v1869
      %2267 = vmatmul.mubr.f32.gmra.mrb[0].mxu0 %v1965
      %v2268 = vpop.f32.mrb[0].mxu0
      %v2269 = vadd.f32 0.0, %v2268
      %v2270 = vpop.f32.mrb[0].mxu0
      %2271 = vmatprep.mubr.f32.mxu0 %v1870
      %2272 = vmatmul.mubr.f32.gmra.mrb[0].mxu0 %v1966
      %v2273 = vpop.f32.mrb[0].mxu0
      %v2274 = vadd.f32 0.0, %v2273
      %v2275 = vpop.f32.mrb[0].mxu0
      %2276 = vmatprep.mubr.f32.mxu0 %v1871
      %2277 = vmatmul.mubr.f32.gmra.mrb[0].mxu0 %v1967
      %v2278 = vpop.f32.mrb[0].mxu0
      %v2279 = vadd.f32 0.0, %v2278
      %v2280 = vpop.f32.mrb[0].mxu0
      %2281 = vmatprep.mubr.f32.mxu0 %v1872
      %2282 = vmatmul.mubr.f32.gmra.mrb[0].mxu0 %v1968
      %v2283 = vpop.f32.mrb[0].mxu0
      %v2284 = vadd.f32 0.0, %v2283
      %v2285 = vpop.f32.mrb[0].mxu0
      %2286 = vmatprep.mubr.f32.mxu0 %v1873
      %2287 = vmatmul.mubr.f32.gmra.mrb[0].mxu0 %v1969
      %v2288 = vpop.f32.mrb[0].mxu0
      %v2289 = vadd.f32 0.0, %v2288
      %v2290 = vpop.f32.mrb[0].mxu0
      %2291 = vmatprep.mubr.f32.mxu0 %v1874
      %2292 = vmatmul.mubr.f32.gmra.mrb[0].mxu0 %v1970
      %v2293 = vpop.f32.mrb[0].mxu0
      %v2294 = vadd.f32 0.0, %v2293
      %v2295 = vpop.f32.mrb[0].mxu0
      %2296 = vmatprep.mubr.f32.mxu0 %v1875
      %2297 = vmatmul.mubr.f32.gmra.mrb[0].mxu0 %v1971
      %v2298 = vpop.f32.mrb[0].mxu0
      %v2299 = vadd.f32 0.0, %v2298
      %v2300 = vpop.f32.mrb[0].mxu0
      %2301 = vmatprep.mubr.f32.mxu0 %v1876
      %2302 = vmatmul.mubr.f32.gmra.mrb[0].mxu0 %v1972
      %v2303 = vpop.f32.mrb[0].mxu0
      %v2304 = vadd.f32 0.0, %v2303
      %v2305 = vpop.f32.mrb[0].mxu0
      %2306 = vmatprep.mubr.f32.mxu0 %v1877
      %2307 = vmatmul.mubr.f32.gmra.mrb[0].mxu0 %v1973
      %v2308 = vpop.f32.mrb[0].mxu0
      %v2309 = vadd.f32 0.0, %v2308
      %v2310 = vpop.f32.mrb[0].mxu0
      %2311 = vmatprep.mubr.f32.mxu0 %v1878
      %2312 = vmatmul.mubr.f32.gmra.mrb[0].mxu0 %v1974
      %v2313 = vpop.f32.mrb[0].mxu0
      %v2314 = vadd.f32 0.0, %v2313
      %v2315 = vpop.f32.mrb[0].mxu0
      %2316 = vmatprep.mubr.f32.mxu0 %v1879
      %2317 = vmatmul.mubr.f32.gmra.mrb[0].mxu0 %v1975
      %v2318 = vpop.f32.mrb[0].mxu0
      %v2319 = vadd.f32 0.0, %v2318
      %v2320 = vpop.f32.mrb[0].mxu0
      %2321 = vmatprep.mubr.f32.mxu0 %v1880
      %2322 = vmatmul.mubr.f32.gmra.mrb[0].mxu0 %v1976
      %v2323 = vpop.f32.mrb[0].mxu0
      %v2324 = vadd.f32 0.0, %v2323
      %v2325 = vpop.f32.mrb[0].mxu0
      %2326 = vmatprep.mubr.f32.mxu0 %v1881
      %2327 = vmatmul.mubr.f32.gmra.mrb[0].mxu0 %v1977
      %v2328 = vpop.f32.mrb[0].mxu0
      %v2329 = vadd.f32 0.0, %v2328
      %v2330 = vpop.f32.mrb[0].mxu0
      %2331 = vmatprep.mubr.f32.mxu0 %v1882
      %2332 = vmatmul.mubr.f32.gmra.mrb[0].mxu0 %v1978
      %v2333 = vpop.f32.mrb[0].mxu0
      %v2334 = vadd.f32 0.0, %v2333
      %v2335 = vpop.f32.mrb[0].mxu0
      %2336 = vmatprep.mubr.f32.mxu0 %v1883
      %2337 = vmatmul.mubr.f32.gmra.mrb[0].mxu0 %v1979
      %v2338 = vpop.f32.mrb[0].mxu0
      %v2339 = vadd.f32 0.0, %v2338
      %v2340 = vpop.f32.mrb[0].mxu0
      %2341 = vmatprep.mubr.f32.mxu0 %v1884
      %2342 = vmatmul.mubr.f32.gmra.mrb[0].mxu0 %v1980
      %v2343 = vpop.f32.mrb[0].mxu0
      %v2344 = vadd.f32 0.0, %v2343
      %v2345 = vpop.f32.mrb[0].mxu0
      %2346 = vmatprep.mubr.f32.mxu0 %v1885
      %2347 = vmatmul.mubr.f32.gmra.mrb[0].mxu0 %v1981
      %v2348 = vpop.f32.mrb[0].mxu0
      %v2349 = vadd.f32 0.0, %v2348
      %v2350 = vpop.f32.mrb[0].mxu0
      %2351 = vmatprep.mubr.f32.mxu0 %v1886
      %2352 = vmatmul.mubr.f32.gmra.mrb[0].mxu0 %v1982
      %v2353 = vpop.f32.mrb[0].mxu0
      %v2354 = vadd.f32 0.0, %v2353
      %v2355 = vpop.f32.mrb[0].mxu0
      %2356 = vmatprep.mubr.f32.mxu0 %v1887
      %2357 = vmatmul.mubr.f32.gmra.mrb[0].mxu0 %v1983
      %v2358 = vpop.f32.mrb[0].mxu0
      %v2359 = vadd.f32 0.0, %v2358
      %v2360 = vpop.f32.mrb[0].mxu0
      %2361 = vmatprep.mubr.f32.mxu0 %v1888
      %2362 = vmatmul.mubr.f32.gmra.mrb[0].mxu0 %v1984
      %v2363 = vpop.f32.mrb[0].mxu0
      %v2364 = vadd.f32 0.0, %v2363
      %v2365 = vpop.f32.mrb[0].mxu0
      %2366 = vmatprep.mubr.f32.mxu0 %v1889
      %2367 = vmatmul.mubr.f32.gmra.mrb[0].mxu0 %v1985
      %v2368 = vpop.f32.mrb[0].mxu0
      %v2369 = vadd.f32 0.0, %v2368
      %v2370 = vpop.f32.mrb[0].mxu0
      %2371 = vmatprep.mubr.f32.mxu0 %v1890
      %2372 = vmatmul.mubr.f32.gmra.mrb[0].mxu0 %v1986
      %v2373 = vpop.f32.mrb[0].mxu0
      %v2374 = vadd.f32 0.0, %v2373
      %v2375 = vpop.f32.mrb[0].mxu0
      %2376 = vmatprep.mubr.f32.mxu0 %v1891
      %2377 = vmatmul.mubr.f32.gmra.mrb[0].mxu0 %v1987
      %v2378 = vpop.f32.mrb[0].mxu0
      %v2379 = vadd.f32 0.0, %v2378
      %v2380 = vpop.f32.mrb[0].mxu0
      %2381 = vmatprep.mubr.f32.mxu0 %v1892
      %2382 = vmatmul.mubr.f32.gmra.mrb[0].mxu0 %v1988
      %v2383 = vpop.f32.mrb[0].mxu0
      %v2384 = vadd.f32 0.0, %v2383
      %v2385 = vpop.f32.mrb[0].mxu0
      %2386 = vmatprep.mubr.f32.mxu0 %v1893
      %2387 = vmatmul.mubr.f32.gmra.mrb[0].mxu0 %v1989
      %v2388 = vpop.f32.mrb[0].mxu0
      %v2389 = vadd.f32 0.0, %v2388
      %v2390 = vpop.f32.mrb[0].mxu0
      %2391 = vdwg.mxu0
      %2392 = vmatprep.subr.mxu0 0.0
      %2393 = vmatpush1.msra.mxu0 %v2151
      %2394 = vmatprep.subr.mxu0 0.0
      %2395 = vmatpush1.msra.mxu0 %v2152
      %2396 = vmatprep.subr.mxu0 0.0
      %2397 = vmatpush1.msra.mxu0 %v2153
      %2398 = vmatprep.subr.mxu0 0.0
      %2399 = vmatpush1.msra.mxu0 %v2154
      %2400 = vmatprep.subr.mxu0 0.0
      %2401 = vmatpush1.msra.mxu0 %v2155
      %2402 = vmatprep.subr.mxu0 0.0
      %2403 = vmatpush1.msra.mxu0 %v2156
      %2404 = vmatprep.subr.mxu0 0.0
      %2405 = vmatpush1.msra.mxu0 %v2157
      %2406 = vmatprep.subr.mxu0 0.0
      %2407 = vmatpush1.msra.mxu0 %v2158
      %2408 = vmatprep.subr.mxu0 0.0
      %2409 = vmatpush1.msra.mxu0 %v2159
      %2410 = vmatprep.subr.mxu0 0.0
      %2411 = vmatpush1.msra.mxu0 %v2160
      %2412 = vmatprep.subr.mxu0 0.0
      %2413 = vmatpush1.msra.mxu0 %v2161
      %2414 = vmatprep.subr.mxu0 0.0
      %2415 = vmatpush1.msra.mxu0 %v2162
      %2416 = vmatprep.subr.mxu0 0.0
      %2417 = vmatpush1.msra.mxu0 %v2163
      %2418 = vmatprep.subr.mxu0 0.0
      %2419 = vmatpush1.msra.mxu0 %v2164
      %2420 = vmatprep.subr.mxu0 0.0
      %2421 = vmatpush1.msra.mxu0 %v2165
      %2422 = vmatprep.subr.mxu0 0.0
      %2423 = vmatpush1.msra.mxu0 %v2166
      %2424 = vmatprep.subr.mxu0 0.0
      %2425 = vmatpush1.msra.mxu0 0.0
      %2426 = vmatprep.subr.mxu0 0.0
      %2427 = vmatpush1.msra.mxu0 0.0
      %2428 = vmatprep.subr.mxu0 0.0
      %2429 = vmatpush1.msra.mxu0 0.0
      %2430 = vmatprep.subr.mxu0 0.0
      %2431 = vmatpush1.msra.mxu0 0.0
      %2432 = vmatprep.subr.mxu0 0.0
      %2433 = vmatpush1.msra.mxu0 0.0
      %2434 = vmatprep.subr.mxu0 0.0
      %2435 = vmatpush1.msra.mxu0 0.0
      %2436 = vmatprep.subr.mxu0 0.0
      %2437 = vmatpush1.msra.mxu0 0.0
      %2438 = vmatprep.subr.mxu0 0.0
      %2439 = vmatpush1.msra.mxu0 0.0
      %2440 = vmatprep.subr.mxu0 0.0
      %2441 = vmatpush1.msra.mxu0 0.0
      %2442 = vmatprep.subr.mxu0 0.0
      %2443 = vmatpush1.msra.mxu0 0.0
      %2444 = vmatprep.subr.mxu0 0.0
      %2445 = vmatpush1.msra.mxu0 0.0
      %2446 = vmatprep.subr.mxu0 0.0
      %2447 = vmatpush1.msra.mxu0 0.0
      %2448 = vmatprep.subr.mxu0 0.0
      %2449 = vmatpush1.msra.mxu0 0.0
      %2450 = vmatprep.subr.mxu0 0.0
      %2451 = vmatpush1.msra.mxu0 0.0
      %2452 = vmatprep.subr.mxu0 0.0
      %2453 = vmatpush1.msra.mxu0 0.0
      %2454 = vmatprep.subr.mxu0 0.0
      %2455 = vmatpush1.msra.mxu0 0.0
      %2456 = vmatprep.mubr.f32.mxu0 0.0
      %2457 = vmatmul.mubr.f32.gmra.mrb[0].mxu0 %v2054
      %v2458 = vpop.f32.mrb[0].mxu0
      %v2459 = vadd.f32 %v2234, %v2458
      %v2460 = vpop.f32.mrb[0].mxu0
      %2461 = vmatprep.mubr.f32.mxu0 0.0
      %2462 = vmatmul.mubr.f32.gmra.mrb[0].mxu0 %v2055
      %v2463 = vpop.f32.mrb[0].mxu0
      %v2464 = vadd.f32 %v2239, %v2463
      %v2465 = vpop.f32.mrb[0].mxu0
      %2466 = vmatprep.mubr.f32.mxu0 0.0
      %2467 = vmatmul.mubr.f32.gmra.mrb[0].mxu0 %v2056
      %v2468 = vpop.f32.mrb[0].mxu0
      %v2469 = vadd.f32 %v2244, %v2468
      %v2470 = vpop.f32.mrb[0].mxu0
      %2471 = vmatprep.mubr.f32.mxu0 0.0
      %2472 = vmatmul.mubr.f32.gmra.mrb[0].mxu0 %v2057
      %v2473 = vpop.f32.mrb[0].mxu0
      %v2474 = vadd.f32 %v2249, %v2473
      %v2475 = vpop.f32.mrb[0].mxu0
      %2476 = vmatprep.mubr.f32.mxu0 0.0
      %2477 = vmatmul.mubr.f32.gmra.mrb[0].mxu0 %v2058
      %v2478 = vpop.f32.mrb[0].mxu0
      %v2479 = vadd.f32 %v2254, %v2478
      %v2480 = vpop.f32.mrb[0].mxu0
      %2481 = vmatprep.mubr.f32.mxu0 0.0
      %2482 = vmatmul.mubr.f32.gmra.mrb[0].mxu0 %v2059
      %v2483 = vpop.f32.mrb[0].mxu0
      %v2484 = vadd.f32 %v2259, %v2483
      %v2485 = vpop.f32.mrb[0].mxu0
      %2486 = vmatprep.mubr.f32.mxu0 0.0
      %2487 = vmatmul.mubr.f32.gmra.mrb[0].mxu0 %v2060
      %v2488 = vpop.f32.mrb[0].mxu0
      %v2489 = vadd.f32 %v2264, %v2488
      %v2490 = vpop.f32.mrb[0].mxu0
      %2491 = vmatprep.mubr.f32.mxu0 0.0
      %2492 = vmatmul.mubr.f32.gmra.mrb[0].mxu0 %v2061
      %v2493 = vpop.f32.mrb[0].mxu0
      %v2494 = vadd.f32 %v2269, %v2493
      %v2495 = vpop.f32.mrb[0].mxu0
      %2496 = vmatprep.mubr.f32.mxu0 0.0
      %2497 = vmatmul.mubr.f32.gmra.mrb[0].mxu0 %v2062
      %v2498 = vpop.f32.mrb[0].mxu0
      %v2499 = vadd.f32 %v2274, %v2498
      %v2500 = vpop.f32.mrb[0].mxu0
      %2501 = vmatprep.mubr.f32.mxu0 0.0
      %2502 = vmatmul.mubr.f32.gmra.mrb[0].mxu0 %v2063
      %v2503 = vpop.f32.mrb[0].mxu0
      %v2504 = vadd.f32 %v2279, %v2503
      %v2505 = vpop.f32.mrb[0].mxu0
      %2506 = vmatprep.mubr.f32.mxu0 0.0
      %2507 = vmatmul.mubr.f32.gmra.mrb[0].mxu0 %v2064
      %v2508 = vpop.f32.mrb[0].mxu0
      %v2509 = vadd.f32 %v2284, %v2508
      %v2510 = vpop.f32.mrb[0].mxu0
      %2511 = vmatprep.mubr.f32.mxu0 0.0
      %2512 = vmatmul.mubr.f32.gmra.mrb[0].mxu0 %v2065
      %v2513 = vpop.f32.mrb[0].mxu0
      %v2514 = vadd.f32 %v2289, %v2513
      %v2515 = vpop.f32.mrb[0].mxu0
      %2516 = vmatprep.mubr.f32.mxu0 0.0
      %2517 = vmatmul.mubr.f32.gmra.mrb[0].mxu0 %v2066
      %v2518 = vpop.f32.mrb[0].mxu0
      %v2519 = vadd.f32 %v2294, %v2518
      %v2520 = vpop.f32.mrb[0].mxu0
      %2521 = vmatprep.mubr.f32.mxu0 0.0
      %2522 = vmatmul.mubr.f32.gmra.mrb[0].mxu0 %v2067
      %v2523 = vpop.f32.mrb[0].mxu0
      %v2524 = vadd.f32 %v2299, %v2523
      %v2525 = vpop.f32.mrb[0].mxu0
      %2526 = vmatprep.mubr.f32.mxu0 0.0
      %2527 = vmatmul.mubr.f32.gmra.mrb[0].mxu0 %v2068
      %v2528 = vpop.f32.mrb[0].mxu0
      %v2529 = vadd.f32 %v2304, %v2528
      %v2530 = vpop.f32.mrb[0].mxu0
      %2531 = vmatprep.mubr.f32.mxu0 0.0
      %2532 = vmatmul.mubr.f32.gmra.mrb[0].mxu0 %v2069
      %v2533 = vpop.f32.mrb[0].mxu0
      %v2534 = vadd.f32 %v2309, %v2533
      %v2535 = vpop.f32.mrb[0].mxu0
      %2536 = vmatprep.mubr.f32.mxu0 0.0
      %2537 = vmatmul.mubr.f32.gmra.mrb[0].mxu0 %v2070
      %v2538 = vpop.f32.mrb[0].mxu0
      %v2539 = vadd.f32 %v2314, %v2538
      %v2540 = vpop.f32.mrb[0].mxu0
      %2541 = vmatprep.mubr.f32.mxu0 0.0
      %2542 = vmatmul.mubr.f32.gmra.mrb[0].mxu0 %v2071
      %v2543 = vpop.f32.mrb[0].mxu0
      %v2544 = vadd.f32 %v2319, %v2543
      %v2545 = vpop.f32.mrb[0].mxu0
      %2546 = vmatprep.mubr.f32.mxu0 0.0
      %2547 = vmatmul.mubr.f32.gmra.mrb[0].mxu0 %v2072
      %v2548 = vpop.f32.mrb[0].mxu0
      %v2549 = vadd.f32 %v2324, %v2548
      %v2550 = vpop.f32.mrb[0].mxu0
      %2551 = vmatprep.mubr.f32.mxu0 0.0
      %2552 = vmatmul.mubr.f32.gmra.mrb[0].mxu0 %v2073
      %v2553 = vpop.f32.mrb[0].mxu0
      %v2554 = vadd.f32 %v2329, %v2553
      %v2555 = vpop.f32.mrb[0].mxu0
      %2556 = vmatprep.mubr.f32.mxu0 0.0
      %2557 = vmatmul.mubr.f32.gmra.mrb[0].mxu0 %v2074
      %v2558 = vpop.f32.mrb[0].mxu0
      %v2559 = vadd.f32 %v2334, %v2558
      %v2560 = vpop.f32.mrb[0].mxu0
      %2561 = vmatprep.mubr.f32.mxu0 0.0
      %2562 = vmatmul.mubr.f32.gmra.mrb[0].mxu0 %v2075
      %v2563 = vpop.f32.mrb[0].mxu0
      %v2564 = vadd.f32 %v2339, %v2563
      %v2565 = vpop.f32.mrb[0].mxu0
      %2566 = vmatprep.mubr.f32.mxu0 0.0
      %2567 = vmatmul.mubr.f32.gmra.mrb[0].mxu0 %v2076
      %v2568 = vpop.f32.mrb[0].mxu0
      %v2569 = vadd.f32 %v2344, %v2568
      %v2570 = vpop.f32.mrb[0].mxu0
      %2571 = vmatprep.mubr.f32.mxu0 0.0
      %2572 = vmatmul.mubr.f32.gmra.mrb[0].mxu0 %v2077
      %v2573 = vpop.f32.mrb[0].mxu0
      %v2574 = vadd.f32 %v2349, %v2573
      %v2575 = vpop.f32.mrb[0].mxu0
      %2576 = vmatprep.mubr.f32.mxu0 0.0
      %2577 = vmatmul.mubr.f32.gmra.mrb[0].mxu0 %v2078
      %v2578 = vpop.f32.mrb[0].mxu0
      %v2579 = vadd.f32 %v2354, %v2578
      %v2580 = vpop.f32.mrb[0].mxu0
      %2581 = vmatprep.mubr.f32.mxu0 0.0
      %2582 = vmatmul.mubr.f32.gmra.mrb[0].mxu0 %v2079
      %v2583 = vpop.f32.mrb[0].mxu0
      %v2584 = vadd.f32 %v2359, %v2583
      %v2585 = vpop.f32.mrb[0].mxu0
      %2586 = vmatprep.mubr.f32.mxu0 0.0
      %2587 = vmatmul.mubr.f32.gmra.mrb[0].mxu0 %v2080
      %v2588 = vpop.f32.mrb[0].mxu0
      %v2589 = vadd.f32 %v2364, %v2588
      %v2590 = vpop.f32.mrb[0].mxu0
      %2591 = vmatprep.mubr.f32.mxu0 0.0
      %2592 = vmatmul.mubr.f32.gmra.mrb[0].mxu0 %v2081
      %v2593 = vpop.f32.mrb[0].mxu0
      %v2594 = vadd.f32 %v2369, %v2593
      %v2595 = vpop.f32.mrb[0].mxu0
      %2596 = vmatprep.mubr.f32.mxu0 0.0
      %2597 = vmatmul.mubr.f32.gmra.mrb[0].mxu0 %v2082
      %v2598 = vpop.f32.mrb[0].mxu0
      %v2599 = vadd.f32 %v2374, %v2598
      %v2600 = vpop.f32.mrb[0].mxu0
      %2601 = vmatprep.mubr.f32.mxu0 0.0
      %2602 = vmatmul.mubr.f32.gmra.mrb[0].mxu0 %v2083
      %v2603 = vpop.f32.mrb[0].mxu0
      %v2604 = vadd.f32 %v2379, %v2603
      %v2605 = vpop.f32.mrb[0].mxu0
      %2606 = vmatprep.mubr.f32.mxu0 0.0
      %2607 = vmatmul.mubr.f32.gmra.mrb[0].mxu0 %v2084
      %v2608 = vpop.f32.mrb[0].mxu0
      %v2609 = vadd.f32 %v2384, %v2608
      %v2610 = vpop.f32.mrb[0].mxu0
      %2611 = vmatprep.mubr.f32.mxu0 0.0
      %2612 = vmatmul.mubr.f32.gmra.mrb[0].mxu0 %v2085
      %v2613 = vpop.f32.mrb[0].mxu0
      %v2614 = vadd.f32 %v2389, %v2613
      %v2615 = vpop.f32.mrb[0].mxu0
      %2616 = vdwg.mxu0
      %v2617 = vadd.f32 %v2086, %v2459
      %v2618 = vadd.f32 %v2087, %v2464
      %v2619 = vadd.f32 %v2088, %v2469
      %v2620 = vadd.f32 %v2089, %v2474
      %v2621 = vadd.f32 %v2090, %v2479
      %v2622 = vadd.f32 %v2091, %v2484
      %v2623 = vadd.f32 %v2092, %v2489
      %v2624 = vadd.f32 %v2093, %v2494
      %v2625 = vadd.f32 %v2094, %v2499
      %v2626 = vadd.f32 %v2095, %v2504
      %v2627 = vadd.f32 %v2096, %v2509
      %v2628 = vadd.f32 %v2097, %v2514
      %v2629 = vadd.f32 %v2098, %v2519
      %v2630 = vadd.f32 %v2099, %v2524
      %v2631 = vadd.f32 %v2100, %v2529
      %v2632 = vadd.f32 %v2101, %v2534
      %v2633 = vadd.f32 %v2102, %v2539
      %v2634 = vadd.f32 %v2103, %v2544
      %v2635 = vadd.f32 %v2104, %v2549
      %v2636 = vadd.f32 %v2105, %v2554
      %v2637 = vadd.f32 %v2106, %v2559
      %v2638 = vadd.f32 %v2107, %v2564
      %v2639 = vadd.f32 %v2108, %v2569
      %v2640 = vadd.f32 %v2109, %v2574
      %v2641 = vadd.f32 %v2110, %v2579
      %v2642 = vadd.f32 %v2111, %v2584
      %v2643 = vadd.f32 %v2112, %v2589
      %v2644 = vadd.f32 %v2113, %v2594
      %v2645 = vadd.f32 %v2114, %v2599
      %v2646 = vadd.f32 %v2115, %v2604
      %v2647 = vadd.f32 %v2116, %v2609
      %v2648 = vadd.f32 %v2117, %v2614
      %2649 = vst [vmem:[#allocation2] sm:$0xff] %v2617
      %2650 = vst [vmem:[#allocation2 + $0x8] sm:$0xff] %v2618
      %2651 = vst [vmem:[#allocation2 + $0x10] sm:$0xff] %v2619
      %2652 = vst [vmem:[#allocation2 + $0x18] sm:$0xff] %v2620
      %2653 = vst [vmem:[#allocation2 + $0x20] sm:$0xff] %v2621
      %2654 = vst [vmem:[#allocation2 + $0x28] sm:$0xff] %v2622
      %2655 = vst [vmem:[#allocation2 + $0x30] sm:$0xff] %v2623
      %2656 = vst [vmem:[#allocation2 + $0x38] sm:$0xff] %v2624
      %2657 = vst [vmem:[#allocation2 + $0x40] sm:$0xff] %v2625
      %2658 = vst [vmem:[#allocation2 + $0x48] sm:$0xff] %v2626
      %2659 = vst [vmem:[#allocation2 + $0x50] sm:$0xff] %v2627
      %2660 = vst [vmem:[#allocation2 + $0x58] sm:$0xff] %v2628
      %2661 = vst [vmem:[#allocation2 + $0x60] sm:$0xff] %v2629
      %2662 = vst [vmem:[#allocation2 + $0x68] sm:$0xff] %v2630
      %2663 = vst [vmem:[#allocation2 + $0x70] sm:$0xff] %v2631
      %2664 = vst [vmem:[#allocation2 + $0x78] sm:$0xff] %v2632
      %2665 = vst [vmem:[#allocation2 + $0x80] sm:$0xff] %v2633
      %2666 = vst [vmem:[#allocation2 + $0x88] sm:$0xff] %v2634
      %2667 = vst [vmem:[#allocation2 + $0x90] sm:$0xff] %v2635
      %2668 = vst [vmem:[#allocation2 + $0x98] sm:$0xff] %v2636
      %2669 = vst [vmem:[#allocation2 + $0xa0] sm:$0xff] %v2637
      %2670 = vst [vmem:[#allocation2 + $0xa8] sm:$0xff] %v2638
      %2671 = vst [vmem:[#allocation2 + $0xb0] sm:$0xff] %v2639
      %2672 = vst [vmem:[#allocation2 + $0xb8] sm:$0xff] %v2640
      %2673 = vst [vmem:[#allocation2 + $0xc0] sm:$0xff] %v2641
      %2674 = vst [vmem:[#allocation2 + $0xc8] sm:$0xff] %v2642
      %2675 = vst [vmem:[#allocation2 + $0xd0] sm:$0xff] %v2643
      %2676 = vst [vmem:[#allocation2 + $0xd8] sm:$0xff] %v2644
      %2677 = vst [vmem:[#allocation2 + $0xe0] sm:$0xff] %v2645
      %2678 = vst [vmem:[#allocation2 + $0xe8] sm:$0xff] %v2646
      %2679 = vst [vmem:[#allocation2 + $0xf0] sm:$0xff] %v2647
      %2680 = vst [vmem:[#allocation2 + $0xf8] sm:$0xff] %v2648
      %v2681 = vld [vmem:[#allocation2] sm:$0xff]
      %v2682 = vld [vmem:[#allocation2 + $0x8] sm:$0xff]
      %v2683 = vld [vmem:[#allocation2 + $0x10] sm:$0xff]
      %v2684 = vld [vmem:[#allocation2 + $0x18] sm:$0xff]
      %v2685 = vld [vmem:[#allocation2 + $0x20] sm:$0xff]
      %v2686 = vld [vmem:[#allocation2 + $0x28] sm:$0xff]
      %v2687 = vld [vmem:[#allocation2 + $0x30] sm:$0xff]
      %v2688 = vld [vmem:[#allocation2 + $0x38] sm:$0xff]
      %v2689 = vld [vmem:[#allocation2 + $0x40] sm:$0xff]
      %v2690 = vld [vmem:[#allocation2 + $0x48] sm:$0xff]
      %v2691 = vld [vmem:[#allocation2 + $0x50] sm:$0xff]
      %v2692 = vld [vmem:[#allocation2 + $0x58] sm:$0xff]
      %v2693 = vld [vmem:[#allocation2 + $0x60] sm:$0xff]
      %v2694 = vld [vmem:[#allocation2 + $0x68] sm:$0xff]
      %v2695 = vld [vmem:[#allocation2 + $0x70] sm:$0xff]
      %v2696 = vld [vmem:[#allocation2 + $0x78] sm:$0xff]
      %v2697 = vld [vmem:[#allocation2 + $0x80] sm:$0xff]
      %v2698 = vld [vmem:[#allocation2 + $0x88] sm:$0xff]
      %v2699 = vld [vmem:[#allocation2 + $0x90] sm:$0xff]
      %v2700 = vld [vmem:[#allocation2 + $0x98] sm:$0xff]
      %v2701 = vld [vmem:[#allocation2 + $0xa0] sm:$0xff]
      %v2702 = vld [vmem:[#allocation2 + $0xa8] sm:$0xff]
      %v2703 = vld [vmem:[#allocation2 + $0xb0] sm:$0xff]
      %v2704 = vld [vmem:[#allocation2 + $0xb8] sm:$0xff]
      %v2705 = vld [vmem:[#allocation2 + $0xc0] sm:$0xff]
      %v2706 = vld [vmem:[#allocation2 + $0xc8] sm:$0xff]
      %v2707 = vld [vmem:[#allocation2 + $0xd0] sm:$0xff]
      %v2708 = vld [vmem:[#allocation2 + $0xd8] sm:$0xff]
      %v2709 = vld [vmem:[#allocation2 + $0xe0] sm:$0xff]
      %v2710 = vld [vmem:[#allocation2 + $0xe8] sm:$0xff]
      %v2711 = vld [vmem:[#allocation2 + $0xf0] sm:$0xff]
      %v2712 = vld [vmem:[#allocation2 + $0xf8] sm:$0xff]
      %2713 = vst [vmem:[%s177] sm:$0xff] %v2681
      %2714 = vst [vmem:[%s177 + $0x8] sm:$0xff] %v2682
      %2715 = vst [vmem:[%s177 + $0x10] sm:$0xff] %v2683
      %2716 = vst [vmem:[%s177 + $0x18] sm:$0xff] %v2684
      %2717 = vst [vmem:[%s177 + $0x20] sm:$0xff] %v2685
      %2718 = vst [vmem:[%s177 + $0x28] sm:$0xff] %v2686
      %2719 = vst [vmem:[%s177 + $0x30] sm:$0xff] %v2687
      %2720 = vst [vmem:[%s177 + $0x38] sm:$0xff] %v2688
      %2721 = vst [vmem:[%s177 + $0x40] sm:$0xff] %v2689
      %2722 = vst [vmem:[%s177 + $0x48] sm:$0xff] %v2690
      %2723 = vst [vmem:[%s177 + $0x50] sm:$0xff] %v2691
      %2724 = vst [vmem:[%s177 + $0x58] sm:$0xff] %v2692
      %2725 = vst [vmem:[%s177 + $0x60] sm:$0xff] %v2693
      %2726 = vst [vmem:[%s177 + $0x68] sm:$0xff] %v2694
      %2727 = vst [vmem:[%s177 + $0x70] sm:$0xff] %v2695
      %2728 = vst [vmem:[%s177 + $0x78] sm:$0xff] %v2696
      %2729 = vst [vmem:[%s177 + $0x80] sm:$0xff] %v2697
      %2730 = vst [vmem:[%s177 + $0x88] sm:$0xff] %v2698
      %2731 = vst [vmem:[%s177 + $0x90] sm:$0xff] %v2699
      %2732 = vst [vmem:[%s177 + $0x98] sm:$0xff] %v2700
      %2733 = vst [vmem:[%s177 + $0xa0] sm:$0xff] %v2701
      %2734 = vst [vmem:[%s177 + $0xa8] sm:$0xff] %v2702
      %2735 = vst [vmem:[%s177 + $0xb0] sm:$0xff] %v2703
      %2736 = vst [vmem:[%s177 + $0xb8] sm:$0xff] %v2704
      %2737 = vst [vmem:[%s177 + $0xc0] sm:$0xff] %v2705
      %2738 = vst [vmem:[%s177 + $0xc8] sm:$0xff] %v2706
      %2739 = vst [vmem:[%s177 + $0xd0] sm:$0xff] %v2707
      %2740 = vst [vmem:[%s177 + $0xd8] sm:$0xff] %v2708
      %2741 = vst [vmem:[%s177 + $0xe0] sm:$0xff] %v2709
      %2742 = vst [vmem:[%s177 + $0xe8] sm:$0xff] %v2710
      %2743 = vst [vmem:[%s177 + $0xf0] sm:$0xff] %v2711
      %2744 = vst [vmem:[%s177 + $0xf8] sm:$0xff] %v2712
      %v2745 = vadd.f32 %v2681, %v2682
      %v2746 = vadd.f32 %v2745, %v2683
      %v2747 = vadd.f32 %v2746, %v2684
      %v2748 = vadd.f32 %v2747, %v2685
      %v2749 = vadd.f32 %v2748, %v2686
      %v2750 = vadd.f32 %v2749, %v2687
      %v2751 = vadd.f32 %v2750, %v2688
      %v2752 = vadd.f32 %v2751, %v2689
      %v2753 = vadd.f32 %v2752, %v2690
      %v2754 = vadd.f32 %v2753, %v2691
      %v2755 = vadd.f32 %v2754, %v2692
      %v2756 = vadd.f32 %v2755, %v2693
      %v2757 = vadd.f32 %v2756, %v2694
      %v2758 = vadd.f32 %v2757, %v2695
      %v2759 = vadd.f32 %v2758, %v2696
      %v2760 = vadd.f32 %v2759, %v2697
      %v2761 = vadd.f32 %v2760, %v2698
      %v2762 = vadd.f32 %v2761, %v2699
      %v2763 = vadd.f32 %v2762, %v2700
      %v2764 = vadd.f32 %v2763, %v2701
      %v2765 = vadd.f32 %v2764, %v2702
      %v2766 = vadd.f32 %v2765, %v2703
      %v2767 = vadd.f32 %v2766, %v2704
      %v2768 = vadd.f32 %v2767, %v2705
      %v2769 = vadd.f32 %v2768, %v2706
      %v2770 = vadd.f32 %v2769, %v2707
      %v2771 = vadd.f32 %v2770, %v2708
      %v2772 = vadd.f32 %v2771, %v2709
      %v2773 = vadd.f32 %v2772, %v2710
      %v2774 = vadd.f32 %v2773, %v2711
      %v2775 = vadd.f32 %v2774, %v2712
      %v2776 = vrot.slane %v2775, 4
      %v2777 = vadd.f32 %v2775, %v2776
      %v2778 = vrot.slane %v2777, 2
      %v2779 = vadd.f32 %v2777, %v2778
      %v2780 = vrot.slane %v2779, 1
      %v2781 = vadd.f32 %v2779, %v2780
      %v2782 = vmul.f32 %v2681, %v2681
      %v2783 = vmul.f32 %v2682, %v2682
      %v2784 = vmul.f32 %v2683, %v2683
      %v2785 = vmul.f32 %v2684, %v2684
      %v2786 = vmul.f32 %v2685, %v2685
      %v2787 = vmul.f32 %v2686, %v2686
      %v2788 = vmul.f32 %v2687, %v2687
      %v2789 = vmul.f32 %v2688, %v2688
      %v2790 = vmul.f32 %v2689, %v2689
      %v2791 = vmul.f32 %v2690, %v2690
      %v2792 = vmul.f32 %v2691, %v2691
      %v2793 = vmul.f32 %v2692, %v2692
      %v2794 = vmul.f32 %v2693, %v2693
      %v2795 = vmul.f32 %v2694, %v2694
      %v2796 = vmul.f32 %v2695, %v2695
      %v2797 = vmul.f32 %v2696, %v2696
      %v2798 = vmul.f32 %v2697, %v2697
      %v2799 = vmul.f32 %v2698, %v2698
      %v2800 = vmul.f32 %v2699, %v2699
      %v2801 = vmul.f32 %v2700, %v2700
      %v2802 = vmul.f32 %v2701, %v2701
      %v2803 = vmul.f32 %v2702, %v2702
      %v2804 = vmul.f32 %v2703, %v2703
      %v2805 = vmul.f32 %v2704, %v2704
      %v2806 = vmul.f32 %v2705, %v2705
      %v2807 = vmul.f32 %v2706, %v2706
      %v2808 = vmul.f32 %v2707, %v2707
      %v2809 = vmul.f32 %v2708, %v2708
      %v2810 = vmul.f32 %v2709, %v2709
      %v2811 = vmul.f32 %v2710, %v2710
      %v2812 = vmul.f32 %v2711, %v2711
      %v2813 = vmul.f32 %v2712, %v2712
      %v2814 = vadd.f32 %v2782, %v2783
      %v2815 = vadd.f32 %v2814, %v2784
      %v2816 = vadd.f32 %v2815, %v2785
      %v2817 = vadd.f32 %v2816, %v2786
      %v2818 = vadd.f32 %v2817, %v2787
      %v2819 = vadd.f32 %v2818, %v2788
      %v2820 = vadd.f32 %v2819, %v2789
      %v2821 = vadd.f32 %v2820, %v2790
      %v2822 = vadd.f32 %v2821, %v2791
      %v2823 = vadd.f32 %v2822, %v2792
      %v2824 = vadd.f32 %v2823, %v2793
      %v2825 = vadd.f32 %v2824, %v2794
      %v2826 = vadd.f32 %v2825, %v2795
      %v2827 = vadd.f32 %v2826, %v2796
      %v2828 = vadd.f32 %v2827, %v2797
      %v2829 = vadd.f32 %v2828, %v2798
      %v2830 = vadd.f32 %v2829, %v2799
      %v2831 = vadd.f32 %v2830, %v2800
      %v2832 = vadd.f32 %v2831, %v2801
      %v2833 = vadd.f32 %v2832, %v2802
      %v2834 = vadd.f32 %v2833, %v2803
      %v2835 = vadd.f32 %v2834, %v2804
      %v2836 = vadd.f32 %v2835, %v2805
      %v2837 = vadd.f32 %v2836, %v2806
      %v2838 = vadd.f32 %v2837, %v2807
      %v2839 = vadd.f32 %v2838, %v2808
      %v2840 = vadd.f32 %v2839, %v2809
      %v2841 = vadd.f32 %v2840, %v2810
      %v2842 = vadd.f32 %v2841, %v2811
      %v2843 = vadd.f32 %v2842, %v2812
      %v2844 = vadd.f32 %v2843, %v2813
      %v2845 = vrot.slane %v2844, 4
      %v2846 = vadd.f32 %v2844, %v2845
      %v2847 = vrot.slane %v2846, 2
      %v2848 = vadd.f32 %v2846, %v2847
      %v2849 = vrot.slane %v2848, 1
      %v2850 = vadd.f32 %v2848, %v2849
      %vm2851 = vcmask 1040384
      %v2852 = vsel %vm2851, %v2781, %v2850
      %2853 = vst [vmem:[%s181] sm:$0x3] %v2852
      %p2854 = scmp.lt.s32.totalorder %s15, 1
      %s2855 = scalar_select %p2854, %s15, 1
      %s2856 = smul.addr %s2855, 32
      %s2857 = smul.addr %s2856, 8
      %s2858 = scalar_lea.vmem %s2, %s2857
      %p2859 = scmp.lt.s32.totalorder %s15, 1
      %s2860 = scalar_select %p2859, %s15, 1
      %s2861 = smul.addr %s2860, 2
      %s2862 = scalar_lea.vmem %s3, %s2861
      // Predicated region
      $region29: #{residual_block_forward.3} parent=27 // pred_check
        %p2863 = pneg %p80
      $region30: #{residual_block_forward.3} parent=27 // pred_check_branch
        %2865 = sbr.rel (%p2863) target = $region32
      $region31: #{residual_block_forward.3} parent=27 // pred_region
        _
      $region32: #{residual_block_forward.3} parent=27 // pred_fallthru
        _
      // Predicated region
      $region33: #{residual_block_forward.3} parent=27 // pred_check
        %p2866 = pneg %p106
      $region34: #{residual_block_forward.3} parent=27 // pred_check_branch
        %2868 = sbr.rel (%p2866) target = $region36
      $region35: #{residual_block_forward.3} parent=27 // pred_region
        _
      $region36: #{residual_block_forward.3} parent=27 // pred_fallthru
        _
    $region28: #{residual_block_forward.3} parent=5 // pred_fallthru
      _
    %p2869 = scmp.le.s32.totalorder 2, %s10
    // Predicated region
    $region37: #{residual_block_forward.3} parent=5 // pred_check
      %p2870 = pneg %p2869
    $region38: #{residual_block_forward.3} parent=5 // pred_check_branch
      %2872 = sbr.rel (%p2870) target = $region40
    $region39: #{residual_block_forward.3} parent=5 // pred_region
      %s2873 = ssub.s32 %s10, 2
      // Predicated region
      $region41: #{residual_block_forward.3} parent=39 // pred_check
        %p2874 = pneg %p86
      $region42: #{residual_block_forward.3} parent=39 // pred_check_branch
        %2876 = sbr.rel (%p2874) target = $region44
      $region43: #{residual_block_forward.3} parent=39 // pred_region
        %p2877 = scmp.lt.s32.totalorder %s16, 1
        %s2878 = scalar_select %p2877, %s16, 1
        %s2879 = smul.addr %s2878, 32
        %s2880 = smul.addr %s2879, 8
        %s2881 = scalar_lea.vmem %s2, %s2880
      $region44: #{residual_block_forward.3} parent=39 // pred_fallthru
        _
      // Predicated region
      $region45: #{residual_block_forward.3} parent=39 // pred_check
        %p2882 = pneg %p112
      $region46: #{residual_block_forward.3} parent=39 // pred_check_branch
        %2884 = sbr.rel (%p2882) target = $region48
      $region47: #{residual_block_forward.3} parent=39 // pred_region
        %p2885 = scmp.lt.s32.totalorder %s16, 1
        %s2886 = scalar_select %p2885, %s16, 1
        %s2887 = smul.addr %s2886, 2
        %s2888 = scalar_lea.vmem %s3, %s2887
      $region48: #{residual_block_forward.3} parent=39 // pred_fallthru
        _
    $region40: #{residual_block_forward.3} parent=5 // pred_fallthru
      _
  $region6: #{residual_block_forward.3} parent=0 // loop_footer
    %s14 = sadd.s32 1, %s10
  $region7: #{residual_block_forward.3} parent=0 // loop_footer_branch
    %9 = sbr.rel target = $region3
  $region8: #{residual_block_forward.3} parent=0 // loop_exit
    _

// kernel: residual_block_forward.4
$region0: #{residual_block_forward.4}
  #allocation0 [shape = 'u32[]', space=smem, size = 0x4, offset = 0x4, fixed_abs, tag = 'smem constant byte address 0x4 - core index']
  #allocation1 [shape = 'u32[144,128]{1,0:T(1,128)}', space=vmem, size = 0x12000, scoped, tag = 'internal scratch']
  #allocation2 [shape = 'f32[18,16,128]{2,1,0:T(8,128)}', space=vmem, size = 0x24000, scoped, tag = 'scratch operand']
  #allocation3 [shape = 'f32[256,128]{1,0:T(8,128)}', space=vmem, size = 0x20000, scoped, tag = 'scratch operand']
  %s0 = inlined_call_operand.vmem [shape: f32[2,16,16,128], index: 0, kind: input, shape index: {}]
  %s1 = inlined_call_operand.vmem [shape: f32[1,128], index: 1, kind: input, shape index: {}]
  %s2 = inlined_call_operand.vmem [shape: f32[1,128], index: 2, kind: input, shape index: {}]
  %s3 = inlined_call_operand.vmem [shape: f32[3,384,128], index: 3, kind: input, shape index: {}]
  %s4 = inlined_call_operand.vmem [shape: f32[2,16,16,128], index: 4, kind: output, shape index: {0}]
  %s5 = inlined_call_operand.vmem [shape: f32[2,2,128], index: 5, kind: output, shape index: {1}]
  %6 = xla_tuple %s4, %s5
  %s7 = sld [smem:[#allocation0]]
  $region57: #{residual_block_forward.4} parent=0
    _
  %s9 = ssub.s32 1, %s7
  %s10 = scalar_select 0, %s9, %s7
  loop: start=0, step=1, limit=4
  $region2: #{residual_block_forward.4} parent=0 // loop_pre_header
    _
  $region3: #{residual_block_forward.4} parent=0 // loop_header
    %s12 = sphi 0, %s16
    %p13 = scmp.ge.s32.totalorder %s12, 4
    %s22 = sphi 0, %s24
    %s25 = sphi 0, %s22
    %s26 = sphi 0, %s25
    %s42 = sphi 0, %s26
    %s46 = sphi 0, %s46
    %s48 = sphi 0, %s46
    %s49 = sphi 0, %s48
    %s63 = sphi 0, %s49
    %s67 = sphi 0, %s67
    %s69 = sphi 0, %s67
    %s70 = sphi 0, %s69
    %s84 = sphi 0, %s70
    %s88 = sphi 0, %s88
    %s90 = sphi 0, %s88
    %s91 = sphi 0, %s90
    %s105 = sphi 0, %s91
    %s111 = sphi 0, %s113
    %s114 = sphi 0, %s111
    %s115 = sphi 0, %s114
    %s131 = sphi 0, %s115
    %s137 = sphi 0, %s139
    %s140 = sphi 0, %s137
    %s141 = sphi 0, %s140
    %s157 = sphi 0, %s141
  $region4: #{residual_block_forward.4} parent=0 // loop_header_branch
    %15 = sbr.rel (%p13) target = $region8
  $region5: #{residual_block_forward.4} parent=0 // loop_body
    %s17 = ssub.s32 %s12, 1
    %s18 = ssub.s32 %s12, 2
    %s19 = sadd.s32 %s12, 1
    %s20 = ssub.s32 %s12, %s19
    %p21 = scmp.eq.s32.totalorder %s20, 0
    %s23 = sadd.s32 %s22, 1
    %s24 = scalar_select %p21, %s22, %s23
    %p27 = pneg %p21
    %p28 = scmp.eq.s32.totalorder %s12, 1
    %p29 = por %p27, %p28
    %p30 = scmp.ne.s32.totalorder %s22, %s25
    %p31 = scmp.eq.s32.totalorder %s12, 0
    %p32 = por %p30, %p31
    %p33 = scmp.ne.s32.totalorder %s22, %s25
    %p34 = scmp.eq.s32.totalorder %s17, 1
    %p35 = por %p33, %p34
    %p36 = scmp.ne.s32.totalorder %s25, %s26
    %p37 = scmp.eq.s32.totalorder %s17, 0
    %p38 = por %p36, %p37
    %p39 = scmp.ne.s32.totalorder %s25, %s26
    %p40 = scmp.eq.s32.totalorder %s18, 1
    %p41 = por %p39, %p40
    %p43 = scmp.ne.s32.totalorder %s26, %s42
    %p44 = scmp.eq.s32.totalorder %s18, 0
    %p45 = por %p43, %p44
    %s47 = sadd.s32 %s46, 1
    %p50 = scmp.eq.s32.totalorder %s12, 1
    %p51 = scmp.ne.s32.totalorder %s46, %s48
    %p52 = scmp.eq.s32.totalorder %s12, 0
    %p53 = por %p51, %p52
    %p54 = scmp.ne.s32.totalorder %s46, %s48
    %p55 = scmp.eq.s32.totalorder %s17, 1
    %p56 = por %p54, %p55
    %p57 = scmp.ne.s32.totalorder %s48, %s49
    %p58 = scmp.eq.s32.totalorder %s17, 0
    %p59 = por %p57, %p58
    %p60 = scmp.ne.s32.totalorder %s48, %s49
    %p61 = scmp.eq.s32.totalorder %s18, 1
    %p62 = por %p60, %p61
    %p64 = scmp.ne.s32.totalorder %s49, %s63
    %p65 = scmp.eq.s32.totalorder %s18, 0
    %p66 = por %p64, %p65
    %s68 = sadd.s32 %s67, 1
    %p71 = scmp.eq.s32.totalorder %s12, 1
    %p72 = scmp.ne.s32.totalorder %s67, %s69
    %p73 = scmp.eq.s32.totalorder %s12, 0
    %p74 = por %p72, %p73
    %p75 = scmp.ne.s32.totalorder %s67, %s69
    %p76 = scmp.eq.s32.totalorder %s17, 1
    %p77 = por %p75, %p76
    %p78 = scmp.ne.s32.totalorder %s69, %s70
    %p79 = scmp.eq.s32.totalorder %s17, 0
    %p80 = por %p78, %p79
    %p81 = scmp.ne.s32.totalorder %s69, %s70
    %p82 = scmp.eq.s32.totalorder %s18, 1
    %p83 = por %p81, %p82
    %p85 = scmp.ne.s32.totalorder %s70, %s84
    %p86 = scmp.eq.s32.totalorder %s18, 0
    %p87 = por %p85, %p86
    %s89 = sadd.s32 %s88, 1
    %p92 = scmp.eq.s32.totalorder %s12, 1
    %p93 = scmp.ne.s32.totalorder %s88, %s90
    %p94 = scmp.eq.s32.totalorder %s12, 0
    %p95 = por %p93, %p94
    %p96 = scmp.ne.s32.totalorder %s88, %s90
    %p97 = scmp.eq.s32.totalorder %s17, 1
    %p98 = por %p96, %p97
    %p99 = scmp.ne.s32.totalorder %s90, %s91
    %p100 = scmp.eq.s32.totalorder %s17, 0
    %p101 = por %p99, %p100
    %p102 = scmp.ne.s32.totalorder %s90, %s91
    %p103 = scmp.eq.s32.totalorder %s18, 1
    %p104 = por %p102, %p103
    %p106 = scmp.ne.s32.totalorder %s91, %s105
    %p107 = scmp.eq.s32.totalorder %s18, 0
    %p108 = por %p106, %p107
    %s109 = ssub.s32 %s12, %s19
    %p110 = scmp.eq.s32.totalorder %s109, 0
    %s112 = sadd.s32 %s111, 1
    %s113 = scalar_select %p110, %s111, %s112
    %p116 = pneg %p110
    %p117 = scmp.eq.s32.totalorder %s12, 1
    %p118 = por %p116, %p117
    %p119 = scmp.ne.s32.totalorder %s111, %s114
    %p120 = scmp.eq.s32.totalorder %s12, 0
    %p121 = por %p119, %p120
    %p122 = scmp.ne.s32.totalorder %s111, %s114
    %p123 = scmp.eq.s32.totalorder %s17, 1
    %p124 = por %p122, %p123
    %p125 = scmp.ne.s32.totalorder %s114, %s115
    %p126 = scmp.eq.s32.totalorder %s17, 0
    %p127 = por %p125, %p126
    %p128 = scmp.ne.s32.totalorder %s114, %s115
    %p129 = scmp.eq.s32.totalorder %s18, 1
    %p130 = por %p128, %p129
    %p132 = scmp.ne.s32.totalorder %s115, %s131
    %p133 = scmp.eq.s32.totalorder %s18, 0
    %p134 = por %p132, %p133
    %s135 = ssub.s32 %s12, %s19
    %p136 = scmp.eq.s32.totalorder %s135, 0
    %s138 = sadd.s32 %s137, 1
    %s139 = scalar_select %p136, %s137, %s138
    %p142 = pneg %p136
    %p143 = scmp.eq.s32.totalorder %s12, 1
    %p144 = por %p142, %p143
    %p145 = scmp.ne.s32.totalorder %s137, %s140
    %p146 = scmp.eq.s32.totalorder %s12, 0
    %p147 = por %p145, %p146
    %p148 = scmp.ne.s32.totalorder %s137, %s140
    %p149 = scmp.eq.s32.totalorder %s17, 1
    %p150 = por %p148, %p149
    %p151 = scmp.ne.s32.totalorder %s140, %s141
    %p152 = scmp.eq.s32.totalorder %s17, 0
    %p153 = por %p151, %p152
    %p154 = scmp.ne.s32.totalorder %s140, %s141
    %p155 = scmp.eq.s32.totalorder %s18, 1
    %p156 = por %p154, %p155
    %p158 = scmp.ne.s32.totalorder %s141, %s157
    %p159 = scmp.eq.s32.totalorder %s18, 0
    %p160 = por %p158, %p159
    %p161 = scmp.le.s32.totalorder 1, %s12
    %p162 = scmp.lt.s32.totalorder %s12, 3
    %p163 = pnand %p161, %p162
    %p164 = pneg %p163
    // Predicated region
    $region9: #{residual_block_forward.4} parent=5 // pred_check
      _
    $region10: #{residual_block_forward.4} parent=5 // pred_check_branch
      %166 = sbr.rel (%p163) target = $region12
    $region11: #{residual_block_forward.4} parent=5 // pred_region
      %s167 = ssub.s32 %s12, 1
      // Predicated region
      $region13: #{residual_block_forward.4} parent=11 // pred_check
        %p168 = pneg %p59
      $region14: #{residual_block_forward.4} parent=11 // pred_check_branch
        %170 = sbr.rel (%p168) target = $region16
      $region15: #{residual_block_forward.4} parent=11 // pred_region
        _
      $region16: #{residual_block_forward.4} parent=11 // pred_fallthru
        _
      // Predicated region
      $region17: #{residual_block_forward.4} parent=11 // pred_check
        %p171 = pneg %p80
      $region18: #{residual_block_forward.4} parent=11 // pred_check_branch
        %173 = sbr.rel (%p171) target = $region20
      $region19: #{residual_block_forward.4} parent=11 // pred_region
        _
      $region20: #{residual_block_forward.4} parent=11 // pred_fallthru
        _
      // Predicated region
      $region21: #{residual_block_forward.4} parent=11 // pred_check
        %p174 = pneg %p101
      $region22: #{residual_block_forward.4} parent=11 // pred_check_branch
        %176 = sbr.rel (%p174) target = $region24
      $region23: #{residual_block_forward.4} parent=11 // pred_region
        _
      $region24: #{residual_block_forward.4} parent=11 // pred_fallthru
        _
    $region12: #{residual_block_forward.4} parent=5 // pred_fallthru
      _
    %p177 = scmp.lt.s32.totalorder %s12, 2
    // Predicated region
    $region25: #{residual_block_forward.4} parent=5 // pred_check
      %p178 = pneg %p177
    $region26: #{residual_block_forward.4} parent=5 // pred_check_branch
      %180 = sbr.rel (%p178) target = $region28
    $region27: #{residual_block_forward.4} parent=5 // pred_region
      // Predicated region
      $region29: #{residual_block_forward.4} parent=27 // pred_check
        %p181 = pneg %p32
      $region30: #{residual_block_forward.4} parent=27 // pred_check_branch
        %183 = sbr.rel (%p181) target = $region32
      $region31: #{residual_block_forward.4} parent=27 // pred_region
        %p184 = scmp.lt.s32.totalorder %s12, 1
        %s185 = scalar_select %p184, %s12, 1
        %s186 = smul.addr %s185, 32
        %s187 = smul.addr %s186, 8
        %s188 = scalar_lea.vmem %s0, %s187
      $region32: #{residual_block_forward.4} parent=27 // pred_fallthru
        _
    $region28: #{residual_block_forward.4} parent=5 // pred_fallthru
      _
    %p189 = scmp.le.s32.totalorder 1, %s12
    %p190 = scmp.lt.s32.totalorder %s12, 3
    %p191 = pnand %p189, %p190
    %p192 = pneg %p191
    // Predicated region
    $region33: #{residual_block_forward.4} parent=5 // pred_check
      _
    $region34: #{residual_block_forward.4} parent=5 // pred_check_branch
      %194 = sbr.rel (%p191) target = $region36
    $region35: #{residual_block_forward.4} parent=5 // pred_region
      %s195 = ssub.s32 %s12, 1
      %p196 = scmp.lt.s32.totalorder %s17, 1
      %s197 = scalar_select %p196, %s17, 1
      %s198 = smul.addr %s197, 32
      %s199 = smul.addr %s198, 8
      %s200 = scalar_lea.vmem %s0, %s199
      %p201 = pneg %p38
      %p202 = pneg %p35
      %p203 = pneg %p59
      %p204 = pneg %p56
      %p205 = pneg %p80
      %p206 = pneg %p77
      %p207 = pneg %p101
      %p208 = pneg %p98
      %p209 = pneg %p127
      %p210 = pneg %p124
      %p211 = scmp.lt.s32.totalorder %s17, 1
      %s212 = scalar_select %p211, %s17, 1
      %s213 = smul.addr %s212, 32
      %s214 = smul.addr %s213, 8
      %s215 = scalar_lea.vmem %s4, %s214
      %p216 = pneg %p153
      %p217 = pneg %p150
      %p218 = scmp.lt.s32.totalorder %s17, 1
      %s219 = scalar_select %p218, %s17, 1
      %s220 = smul.addr %s219, 2
      %s221 = scalar_lea.vmem %s5, %s220
      %p222 = scmp.lt.s32.totalorder %s17, 1
      %s223 = scalar_select %p222, %s17, 1
      %s224 = smul.addr %s223, 32
      %s225 = smul.addr %s224, 8
      %s226 = scalar_lea.vmem %s0, %s225
      %p227 = scmp.lt.s32.totalorder %s17, 1
      %s228 = scalar_select %p227, %s17, 1
      %s229 = smul.addr %s228, 32
      %s230 = smul.addr %s229, 8
      %s231 = scalar_lea.vmem %s4, %s230
      %p232 = scmp.lt.s32.totalorder %s17, 1
      %s233 = scalar_select %p232, %s17, 1
      %s234 = smul.addr %s233, 2
      %s235 = scalar_lea.vmem %s5, %s234
      %v236 = vld [vmem:[%s1] sm:$0x1]
      %v237 = vld [vmem:[%s2] sm:$0x1]
      %v238 = vld [vmem:[%s226] sm:$0xff]
      %v239 = vld [vmem:[%s226 + $0x8] sm:$0xff]
      %v240 = vld [vmem:[%s226 + $0x10] sm:$0xff]
      %v241 = vld [vmem:[%s226 + $0x18] sm:$0xff]
      %v242 = vld [vmem:[%s226 + $0x20] sm:$0xff]
      %v243 = vld [vmem:[%s226 + $0x28] sm:$0xff]
      %v244 = vld [vmem:[%s226 + $0x30] sm:$0xff]
      %v245 = vld [vmem:[%s226 + $0x38] sm:$0xff]
      %v246 = vld [vmem:[%s226 + $0x40] sm:$0xff]
      %v247 = vld [vmem:[%s226 + $0x48] sm:$0xff]
      %v248 = vld [vmem:[%s226 + $0x50] sm:$0xff]
      %v249 = vld [vmem:[%s226 + $0x58] sm:$0xff]
      %v250 = vld [vmem:[%s226 + $0x60] sm:$0xff]
      %v251 = vld [vmem:[%s226 + $0x68] sm:$0xff]
      %v252 = vld [vmem:[%s226 + $0x70] sm:$0xff]
      %v253 = vld [vmem:[%s226 + $0x78] sm:$0xff]
      %v254 = vld [vmem:[%s226 + $0x80] sm:$0xff]
      %v255 = vld [vmem:[%s226 + $0x88] sm:$0xff]
      %v256 = vld [vmem:[%s226 + $0x90] sm:$0xff]
      %v257 = vld [vmem:[%s226 + $0x98] sm:$0xff]
      %v258 = vld [vmem:[%s226 + $0xa0] sm:$0xff]
      %v259 = vld [vmem:[%s226 + $0xa8] sm:$0xff]
      %v260 = vld [vmem:[%s226 + $0xb0] sm:$0xff]
      %v261 = vld [vmem:[%s226 + $0xb8] sm:$0xff]
      %v262 = vld [vmem:[%s226 + $0xc0] sm:$0xff]
      %v263 = vld [vmem:[%s226 + $0xc8] sm:$0xff]
      %v264 = vld [vmem:[%s226 + $0xd0] sm:$0xff]
      %v265 = vld [vmem:[%s226 + $0xd8] sm:$0xff]
      %v266 = vld [vmem:[%s226 + $0xe0] sm:$0xff]
      %v267 = vld [vmem:[%s226 + $0xe8] sm:$0xff]
      %v268 = vld [vmem:[%s226 + $0xf0] sm:$0xff]
      %v269 = vld [vmem:[%s226 + $0xf8] sm:$0xff]
      %v271 = vlaneseq
      %v272 = vshrl.u32 %v271, 7
      %v273 = vsub.s32 0, %v272
      %v274 = vrot.slane %v236, %v273
      %v276 = vmul.f32 %v238, %v274
      %v277 = vmul.f32 %v239, %v274
      %v278 = vmul.f32 %v240, %v274
      %v279 = vmul.f32 %v241, %v274
      %v280 = vmul.f32 %v242, %v274
      %v281 = vmul.f32 %v243, %v274
      %v282 = vmul.f32 %v244, %v274
      %v283 = vmul.f32 %v245, %v274
      %v284 = vmul.f32 %v246, %v274
      %v285 = vmul.f32 %v247, %v274
      %v286 = vmul.f32 %v248, %v274
      %v287 = vmul.f32 %v249, %v274
      %v288 = vmul.f32 %v250, %v274
      %v289 = vmul.f32 %v251, %v274
      %v290 = vmul.f32 %v252, %v274
      %v291 = vmul.f32 %v253, %v274
      %v292 = vmul.f32 %v254, %v274
      %v293 = vmul.f32 %v255, %v274
      %v294 = vmul.f32 %v256, %v274
      %v295 = vmul.f32 %v257, %v274
      %v296 = vmul.f32 %v258, %v274
      %v297 = vmul.f32 %v259, %v274
      %v298 = vmul.f32 %v260, %v274
      %v299 = vmul.f32 %v261, %v274
      %v300 = vmul.f32 %v262, %v274
      %v301 = vmul.f32 %v263, %v274
      %v302 = vmul.f32 %v264, %v274
      %v303 = vmul.f32 %v265, %v274
      %v304 = vmul.f32 %v266, %v274
      %v305 = vmul.f32 %v267, %v274
      %v306 = vmul.f32 %v268, %v274
      %v307 = vmul.f32 %v269, %v274
      %v309 = vlaneseq
      %v310 = vshrl.u32 %v309, 7
      %v311 = vsub.s32 0, %v310
      %v312 = vrot.slane %v237, %v311
      %v314 = vadd.f32 %v276, %v312
      %v315 = vadd.f32 %v277, %v312
      %v316 = vadd.f32 %v278, %v312
      %v317 = vadd.f32 %v279, %v312
      %v318 = vadd.f32 %v280, %v312
      %v319 = vadd.f32 %v281, %v312
      %v320 = vadd.f32 %v282, %v312
      %v321 = vadd.f32 %v283, %v312
      %v322 = vadd.f32 %v284, %v312
      %v323 = vadd.f32 %v285, %v312
      %v324 = vadd.f32 %v286, %v312
      %v325 = vadd.f32 %v287, %v312
      %v326 = vadd.f32 %v288, %v312
      %v327 = vadd.f32 %v289, %v312
      %v328 = vadd.f32 %v290, %v312
      %v329 = vadd.f32 %v291, %v312
      %v330 = vadd.f32 %v292, %v312
      %v331 = vadd.f32 %v293, %v312
      %v332 = vadd.f32 %v294, %v312
      %v333 = vadd.f32 %v295, %v312
      %v334 = vadd.f32 %v296, %v312
      %v335 = vadd.f32 %v297, %v312
      %v336 = vadd.f32 %v298, %v312
      %v337 = vadd.f32 %v299, %v312
      %v338 = vadd.f32 %v300, %v312
      %v339 = vadd.f32 %v301, %v312
      %v340 = vadd.f32 %v302, %v312
      %v341 = vadd.f32 %v303, %v312
      %v342 = vadd.f32 %v304, %v312
      %v343 = vadd.f32 %v305, %v312
      %v344 = vadd.f32 %v306, %v312
      %v345 = vadd.f32 %v307, %v312
      %v346 = vmax.f32 %v314, 0.0
      %v347 = vmax.f32 %v315, 0.0
      %v348 = vmax.f32 %v316, 0.0
      %v349 = vmax.f32 %v317, 0.0
      %v350 = vmax.f32 %v318, 0.0
      %v351 = vmax.f32 %v319, 0.0
      %v352 = vmax.f32 %v320, 0.0
      %v353 = vmax.f32 %v321, 0.0
      %v354 = vmax.f32 %v322, 0.0
      %v355 = vmax.f32 %v323, 0.0
      %v356 = vmax.f32 %v324, 0.0
      %v357 = vmax.f32 %v325, 0.0
      %v358 = vmax.f32 %v326, 0.0
      %v359 = vmax.f32 %v327, 0.0
      %v360 = vmax.f32 %v328, 0.0
      %v361 = vmax.f32 %v329, 0.0
      %v362 = vmax.f32 %v330, 0.0
      %v363 = vmax.f32 %v331, 0.0
      %v364 = vmax.f32 %v332, 0.0
      %v365 = vmax.f32 %v333, 0.0
      %v366 = vmax.f32 %v334, 0.0
      %v367 = vmax.f32 %v335, 0.0
      %v368 = vmax.f32 %v336, 0.0
      %v369 = vmax.f32 %v337, 0.0
      %v370 = vmax.f32 %v338, 0.0
      %v371 = vmax.f32 %v339, 0.0
      %v372 = vmax.f32 %v340, 0.0
      %v373 = vmax.f32 %v341, 0.0
      %v374 = vmax.f32 %v342, 0.0
      %v375 = vmax.f32 %v343, 0.0
      %v376 = vmax.f32 %v344, 0.0
      %v377 = vmax.f32 %v345, 0.0
      %378 = vst [vmem:[#allocation2] sm:$0xff] 0.0
      %379 = vst [vmem:[#allocation2 + $0x8] sm:$0xff] 0.0
      %s380 = scalar_lea.vmem [#allocation2], 272
      %381 = vst [vmem:[%s380] sm:$0xff] 0.0
      %382 = vst [vmem:[%s380 + $0x8] sm:$0xff] 0.0
      %s383 = scalar_lea.vmem [#allocation2], 16
      %384 = vst [vmem:[%s383] sm:$0xff] %v346
      %385 = vst [vmem:[%s383 + $0x8] sm:$0xff] %v347
      %386 = vst [vmem:[%s383 + $0x10] sm:$0xff] %v348
      %387 = vst [vmem:[%s383 + $0x18] sm:$0xff] %v349
      %388 = vst [vmem:[%s383 + $0x20] sm:$0xff] %v350
      %389 = vst [vmem:[%s383 + $0x28] sm:$0xff] %v351
      %390 = vst [vmem:[%s383 + $0x30] sm:$0xff] %v352
      %391 = vst [vmem:[%s383 + $0x38] sm:$0xff] %v353
      %392 = vst [vmem:[%s383 + $0x40] sm:$0xff] %v354
      %393 = vst [vmem:[%s383 + $0x48] sm:$0xff] %v355
      %394 = vst [vmem:[%s383 + $0x50] sm:$0xff] %v356
      %395 = vst [vmem:[%s383 + $0x58] sm:$0xff] %v357
      %396 = vst [vmem:[%s383 + $0x60] sm:$0xff] %v358
      %397 = vst [vmem:[%s383 + $0x68] sm:$0xff] %v359
      %398 = vst [vmem:[%s383 + $0x70] sm:$0xff] %v360
      %399 = vst [vmem:[%s383 + $0x78] sm:$0xff] %v361
      %400 = vst [vmem:[%s383 + $0x80] sm:$0xff] %v362
      %401 = vst [vmem:[%s383 + $0x88] sm:$0xff] %v363
      %402 = vst [vmem:[%s383 + $0x90] sm:$0xff] %v364
      %403 = vst [vmem:[%s383 + $0x98] sm:$0xff] %v365
      %404 = vst [vmem:[%s383 + $0xa0] sm:$0xff] %v366
      %405 = vst [vmem:[%s383 + $0xa8] sm:$0xff] %v367
      %406 = vst [vmem:[%s383 + $0xb0] sm:$0xff] %v368
      %407 = vst [vmem:[%s383 + $0xb8] sm:$0xff] %v369
      %408 = vst [vmem:[%s383 + $0xc0] sm:$0xff] %v370
      %409 = vst [vmem:[%s383 + $0xc8] sm:$0xff] %v371
      %410 = vst [vmem:[%s383 + $0xd0] sm:$0xff] %v372
      %411 = vst [vmem:[%s383 + $0xd8] sm:$0xff] %v373
      %412 = vst [vmem:[%s383 + $0xe0] sm:$0xff] %v374
      %413 = vst [vmem:[%s383 + $0xe8] sm:$0xff] %v375
      %414 = vst [vmem:[%s383 + $0xf0] sm:$0xff] %v376
      %415 = vst [vmem:[%s383 + $0xf8] sm:$0xff] %v377
      %v416 = vlaneseq
      %v417 = vshrl.u32 %v416, 7
      %v418 = vadd.s32 %v417, 8
      %vm419 = vcmp.gt.s32.totalorder %v417, 0
      %vm420 = vcmp.gt.s32.totalorder %v418, 0
      %vm421 = vcmp.lt.s32.totalorder %v417, 15
      %vm422 = vcmp.lt.s32.totalorder %v418, 15
      %423 = vst [vmem:[#allocation3] sm:$0xff] 0.0
      %424 = vst [vmem:[#allocation3 + $0x8] sm:$0xff] 0.0
      %425 = vst [vmem:[#allocation3 + $0x10] sm:$0xff] 0.0
      %426 = vst [vmem:[#allocation3 + $0x18] sm:$0xff] 0.0
      %427 = vst [vmem:[#allocation3 + $0x20] sm:$0xff] 0.0
      %428 = vst [vmem:[#allocation3 + $0x28] sm:$0xff] 0.0
      %429 = vst [vmem:[#allocation3 + $0x30] sm:$0xff] 0.0
      %430 = vst [vmem:[#allocation3 + $0x38] sm:$0xff] 0.0
      %431 = vst [vmem:[#allocation3 + $0x40] sm:$0xff] 0.0
      %432 = vst [vmem:[#allocation3 + $0x48] sm:$0xff] 0.0
      %433 = vst [vmem:[#allocation3 + $0x50] sm:$0xff] 0.0
      %434 = vst [vmem:[#allocation3 + $0x58] sm:$0xff] 0.0
      %435 = vst [vmem:[#allocation3 + $0x60] sm:$0xff] 0.0
      %436 = vst [vmem:[#allocation3 + $0x68] sm:$0xff] 0.0
      %437 = vst [vmem:[#allocation3 + $0x70] sm:$0xff] 0.0
      %438 = vst [vmem:[#allocation3 + $0x78] sm:$0xff] 0.0
      %439 = vst [vmem:[#allocation3 + $0x80] sm:$0xff] 0.0
      %440 = vst [vmem:[#allocation3 + $0x88] sm:$0xff] 0.0
      %441 = vst [vmem:[#allocation3 + $0x90] sm:$0xff] 0.0
      %442 = vst [vmem:[#allocation3 + $0x98] sm:$0xff] 0.0
      %443 = vst [vmem:[#allocation3 + $0xa0] sm:$0xff] 0.0
      %444 = vst [vmem:[#allocation3 + $0xa8] sm:$0xff] 0.0
      %445 = vst [vmem:[#allocation3 + $0xb0] sm:$0xff] 0.0
      %446 = vst [vmem:[#allocation3 + $0xb8] sm:$0xff] 0.0
      %447 = vst [vmem:[#allocation3 + $0xc0] sm:$0xff] 0.0
      %448 = vst [vmem:[#allocation3 + $0xc8] sm:$0xff] 0.0
      %449 = vst [vmem:[#allocation3 + $0xd0] sm:$0xff] 0.0
      %450 = vst [vmem:[#allocation3 + $0xd8] sm:$0xff] 0.0
      %451 = vst [vmem:[#allocation3 + $0xe0] sm:$0xff] 0.0
      %452 = vst [vmem:[#allocation3 + $0xe8] sm:$0xff] 0.0
      %453 = vst [vmem:[#allocation3 + $0xf0] sm:$0xff] 0.0
      %454 = vst [vmem:[#allocation3 + $0xf8] sm:$0xff] 0.0
      %v455 = vld [vmem:[#allocation2] sm:$0xff]
      %v456 = vld [vmem:[#allocation2 + $0x8] sm:$0xff]
      %v457 = vld [vmem:[#allocation2 + $0x10] sm:$0xff]
      %v458 = vld [vmem:[#allocation2 + $0x18] sm:$0xff]
      %v459 = vld [vmem:[#allocation2 + $0x20] sm:$0xff]
      %v460 = vld [vmem:[#allocation2 + $0x28] sm:$0xff]
      %v461 = vld [vmem:[#allocation2 + $0x30] sm:$0xff]
      %v462 = vld [vmem:[#allocation2 + $0x38] sm:$0xff]
      %v463 = vld [vmem:[#allocation2 + $0x40] sm:$0xff]
      %v464 = vld [vmem:[#allocation2 + $0x48] sm:$0xff]
      %v465 = vld [vmem:[#allocation2 + $0x50] sm:$0xff]
      %v466 = vld [vmem:[#allocation2 + $0x58] sm:$0xff]
      %v467 = vld [vmem:[#allocation2 + $0x60] sm:$0xff]
      %v468 = vld [vmem:[#allocation2 + $0x68] sm:$0xff]
      %v469 = vld [vmem:[#allocation2 + $0x70] sm:$0xff]
      %v470 = vld [vmem:[#allocation2 + $0x78] sm:$0xff]
      %v471 = vld [vmem:[#allocation2 + $0x80] sm:$0xff]
      %v472 = vld [vmem:[#allocation2 + $0x88] sm:$0xff]
      %v473 = vld [vmem:[#allocation2 + $0x90] sm:$0xff]
      %v474 = vld [vmem:[#allocation2 + $0x98] sm:$0xff]
      %v475 = vld [vmem:[#allocation2 + $0xa0] sm:$0xff]
      %v476 = vld [vmem:[#allocation2 + $0xa8] sm:$0xff]
      %v477 = vld [vmem:[#allocation2 + $0xb0] sm:$0xff]
      %v478 = vld [vmem:[#allocation2 + $0xb8] sm:$0xff]
      %v479 = vld [vmem:[#allocation2 + $0xc0] sm:$0xff]
      %v480 = vld [vmem:[#allocation2 + $0xc8] sm:$0xff]
      %v481 = vld [vmem:[#allocation2 + $0xd0] sm:$0xff]
      %v482 = vld [vmem:[#allocation2 + $0xd8] sm:$0xff]
      %v483 = vld [vmem:[#allocation2 + $0xe0] sm:$0xff]
      %v484 = vld [vmem:[#allocation2 + $0xe8] sm:$0xff]
      %v485 = vld [vmem:[#allocation2 + $0xf0] sm:$0xff]
      %v486 = vld [vmem:[#allocation2 + $0xf8] sm:$0xff]
      %v487 = vrot.slane %v455, 7
      %v488 = vrot.slane %v456, 7
      %v489 = vrot.slane %v457, 7
      %v490 = vrot.slane %v458, 7
      %v491 = vrot.slane %v459, 7
      %v492 = vrot.slane %v460, 7
      %v493 = vrot.slane %v461, 7
      %v494 = vrot.slane %v462, 7
      %v495 = vrot.slane %v463, 7
      %v496 = vrot.slane %v464, 7
      %v497 = vrot.slane %v465, 7
      %v498 = vrot.slane %v466, 7
      %v499 = vrot.slane %v467, 7
      %v500 = vrot.slane %v468, 7
      %v501 = vrot.slane %v469, 7
      %v502 = vrot.slane %v470, 7
      %v503 = vrot.slane %v471, 7
      %v504 = vrot.slane %v472, 7
      %v505 = vrot.slane %v473, 7
      %v506 = vrot.slane %v474, 7
      %v507 = vrot.slane %v475, 7
      %v508 = vrot.slane %v476, 7
      %v509 = vrot.slane %v477, 7
      %v510 = vrot.slane %v478, 7
      %v511 = vrot.slane %v479, 7
      %v512 = vrot.slane %v480, 7
      %v513 = vrot.slane %v481, 7
      %v514 = vrot.slane %v482, 7
      %v515 = vrot.slane %v483, 7
      %v516 = vrot.slane %v484, 7
      %v517 = vrot.slane %v485, 7
      %v518 = vrot.slane %v486, 7
      %vm519 = vcmp.lt.s32.totalorder %v417, 1
      %v520 = vsel %vm519, %v517, %v518
      %v521 = vsel %vm519, %v516, %v517
      %v522 = vsel %vm519, %v515, %v516
      %v523 = vsel %vm519, %v514, %v515
      %v524 = vsel %vm519, %v513, %v514
      %v525 = vsel %vm519, %v512, %v513
      %v526 = vsel %vm519, %v511, %v512
      %v527 = vsel %vm519, %v510, %v511
      %v528 = vsel %vm519, %v509, %v510
      %v529 = vsel %vm519, %v508, %v509
      %v530 = vsel %vm519, %v507, %v508
      %v531 = vsel %vm519, %v506, %v507
      %v532 = vsel %vm519, %v505, %v506
      %v533 = vsel %vm519, %v504, %v505
      %v534 = vsel %vm519, %v503, %v504
      %v535 = vsel %vm519, %v502, %v503
      %v536 = vsel %vm519, %v501, %v502
      %v537 = vsel %vm519, %v500, %v501
      %v538 = vsel %vm519, %v499, %v500
      %v539 = vsel %vm519, %v498, %v499
      %v540 = vsel %vm519, %v497, %v498
      %v541 = vsel %vm519, %v496, %v497
      %v542 = vsel %vm519, %v495, %v496
      %v543 = vsel %vm519, %v494, %v495
      %v544 = vsel %vm519, %v493, %v494
      %v545 = vsel %vm519, %v492, %v493
      %v546 = vsel %vm519, %v491, %v492
      %v547 = vsel %vm519, %v490, %v491
      %v548 = vsel %vm519, %v489, %v490
      %v549 = vsel %vm519, %v488, %v489
      %v550 = vsel %vm519, %v487, %v488
      %v551 = vsel %vm519, %v518, %v487
      %v552 = vsel %vm419, %v551, 0.0
      %v553 = vsel %vm420, %v550, 0.0
      %v554 = vsel %vm419, %v549, 0.0
      %v555 = vsel %vm420, %v548, 0.0
      %v556 = vsel %vm419, %v547, 0.0
      %v557 = vsel %vm420, %v546, 0.0
      %v558 = vsel %vm419, %v545, 0.0
      %v559 = vsel %vm420, %v544, 0.0
      %v560 = vsel %vm419, %v543, 0.0
      %v561 = vsel %vm420, %v542, 0.0
      %v562 = vsel %vm419, %v541, 0.0
      %v563 = vsel %vm420, %v540, 0.0
      %v564 = vsel %vm419, %v539, 0.0
      %v565 = vsel %vm420, %v538, 0.0
      %v566 = vsel %vm419, %v537, 0.0
      %v567 = vsel %vm420, %v536, 0.0
      %v568 = vsel %vm419, %v535, 0.0
      %v569 = vsel %vm420, %v534, 0.0
      %v570 = vsel %vm419, %v533, 0.0
      %v571 = vsel %vm420, %v532, 0.0
      %v572 = vsel %vm419, %v531, 0.0
      %v573 = vsel %vm420, %v530, 0.0
      %v574 = vsel %vm419, %v529, 0.0
      %v575 = vsel %vm420, %v528, 0.0
      %v576 = vsel %vm419, %v527, 0.0
      %v577 = vsel %vm420, %v526, 0.0
      %v578 = vsel %vm419, %v525, 0.0
      %v579 = vsel %vm420, %v524, 0.0
      %v580 = vsel %vm419, %v523, 0.0
      %v581 = vsel %vm420, %v522, 0.0
      %v582 = vsel %vm419, %v521, 0.0
      %v583 = vsel %vm420, %v520, 0.0
      %v584 = vrot.slane %v455, 1
      %v585 = vrot.slane %v456, 1
      %v586 = vrot.slane %v457, 1
      %v587 = vrot.slane %v458, 1
      %v588 = vrot.slane %v459, 1
      %v589 = vrot.slane %v460, 1
      %v590 = vrot.slane %v461, 1
      %v591 = vrot.slane %v462, 1
      %v592 = vrot.slane %v463, 1
      %v593 = vrot.slane %v464, 1
      %v594 = vrot.slane %v465, 1
      %v595 = vrot.slane %v466, 1
      %v596 = vrot.slane %v467, 1
      %v597 = vrot.slane %v468, 1
      %v598 = vrot.slane %v469, 1
      %v599 = vrot.slane %v470, 1
      %v600 = vrot.slane %v471, 1
      %v601 = vrot.slane %v472, 1
      %v602 = vrot.slane %v473, 1
      %v603 = vrot.slane %v474, 1
      %v604 = vrot.slane %v475, 1
      %v605 = vrot.slane %v476, 1
      %v606 = vrot.slane %v477, 1
      %v607 = vrot.slane %v478, 1
      %v608 = vrot.slane %v479, 1
      %v609 = vrot.slane %v480, 1
      %v610 = vrot.slane %v481, 1
      %v611 = vrot.slane %v482, 1
      %v612 = vrot.slane %v483, 1
      %v613 = vrot.slane %v484, 1
      %v614 = vrot.slane %v485, 1
      %v615 = vrot.slane %v486, 1
      %vm616 = vcmp.lt.s32.totalorder %v417, 7
      %v617 = vsel %vm616, %v614, %v615
      %v618 = vsel %vm616, %v613, %v614
      %v619 = vsel %vm616, %v612, %v613
      %v620 = vsel %vm616, %v611, %v612
      %v621 = vsel %vm616, %v610, %v611
      %v622 = vsel %vm616, %v609, %v610
      %v623 = vsel %vm616, %v608, %v609
      %v624 = vsel %vm616, %v607, %v608
      %v625 = vsel %vm616, %v606, %v607
      %v626 = vsel %vm616, %v605, %v606
      %v627 = vsel %vm616, %v604, %v605
      %v628 = vsel %vm616, %v603, %v604
      %v629 = vsel %vm616, %v602, %v603
      %v630 = vsel %vm616, %v601, %v602
      %v631 = vsel %vm616, %v600, %v601
      %v632 = vsel %vm616, %v599, %v600
      %v633 = vsel %vm616, %v598, %v599
      %v634 = vsel %vm616, %v597, %v598
      %v635 = vsel %vm616, %v596, %v597
      %v636 = vsel %vm616, %v595, %v596
      %v637 = vsel %vm616, %v594, %v595
      %v638 = vsel %vm616, %v593, %v594
      %v639 = vsel %vm616, %v592, %v593
      %v640 = vsel %vm616, %v591, %v592
      %v641 = vsel %vm616, %v590, %v591
      %v642 = vsel %vm616, %v589, %v590
      %v643 = vsel %vm616, %v588, %v589
      %v644 = vsel %vm616, %v587, %v588
      %v645 = vsel %vm616, %v586, %v587
      %v646 = vsel %vm616, %v585, %v586
      %v647 = vsel %vm616, %v584, %v585
      %v648 = vsel %vm616, %v615, %v584
      %v649 = vsel %vm421, %v647, 0.0
      %v650 = vsel %vm422, %v646, 0.0
      %v651 = vsel %vm421, %v645, 0.0
      %v652 = vsel %vm422, %v644, 0.0
      %v653 = vsel %vm421, %v643, 0.0
      %v654 = vsel %vm422, %v642, 0.0
      %v655 = vsel %vm421, %v641, 0.0
      %v656 = vsel %vm422, %v640, 0.0
      %v657 = vsel %vm421, %v639, 0.0
      %v658 = vsel %vm422, %v638, 0.0
      %v659 = vsel %vm421, %v637, 0.0
      %v660 = vsel %vm422, %v636, 0.0
      %v661 = vsel %vm421, %v635, 0.0
      %v662 = vsel %vm422, %v634, 0.0
      %v663 = vsel %vm421, %v633, 0.0
      %v664 = vsel %vm422, %v632, 0.0
      %v665 = vsel %vm421, %v631, 0.0
      %v666 = vsel %vm422, %v630, 0.0
      %v667 = vsel %vm421, %v629, 0.0
      %v668 = vsel %vm422, %v628, 0.0
      %v669 = vsel %vm421, %v627, 0.0
      %v670 = vsel %vm422, %v626, 0.0
      %v671 = vsel %vm421, %v625, 0.0
      %v672 = vsel %vm422, %v624, 0.0
      %v673 = vsel %vm421, %v623, 0.0
      %v674 = vsel %vm422, %v622, 0.0
      %v675 = vsel %vm421, %v621, 0.0
      %v676 = vsel %vm422, %v620, 0.0
      %v677 = vsel %vm421, %v619, 0.0
      %v678 = vsel %vm422, %v618, 0.0
      %v679 = vsel %vm421, %v617, 0.0
      %v680 = vsel %vm422, %v648, 0.0
      %v681 = vld [vmem:[#allocation3] sm:$0xff]
      %v682 = vld [vmem:[#allocation3 + $0x8] sm:$0xff]
      %v683 = vld [vmem:[#allocation3 + $0x10] sm:$0xff]
      %v684 = vld [vmem:[#allocation3 + $0x18] sm:$0xff]
      %v685 = vld [vmem:[#allocation3 + $0x20] sm:$0xff]
      %v686 = vld [vmem:[#allocation3 + $0x28] sm:$0xff]
      %v687 = vld [vmem:[#allocation3 + $0x30] sm:$0xff]
      %v688 = vld [vmem:[#allocation3 + $0x38] sm:$0xff]
      %v689 = vld [vmem:[#allocation3 + $0x40] sm:$0xff]
      %v690 = vld [vmem:[#allocation3 + $0x48] sm:$0xff]
      %v691 = vld [vmem:[#allocation3 + $0x50] sm:$0xff]
      %v692 = vld [vmem:[#allocation3 + $0x58] sm:$0xff]
      %v693 = vld [vmem:[#allocation3 + $0x60] sm:$0xff]
      %v694 = vld [vmem:[#allocation3 + $0x68] sm:$0xff]
      %v695 = vld [vmem:[#allocation3 + $0x70] sm:$0xff]
      %v696 = vld [vmem:[#allocation3 + $0x78] sm:$0xff]
      %v697 = vld [vmem:[#allocation3 + $0x80] sm:$0xff]
      %v698 = vld [vmem:[#allocation3 + $0x88] sm:$0xff]
      %v699 = vld [vmem:[#allocation3 + $0x90] sm:$0xff]
      %v700 = vld [vmem:[#allocation3 + $0x98] sm:$0xff]
      %v701 = vld [vmem:[#allocation3 + $0xa0] sm:$0xff]
      %v702 = vld [vmem:[#allocation3 + $0xa8] sm:$0xff]
      %v703 = vld [vmem:[#allocation3 + $0xb0] sm:$0xff]
      %v704 = vld [vmem:[#allocation3 + $0xb8] sm:$0xff]
      %v705 = vld [vmem:[#allocation3 + $0xc0] sm:$0xff]
      %v706 = vld [vmem:[#allocation3 + $0xc8] sm:$0xff]
      %v707 = vld [vmem:[#allocation3 + $0xd0] sm:$0xff]
      %v708 = vld [vmem:[#allocation3 + $0xd8] sm:$0xff]
      %v709 = vld [vmem:[#allocation3 + $0xe0] sm:$0xff]
      %v710 = vld [vmem:[#allocation3 + $0xe8] sm:$0xff]
      %v711 = vld [vmem:[#allocation3 + $0xf0] sm:$0xff]
      %v712 = vld [vmem:[#allocation3 + $0xf8] sm:$0xff]
      %v713 = vld [vmem:[%s3] sm:$0xff]
      %v714 = vld [vmem:[%s3 + $0x8] sm:$0xff]
      %v715 = vld [vmem:[%s3 + $0x10] sm:$0xff]
      %v716 = vld [vmem:[%s3 + $0x18] sm:$0xff]
      %v717 = vld [vmem:[%s3 + $0x20] sm:$0xff]
      %v718 = vld [vmem:[%s3 + $0x28] sm:$0xff]
      %v719 = vld [vmem:[%s3 + $0x30] sm:$0xff]
      %v720 = vld [vmem:[%s3 + $0x38] sm:$0xff]
      %v721 = vld [vmem:[%s3 + $0x40] sm:$0xff]
      %v722 = vld [vmem:[%s3 + $0x48] sm:$0xff]
      %v723 = vld [vmem:[%s3 + $0x50] sm:$0xff]
      %v724 = vld [vmem:[%s3 + $0x58] sm:$0xff]
      %v725 = vld [vmem:[%s3 + $0x60] sm:$0xff]
      %v726 = vld [vmem:[%s3 + $0x68] sm:$0xff]
      %v727 = vld [vmem:[%s3 + $0x70] sm:$0xff]
      %v728 = vld [vmem:[%s3 + $0x78] sm:$0xff]
      %v729 = vld [vmem:[%s3 + $0x80] sm:$0xff]
      %v730 = vld [vmem:[%s3 + $0x88] sm:$0xff]
      %v731 = vld [vmem:[%s3 + $0x90] sm:$0xff]
      %v732 = vld [vmem:[%s3 + $0x98] sm:$0xff]
      %v733 = vld [vmem:[%s3 + $0xa0] sm:$0xff]
      %v734 = vld [vmem:[%s3 + $0xa8] sm:$0xff]
      %v735 = vld [vmem:[%s3 + $0xb0] sm:$0xff]
      %v736 = vld [vmem:[%s3 + $0xb8] sm:$0xff]
      %v737 = vld [vmem:[%s3 + $0xc0] sm:$0xff]
      %v738 = vld [vmem:[%s3 + $0xc8] sm:$0xff]
      %v739 = vld [vmem:[%s3 + $0xd0] sm:$0xff]
      %v740 = vld [vmem:[%s3 + $0xd8] sm:$0xff]
      %v741 = vld [vmem:[%s3 + $0xe0] sm:$0xff]
      %v742 = vld [vmem:[%s3 + $0xe8] sm:$0xff]
      %v743 = vld [vmem:[%s3 + $0xf0] sm:$0xff]
      %v744 = vld [vmem:[%s3 + $0xf8] sm:$0xff]
      %v745 = vld [vmem:[%s3 + $0x100] sm:$0xff]
      %v746 = vld [vmem:[%s3 + $0x108] sm:$0xff]
      %v747 = vld [vmem:[%s3 + $0x110] sm:$0xff]
      %v748 = vld [vmem:[%s3 + $0x118] sm:$0xff]
      %v749 = vld [vmem:[%s3 + $0x120] sm:$0xff]
      %v750 = vld [vmem:[%s3 + $0x128] sm:$0xff]
      %v751 = vld [vmem:[%s3 + $0x130] sm:$0xff]
      %v752 = vld [vmem:[%s3 + $0x138] sm:$0xff]
      %v753 = vld [vmem:[%s3 + $0x140] sm:$0xff]
      %v754 = vld [vmem:[%s3 + $0x148] sm:$0xff]
      %v755 = vld [vmem:[%s3 + $0x150] sm:$0xff]
      %v756 = vld [vmem:[%s3 + $0x158] sm:$0xff]
      %v757 = vld [vmem:[%s3 + $0x160] sm:$0xff]
      %v758 = vld [vmem:[%s3 + $0x168] sm:$0xff]
      %v759 = vld [vmem:[%s3 + $0x170] sm:$0xff]
      %v760 = vld [vmem:[%s3 + $0x178] sm:$0xff]
      %761 = vmatprep.subr.mxu0 0.0
      %762 = vmatpush1.msra.mxu0 %v713
      %763 = vmatprep.subr.mxu0 0.0
      %764 = vmatpush1.msra.mxu0 %v714
      %765 = vmatprep.subr.mxu0 0.0
      %766 = vmatpush1.msra.mxu0 %v715
      %767 = vmatprep.subr.mxu0 0.0
      %768 = vmatpush1.msra.mxu0 %v716
      %769 = vmatprep.subr.mxu0 0.0
      %770 = vmatpush1.msra.mxu0 %v717
      %771 = vmatprep.subr.mxu0 0.0
      %772 = vmatpush1.msra.mxu0 %v718
      %773 = vmatprep.subr.mxu0 0.0
      %774 = vmatpush1.msra.mxu0 %v719
      %775 = vmatprep.subr.mxu0 0.0
      %776 = vmatpush1.msra.mxu0 %v720
      %777 = vmatprep.subr.mxu0 0.0
      %778 = vmatpush1.msra.mxu0 %v721
      %779 = vmatprep.subr.mxu0 0.0
      %780 = vmatpush1.msra.mxu0 %v722
      %781 = vmatprep.subr.mxu0 0.0
      %782 = vmatpush1.msra.mxu0 %v723
      %783 = vmatprep.subr.mxu0 0.0
      %784 = vmatpush1.msra.mxu0 %v724
      %785 = vmatprep.subr.mxu0 0.0
      %786 = vmatpush1.msra.mxu0 %v725
      %787 = vmatprep.subr.mxu0 0.0
      %788 = vmatpush1.msra.mxu0 %v726
      %789 = vmatprep.subr.mxu0 0.0
      %790 = vmatpush1.msra.mxu0 %v727
      %791 = vmatprep.subr.mxu0 0.0
      %792 = vmatpush1.msra.mxu0 %v728
      %793 = vmatprep.subr.mxu0 0.0
      %794 = vmatpush1.msra.mxu0 %v729
      %795 = vmatprep.subr.mxu0 0.0
      %796 = vmatpush1.msra.mxu0 %v730
      %797 = vmatprep.subr.mxu0 0.0
      %798 = vmatpush1.msra.mxu0 %v731
      %799 = vmatprep.subr.mxu0 0.0
      %800 = vmatpush1.msra.mxu0 %v732
      %801 = vmatprep.subr.mxu0 0.0
      %802 = vmatpush1.msra.mxu0 %v733
      %803 = vmatprep.subr.mxu0 0.0
      %804 = vmatpush1.msra.mxu0 %v734
      %805 = vmatprep.subr.mxu0 0.0
      %806 = vmatpush1.msra.mxu0 %v735
      %807 = vmatprep.subr.mxu0 0.0
      %808 = vmatpush1.msra.mxu0 %v736
      %809 = vmatprep.subr.mxu0 0.0
      %810 = vmatpush1.msra.mxu0 %v737
      %811 = vmatprep.subr.mxu0 0.0
      %812 = vmatpush1.msra.mxu0 %v738
      %813 = vmatprep.subr.mxu0 0.0
      %814 = vmatpush1.msra.mxu0 %v739
      %815 = vmatprep.subr.mxu0 0.0
      %816 = vmatpush1.msra.mxu0 %v740
      %817 = vmatprep.subr.mxu0 0.0
      %818 = vmatpush1.msra.mxu0 %v741
      %819 = vmatprep.subr.mxu0 0.0
      %820 = vmatpush1.msra.mxu0 %v742
      %821 = vmatprep.subr.mxu0 0.0
      %822 = vmatpush1.msra.mxu0 %v743
      %823 = vmatprep.subr.mxu0 0.0
      %824 = vmatpush1.msra.mxu0 %v744
      %825 = vmatprep.mubr.f32.mxu0 %v455
      %826 = vmatmul.mubr.f32.gmra.mrb[0].mxu0 %v552
      %v827 = vpop.f32.mrb[0].mxu0
      %v828 = vadd.f32 0.0, %v827
      %v829 = vpop.f32.mrb[0].mxu0
      %830 = vmatprep.mubr.f32.mxu0 %v456
      %831 = vmatmul.mubr.f32.gmra.mrb[0].mxu0 %v553
      %v832 = vpop.f32.mrb[0].mxu0
      %v833 = vadd.f32 0.0, %v832
      %v834 = vpop.f32.mrb[0].mxu0
      %835 = vmatprep.mubr.f32.mxu0 %v457
      %836 = vmatmul.mubr.f32.gmra.mrb[0].mxu0 %v554
      %v837 = vpop.f32.mrb[0].mxu0
      %v838 = vadd.f32 0.0, %v837
      %v839 = vpop.f32.mrb[0].mxu0
      %840 = vmatprep.mubr.f32.mxu0 %v458
      %841 = vmatmul.mubr.f32.gmra.mrb[0].mxu0 %v555
      %v842 = vpop.f32.mrb[0].mxu0
      %v843 = vadd.f32 0.0, %v842
      %v844 = vpop.f32.mrb[0].mxu0
      %845 = vmatprep.mubr.f32.mxu0 %v459
      %846 = vmatmul.mubr.f32.gmra.mrb[0].mxu0 %v556
      %v847 = vpop.f32.mrb[0].mxu0
      %v848 = vadd.f32 0.0, %v847
      %v849 = vpop.f32.mrb[0].mxu0
      %850 = vmatprep.mubr.f32.mxu0 %v460
      %851 = vmatmul.mubr.f32.gmra.mrb[0].mxu0 %v557
      %v852 = vpop.f32.mrb[0].mxu0
      %v853 = vadd.f32 0.0, %v852
      %v854 = vpop.f32.mrb[0].mxu0
      %855 = vmatprep.mubr.f32.mxu0 %v461
      %856 = vmatmul.mubr.f32.gmra.mrb[0].mxu0 %v558
      %v857 = vpop.f32.mrb[0].mxu0
      %v858 = vadd.f32 0.0, %v857
      %v859 = vpop.f32.mrb[0].mxu0
      %860 = vmatprep.mubr.f32.mxu0 %v462
      %861 = vmatmul.mubr.f32.gmra.mrb[0].mxu0 %v559
      %v862 = vpop.f32.mrb[0].mxu0
      %v863 = vadd.f32 0.0, %v862
      %v864 = vpop.f32.mrb[0].mxu0
      %865 = vmatprep.mubr.f32.mxu0 %v463
      %866 = vmatmul.mubr.f32.gmra.mrb[0].mxu0 %v560
      %v867 = vpop.f32.mrb[0].mxu0
      %v868 = vadd.f32 0.0, %v867
      %v869 = vpop.f32.mrb[0].mxu0
      %870 = vmatprep.mubr.f32.mxu0 %v464
      %871 = vmatmul.mubr.f32.gmra.mrb[0].mxu0 %v561
      %v872 = vpop.f32.mrb[0].mxu0
      %v873 = vadd.f32 0.0, %v872
      %v874 = vpop.f32.mrb[0].mxu0
      %875 = vmatprep.mubr.f32.mxu0 %v465
      %876 = vmatmul.mubr.f32.gmra.mrb[0].mxu0 %v562
      %v877 = vpop.f32.mrb[0].mxu0
      %v878 = vadd.f32 0.0, %v877
      %v879 = vpop.f32.mrb[0].mxu0
      %880 = vmatprep.mubr.f32.mxu0 %v466
      %881 = vmatmul.mubr.f32.gmra.mrb[0].mxu0 %v563
      %v882 = vpop.f32.mrb[0].mxu0
      %v883 = vadd.f32 0.0, %v882
      %v884 = vpop.f32.mrb[0].mxu0
      %885 = vmatprep.mubr.f32.mxu0 %v467
      %886 = vmatmul.mubr.f32.gmra.mrb[0].mxu0 %v564
      %v887 = vpop.f32.mrb[0].mxu0
      %v888 = vadd.f32 0.0, %v887
      %v889 = vpop.f32.mrb[0].mxu0
      %890 = vmatprep.mubr.f32.mxu0 %v468
      %891 = vmatmul.mubr.f32.gmra.mrb[0].mxu0 %v565
      %v892 = vpop.f32.mrb[0].mxu0
      %v893 = vadd.f32 0.0, %v892
      %v894 = vpop.f32.mrb[0].mxu0
      %895 = vmatprep.mubr.f32.mxu0 %v469
      %896 = vmatmul.mubr.f32.gmra.mrb[0].mxu0 %v566
      %v897 = vpop.f32.mrb[0].mxu0
      %v898 = vadd.f32 0.0, %v897
      %v899 = vpop.f32.mrb[0].mxu0
      %900 = vmatprep.mubr.f32.mxu0 %v470
      %901 = vmatmul.mubr.f32.gmra.mrb[0].mxu0 %v567
      %v902 = vpop.f32.mrb[0].mxu0
      %v903 = vadd.f32 0.0, %v902
      %v904 = vpop.f32.mrb[0].mxu0
      %905 = vmatprep.mubr.f32.mxu0 %v471
      %906 = vmatmul.mubr.f32.gmra.mrb[0].mxu0 %v568
      %v907 = vpop.f32.mrb[0].mxu0
      %v908 = vadd.f32 0.0, %v907
      %v909 = vpop.f32.mrb[0].mxu0
      %910 = vmatprep.mubr.f32.mxu0 %v472
      %911 = vmatmul.mubr.f32.gmra.mrb[0].mxu0 %v569
      %v912 = vpop.f32.mrb[0].mxu0
      %v913 = vadd.f32 0.0, %v912
      %v914 = vpop.f32.mrb[0].mxu0
      %915 = vmatprep.mubr.f32.mxu0 %v473
      %916 = vmatmul.mubr.f32.gmra.mrb[0].mxu0 %v570
      %v917 = vpop.f32.mrb[0].mxu0
      %v918 = vadd.f32 0.0, %v917
      %v919 = vpop.f32.mrb[0].mxu0
      %920 = vmatprep.mubr.f32.mxu0 %v474
      %921 = vmatmul.mubr.f32.gmra.mrb[0].mxu0 %v571
      %v922 = vpop.f32.mrb[0].mxu0
      %v923 = vadd.f32 0.0, %v922
      %v924 = vpop.f32.mrb[0].mxu0
      %925 = vmatprep.mubr.f32.mxu0 %v475
      %926 = vmatmul.mubr.f32.gmra.mrb[0].mxu0 %v572
      %v927 = vpop.f32.mrb[0].mxu0
      %v928 = vadd.f32 0.0, %v927
      %v929 = vpop.f32.mrb[0].mxu0
      %930 = vmatprep.mubr.f32.mxu0 %v476
      %931 = vmatmul.mubr.f32.gmra.mrb[0].mxu0 %v573
      %v932 = vpop.f32.mrb[0].mxu0
      %v933 = vadd.f32 0.0, %v932
      %v934 = vpop.f32.mrb[0].mxu0
      %935 = vmatprep.mubr.f32.mxu0 %v477
      %936 = vmatmul.mubr.f32.gmra.mrb[0].mxu0 %v574
      %v937 = vpop.f32.mrb[0].mxu0
      %v938 = vadd.f32 0.0, %v937
      %v939 = vpop.f32.mrb[0].mxu0
      %940 = vmatprep.mubr.f32.mxu0 %v478
      %941 = vmatmul.mubr.f32.gmra.mrb[0].mxu0 %v575
      %v942 = vpop.f32.mrb[0].mxu0
      %v943 = vadd.f32 0.0, %v942
      %v944 = vpop.f32.mrb[0].mxu0
      %945 = vmatprep.mubr.f32.mxu0 %v479
      %946 = vmatmul.mubr.f32.gmra.mrb[0].mxu0 %v576
      %v947 = vpop.f32.mrb[0].mxu0
      %v948 = vadd.f32 0.0, %v947
      %v949 = vpop.f32.mrb[0].mxu0
      %950 = vmatprep.mubr.f32.mxu0 %v480
      %951 = vmatmul.mubr.f32.gmra.mrb[0].mxu0 %v577
      %v952 = vpop.f32.mrb[0].mxu0
      %v953 = vadd.f32 0.0, %v952
      %v954 = vpop.f32.mrb[0].mxu0
      %955 = vmatprep.mubr.f32.mxu0 %v481
      %956 = vmatmul.mubr.f32.gmra.mrb[0].mxu0 %v578
      %v957 = vpop.f32.mrb[0].mxu0
      %v958 = vadd.f32 0.0, %v957
      %v959 = vpop.f32.mrb[0].mxu0
      %960 = vmatprep.mubr.f32.mxu0 %v482
      %961 = vmatmul.mubr.f32.gmra.mrb[0].mxu0 %v579
      %v962 = vpop.f32.mrb[0].mxu0
      %v963 = vadd.f32 0.0, %v962
      %v964 = vpop.f32.mrb[0].mxu0
      %965 = vmatprep.mubr.f32.mxu0 %v483
      %966 = vmatmul.mubr.f32.gmra.mrb[0].mxu0 %v580
      %v967 = vpop.f32.mrb[0].mxu0
      %v968 = vadd.f32 0.0, %v967
      %v969 = vpop.f32.mrb[0].mxu0
      %970 = vmatprep.mubr.f32.mxu0 %v484
      %971 = vmatmul.mubr.f32.gmra.mrb[0].mxu0 %v581
      %v972 = vpop.f32.mrb[0].mxu0
      %v973 = vadd.f32 0.0, %v972
      %v974 = vpop.f32.mrb[0].mxu0
      %975 = vmatprep.mubr.f32.mxu0 %v485
      %976 = vmatmul.mubr.f32.gmra.mrb[0].mxu0 %v582
      %v977 = vpop.f32.mrb[0].mxu0
      %v978 = vadd.f32 0.0, %v977
      %v979 = vpop.f32.mrb[0].mxu0
      %980 = vmatprep.mubr.f32.mxu0 %v486
      %981 = vmatmul.mubr.f32.gmra.mrb[0].mxu0 %v583
      %v982 = vpop.f32.mrb[0].mxu0
      %v983 = vadd.f32 0.0, %v982
      %v984 = vpop.f32.mrb[0].mxu0
      %985 = vdwg.mxu0
      %986 = vmatprep.subr.mxu0 0.0
      %987 = vmatpush1.msra.mxu0 %v745
      %988 = vmatprep.subr.mxu0 0.0
      %989 = vmatpush1.msra.mxu0 %v746
      %990 = vmatprep.subr.mxu0 0.0
      %991 = vmatpush1.msra.mxu0 %v747
      %992 = vmatprep.subr.mxu0 0.0
      %993 = vmatpush1.msra.mxu0 %v748
      %994 = vmatprep.subr.mxu0 0.0
      %995 = vmatpush1.msra.mxu0 %v749
      %996 = vmatprep.subr.mxu0 0.0
      %997 = vmatpush1.msra.mxu0 %v750
      %998 = vmatprep.subr.mxu0 0.0
      %999 = vmatpush1.msra.mxu0 %v751
      %1000 = vmatprep.subr.mxu0 0.0
      %1001 = vmatpush1.msra.mxu0 %v752
      %1002 = vmatprep.subr.mxu0 0.0
      %1003 = vmatpush1.msra.mxu0 %v753
      %1004 = vmatprep.subr.mxu0 0.0
      %1005 = vmatpush1.msra.mxu0 %v754
      %1006 = vmatprep.subr.mxu0 0.0
      %1007 = vmatpush1.msra.mxu0 %v755
      %1008 = vmatprep.subr.mxu0 0.0
      %1009 = vmatpush1.msra.mxu0 %v756
      %1010 = vmatprep.subr.mxu0 0.0
      %1011 = vmatpush1.msra.mxu0 %v757
      %1012 = vmatprep.subr.mxu0 0.0
      %1013 = vmatpush1.msra.mxu0 %v758
      %1014 = vmatprep.subr.mxu0 0.0
      %1015 = vmatpush1.msra.mxu0 %v759
      %1016 = vmatprep.subr.mxu0 0.0
      %1017 = vmatpush1.msra.mxu0 %v760
      %1018 = vmatprep.subr.mxu0 0.0
      %1019 = vmatpush1.msra.mxu0 0.0
      %1020 = vmatprep.subr.mxu0 0.0
      %1021 = vmatpush1.msra.mxu0 0.0
      %1022 = vmatprep.subr.mxu0 0.0
      %1023 = vmatpush1.msra.mxu0 0.0
      %1024 = vmatprep.subr.mxu0 0.0
      %1025 = vmatpush1.msra.mxu0 0.0
      %1026 = vmatprep.subr.mxu0 0.0
      %1027 = vmatpush1.msra.mxu0 0.0
      %1028 = vmatprep.subr.mxu0 0.0
      %1029 = vmatpush1.msra.mxu0 0.0
      %1030 = vmatprep.subr.mxu0 0.0
      %1031 = vmatpush1.msra.mxu0 0.0
      %1032 = vmatprep.subr.mxu0 0.0
      %1033 = vmatpush1.msra.mxu0 0.0
      %1034 = vmatprep.subr.mxu0 0.0
      %1035 = vmatpush1.msra.mxu0 0.0
      %1036 = vmatprep.subr.mxu0 0.0
      %1037 = vmatpush1.msra.mxu0 0.0
      %1038 = vmatprep.subr.mxu0 0.0
      %1039 = vmatpush1.msra.mxu0 0.0
      %1040 = vmatprep.subr.mxu0 0.0
      %1041 = vmatpush1.msra.mxu0 0.0
      %1042 = vmatprep.subr.mxu0 0.0
      %1043 = vmatpush1.msra.mxu0 0.0
      %1044 = vmatprep.subr.mxu0 0.0
      %1045 = vmatpush1.msra.mxu0 0.0
      %1046 = vmatprep.subr.mxu0 0.0
      %1047 = vmatpush1.msra.mxu0 0.0
      %1048 = vmatprep.subr.mxu0 0.0
      %1049 = vmatpush1.msra.mxu0 0.0
      %1050 = vmatprep.mubr.f32.mxu0 0.0
      %1051 = vmatmul.mubr.f32.gmra.mrb[0].mxu0 %v649
      %v1052 = vpop.f32.mrb[0].mxu0
      %v1053 = vadd.f32 %v828, %v1052
      %v1054 = vpop.f32.mrb[0].mxu0
      %1055 = vmatprep.mubr.f32.mxu0 0.0
      %1056 = vmatmul.mubr.f32.gmra.mrb[0].mxu0 %v650
      %v1057 = vpop.f32.mrb[0].mxu0
      %v1058 = vadd.f32 %v833, %v1057
      %v1059 = vpop.f32.mrb[0].mxu0
      %1060 = vmatprep.mubr.f32.mxu0 0.0
      %1061 = vmatmul.mubr.f32.gmra.mrb[0].mxu0 %v651
      %v1062 = vpop.f32.mrb[0].mxu0
      %v1063 = vadd.f32 %v838, %v1062
      %v1064 = vpop.f32.mrb[0].mxu0
      %1065 = vmatprep.mubr.f32.mxu0 0.0
      %1066 = vmatmul.mubr.f32.gmra.mrb[0].mxu0 %v652
      %v1067 = vpop.f32.mrb[0].mxu0
      %v1068 = vadd.f32 %v843, %v1067
      %v1069 = vpop.f32.mrb[0].mxu0
      %1070 = vmatprep.mubr.f32.mxu0 0.0
      %1071 = vmatmul.mubr.f32.gmra.mrb[0].mxu0 %v653
      %v1072 = vpop.f32.mrb[0].mxu0
      %v1073 = vadd.f32 %v848, %v1072
      %v1074 = vpop.f32.mrb[0].mxu0
      %1075 = vmatprep.mubr.f32.mxu0 0.0
      %1076 = vmatmul.mubr.f32.gmra.mrb[0].mxu0 %v654
      %v1077 = vpop.f32.mrb[0].mxu0
      %v1078 = vadd.f32 %v853, %v1077
      %v1079 = vpop.f32.mrb[0].mxu0
      %1080 = vmatprep.mubr.f32.mxu0 0.0
      %1081 = vmatmul.mubr.f32.gmra.mrb[0].mxu0 %v655
      %v1082 = vpop.f32.mrb[0].mxu0
      %v1083 = vadd.f32 %v858, %v1082
      %v1084 = vpop.f32.mrb[0].mxu0
      %1085 = vmatprep.mubr.f32.mxu0 0.0
      %1086 = vmatmul.mubr.f32.gmra.mrb[0].mxu0 %v656
      %v1087 = vpop.f32.mrb[0].mxu0
      %v1088 = vadd.f32 %v863, %v1087
      %v1089 = vpop.f32.mrb[0].mxu0
      %1090 = vmatprep.mubr.f32.mxu0 0.0
      %1091 = vmatmul.mubr.f32.gmra.mrb[0].mxu0 %v657
      %v1092 = vpop.f32.mrb[0].mxu0
      %v1093 = vadd.f32 %v868, %v1092
      %v1094 = vpop.f32.mrb[0].mxu0
      %1095 = vmatprep.mubr.f32.mxu0 0.0
      %1096 = vmatmul.mubr.f32.gmra.mrb[0].mxu0 %v658
      %v1097 = vpop.f32.mrb[0].mxu0
      %v1098 = vadd.f32 %v873, %v1097
      %v1099 = vpop.f32.mrb[0].mxu0
      %1100 = vmatprep.mubr.f32.mxu0 0.0
      %1101 = vmatmul.mubr.f32.gmra.mrb[0].mxu0 %v659
      %v1102 = vpop.f32.mrb[0].mxu0
      %v1103 = vadd.f32 %v878, %v1102
      %v1104 = vpop.f32.mrb[0].mxu0
      %1105 = vmatprep.mubr.f32.mxu0 0.0
      %1106 = vmatmul.mubr.f32.gmra.mrb[0].mxu0 %v660
      %v1107 = vpop.f32.mrb[0].mxu0
      %v1108 = vadd.f32 %v883, %v1107
      %v1109 = vpop.f32.mrb[0].mxu0
      %1110 = vmatprep.mubr.f32.mxu0 0.0
      %1111 = vmatmul.mubr.f32.gmra.mrb[0].mxu0 %v661
      %v1112 = vpop.f32.mrb[0].mxu0
      %v1113 = vadd.f32 %v888, %v1112
      %v1114 = vpop.f32.mrb[0].mxu0
      %1115 = vmatprep.mubr.f32.mxu0 0.0
      %1116 = vmatmul.mubr.f32.gmra.mrb[0].mxu0 %v662
      %v1117 = vpop.f32.mrb[0].mxu0
      %v1118 = vadd.f32 %v893, %v1117
      %v1119 = vpop.f32.mrb[0].mxu0
      %1120 = vmatprep.mubr.f32.mxu0 0.0
      %1121 = vmatmul.mubr.f32.gmra.mrb[0].mxu0 %v663
      %v1122 = vpop.f32.mrb[0].mxu0
      %v1123 = vadd.f32 %v898, %v1122
      %v1124 = vpop.f32.mrb[0].mxu0
      %1125 = vmatprep.mubr.f32.mxu0 0.0
      %1126 = vmatmul.mubr.f32.gmra.mrb[0].mxu0 %v664
      %v1127 = vpop.f32.mrb[0].mxu0
      %v1128 = vadd.f32 %v903, %v1127
      %v1129 = vpop.f32.mrb[0].mxu0
      %1130 = vmatprep.mubr.f32.mxu0 0.0
      %1131 = vmatmul.mubr.f32.gmra.mrb[0].mxu0 %v665
      %v1132 = vpop.f32.mrb[0].mxu0
      %v1133 = vadd.f32 %v908, %v1132
      %v1134 = vpop.f32.mrb[0].mxu0
      %1135 = vmatprep.mubr.f32.mxu0 0.0
      %1136 = vmatmul.mubr.f32.gmra.mrb[0].mxu0 %v666
      %v1137 = vpop.f32.mrb[0].mxu0
      %v1138 = vadd.f32 %v913, %v1137
      %v1139 = vpop.f32.mrb[0].mxu0
      %1140 = vmatprep.mubr.f32.mxu0 0.0
      %1141 = vmatmul.mubr.f32.gmra.mrb[0].mxu0 %v667
      %v1142 = vpop.f32.mrb[0].mxu0
      %v1143 = vadd.f32 %v918, %v1142
      %v1144 = vpop.f32.mrb[0].mxu0
      %1145 = vmatprep.mubr.f32.mxu0 0.0
      %1146 = vmatmul.mubr.f32.gmra.mrb[0].mxu0 %v668
      %v1147 = vpop.f32.mrb[0].mxu0
      %v1148 = vadd.f32 %v923, %v1147
      %v1149 = vpop.f32.mrb[0].mxu0
      %1150 = vmatprep.mubr.f32.mxu0 0.0
      %1151 = vmatmul.mubr.f32.gmra.mrb[0].mxu0 %v669
      %v1152 = vpop.f32.mrb[0].mxu0
      %v1153 = vadd.f32 %v928, %v1152
      %v1154 = vpop.f32.mrb[0].mxu0
      %1155 = vmatprep.mubr.f32.mxu0 0.0
      %1156 = vmatmul.mubr.f32.gmra.mrb[0].mxu0 %v670
      %v1157 = vpop.f32.mrb[0].mxu0
      %v1158 = vadd.f32 %v933, %v1157
      %v1159 = vpop.f32.mrb[0].mxu0
      %1160 = vmatprep.mubr.f32.mxu0 0.0
      %1161 = vmatmul.mubr.f32.gmra.mrb[0].mxu0 %v671
      %v1162 = vpop.f32.mrb[0].mxu0
      %v1163 = vadd.f32 %v938, %v1162
      %v1164 = vpop.f32.mrb[0].mxu0
      %1165 = vmatprep.mubr.f32.mxu0 0.0
      %1166 = vmatmul.mubr.f32.gmra.mrb[0].mxu0 %v672
      %v1167 = vpop.f32.mrb[0].mxu0
      %v1168 = vadd.f32 %v943, %v1167
      %v1169 = vpop.f32.mrb[0].mxu0
      %1170 = vmatprep.mubr.f32.mxu0 0.0
      %1171 = vmatmul.mubr.f32.gmra.mrb[0].mxu0 %v673
      %v1172 = vpop.f32.mrb[0].mxu0
      %v1173 = vadd.f32 %v948, %v1172
      %v1174 = vpop.f32.mrb[0].mxu0
      %1175 = vmatprep.mubr.f32.mxu0 0.0
      %1176 = vmatmul.mubr.f32.gmra.mrb[0].mxu0 %v674
      %v1177 = vpop.f32.mrb[0].mxu0
      %v1178 = vadd.f32 %v953, %v1177
      %v1179 = vpop.f32.mrb[0].mxu0
      %1180 = vmatprep.mubr.f32.mxu0 0.0
      %1181 = vmatmul.mubr.f32.gmra.mrb[0].mxu0 %v675
      %v1182 = vpop.f32.mrb[0].mxu0
      %v1183 = vadd.f32 %v958, %v1182
      %v1184 = vpop.f32.mrb[0].mxu0
      %1185 = vmatprep.mubr.f32.mxu0 0.0
      %1186 = vmatmul.mubr.f32.gmra.mrb[0].mxu0 %v676
      %v1187 = vpop.f32.mrb[0].mxu0
      %v1188 = vadd.f32 %v963, %v1187
      %v1189 = vpop.f32.mrb[0].mxu0
      %1190 = vmatprep.mubr.f32.mxu0 0.0
      %1191 = vmatmul.mubr.f32.gmra.mrb[0].mxu0 %v677
      %v1192 = vpop.f32.mrb[0].mxu0
      %v1193 = vadd.f32 %v968, %v1192
      %v1194 = vpop.f32.mrb[0].mxu0
      %1195 = vmatprep.mubr.f32.mxu0 0.0
      %1196 = vmatmul.mubr.f32.gmra.mrb[0].mxu0 %v678
      %v1197 = vpop.f32.mrb[0].mxu0
      %v1198 = vadd.f32 %v973, %v1197
      %v1199 = vpop.f32.mrb[0].mxu0
      %1200 = vmatprep.mubr.f32.mxu0 0.0
      %1201 = vmatmul.mubr.f32.gmra.mrb[0].mxu0 %v679
      %v1202 = vpop.f32.mrb[0].mxu0
      %v1203 = vadd.f32 %v978, %v1202
      %v1204 = vpop.f32.mrb[0].mxu0
      %1205 = vmatprep.mubr.f32.mxu0 0.0
      %1206 = vmatmul.mubr.f32.gmra.mrb[0].mxu0 %v680
      %v1207 = vpop.f32.mrb[0].mxu0
      %v1208 = vadd.f32 %v983, %v1207
      %v1209 = vpop.f32.mrb[0].mxu0
      %1210 = vdwg.mxu0
      %v1211 = vadd.f32 %v681, %v1053
      %v1212 = vadd.f32 %v682, %v1058
      %v1213 = vadd.f32 %v683, %v1063
      %v1214 = vadd.f32 %v684, %v1068
      %v1215 = vadd.f32 %v685, %v1073
      %v1216 = vadd.f32 %v686, %v1078
      %v1217 = vadd.f32 %v687, %v1083
      %v1218 = vadd.f32 %v688, %v1088
      %v1219 = vadd.f32 %v689, %v1093
      %v1220 = vadd.f32 %v690, %v1098
      %v1221 = vadd.f32 %v691, %v1103
      %v1222 = vadd.f32 %v692, %v1108
      %v1223 = vadd.f32 %v693, %v1113
      %v1224 = vadd.f32 %v694, %v1118
      %v1225 = vadd.f32 %v695, %v1123
      %v1226 = vadd.f32 %v696, %v1128
      %v1227 = vadd.f32 %v697, %v1133
      %v1228 = vadd.f32 %v698, %v1138
      %v1229 = vadd.f32 %v699, %v1143
      %v1230 = vadd.f32 %v700, %v1148
      %v1231 = vadd.f32 %v701, %v1153
      %v1232 = vadd.f32 %v702, %v1158
      %v1233 = vadd.f32 %v703, %v1163
      %v1234 = vadd.f32 %v704, %v1168
      %v1235 = vadd.f32 %v705, %v1173
      %v1236 = vadd.f32 %v706, %v1178
      %v1237 = vadd.f32 %v707, %v1183
      %v1238 = vadd.f32 %v708, %v1188
      %v1239 = vadd.f32 %v709, %v1193
      %v1240 = vadd.f32 %v710, %v1198
      %v1241 = vadd.f32 %v711, %v1203
      %v1242 = vadd.f32 %v712, %v1208
      %1243 = vst [vmem:[#allocation3] sm:$0xff] %v1211
      %1244 = vst [vmem:[#allocation3 + $0x8] sm:$0xff] %v1212
      %1245 = vst [vmem:[#allocation3 + $0x10] sm:$0xff] %v1213
      %1246 = vst [vmem:[#allocation3 + $0x18] sm:$0xff] %v1214
      %1247 = vst [vmem:[#allocation3 + $0x20] sm:$0xff] %v1215
      %1248 = vst [vmem:[#allocation3 + $0x28] sm:$0xff] %v1216
      %1249 = vst [vmem:[#allocation3 + $0x30] sm:$0xff] %v1217
      %1250 = vst [vmem:[#allocation3 + $0x38] sm:$0xff] %v1218
      %1251 = vst [vmem:[#allocation3 + $0x40] sm:$0xff] %v1219
      %1252 = vst [vmem:[#allocation3 + $0x48] sm:$0xff] %v1220
      %1253 = vst [vmem:[#allocation3 + $0x50] sm:$0xff] %v1221
      %1254 = vst [vmem:[#allocation3 + $0x58] sm:$0xff] %v1222
      %1255 = vst [vmem:[#allocation3 + $0x60] sm:$0xff] %v1223
      %1256 = vst [vmem:[#allocation3 + $0x68] sm:$0xff] %v1224
      %1257 = vst [vmem:[#allocation3 + $0x70] sm:$0xff] %v1225
      %1258 = vst [vmem:[#allocation3 + $0x78] sm:$0xff] %v1226
      %1259 = vst [vmem:[#allocation3 + $0x80] sm:$0xff] %v1227
      %1260 = vst [vmem:[#allocation3 + $0x88] sm:$0xff] %v1228
      %1261 = vst [vmem:[#allocation3 + $0x90] sm:$0xff] %v1229
      %1262 = vst [vmem:[#allocation3 + $0x98] sm:$0xff] %v1230
      %1263 = vst [vmem:[#allocation3 + $0xa0] sm:$0xff] %v1231
      %1264 = vst [vmem:[#allocation3 + $0xa8] sm:$0xff] %v1232
      %1265 = vst [vmem:[#allocation3 + $0xb0] sm:$0xff] %v1233
      %1266 = vst [vmem:[#allocation3 + $0xb8] sm:$0xff] %v1234
      %1267 = vst [vmem:[#allocation3 + $0xc0] sm:$0xff] %v1235
      %1268 = vst [vmem:[#allocation3 + $0xc8] sm:$0xff] %v1236
      %1269 = vst [vmem:[#allocation3 + $0xd0] sm:$0xff] %v1237
      %1270 = vst [vmem:[#allocation3 + $0xd8] sm:$0xff] %v1238
      %1271 = vst [vmem:[#allocation3 + $0xe0] sm:$0xff] %v1239
      %1272 = vst [vmem:[#allocation3 + $0xe8] sm:$0xff] %v1240
      %1273 = vst [vmem:[#allocation3 + $0xf0] sm:$0xff] %v1241
      %1274 = vst [vmem:[#allocation3 + $0xf8] sm:$0xff] %v1242
      %v1275 = vld [vmem:[%s383] sm:$0xff]
      %v1276 = vld [vmem:[%s383 + $0x8] sm:$0xff]
      %v1277 = vld [vmem:[%s383 + $0x10] sm:$0xff]
      %v1278 = vld [vmem:[%s383 + $0x18] sm:$0xff]
      %v1279 = vld [vmem:[%s383 + $0x20] sm:$0xff]
      %v1280 = vld [vmem:[%s383 + $0x28] sm:$0xff]
      %v1281 = vld [vmem:[%s383 + $0x30] sm:$0xff]
      %v1282 = vld [vmem:[%s383 + $0x38] sm:$0xff]
      %v1283 = vld [vmem:[%s383 + $0x40] sm:$0xff]
      %v1284 = vld [vmem:[%s383 + $0x48] sm:$0xff]
      %v1285 = vld [vmem:[%s383 + $0x50] sm:$0xff]
      %v1286 = vld [vmem:[%s383 + $0x58] sm:$0xff]
      %v1287 = vld [vmem:[%s383 + $0x60] sm:$0xff]
      %v1288 = vld [vmem:[%s383 + $0x68] sm:$0xff]
      %v1289 = vld [vmem:[%s383 + $0x70] sm:$0xff]
      %v1290 = vld [vmem:[%s383 + $0x78] sm:$0xff]
      %v1291 = vld [vmem:[%s383 + $0x80] sm:$0xff]
      %v1292 = vld [vmem:[%s383 + $0x88] sm:$0xff]
      %v1293 = vld [vmem:[%s383 + $0x90] sm:$0xff]
      %v1294 = vld [vmem:[%s383 + $0x98] sm:$0xff]
      %v1295 = vld [vmem:[%s383 + $0xa0] sm:$0xff]
      %v1296 = vld [vmem:[%s383 + $0xa8] sm:$0xff]
      %v1297 = vld [vmem:[%s383 + $0xb0] sm:$0xff]
      %v1298 = vld [vmem:[%s383 + $0xb8] sm:$0xff]
      %v1299 = vld [vmem:[%s383 + $0xc0] sm:$0xff]
      %v1300 = vld [vmem:[%s383 + $0xc8] sm:$0xff]
      %v1301 = vld [vmem:[%s383 + $0xd0] sm:$0xff]
      %v1302 = vld [vmem:[%s383 + $0xd8] sm:$0xff]
      %v1303 = vld [vmem:[%s383 + $0xe0] sm:$0xff]
      %v1304 = vld [vmem:[%s383 + $0xe8] sm:$0xff]
      %v1305 = vld [vmem:[%s383 + $0xf0] sm:$0xff]
      %v1306 = vld [vmem:[%s383 + $0xf8] sm:$0xff]
      %v1307 = vrot.slane %v1275, 7
      %v1308 = vrot.slane %v1276, 7
      %v1309 = vrot.slane %v1277, 7
      %v1310 = vrot.slane %v1278, 7
      %v1311 = vrot.slane %v1279, 7
      %v1312 = vrot.slane %v1280, 7
      %v1313 = vrot.slane %v1281, 7
      %v1314 = vrot.slane %v1282, 7
      %v1315 = vrot.slane %v1283, 7
      %v1316 = vrot.slane %v1284, 7
      %v1317 = vrot.slane %v1285, 7
      %v1318 = vrot.slane %v1286, 7
      %v1319 = vrot.slane %v1287, 7
      %v1320 = vrot.slane %v1288, 7
      %v1321 = vrot.slane %v1289, 7
      %v1322 = vrot.slane %v1290, 7
      %v1323 = vrot.slane %v1291, 7
      %v1324 = vrot.slane %v1292, 7
      %v1325 = vrot.slane %v1293, 7
      %v1326 = vrot.slane %v1294, 7
      %v1327 = vrot.slane %v1295, 7
      %v1328 = vrot.slane %v1296, 7
      %v1329 = vrot.slane %v1297, 7
      %v1330 = vrot.slane %v1298, 7
      %v1331 = vrot.slane %v1299, 7
      %v1332 = vrot.slane %v1300, 7
      %v1333 = vrot.slane %v1301, 7
      %v1334 = vrot.slane %v1302, 7
      %v1335 = vrot.slane %v1303, 7
      %v1336 = vrot.slane %v1304, 7
      %v1337 = vrot.slane %v1305, 7
      %v1338 = vrot.slane %v1306, 7
      %v1339 = vsel %vm519, %v1337, %v1338
      %v1340 = vsel %vm519, %v1336, %v1337
      %v1341 = vsel %vm519, %v1335, %v1336
      %v1342 = vsel %vm519, %v1334, %v1335
      %v1343 = vsel %vm519, %v1333, %v1334
      %v1344 = vsel %vm519, %v1332, %v1333
      %v1345 = vsel %vm519, %v1331, %v1332
      %v1346 = vsel %vm519, %v1330, %v1331
      %v1347 = vsel %vm519, %v1329, %v1330
      %v1348 = vsel %vm519, %v1328, %v1329
      %v1349 = vsel %vm519, %v1327, %v1328
      %v1350 = vsel %vm519, %v1326, %v1327
      %v1351 = vsel %vm519, %v1325, %v1326
      %v1352 = vsel %vm519, %v1324, %v1325
      %v1353 = vsel %vm519, %v1323, %v1324
      %v1354 = vsel %vm519, %v1322, %v1323
      %v1355 = vsel %vm519, %v1321, %v1322
      %v1356 = vsel %vm519, %v1320, %v1321
      %v1357 = vsel %vm519, %v1319, %v1320
      %v1358 = vsel %vm519, %v1318, %v1319
      %v1359 = vsel %vm519, %v1317, %v1318
      %v1360 = vsel %vm519, %v1316, %v1317
      %v1361 = vsel %vm519, %v1315, %v1316
      %v1362 = vsel %vm519, %v1314, %v1315
      %v1363 = vsel %vm519, %v1313, %v1314
      %v1364 = vsel %vm519, %v1312, %v1313
      %v1365 = vsel %vm519, %v1311, %v1312
      %v1366 = vsel %vm519, %v1310, %v1311
      %v1367 = vsel %vm519, %v1309, %v1310
      %v1368 = vsel %vm519, %v1308, %v1309
      %v1369 = vsel %vm519, %v1307, %v1308
      %v1370 = vsel %vm519, %v1338, %v1307
      %v1371 = vsel %vm419, %v1370, 0.0
      %v1372 = vsel %vm420, %v1369, 0.0
      %v1373 = vsel %vm419, %v1368, 0.0
      %v1374 = vsel %vm420, %v1367, 0.0
      %v1375 = vsel %vm419, %v1366, 0.0
      %v1376 = vsel %vm420, %v1365, 0.0
      %v1377 = vsel %vm419, %v1364, 0.0
      %v1378 = vsel %vm420, %v1363, 0.0
      %v1379 = vsel %vm419, %v1362, 0.0
      %v1380 = vsel %vm420, %v1361, 0.0
      %v1381 = vsel %vm419, %v1360, 0.0
      %v1382 = vsel %vm420, %v1359, 0.0
      %v1383 = vsel %vm419, %v1358, 0.0
      %v1384 = vsel %vm420, %v1357, 0.0
      %v1385 = vsel %vm419, %v1356, 0.0
      %v1386 = vsel %vm420, %v1355, 0.0
      %v1387 = vsel %vm419, %v1354, 0.0
      %v1388 = vsel %vm420, %v1353, 0.0
      %v1389 = vsel %vm419, %v1352, 0.0
      %v1390 = vsel %vm420, %v1351, 0.0
      %v1391 = vsel %vm419, %v1350, 0.0
      %v1392 = vsel %vm420, %v1349, 0.0
      %v1393 = vsel %vm419, %v1348, 0.0
      %v1394 = vsel %vm420, %v1347, 0.0
      %v1395 = vsel %vm419, %v1346, 0.0
      %v1396 = vsel %vm420, %v1345, 0.0
      %v1397 = vsel %vm419, %v1344, 0.0
      %v1398 = vsel %vm420, %v1343, 0.0
      %v1399 = vsel %vm419, %v1342, 0.0
      %v1400 = vsel %vm420, %v1341, 0.0
      %v1401 = vsel %vm419, %v1340, 0.0
      %v1402 = vsel %vm420, %v1339, 0.0
      %v1403 = vrot.slane %v1275, 1
      %v1404 = vrot.slane %v1276, 1
      %v1405 = vrot.slane %v1277, 1
      %v1406 = vrot.slane %v1278, 1
      %v1407 = vrot.slane %v1279, 1
      %v1408 = vrot.slane %v1280, 1
      %v1409 = vrot.slane %v1281, 1
      %v1410 = vrot.slane %v1282, 1
      %v1411 = vrot.slane %v1283, 1
      %v1412 = vrot.slane %v1284, 1
      %v1413 = vrot.slane %v1285, 1
      %v1414 = vrot.slane %v1286, 1
      %v1415 = vrot.slane %v1287, 1
      %v1416 = vrot.slane %v1288, 1
      %v1417 = vrot.slane %v1289, 1
      %v1418 = vrot.slane %v1290, 1
      %v1419 = vrot.slane %v1291, 1
      %v1420 = vrot.slane %v1292, 1
      %v1421 = vrot.slane %v1293, 1
      %v1422 = vrot.slane %v1294, 1
      %v1423 = vrot.slane %v1295, 1
      %v1424 = vrot.slane %v1296, 1
      %v1425 = vrot.slane %v1297, 1
      %v1426 = vrot.slane %v1298, 1
      %v1427 = vrot.slane %v1299, 1
      %v1428 = vrot.slane %v1300, 1
      %v1429 = vrot.slane %v1301, 1
      %v1430 = vrot.slane %v1302, 1
      %v1431 = vrot.slane %v1303, 1
      %v1432 = vrot.slane %v1304, 1
      %v1433 = vrot.slane %v1305, 1
      %v1434 = vrot.slane %v1306, 1
      %v1435 = vsel %vm616, %v1433, %v1434
      %v1436 = vsel %vm616, %v1432, %v1433
      %v1437 = vsel %vm616, %v1431, %v1432
      %v1438 = vsel %vm616, %v1430, %v1431
      %v1439 = vsel %vm616, %v1429, %v1430
      %v1440 = vsel %vm616, %v1428, %v1429
      %v1441 = vsel %vm616, %v1427, %v1428
      %v1442 = vsel %vm616, %v1426, %v1427
      %v1443 = vsel %vm616, %v1425, %v1426
      %v1444 = vsel %vm616, %v1424, %v1425
      %v1445 = vsel %vm616, %v1423, %v1424
      %v1446 = vsel %vm616, %v1422, %v1423
      %v1447 = vsel %vm616, %v1421, %v1422
      %v1448 = vsel %vm616, %v1420, %v1421
      %v1449 = vsel %vm616, %v1419, %v1420
      %v1450 = vsel %vm616, %v1418, %v1419
      %v1451 = vsel %vm616, %v1417, %v1418
      %v1452 = vsel %vm616, %v1416, %v1417
      %v1453 = vsel %vm616, %v1415, %v1416
      %v1454 = vsel %vm616, %v1414, %v1415
      %v1455 = vsel %vm616, %v1413, %v1414
      %v1456 = vsel %vm616, %v1412, %v1413
      %v1457 = vsel %vm616, %v1411, %v1412
      %v1458 = vsel %vm616, %v1410, %v1411
      %v1459 = vsel %vm616, %v1409, %v1410
      %v1460 = vsel %vm616, %v1408, %v1409
      %v1461 = vsel %vm616, %v1407, %v1408
      %v1462 = vsel %vm616, %v1406, %v1407
      %v1463 = vsel %vm616, %v1405, %v1406
      %v1464 = vsel %vm616, %v1404, %v1405
      %v1465 = vsel %vm616, %v1403, %v1404
      %v1466 = vsel %vm616, %v1434, %v1403
      %v1467 = vsel %vm421, %v1465, 0.0
      %v1468 = vsel %vm422, %v1464, 0.0
      %v1469 = vsel %vm421, %v1463, 0.0
      %v1470 = vsel %vm422, %v1462, 0.0
      %v1471 = vsel %vm421, %v1461, 0.0
      %v1472 = vsel %vm422, %v1460, 0.0
      %v1473 = vsel %vm421, %v1459, 0.0
      %v1474 = vsel %vm422, %v1458, 0.0
      %v1475 = vsel %vm421, %v1457, 0.0
      %v1476 = vsel %vm422, %v1456, 0.0
      %v1477 = vsel %vm421, %v1455, 0.0
      %v1478 = vsel %vm422, %v1454, 0.0
      %v1479 = vsel %vm421, %v1453, 0.0
      %v1480 = vsel %vm422, %v1452, 0.0
      %v1481 = vsel %vm421, %v1451, 0.0
      %v1482 = vsel %vm422, %v1450, 0.0
      %v1483 = vsel %vm421, %v1449, 0.0
      %v1484 = vsel %vm422, %v1448, 0.0
      %v1485 = vsel %vm421, %v1447, 0.0
      %v1486 = vsel %vm422, %v1446, 0.0
      %v1487 = vsel %vm421, %v1445, 0.0
      %v1488 = vsel %vm422, %v1444, 0.0
      %v1489 = vsel %vm421, %v1443, 0.0
      %v1490 = vsel %vm422, %v1442, 0.0
      %v1491 = vsel %vm421, %v1441, 0.0
      %v1492 = vsel %vm422, %v1440, 0.0
      %v1493 = vsel %vm421, %v1439, 0.0
      %v1494 = vsel %vm422, %v1438, 0.0
      %v1495 = vsel %vm421, %v1437, 0.0
      %v1496 = vsel %vm422, %v1436, 0.0
      %v1497 = vsel %vm421, %v1435, 0.0
      %v1498 = vsel %vm422, %v1466, 0.0
      %v1499 = vld [vmem:[#allocation3] sm:$0xff]
      %v1500 = vld [vmem:[#allocation3 + $0x8] sm:$0xff]
      %v1501 = vld [vmem:[#allocation3 + $0x10] sm:$0xff]
      %v1502 = vld [vmem:[#allocation3 + $0x18] sm:$0xff]
      %v1503 = vld [vmem:[#allocation3 + $0x20] sm:$0xff]
      %v1504 = vld [vmem:[#allocation3 + $0x28] sm:$0xff]
      %v1505 = vld [vmem:[#allocation3 + $0x30] sm:$0xff]
      %v1506 = vld [vmem:[#allocation3 + $0x38] sm:$0xff]
      %v1507 = vld [vmem:[#allocation3 + $0x40] sm:$0xff]
      %v1508 = vld [vmem:[#allocation3 + $0x48] sm:$0xff]
      %v1509 = vld [vmem:[#allocation3 + $0x50] sm:$0xff]
      %v1510 = vld [vmem:[#allocation3 + $0x58] sm:$0xff]
      %v1511 = vld [vmem:[#allocation3 + $0x60] sm:$0xff]
      %v1512 = vld [vmem:[#allocation3 + $0x68] sm:$0xff]
      %v1513 = vld [vmem:[#allocation3 + $0x70] sm:$0xff]
      %v1514 = vld [vmem:[#allocation3 + $0x78] sm:$0xff]
      %v1515 = vld [vmem:[#allocation3 + $0x80] sm:$0xff]
      %v1516 = vld [vmem:[#allocation3 + $0x88] sm:$0xff]
      %v1517 = vld [vmem:[#allocation3 + $0x90] sm:$0xff]
      %v1518 = vld [vmem:[#allocation3 + $0x98] sm:$0xff]
      %v1519 = vld [vmem:[#allocation3 + $0xa0] sm:$0xff]
      %v1520 = vld [vmem:[#allocation3 + $0xa8] sm:$0xff]
      %v1521 = vld [vmem:[#allocation3 + $0xb0] sm:$0xff]
      %v1522 = vld [vmem:[#allocation3 + $0xb8] sm:$0xff]
      %v1523 = vld [vmem:[#allocation3 + $0xc0] sm:$0xff]
      %v1524 = vld [vmem:[#allocation3 + $0xc8] sm:$0xff]
      %v1525 = vld [vmem:[#allocation3 + $0xd0] sm:$0xff]
      %v1526 = vld [vmem:[#allocation3 + $0xd8] sm:$0xff]
      %v1527 = vld [vmem:[#allocation3 + $0xe0] sm:$0xff]
      %v1528 = vld [vmem:[#allocation3 + $0xe8] sm:$0xff]
      %v1529 = vld [vmem:[#allocation3 + $0xf0] sm:$0xff]
      %v1530 = vld [vmem:[#allocation3 + $0xf8] sm:$0xff]
      %s1531 = scalar_lea.vmem %s3, 384
      %v1532 = vld [vmem:[%s1531] sm:$0xff]
      %v1533 = vld [vmem:[%s1531 + $0x8] sm:$0xff]
      %v1534 = vld [vmem:[%s1531 + $0x10] sm:$0xff]
      %v1535 = vld [vmem:[%s1531 + $0x18] sm:$0xff]
      %v1536 = vld [vmem:[%s1531 + $0x20] sm:$0xff]
      %v1537 = vld [vmem:[%s1531 + $0x28] sm:$0xff]
      %v1538 = vld [vmem:[%s1531 + $0x30] sm:$0xff]
      %v1539 = vld [vmem:[%s1531 + $0x38] sm:$0xff]
      %v1540 = vld [vmem:[%s1531 + $0x40] sm:$0xff]
      %v1541 = vld [vmem:[%s1531 + $0x48] sm:$0xff]
      %v1542 = vld [vmem:[%s1531 + $0x50] sm:$0xff]
      %v1543 = vld [vmem:[%s1531 + $0x58] sm:$0xff]
      %v1544 = vld [vmem:[%s1531 + $0x60] sm:$0xff]
      %v1545 = vld [vmem:[%s1531 + $0x68] sm:$0xff]
      %v1546 = vld [vmem:[%s1531 + $0x70] sm:$0xff]
      %v1547 = vld [vmem:[%s1531 + $0x78] sm:$0xff]
      %v1548 = vld [vmem:[%s1531 + $0x80] sm:$0xff]
      %v1549 = vld [vmem:[%s1531 + $0x88] sm:$0xff]
      %v1550 = vld [vmem:[%s1531 + $0x90] sm:$0xff]
      %v1551 = vld [vmem:[%s1531 + $0x98] sm:$0xff]
      %v1552 = vld [vmem:[%s1531 + $0xa0] sm:$0xff]
      %v1553 = vld [vmem:[%s1531 + $0xa8] sm:$0xff]
      %v1554 = vld [vmem:[%s1531 + $0xb0] sm:$0xff]
      %v1555 = vld [vmem:[%s1531 + $0xb8] sm:$0xff]
      %v1556 = vld [vmem:[%s1531 + $0xc0] sm:$0xff]
      %v1557 = vld [vmem:[%s1531 + $0xc8] sm:$0xff]
      %v1558 = vld [vmem:[%s1531 + $0xd0] sm:$0xff]
      %v1559 = vld [vmem:[%s1531 + $0xd8] sm:$0xff]
      %v1560 = vld [vmem:[%s1531 + $0xe0] sm:$0xff]
      %v1561 = vld [vmem:[%s1531 + $0xe8] sm:$0xff]
      %v1562 = vld [vmem:[%s1531 + $0xf0] sm:$0xff]
      %v1563 = vld [vmem:[%s1531 + $0xf8] sm:$0xff]
      %v1564 = vld [vmem:[%s1531 + $0x100] sm:$0xff]
      %v1565 = vld [vmem:[%s1531 + $0x108] sm:$0xff]
      %v1566 = vld [vmem:[%s1531 + $0x110] sm:$0xff]
      %v1567 = vld [vmem:[%s1531 + $0x118] sm:$0xff]
      %v1568 = vld [vmem:[%s1531 + $0x120] sm:$0xff]
      %v1569 = vld [vmem:[%s1531 + $0x128] sm:$0xff]
      %v1570 = vld [vmem:[%s1531 + $0x130] sm:$0xff]
      %v1571 = vld [vmem:[%s1531 + $0x138] sm:$0xff]
      %v1572 = vld [vmem:[%s1531 + $0x140] sm:$0xff]
      %v1573 = vld [vmem:[%s1531 + $0x148] sm:$0xff]
      %v1574 = vld [vmem:[%s1531 + $0x150] sm:$0xff]
      %v1575 = vld [vmem:[%s1531 + $0x158] sm:$0xff]
      %v1576 = vld [vmem:[%s1531 + $0x160] sm:$0xff]
      %v1577 = vld [vmem:[%s1531 + $0x168] sm:$0xff]
      %v1578 = vld [vmem:[%s1531 + $0x170] sm:$0xff]
      %v1579 = vld [vmem:[%s1531 + $0x178] sm:$0xff]
      %1580 = vmatprep.subr.mxu0 0.0
      %1581 = vmatpush1.msra.mxu0 %v1532
      %1582 = vmatprep.subr.mxu0 0.0
      %1583 = vmatpush1.msra.mxu0 %v1533
      %1584 = vmatprep.subr.mxu0 0.0
      %1585 = vmatpush1.msra.mxu0 %v1534
      %1586 = vmatprep.subr.mxu0 0.0
      %1587 = vmatpush1.msra.mxu0 %v1535
      %1588 = vmatprep.subr.mxu0 0.0
      %1589 = vmatpush1.msra.mxu0 %v1536
      %1590 = vmatprep.subr.mxu0 0.0
      %1591 = vmatpush1.msra.mxu0 %v1537
      %1592 = vmatprep.subr.mxu0 0.0
      %1593 = vmatpush1.msra.mxu0 %v1538
      %1594 = vmatprep.subr.mxu0 0.0
      %1595 = vmatpush1.msra.mxu0 %v1539
      %1596 = vmatprep.subr.mxu0 0.0
      %1597 = vmatpush1.msra.mxu0 %v1540
      %1598 = vmatprep.subr.mxu0 0.0
      %1599 = vmatpush1.msra.mxu0 %v1541
      %1600 = vmatprep.subr.mxu0 0.0
      %1601 = vmatpush1.msra.mxu0 %v1542
      %1602 = vmatprep.subr.mxu0 0.0
      %1603 = vmatpush1.msra.mxu0 %v1543
      %1604 = vmatprep.subr.mxu0 0.0
      %1605 = vmatpush1.msra.mxu0 %v1544
      %1606 = vmatprep.subr.mxu0 0.0
      %1607 = vmatpush1.msra.mxu0 %v1545
      %1608 = vmatprep.subr.mxu0 0.0
      %1609 = vmatpush1.msra.mxu0 %v1546
      %1610 = vmatprep.subr.mxu0 0.0
      %1611 = vmatpush1.msra.mxu0 %v1547
      %1612 = vmatprep.subr.mxu0 0.0
      %1613 = vmatpush1.msra.mxu0 %v1548
      %1614 = vmatprep.subr.mxu0 0.0
      %1615 = vmatpush1.msra.mxu0 %v1549
      %1616 = vmatprep.subr.mxu0 0.0
      %1617 = vmatpush1.msra.mxu0 %v1550
      %1618 = vmatprep.subr.mxu0 0.0
      %1619 = vmatpush1.msra.mxu0 %v1551
      %1620 = vmatprep.subr.mxu0 0.0
      %1621 = vmatpush1.msra.mxu0 %v1552
      %1622 = vmatprep.subr.mxu0 0.0
      %1623 = vmatpush1.msra.mxu0 %v1553
      %1624 = vmatprep.subr.mxu0 0.0
      %1625 = vmatpush1.msra.mxu0 %v1554
      %1626 = vmatprep.subr.mxu0 0.0
      %1627 = vmatpush1.msra.mxu0 %v1555
      %1628 = vmatprep.subr.mxu0 0.0
      %1629 = vmatpush1.msra.mxu0 %v1556
      %1630 = vmatprep.subr.mxu0 0.0
      %1631 = vmatpush1.msra.mxu0 %v1557
      %1632 = vmatprep.subr.mxu0 0.0
      %1633 = vmatpush1.msra.mxu0 %v1558
      %1634 = vmatprep.subr.mxu0 0.0
      %1635 = vmatpush1.msra.mxu0 %v1559
      %1636 = vmatprep.subr.mxu0 0.0
      %1637 = vmatpush1.msra.mxu0 %v1560
      %1638 = vmatprep.subr.mxu0 0.0
      %1639 = vmatpush1.msra.mxu0 %v1561
      %1640 = vmatprep.subr.mxu0 0.0
      %1641 = vmatpush1.msra.mxu0 %v1562
      %1642 = vmatprep.subr.mxu0 0.0
      %1643 = vmatpush1.msra.mxu0 %v1563
      %1644 = vmatprep.mubr.f32.mxu0 %v1275
      %1645 = vmatmul.mubr.f32.gmra.mrb[0].mxu0 %v1371
      %v1646 = vpop.f32.mrb[0].mxu0
      %v1647 = vadd.f32 0.0, %v1646
      %v1648 = vpop.f32.mrb[0].mxu0
      %1649 = vmatprep.mubr.f32.mxu0 %v1276
      %1650 = vmatmul.mubr.f32.gmra.mrb[0].mxu0 %v1372
      %v1651 = vpop.f32.mrb[0].mxu0
      %v1652 = vadd.f32 0.0, %v1651
      %v1653 = vpop.f32.mrb[0].mxu0
      %1654 = vmatprep.mubr.f32.mxu0 %v1277
      %1655 = vmatmul.mubr.f32.gmra.mrb[0].mxu0 %v1373
      %v1656 = vpop.f32.mrb[0].mxu0
      %v1657 = vadd.f32 0.0, %v1656
      %v1658 = vpop.f32.mrb[0].mxu0
      %1659 = vmatprep.mubr.f32.mxu0 %v1278
      %1660 = vmatmul.mubr.f32.gmra.mrb[0].mxu0 %v1374
      %v1661 = vpop.f32.mrb[0].mxu0
      %v1662 = vadd.f32 0.0, %v1661
      %v1663 = vpop.f32.mrb[0].mxu0
      %1664 = vmatprep.mubr.f32.mxu0 %v1279
      %1665 = vmatmul.mubr.f32.gmra.mrb[0].mxu0 %v1375
      %v1666 = vpop.f32.mrb[0].mxu0
      %v1667 = vadd.f32 0.0, %v1666
      %v1668 = vpop.f32.mrb[0].mxu0
      %1669 = vmatprep.mubr.f32.mxu0 %v1280
      %1670 = vmatmul.mubr.f32.gmra.mrb[0].mxu0 %v1376
      %v1671 = vpop.f32.mrb[0].mxu0
      %v1672 = vadd.f32 0.0, %v1671
      %v1673 = vpop.f32.mrb[0].mxu0
      %1674 = vmatprep.mubr.f32.mxu0 %v1281
      %1675 = vmatmul.mubr.f32.gmra.mrb[0].mxu0 %v1377
      %v1676 = vpop.f32.mrb[0].mxu0
      %v1677 = vadd.f32 0.0, %v1676
      %v1678 = vpop.f32.mrb[0].mxu0
      %1679 = vmatprep.mubr.f32.mxu0 %v1282
      %1680 = vmatmul.mubr.f32.gmra.mrb[0].mxu0 %v1378
      %v1681 = vpop.f32.mrb[0].mxu0
      %v1682 = vadd.f32 0.0, %v1681
      %v1683 = vpop.f32.mrb[0].mxu0
      %1684 = vmatprep.mubr.f32.mxu0 %v1283
      %1685 = vmatmul.mubr.f32.gmra.mrb[0].mxu0 %v1379
      %v1686 = vpop.f32.mrb[0].mxu0
      %v1687 = vadd.f32 0.0, %v1686
      %v1688 = vpop.f32.mrb[0].mxu0
      %1689 = vmatprep.mubr.f32.mxu0 %v1284
      %1690 = vmatmul.mubr.f32.gmra.mrb[0].mxu0 %v1380
      %v1691 = vpop.f32.mrb[0].mxu0
      %v1692 = vadd.f32 0.0, %v1691
      %v1693 = vpop.f32.mrb[0].mxu0
      %1694 = vmatprep.mubr.f32.mxu0 %v1285
      %1695 = vmatmul.mubr.f32.gmra.mrb[0].mxu0 %v1381
      %v1696 = vpop.f32.mrb[0].mxu0
      %v1697 = vadd.f32 0.0, %v1696
      %v1698 = vpop.f32.mrb[0].mxu0
      %1699 = vmatprep.mubr.f32.mxu0 %v1286
      %1700 = vmatmul.mubr.f32.gmra.mrb[0].mxu0 %v1382
      %v1701 = vpop.f32.mrb[0].mxu0
      %v1702 = vadd.f32 0.0, %v1701
      %v1703 = vpop.f32.mrb[0].mxu0
      %1704 = vmatprep.mubr.f32.mxu0 %v1287
      %1705 = vmatmul.mubr.f32.gmra.mrb[0].mxu0 %v1383
      %v1706 = vpop.f32.mrb[0].mxu0
      %v1707 = vadd.f32 0.0, %v1706
      %v1708 = vpop.f32.mrb[0].mxu0
      %1709 = vmatprep.mubr.f32.mxu0 %v1288
      %1710 = vmatmul.mubr.f32.gmra.mrb[0].mxu0 %v1384
      %v1711 = vpop.f32.mrb[0].mxu0
      %v1712 = vadd.f32 0.0, %v1711
      %v1713 = vpop.f32.mrb[0].mxu0
      %1714 = vmatprep.mubr.f32.mxu0 %v1289
      %1715 = vmatmul.mubr.f32.gmra.mrb[0].mxu0 %v1385
      %v1716 = vpop.f32.mrb[0].mxu0
      %v1717 = vadd.f32 0.0, %v1716
      %v1718 = vpop.f32.mrb[0].mxu0
      %1719 = vmatprep.mubr.f32.mxu0 %v1290
      %1720 = vmatmul.mubr.f32.gmra.mrb[0].mxu0 %v1386
      %v1721 = vpop.f32.mrb[0].mxu0
      %v1722 = vadd.f32 0.0, %v1721
      %v1723 = vpop.f32.mrb[0].mxu0
      %1724 = vmatprep.mubr.f32.mxu0 %v1291
      %1725 = vmatmul.mubr.f32.gmra.mrb[0].mxu0 %v1387
      %v1726 = vpop.f32.mrb[0].mxu0
      %v1727 = vadd.f32 0.0, %v1726
      %v1728 = vpop.f32.mrb[0].mxu0
      %1729 = vmatprep.mubr.f32.mxu0 %v1292
      %1730 = vmatmul.mubr.f32.gmra.mrb[0].mxu0 %v1388
      %v1731 = vpop.f32.mrb[0].mxu0
      %v1732 = vadd.f32 0.0, %v1731
      %v1733 = vpop.f32.mrb[0].mxu0
      %1734 = vmatprep.mubr.f32.mxu0 %v1293
      %1735 = vmatmul.mubr.f32.gmra.mrb[0].mxu0 %v1389
      %v1736 = vpop.f32.mrb[0].mxu0
      %v1737 = vadd.f32 0.0, %v1736
      %v1738 = vpop.f32.mrb[0].mxu0
      %1739 = vmatprep.mubr.f32.mxu0 %v1294
      %1740 = vmatmul.mubr.f32.gmra.mrb[0].mxu0 %v1390
      %v1741 = vpop.f32.mrb[0].mxu0
      %v1742 = vadd.f32 0.0, %v1741
      %v1743 = vpop.f32.mrb[0].mxu0
      %1744 = vmatprep.mubr.f32.mxu0 %v1295
      %1745 = vmatmul.mubr.f32.gmra.mrb[0].mxu0 %v1391
      %v1746 = vpop.f32.mrb[0].mxu0
      %v1747 = vadd.f32 0.0, %v1746
      %v1748 = vpop.f32.mrb[0].mxu0
      %1749 = vmatprep.mubr.f32.mxu0 %v1296
      %1750 = vmatmul.mubr.f32.gmra.mrb[0].mxu0 %v1392
      %v1751 = vpop.f32.mrb[0].mxu0
      %v1752 = vadd.f32 0.0, %v1751
      %v1753 = vpop.f32.mrb[0].mxu0
      %1754 = vmatprep.mubr.f32.mxu0 %v1297
      %1755 = vmatmul.mubr.f32.gmra.mrb[0].mxu0 %v1393
      %v1756 = vpop.f32.mrb[0].mxu0
      %v1757 = vadd.f32 0.0, %v1756
      %v1758 = vpop.f32.mrb[0].mxu0
      %1759 = vmatprep.mubr.f32.mxu0 %v1298
      %1760 = vmatmul.mubr.f32.gmra.mrb[0].mxu0 %v1394
      %v1761 = vpop.f32.mrb[0].mxu0
      %v1762 = vadd.f32 0.0, %v1761
      %v1763 = vpop.f32.mrb[0].mxu0
      %1764 = vmatprep.mubr.f32.mxu0 %v1299
      %1765 = vmatmul.mubr.f32.gmra.mrb[0].mxu0 %v1395
      %v1766 = vpop.f32.mrb[0].mxu0
      %v1767 = vadd.f32 0.0, %v1766
      %v1768 = vpop.f32.mrb[0].mxu0
      %1769 = vmatprep.mubr.f32.mxu0 %v1300
      %1770 = vmatmul.mubr.f32.gmra.mrb[0].mxu0 %v1396
      %v1771 = vpop.f32.mrb[0].mxu0
      %v1772 = vadd.f32 0.0, %v1771
      %v1773 = vpop.f32.mrb[0].mxu0
      %1774 = vmatprep.mubr.f32.mxu0 %v1301
      %1775 = vmatmul.mubr.f32.gmra.mrb[0].mxu0 %v1397
      %v1776 = vpop.f32.mrb[0].mxu0
      %v1777 = vadd.f32 0.0, %v1776
      %v1778 = vpop.f32.mrb[0].mxu0
      %1779 = vmatprep.mubr.f32.mxu0 %v1302
      %1780 = vmatmul.mubr.f32.gmra.mrb[0].mxu0 %v1398
      %v1781 = vpop.f32.mrb[0].mxu0
      %v1782 = vadd.f32 0.0, %v1781
      %v1783 = vpop.f32.mrb[0].mxu0
      %1784 = vmatprep.mubr.f32.mxu0 %v1303
      %1785 = vmatmul.mubr.f32.gmra.mrb[0].mxu0 %v1399
      %v1786 = vpop.f32.mrb[0].mxu0
      %v1787 = vadd.f32 0.0, %v1786
      %v1788 = vpop.f32.mrb[0].mxu0
      %1789 = vmatprep.mubr.f32.mxu0 %v1304
      %1790 = vmatmul.mubr.f32.gmra.mrb[0].mxu0 %v1400
      %v1791 = vpop.f32.mrb[0].mxu0
      %v1792 = vadd.f32 0.0, %v1791
      %v1793 = vpop.f32.mrb[0].mxu0
      %1794 = vmatprep.mubr.f32.mxu0 %v1305
      %1795 = vmatmul.mubr.f32.gmra.mrb[0].mxu0 %v1401
      %v1796 = vpop.f32.mrb[0].mxu0
      %v1797 = vadd.f32 0.0, %v1796
      %v1798 = vpop.f32.mrb[0].mxu0
      %1799 = vmatprep.mubr.f32.mxu0 %v1306
      %1800 = vmatmul.mubr.f32.gmra.mrb[0].mxu0 %v1402
      %v1801 = vpop.f32.mrb[0].mxu0
      %v1802 = vadd.f32 0.0, %v1801
      %v1803 = vpop.f32.mrb[0].mxu0
      %1804 = vdwg.mxu0
      %1805 = vmatprep.subr.mxu0 0.0
      %1806 = vmatpush1.msra.mxu0 %v1564
      %1807 = vmatprep.subr.mxu0 0.0
      %1808 = vmatpush1.msra.mxu0 %v1565
      %1809 = vmatprep.subr.mxu0 0.0
      %1810 = vmatpush1.msra.mxu0 %v1566
      %1811 = vmatprep.subr.mxu0 0.0
      %1812 = vmatpush1.msra.mxu0 %v1567
      %1813 = vmatprep.subr.mxu0 0.0
      %1814 = vmatpush1.msra.mxu0 %v1568
      %1815 = vmatprep.subr.mxu0 0.0
      %1816 = vmatpush1.msra.mxu0 %v1569
      %1817 = vmatprep.subr.mxu0 0.0
      %1818 = vmatpush1.msra.mxu0 %v1570
      %1819 = vmatprep.subr.mxu0 0.0
      %1820 = vmatpush1.msra.mxu0 %v1571
      %1821 = vmatprep.subr.mxu0 0.0
      %1822 = vmatpush1.msra.mxu0 %v1572
      %1823 = vmatprep.subr.mxu0 0.0
      %1824 = vmatpush1.msra.mxu0 %v1573
      %1825 = vmatprep.subr.mxu0 0.0
      %1826 = vmatpush1.msra.mxu0 %v1574
      %1827 = vmatprep.subr.mxu0 0.0
      %1828 = vmatpush1.msra.mxu0 %v1575
      %1829 = vmatprep.subr.mxu0 0.0
      %1830 = vmatpush1.msra.mxu0 %v1576
      %1831 = vmatprep.subr.mxu0 0.0
      %1832 = vmatpush1.msra.mxu0 %v1577
      %1833 = vmatprep.subr.mxu0 0.0
      %1834 = vmatpush1.msra.mxu0 %v1578
      %1835 = vmatprep.subr.mxu0 0.0
      %1836 = vmatpush1.msra.mxu0 %v1579
      %1837 = vmatprep.subr.mxu0 0.0
      %1838 = vmatpush1.msra.mxu0 0.0
      %1839 = vmatprep.subr.mxu0 0.0
      %1840 = vmatpush1.msra.mxu0 0.0
      %1841 = vmatprep.subr.mxu0 0.0
      %1842 = vmatpush1.msra.mxu0 0.0
      %1843 = vmatprep.subr.mxu0 0.0
      %1844 = vmatpush1.msra.mxu0 0.0
      %1845 = vmatprep.subr.mxu0 0.0
      %1846 = vmatpush1.msra.mxu0 0.0
      %1847 = vmatprep.subr.mxu0 0.0
      %1848 = vmatpush1.msra.mxu0 0.0
      %1849 = vmatprep.subr.mxu0 0.0
      %1850 = vmatpush1.msra.mxu0 0.0
      %1851 = vmatprep.subr.mxu0 0.0
      %1852 = vmatpush1.msra.mxu0 0.0
      %1853 = vmatprep.subr.mxu0 0.0
      %1854 = vmatpush1.msra.mxu0 0.0
      %1855 = vmatprep.subr.mxu0 0.0
      %1856 = vmatpush1.msra.mxu0 0.0
      %1857 = vmatprep.subr.mxu0 0.0
      %1858 = vmatpush1.msra.mxu0 0.0
      %1859 = vmatprep.subr.mxu0 0.0
      %1860 = vmatpush1.msra.mxu0 0.0
      %1861 = vmatprep.subr.mxu0 0.0
      %1862 = vmatpush1.msra.mxu0 0.0
      %1863 = vmatprep.subr.mxu0 0.0
      %1864 = vmatpush1.msra.mxu0 0.0
      %1865 = vmatprep.subr.mxu0 0.0
      %1866 = vmatpush1.msra.mxu0 0.0
      %1867 = vmatprep.subr.mxu0 0.0
      %1868 = vmatpush1.msra.mxu0 0.0
      %1869 = vmatprep.mubr.f32.mxu0 0.0
      %1870 = vmatmul.mubr.f32.gmra.mrb[0].mxu0 %v1467
      %v1871 = vpop.f32.mrb[0].mxu0
      %v1872 = vadd.f32 %v1647, %v1871
      %v1873 = vpop.f32.mrb[0].mxu0
      %1874 = vmatprep.mubr.f32.mxu0 0.0
      %1875 = vmatmul.mubr.f32.gmra.mrb[0].mxu0 %v1468
      %v1876 = vpop.f32.mrb[0].mxu0
      %v1877 = vadd.f32 %v1652, %v1876
      %v1878 = vpop.f32.mrb[0].mxu0
      %1879 = vmatprep.mubr.f32.mxu0 0.0
      %1880 = vmatmul.mubr.f32.gmra.mrb[0].mxu0 %v1469
      %v1881 = vpop.f32.mrb[0].mxu0
      %v1882 = vadd.f32 %v1657, %v1881
      %v1883 = vpop.f32.mrb[0].mxu0
      %1884 = vmatprep.mubr.f32.mxu0 0.0
      %1885 = vmatmul.mubr.f32.gmra.mrb[0].mxu0 %v1470
      %v1886 = vpop.f32.mrb[0].mxu0
      %v1887 = vadd.f32 %v1662, %v1886
      %v1888 = vpop.f32.mrb[0].mxu0
      %1889 = vmatprep.mubr.f32.mxu0 0.0
      %1890 = vmatmul.mubr.f32.gmra.mrb[0].mxu0 %v1471
      %v1891 = vpop.f32.mrb[0].mxu0
      %v1892 = vadd.f32 %v1667, %v1891
      %v1893 = vpop.f32.mrb[0].mxu0
      %1894 = vmatprep.mubr.f32.mxu0 0.0
      %1895 = vmatmul.mubr.f32.gmra.mrb[0].mxu0 %v1472
      %v1896 = vpop.f32.mrb[0].mxu0
      %v1897 = vadd.f32 %v1672, %v1896
      %v1898 = vpop.f32.mrb[0].mxu0
      %1899 = vmatprep.mubr.f32.mxu0 0.0
      %1900 = vmatmul.mubr.f32.gmra.mrb[0].mxu0 %v1473
      %v1901 = vpop.f32.mrb[0].mxu0
      %v1902 = vadd.f32 %v1677, %v1901
      %v1903 = vpop.f32.mrb[0].mxu0
      %1904 = vmatprep.mubr.f32.mxu0 0.0
      %1905 = vmatmul.mubr.f32.gmra.mrb[0].mxu0 %v1474
      %v1906 = vpop.f32.mrb[0].mxu0
      %v1907 = vadd.f32 %v1682, %v1906
      %v1908 = vpop.f32.mrb[0].mxu0
      %1909 = vmatprep.mubr.f32.mxu0 0.0
      %1910 = vmatmul.mubr.f32.gmra.mrb[0].mxu0 %v1475
      %v1911 = vpop.f32.mrb[0].mxu0
      %v1912 = vadd.f32 %v1687, %v1911
      %v1913 = vpop.f32.mrb[0].mxu0
      %1914 = vmatprep.mubr.f32.mxu0 0.0
      %1915 = vmatmul.mubr.f32.gmra.mrb[0].mxu0 %v1476
      %v1916 = vpop.f32.mrb[0].mxu0
      %v1917 = vadd.f32 %v1692, %v1916
      %v1918 = vpop.f32.mrb[0].mxu0
      %1919 = vmatprep.mubr.f32.mxu0 0.0
      %1920 = vmatmul.mubr.f32.gmra.mrb[0].mxu0 %v1477
      %v1921 = vpop.f32.mrb[0].mxu0
      %v1922 = vadd.f32 %v1697, %v1921
      %v1923 = vpop.f32.mrb[0].mxu0
      %1924 = vmatprep.mubr.f32.mxu0 0.0
      %1925 = vmatmul.mubr.f32.gmra.mrb[0].mxu0 %v1478
      %v1926 = vpop.f32.mrb[0].mxu0
      %v1927 = vadd.f32 %v1702, %v1926
      %v1928 = vpop.f32.mrb[0].mxu0
      %1929 = vmatprep.mubr.f32.mxu0 0.0
      %1930 = vmatmul.mubr.f32.gmra.mrb[0].mxu0 %v1479
      %v1931 = vpop.f32.mrb[0].mxu0
      %v1932 = vadd.f32 %v1707, %v1931
      %v1933 = vpop.f32.mrb[0].mxu0
      %1934 = vmatprep.mubr.f32.mxu0 0.0
      %1935 = vmatmul.mubr.f32.gmra.mrb[0].mxu0 %v1480
      %v1936 = vpop.f32.mrb[0].mxu0
      %v1937 = vadd.f32 %v1712, %v1936
      %v1938 = vpop.f32.mrb[0].mxu0
      %1939 = vmatprep.mubr.f32.mxu0 0.0
      %1940 = vmatmul.mubr.f32.gmra.mrb[0].mxu0 %v1481
      %v1941 = vpop.f32.mrb[0].mxu0
      %v1942 = vadd.f32 %v1717, %v1941
      %v1943 = vpop.f32.mrb[0].mxu0
      %1944 = vmatprep.mubr.f32.mxu0 0.0
      %1945 = vmatmul.mubr.f32.gmra.mrb[0].mxu0 %v1482
      %v1946 = vpop.f32.mrb[0].mxu0
      %v1947 = vadd.f32 %v1722, %v1946
      %v1948 = vpop.f32.mrb[0].mxu0
      %1949 = vmatprep.mubr.f32.mxu0 0.0
      %1950 = vmatmul.mubr.f32.gmra.mrb[0].mxu0 %v1483
      %v1951 = vpop.f32.mrb[0].mxu0
      %v1952 = vadd.f32 %v1727, %v1951
      %v1953 = vpop.f32.mrb[0].mxu0
      %1954 = vmatprep.mubr.f32.mxu0 0.0
      %1955 = vmatmul.mubr.f32.gmra.mrb[0].mxu0 %v1484
      %v1956 = vpop.f32.mrb[0].mxu0
      %v1957 = vadd.f32 %v1732, %v1956
      %v1958 = vpop.f32.mrb[0].mxu0
      %1959 = vmatprep.mubr.f32.mxu0 0.0
      %1960 = vmatmul.mubr.f32.gmra.mrb[0].mxu0 %v1485
      %v1961 = vpop.f32.mrb[0].mxu0
      %v1962 = vadd.f32 %v1737, %v1961
      %v1963 = vpop.f32.mrb[0].mxu0
      %1964 = vmatprep.mubr.f32.mxu0 0.0
      %1965 = vmatmul.mubr.f32.gmra.mrb[0].mxu0 %v1486
      %v1966 = vpop.f32.mrb[0].mxu0
      %v1967 = vadd.f32 %v1742, %v1966
      %v1968 = vpop.f32.mrb[0].mxu0
      %1969 = vmatprep.mubr.f32.mxu0 0.0
      %1970 = vmatmul.mubr.f32.gmra.mrb[0].mxu0 %v1487
      %v1971 = vpop.f32.mrb[0].mxu0
      %v1972 = vadd.f32 %v1747, %v1971
      %v1973 = vpop.f32.mrb[0].mxu0
      %1974 = vmatprep.mubr.f32.mxu0 0.0
      %1975 = vmatmul.mubr.f32.gmra.mrb[0].mxu0 %v1488
      %v1976 = vpop.f32.mrb[0].mxu0
      %v1977 = vadd.f32 %v1752, %v1976
      %v1978 = vpop.f32.mrb[0].mxu0
      %1979 = vmatprep.mubr.f32.mxu0 0.0
      %1980 = vmatmul.mubr.f32.gmra.mrb[0].mxu0 %v1489
      %v1981 = vpop.f32.mrb[0].mxu0
      %v1982 = vadd.f32 %v1757, %v1981
      %v1983 = vpop.f32.mrb[0].mxu0
      %1984 = vmatprep.mubr.f32.mxu0 0.0
      %1985 = vmatmul.mubr.f32.gmra.mrb[0].mxu0 %v1490
      %v1986 = vpop.f32.mrb[0].mxu0
      %v1987 = vadd.f32 %v1762, %v1986
      %v1988 = vpop.f32.mrb[0].mxu0
      %1989 = vmatprep.mubr.f32.mxu0 0.0
      %1990 = vmatmul.mubr.f32.gmra.mrb[0].mxu0 %v1491
      %v1991 = vpop.f32.mrb[0].mxu0
      %v1992 = vadd.f32 %v1767, %v1991
      %v1993 = vpop.f32.mrb[0].mxu0
      %1994 = vmatprep.mubr.f32.mxu0 0.0
      %1995 = vmatmul.mubr.f32.gmra.mrb[0].mxu0 %v1492
      %v1996 = vpop.f32.mrb[0].mxu0
      %v1997 = vadd.f32 %v1772, %v1996
      %v1998 = vpop.f32.mrb[0].mxu0
      %1999 = vmatprep.mubr.f32.mxu0 0.0
      %2000 = vmatmul.mubr.f32.gmra.mrb[0].mxu0 %v1493
      %v2001 = vpop.f32.mrb[0].mxu0
      %v2002 = vadd.f32 %v1777, %v2001
      %v2003 = vpop.f32.mrb[0].mxu0
      %2004 = vmatprep.mubr.f32.mxu0 0.0
      %2005 = vmatmul.mubr.f32.gmra.mrb[0].mxu0 %v1494
      %v2006 = vpop.f32.mrb[0].mxu0
      %v2007 = vadd.f32 %v1782, %v2006
      %v2008 = vpop.f32.mrb[0].mxu0
      %2009 = vmatprep.mubr.f32.mxu0 0.0
      %2010 = vmatmul.mubr.f32.gmra.mrb[0].mxu0 %v1495
      %v2011 = vpop.f32.mrb[0].mxu0
      %v2012 = vadd.f32 %v1787, %v2011
      %v2013 = vpop.f32.mrb[0].mxu0
      %2014 = vmatprep.mubr.f32.mxu0 0.0
      %2015 = vmatmul.mubr.f32.gmra.mrb[0].mxu0 %v1496
      %v2016 = vpop.f32.mrb[0].mxu0
      %v2017 = vadd.f32 %v1792, %v2016
      %v2018 = vpop.f32.mrb[0].mxu0
      %2019 = vmatprep.mubr.f32.mxu0 0.0
      %2020 = vmatmul.mubr.f32.gmra.mrb[0].mxu0 %v1497
      %v2021 = vpop.f32.mrb[0].mxu0
      %v2022 = vadd.f32 %v1797, %v2021
      %v2023 = vpop.f32.mrb[0].mxu0
      %2024 = vmatprep.mubr.f32.mxu0 0.0
      %2025 = vmatmul.mubr.f32.gmra.mrb[0].mxu0 %v1498
      %v2026 = vpop.f32.mrb[0].mxu0
      %v2027 = vadd.f32 %v1802, %v2026
      %v2028 = vpop.f32.mrb[0].mxu0
      %2029 = vdwg.mxu0
      %v2030 = vadd.f32 %v1499, %v1872
      %v2031 = vadd.f32 %v1500, %v1877
      %v2032 = vadd.f32 %v1501, %v1882
      %v2033 = vadd.f32 %v1502, %v1887
      %v2034 = vadd.f32 %v1503, %v1892
      %v2035 = vadd.f32 %v1504, %v1897
      %v2036 = vadd.f32 %v1505, %v1902
      %v2037 = vadd.f32 %v1506, %v1907
      %v2038 = vadd.f32 %v1507, %v1912
      %v2039 = vadd.f32 %v1508, %v1917
      %v2040 = vadd.f32 %v1509, %v1922
      %v2041 = vadd.f32 %v1510, %v1927
      %v2042 = vadd.f32 %v1511, %v1932
      %v2043 = vadd.f32 %v1512, %v1937
      %v2044 = vadd.f32 %v1513, %v1942
      %v2045 = vadd.f32 %v1514, %v1947
      %v2046 = vadd.f32 %v1515, %v1952
      %v2047 = vadd.f32 %v1516, %v1957
      %v2048 = vadd.f32 %v1517, %v1962
      %v2049 = vadd.f32 %v1518, %v1967
      %v2050 = vadd.f32 %v1519, %v1972
      %v2051 = vadd.f32 %v1520, %v1977
      %v2052 = vadd.f32 %v1521, %v1982
      %v2053 = vadd.f32 %v1522, %v1987
      %v2054 = vadd.f32 %v1523, %v1992
      %v2055 = vadd.f32 %v1524, %v1997
      %v2056 = vadd.f32 %v1525, %v2002
      %v2057 = vadd.f32 %v1526, %v2007
      %v2058 = vadd.f32 %v1527, %v2012
      %v2059 = vadd.f32 %v1528, %v2017
      %v2060 = vadd.f32 %v1529, %v2022
      %v2061 = vadd.f32 %v1530, %v2027
      %2062 = vst [vmem:[#allocation3] sm:$0xff] %v2030
      %2063 = vst [vmem:[#allocation3 + $0x8] sm:$0xff] %v2031
      %2064 = vst [vmem:[#allocation3 + $0x10] sm:$0xff] %v2032
      %2065 = vst [vmem:[#allocation3 + $0x18] sm:$0xff] %v2033
      %2066 = vst [vmem:[#allocation3 + $0x20] sm:$0xff] %v2034
      %2067 = vst [vmem:[#allocation3 + $0x28] sm:$0xff] %v2035
      %2068 = vst [vmem:[#allocation3 + $0x30] sm:$0xff] %v2036
      %2069 = vst [vmem:[#allocation3 + $0x38] sm:$0xff] %v2037
      %2070 = vst [vmem:[#allocation3 + $0x40] sm:$0xff] %v2038
      %2071 = vst [vmem:[#allocation3 + $0x48] sm:$0xff] %v2039
      %2072 = vst [vmem:[#allocation3 + $0x50] sm:$0xff] %v2040
      %2073 = vst [vmem:[#allocation3 + $0x58] sm:$0xff] %v2041
      %2074 = vst [vmem:[#allocation3 + $0x60] sm:$0xff] %v2042
      %2075 = vst [vmem:[#allocation3 + $0x68] sm:$0xff] %v2043
      %2076 = vst [vmem:[#allocation3 + $0x70] sm:$0xff] %v2044
      %2077 = vst [vmem:[#allocation3 + $0x78] sm:$0xff] %v2045
      %2078 = vst [vmem:[#allocation3 + $0x80] sm:$0xff] %v2046
      %2079 = vst [vmem:[#allocation3 + $0x88] sm:$0xff] %v2047
      %2080 = vst [vmem:[#allocation3 + $0x90] sm:$0xff] %v2048
      %2081 = vst [vmem:[#allocation3 + $0x98] sm:$0xff] %v2049
      %2082 = vst [vmem:[#allocation3 + $0xa0] sm:$0xff] %v2050
      %2083 = vst [vmem:[#allocation3 + $0xa8] sm:$0xff] %v2051
      %2084 = vst [vmem:[#allocation3 + $0xb0] sm:$0xff] %v2052
      %2085 = vst [vmem:[#allocation3 + $0xb8] sm:$0xff] %v2053
      %2086 = vst [vmem:[#allocation3 + $0xc0] sm:$0xff] %v2054
      %2087 = vst [vmem:[#allocation3 + $0xc8] sm:$0xff] %v2055
      %2088 = vst [vmem:[#allocation3 + $0xd0] sm:$0xff] %v2056
      %2089 = vst [vmem:[#allocation3 + $0xd8] sm:$0xff] %v2057
      %2090 = vst [vmem:[#allocation3 + $0xe0] sm:$0xff] %v2058
      %2091 = vst [vmem:[#allocation3 + $0xe8] sm:$0xff] %v2059
      %2092 = vst [vmem:[#allocation3 + $0xf0] sm:$0xff] %v2060
      %2093 = vst [vmem:[#allocation3 + $0xf8] sm:$0xff] %v2061
      %s2094 = scalar_lea.vmem [#allocation2], 32
      %v2095 = vld [vmem:[%s2094] sm:$0xff]
      %v2096 = vld [vmem:[%s2094 + $0x8] sm:$0xff]
      %v2097 = vld [vmem:[%s2094 + $0x10] sm:$0xff]
      %v2098 = vld [vmem:[%s2094 + $0x18] sm:$0xff]
      %v2099 = vld [vmem:[%s2094 + $0x20] sm:$0xff]
      %v2100 = vld [vmem:[%s2094 + $0x28] sm:$0xff]
      %v2101 = vld [vmem:[%s2094 + $0x30] sm:$0xff]
      %v2102 = vld [vmem:[%s2094 + $0x38] sm:$0xff]
      %v2103 = vld [vmem:[%s2094 + $0x40] sm:$0xff]
      %v2104 = vld [vmem:[%s2094 + $0x48] sm:$0xff]
      %v2105 = vld [vmem:[%s2094 + $0x50] sm:$0xff]
      %v2106 = vld [vmem:[%s2094 + $0x58] sm:$0xff]
      %v2107 = vld [vmem:[%s2094 + $0x60] sm:$0xff]
      %v2108 = vld [vmem:[%s2094 + $0x68] sm:$0xff]
      %v2109 = vld [vmem:[%s2094 + $0x70] sm:$0xff]
      %v2110 = vld [vmem:[%s2094 + $0x78] sm:$0xff]
      %v2111 = vld [vmem:[%s2094 + $0x80] sm:$0xff]
      %v2112 = vld [vmem:[%s2094 + $0x88] sm:$0xff]
      %v2113 = vld [vmem:[%s2094 + $0x90] sm:$0xff]
      %v2114 = vld [vmem:[%s2094 + $0x98] sm:$0xff]
      %v2115 = vld [vmem:[%s2094 + $0xa0] sm:$0xff]
      %v2116 = vld [vmem:[%s2094 + $0xa8] sm:$0xff]
      %v2117 = vld [vmem:[%s2094 + $0xb0] sm:$0xff]
      %v2118 = vld [vmem:[%s2094 + $0xb8] sm:$0xff]
      %v2119 = vld [vmem:[%s2094 + $0xc0] sm:$0xff]
      %v2120 = vld [vmem:[%s2094 + $0xc8] sm:$0xff]
      %v2121 = vld [vmem:[%s2094 + $0xd0] sm:$0xff]
      %v2122 = vld [vmem:[%s2094 + $0xd8] sm:$0xff]
      %v2123 = vld [vmem:[%s2094 + $0xe0] sm:$0xff]
      %v2124 = vld [vmem:[%s2094 + $0xe8] sm:$0xff]
      %v2125 = vld [vmem:[%s2094 + $0xf0] sm:$0xff]
      %v2126 = vld [vmem:[%s2094 + $0xf8] sm:$0xff]
      %v2127 = vrot.slane %v2095, 7
      %v2128 = vrot.slane %v2096, 7
      %v2129 = vrot.slane %v2097, 7
      %v2130 = vrot.slane %v2098, 7
      %v2131 = vrot.slane %v2099, 7
      %v2132 = vrot.slane %v2100, 7
      %v2133 = vrot.slane %v2101, 7
      %v2134 = vrot.slane %v2102, 7
      %v2135 = vrot.slane %v2103, 7
      %v2136 = vrot.slane %v2104, 7
      %v2137 = vrot.slane %v2105, 7
      %v2138 = vrot.slane %v2106, 7
      %v2139 = vrot.slane %v2107, 7
      %v2140 = vrot.slane %v2108, 7
      %v2141 = vrot.slane %v2109, 7
      %v2142 = vrot.slane %v2110, 7
      %v2143 = vrot.slane %v2111, 7
      %v2144 = vrot.slane %v2112, 7
      %v2145 = vrot.slane %v2113, 7
      %v2146 = vrot.slane %v2114, 7
      %v2147 = vrot.slane %v2115, 7
      %v2148 = vrot.slane %v2116, 7
      %v2149 = vrot.slane %v2117, 7
      %v2150 = vrot.slane %v2118, 7
      %v2151 = vrot.slane %v2119, 7
      %v2152 = vrot.slane %v2120, 7
      %v2153 = vrot.slane %v2121, 7
      %v2154 = vrot.slane %v2122, 7
      %v2155 = vrot.slane %v2123, 7
      %v2156 = vrot.slane %v2124, 7
      %v2157 = vrot.slane %v2125, 7
      %v2158 = vrot.slane %v2126, 7
      %v2159 = vsel %vm519, %v2157, %v2158
      %v2160 = vsel %vm519, %v2156, %v2157
      %v2161 = vsel %vm519, %v2155, %v2156
      %v2162 = vsel %vm519, %v2154, %v2155
      %v2163 = vsel %vm519, %v2153, %v2154
      %v2164 = vsel %vm519, %v2152, %v2153
      %v2165 = vsel %vm519, %v2151, %v2152
      %v2166 = vsel %vm519, %v2150, %v2151
      %v2167 = vsel %vm519, %v2149, %v2150
      %v2168 = vsel %vm519, %v2148, %v2149
      %v2169 = vsel %vm519, %v2147, %v2148
      %v2170 = vsel %vm519, %v2146, %v2147
      %v2171 = vsel %vm519, %v2145, %v2146
      %v2172 = vsel %vm519, %v2144, %v2145
      %v2173 = vsel %vm519, %v2143, %v2144
      %v2174 = vsel %vm519, %v2142, %v2143
      %v2175 = vsel %vm519, %v2141, %v2142
      %v2176 = vsel %vm519, %v2140, %v2141
      %v2177 = vsel %vm519, %v2139, %v2140
      %v2178 = vsel %vm519, %v2138, %v2139
      %v2179 = vsel %vm519, %v2137, %v2138
      %v2180 = vsel %vm519, %v2136, %v2137
      %v2181 = vsel %vm519, %v2135, %v2136
      %v2182 = vsel %vm519, %v2134, %v2135
      %v2183 = vsel %vm519, %v2133, %v2134
      %v2184 = vsel %vm519, %v2132, %v2133
      %v2185 = vsel %vm519, %v2131, %v2132
      %v2186 = vsel %vm519, %v2130, %v2131
      %v2187 = vsel %vm519, %v2129, %v2130
      %v2188 = vsel %vm519, %v2128, %v2129
      %v2189 = vsel %vm519, %v2127, %v2128
      %v2190 = vsel %vm519, %v2158, %v2127
      %v2191 = vsel %vm419, %v2190, 0.0
      %v2192 = vsel %vm420, %v2189, 0.0
      %v2193 = vsel %vm419, %v2188, 0.0
      %v2194 = vsel %vm420, %v2187, 0.0
      %v2195 = vsel %vm419, %v2186, 0.0
      %v2196 = vsel %vm420, %v2185, 0.0
      %v2197 = vsel %vm419, %v2184, 0.0
      %v2198 = vsel %vm420, %v2183, 0.0
      %v2199 = vsel %vm419, %v2182, 0.0
      %v2200 = vsel %vm420, %v2181, 0.0
      %v2201 = vsel %vm419, %v2180, 0.0
      %v2202 = vsel %vm420, %v2179, 0.0
      %v2203 = vsel %vm419, %v2178, 0.0
      %v2204 = vsel %vm420, %v2177, 0.0
      %v2205 = vsel %vm419, %v2176, 0.0
      %v2206 = vsel %vm420, %v2175, 0.0
      %v2207 = vsel %vm419, %v2174, 0.0
      %v2208 = vsel %vm420, %v2173, 0.0
      %v2209 = vsel %vm419, %v2172, 0.0
      %v2210 = vsel %vm420, %v2171, 0.0
      %v2211 = vsel %vm419, %v2170, 0.0
      %v2212 = vsel %vm420, %v2169, 0.0
      %v2213 = vsel %vm419, %v2168, 0.0
      %v2214 = vsel %vm420, %v2167, 0.0
      %v2215 = vsel %vm419, %v2166, 0.0
      %v2216 = vsel %vm420, %v2165, 0.0
      %v2217 = vsel %vm419, %v2164, 0.0
      %v2218 = vsel %vm420, %v2163, 0.0
      %v2219 = vsel %vm419, %v2162, 0.0
      %v2220 = vsel %vm420, %v2161, 0.0
      %v2221 = vsel %vm419, %v2160, 0.0
      %v2222 = vsel %vm420, %v2159, 0.0
      %v2223 = vrot.slane %v2095, 1
      %v2224 = vrot.slane %v2096, 1
      %v2225 = vrot.slane %v2097, 1
      %v2226 = vrot.slane %v2098, 1
      %v2227 = vrot.slane %v2099, 1
      %v2228 = vrot.slane %v2100, 1
      %v2229 = vrot.slane %v2101, 1
      %v2230 = vrot.slane %v2102, 1
      %v2231 = vrot.slane %v2103, 1
      %v2232 = vrot.slane %v2104, 1
      %v2233 = vrot.slane %v2105, 1
      %v2234 = vrot.slane %v2106, 1
      %v2235 = vrot.slane %v2107, 1
      %v2236 = vrot.slane %v2108, 1
      %v2237 = vrot.slane %v2109, 1
      %v2238 = vrot.slane %v2110, 1
      %v2239 = vrot.slane %v2111, 1
      %v2240 = vrot.slane %v2112, 1
      %v2241 = vrot.slane %v2113, 1
      %v2242 = vrot.slane %v2114, 1
      %v2243 = vrot.slane %v2115, 1
      %v2244 = vrot.slane %v2116, 1
      %v2245 = vrot.slane %v2117, 1
      %v2246 = vrot.slane %v2118, 1
      %v2247 = vrot.slane %v2119, 1
      %v2248 = vrot.slane %v2120, 1
      %v2249 = vrot.slane %v2121, 1
      %v2250 = vrot.slane %v2122, 1
      %v2251 = vrot.slane %v2123, 1
      %v2252 = vrot.slane %v2124, 1
      %v2253 = vrot.slane %v2125, 1
      %v2254 = vrot.slane %v2126, 1
      %v2255 = vsel %vm616, %v2253, %v2254
      %v2256 = vsel %vm616, %v2252, %v2253
      %v2257 = vsel %vm616, %v2251, %v2252
      %v2258 = vsel %vm616, %v2250, %v2251
      %v2259 = vsel %vm616, %v2249, %v2250
      %v2260 = vsel %vm616, %v2248, %v2249
      %v2261 = vsel %vm616, %v2247, %v2248
      %v2262 = vsel %vm616, %v2246, %v2247
      %v2263 = vsel %vm616, %v2245, %v2246
      %v2264 = vsel %vm616, %v2244, %v2245
      %v2265 = vsel %vm616, %v2243, %v2244
      %v2266 = vsel %vm616, %v2242, %v2243
      %v2267 = vsel %vm616, %v2241, %v2242
      %v2268 = vsel %vm616, %v2240, %v2241
      %v2269 = vsel %vm616, %v2239, %v2240
      %v2270 = vsel %vm616, %v2238, %v2239
      %v2271 = vsel %vm616, %v2237, %v2238
      %v2272 = vsel %vm616, %v2236, %v2237
      %v2273 = vsel %vm616, %v2235, %v2236
      %v2274 = vsel %vm616, %v2234, %v2235
      %v2275 = vsel %vm616, %v2233, %v2234
      %v2276 = vsel %vm616, %v2232, %v2233
      %v2277 = vsel %vm616, %v2231, %v2232
      %v2278 = vsel %vm616, %v2230, %v2231
      %v2279 = vsel %vm616, %v2229, %v2230
      %v2280 = vsel %vm616, %v2228, %v2229
      %v2281 = vsel %vm616, %v2227, %v2228
      %v2282 = vsel %vm616, %v2226, %v2227
      %v2283 = vsel %vm616, %v2225, %v2226
      %v2284 = vsel %vm616, %v2224, %v2225
      %v2285 = vsel %vm616, %v2223, %v2224
      %v2286 = vsel %vm616, %v2254, %v2223
      %v2287 = vsel %vm421, %v2285, 0.0
      %v2288 = vsel %vm422, %v2284, 0.0
      %v2289 = vsel %vm421, %v2283, 0.0
      %v2290 = vsel %vm422, %v2282, 0.0
      %v2291 = vsel %vm421, %v2281, 0.0
      %v2292 = vsel %vm422, %v2280, 0.0
      %v2293 = vsel %vm421, %v2279, 0.0
      %v2294 = vsel %vm422, %v2278, 0.0
      %v2295 = vsel %vm421, %v2277, 0.0
      %v2296 = vsel %vm422, %v2276, 0.0
      %v2297 = vsel %vm421, %v2275, 0.0
      %v2298 = vsel %vm422, %v2274, 0.0
      %v2299 = vsel %vm421, %v2273, 0.0
      %v2300 = vsel %vm422, %v2272, 0.0
      %v2301 = vsel %vm421, %v2271, 0.0
      %v2302 = vsel %vm422, %v2270, 0.0
      %v2303 = vsel %vm421, %v2269, 0.0
      %v2304 = vsel %vm422, %v2268, 0.0
      %v2305 = vsel %vm421, %v2267, 0.0
      %v2306 = vsel %vm422, %v2266, 0.0
      %v2307 = vsel %vm421, %v2265, 0.0
      %v2308 = vsel %vm422, %v2264, 0.0
      %v2309 = vsel %vm421, %v2263, 0.0
      %v2310 = vsel %vm422, %v2262, 0.0
      %v2311 = vsel %vm421, %v2261, 0.0
      %v2312 = vsel %vm422, %v2260, 0.0
      %v2313 = vsel %vm421, %v2259, 0.0
      %v2314 = vsel %vm422, %v2258, 0.0
      %v2315 = vsel %vm421, %v2257, 0.0
      %v2316 = vsel %vm422, %v2256, 0.0
      %v2317 = vsel %vm421, %v2255, 0.0
      %v2318 = vsel %vm422, %v2286, 0.0
      %v2319 = vld [vmem:[#allocation3] sm:$0xff]
      %v2320 = vld [vmem:[#allocation3 + $0x8] sm:$0xff]
      %v2321 = vld [vmem:[#allocation3 + $0x10] sm:$0xff]
      %v2322 = vld [vmem:[#allocation3 + $0x18] sm:$0xff]
      %v2323 = vld [vmem:[#allocation3 + $0x20] sm:$0xff]
      %v2324 = vld [vmem:[#allocation3 + $0x28] sm:$0xff]
      %v2325 = vld [vmem:[#allocation3 + $0x30] sm:$0xff]
      %v2326 = vld [vmem:[#allocation3 + $0x38] sm:$0xff]
      %v2327 = vld [vmem:[#allocation3 + $0x40] sm:$0xff]
      %v2328 = vld [vmem:[#allocation3 + $0x48] sm:$0xff]
      %v2329 = vld [vmem:[#allocation3 + $0x50] sm:$0xff]
      %v2330 = vld [vmem:[#allocation3 + $0x58] sm:$0xff]
      %v2331 = vld [vmem:[#allocation3 + $0x60] sm:$0xff]
      %v2332 = vld [vmem:[#allocation3 + $0x68] sm:$0xff]
      %v2333 = vld [vmem:[#allocation3 + $0x70] sm:$0xff]
      %v2334 = vld [vmem:[#allocation3 + $0x78] sm:$0xff]
      %v2335 = vld [vmem:[#allocation3 + $0x80] sm:$0xff]
      %v2336 = vld [vmem:[#allocation3 + $0x88] sm:$0xff]
      %v2337 = vld [vmem:[#allocation3 + $0x90] sm:$0xff]
      %v2338 = vld [vmem:[#allocation3 + $0x98] sm:$0xff]
      %v2339 = vld [vmem:[#allocation3 + $0xa0] sm:$0xff]
      %v2340 = vld [vmem:[#allocation3 + $0xa8] sm:$0xff]
      %v2341 = vld [vmem:[#allocation3 + $0xb0] sm:$0xff]
      %v2342 = vld [vmem:[#allocation3 + $0xb8] sm:$0xff]
      %v2343 = vld [vmem:[#allocation3 + $0xc0] sm:$0xff]
      %v2344 = vld [vmem:[#allocation3 + $0xc8] sm:$0xff]
      %v2345 = vld [vmem:[#allocation3 + $0xd0] sm:$0xff]
      %v2346 = vld [vmem:[#allocation3 + $0xd8] sm:$0xff]
      %v2347 = vld [vmem:[#allocation3 + $0xe0] sm:$0xff]
      %v2348 = vld [vmem:[#allocation3 + $0xe8] sm:$0xff]
      %v2349 = vld [vmem:[#allocation3 + $0xf0] sm:$0xff]
      %v2350 = vld [vmem:[#allocation3 + $0xf8] sm:$0xff]
      %s2351 = scalar_lea.vmem %s3, 768
      %v2352 = vld [vmem:[%s2351] sm:$0xff]
      %v2353 = vld [vmem:[%s2351 + $0x8] sm:$0xff]
      %v2354 = vld [vmem:[%s2351 + $0x10] sm:$0xff]
      %v2355 = vld [vmem:[%s2351 + $0x18] sm:$0xff]
      %v2356 = vld [vmem:[%s2351 + $0x20] sm:$0xff]
      %v2357 = vld [vmem:[%s2351 + $0x28] sm:$0xff]
      %v2358 = vld [vmem:[%s2351 + $0x30] sm:$0xff]
      %v2359 = vld [vmem:[%s2351 + $0x38] sm:$0xff]
      %v2360 = vld [vmem:[%s2351 + $0x40] sm:$0xff]
      %v2361 = vld [vmem:[%s2351 + $0x48] sm:$0xff]
      %v2362 = vld [vmem:[%s2351 + $0x50] sm:$0xff]
      %v2363 = vld [vmem:[%s2351 + $0x58] sm:$0xff]
      %v2364 = vld [vmem:[%s2351 + $0x60] sm:$0xff]
      %v2365 = vld [vmem:[%s2351 + $0x68] sm:$0xff]
      %v2366 = vld [vmem:[%s2351 + $0x70] sm:$0xff]
      %v2367 = vld [vmem:[%s2351 + $0x78] sm:$0xff]
      %v2368 = vld [vmem:[%s2351 + $0x80] sm:$0xff]
      %v2369 = vld [vmem:[%s2351 + $0x88] sm:$0xff]
      %v2370 = vld [vmem:[%s2351 + $0x90] sm:$0xff]
      %v2371 = vld [vmem:[%s2351 + $0x98] sm:$0xff]
      %v2372 = vld [vmem:[%s2351 + $0xa0] sm:$0xff]
      %v2373 = vld [vmem:[%s2351 + $0xa8] sm:$0xff]
      %v2374 = vld [vmem:[%s2351 + $0xb0] sm:$0xff]
      %v2375 = vld [vmem:[%s2351 + $0xb8] sm:$0xff]
      %v2376 = vld [vmem:[%s2351 + $0xc0] sm:$0xff]
      %v2377 = vld [vmem:[%s2351 + $0xc8] sm:$0xff]
      %v2378 = vld [vmem:[%s2351 + $0xd0] sm:$0xff]
      %v2379 = vld [vmem:[%s2351 + $0xd8] sm:$0xff]
      %v2380 = vld [vmem:[%s2351 + $0xe0] sm:$0xff]
      %v2381 = vld [vmem:[%s2351 + $0xe8] sm:$0xff]
      %v2382 = vld [vmem:[%s2351 + $0xf0] sm:$0xff]
      %v2383 = vld [vmem:[%s2351 + $0xf8] sm:$0xff]
      %v2384 = vld [vmem:[%s2351 + $0x100] sm:$0xff]
      %v2385 = vld [vmem:[%s2351 + $0x108] sm:$0xff]
      %v2386 = vld [vmem:[%s2351 + $0x110] sm:$0xff]
      %v2387 = vld [vmem:[%s2351 + $0x118] sm:$0xff]
      %v2388 = vld [vmem:[%s2351 + $0x120] sm:$0xff]
      %v2389 = vld [vmem:[%s2351 + $0x128] sm:$0xff]
      %v2390 = vld [vmem:[%s2351 + $0x130] sm:$0xff]
      %v2391 = vld [vmem:[%s2351 + $0x138] sm:$0xff]
      %v2392 = vld [vmem:[%s2351 + $0x140] sm:$0xff]
      %v2393 = vld [vmem:[%s2351 + $0x148] sm:$0xff]
      %v2394 = vld [vmem:[%s2351 + $0x150] sm:$0xff]
      %v2395 = vld [vmem:[%s2351 + $0x158] sm:$0xff]
      %v2396 = vld [vmem:[%s2351 + $0x160] sm:$0xff]
      %v2397 = vld [vmem:[%s2351 + $0x168] sm:$0xff]
      %v2398 = vld [vmem:[%s2351 + $0x170] sm:$0xff]
      %v2399 = vld [vmem:[%s2351 + $0x178] sm:$0xff]
      %2400 = vmatprep.subr.mxu0 0.0
      %2401 = vmatpush1.msra.mxu0 %v2352
      %2402 = vmatprep.subr.mxu0 0.0
      %2403 = vmatpush1.msra.mxu0 %v2353
      %2404 = vmatprep.subr.mxu0 0.0
      %2405 = vmatpush1.msra.mxu0 %v2354
      %2406 = vmatprep.subr.mxu0 0.0
      %2407 = vmatpush1.msra.mxu0 %v2355
      %2408 = vmatprep.subr.mxu0 0.0
      %2409 = vmatpush1.msra.mxu0 %v2356
      %2410 = vmatprep.subr.mxu0 0.0
      %2411 = vmatpush1.msra.mxu0 %v2357
      %2412 = vmatprep.subr.mxu0 0.0
      %2413 = vmatpush1.msra.mxu0 %v2358
      %2414 = vmatprep.subr.mxu0 0.0
      %2415 = vmatpush1.msra.mxu0 %v2359
      %2416 = vmatprep.subr.mxu0 0.0
      %2417 = vmatpush1.msra.mxu0 %v2360
      %2418 = vmatprep.subr.mxu0 0.0
      %2419 = vmatpush1.msra.mxu0 %v2361
      %2420 = vmatprep.subr.mxu0 0.0
      %2421 = vmatpush1.msra.mxu0 %v2362
      %2422 = vmatprep.subr.mxu0 0.0
      %2423 = vmatpush1.msra.mxu0 %v2363
      %2424 = vmatprep.subr.mxu0 0.0
      %2425 = vmatpush1.msra.mxu0 %v2364
      %2426 = vmatprep.subr.mxu0 0.0
      %2427 = vmatpush1.msra.mxu0 %v2365
      %2428 = vmatprep.subr.mxu0 0.0
      %2429 = vmatpush1.msra.mxu0 %v2366
      %2430 = vmatprep.subr.mxu0 0.0
      %2431 = vmatpush1.msra.mxu0 %v2367
      %2432 = vmatprep.subr.mxu0 0.0
      %2433 = vmatpush1.msra.mxu0 %v2368
      %2434 = vmatprep.subr.mxu0 0.0
      %2435 = vmatpush1.msra.mxu0 %v2369
      %2436 = vmatprep.subr.mxu0 0.0
      %2437 = vmatpush1.msra.mxu0 %v2370
      %2438 = vmatprep.subr.mxu0 0.0
      %2439 = vmatpush1.msra.mxu0 %v2371
      %2440 = vmatprep.subr.mxu0 0.0
      %2441 = vmatpush1.msra.mxu0 %v2372
      %2442 = vmatprep.subr.mxu0 0.0
      %2443 = vmatpush1.msra.mxu0 %v2373
      %2444 = vmatprep.subr.mxu0 0.0
      %2445 = vmatpush1.msra.mxu0 %v2374
      %2446 = vmatprep.subr.mxu0 0.0
      %2447 = vmatpush1.msra.mxu0 %v2375
      %2448 = vmatprep.subr.mxu0 0.0
      %2449 = vmatpush1.msra.mxu0 %v2376
      %2450 = vmatprep.subr.mxu0 0.0
      %2451 = vmatpush1.msra.mxu0 %v2377
      %2452 = vmatprep.subr.mxu0 0.0
      %2453 = vmatpush1.msra.mxu0 %v2378
      %2454 = vmatprep.subr.mxu0 0.0
      %2455 = vmatpush1.msra.mxu0 %v2379
      %2456 = vmatprep.subr.mxu0 0.0
      %2457 = vmatpush1.msra.mxu0 %v2380
      %2458 = vmatprep.subr.mxu0 0.0
      %2459 = vmatpush1.msra.mxu0 %v2381
      %2460 = vmatprep.subr.mxu0 0.0
      %2461 = vmatpush1.msra.mxu0 %v2382
      %2462 = vmatprep.subr.mxu0 0.0
      %2463 = vmatpush1.msra.mxu0 %v2383
      %2464 = vmatprep.mubr.f32.mxu0 %v2095
      %2465 = vmatmul.mubr.f32.gmra.mrb[0].mxu0 %v2191
      %v2466 = vpop.f32.mrb[0].mxu0
      %v2467 = vadd.f32 0.0, %v2466
      %v2468 = vpop.f32.mrb[0].mxu0
      %2469 = vmatprep.mubr.f32.mxu0 %v2096
      %2470 = vmatmul.mubr.f32.gmra.mrb[0].mxu0 %v2192
      %v2471 = vpop.f32.mrb[0].mxu0
      %v2472 = vadd.f32 0.0, %v2471
      %v2473 = vpop.f32.mrb[0].mxu0
      %2474 = vmatprep.mubr.f32.mxu0 %v2097
      %2475 = vmatmul.mubr.f32.gmra.mrb[0].mxu0 %v2193
      %v2476 = vpop.f32.mrb[0].mxu0
      %v2477 = vadd.f32 0.0, %v2476
      %v2478 = vpop.f32.mrb[0].mxu0
      %2479 = vmatprep.mubr.f32.mxu0 %v2098
      %2480 = vmatmul.mubr.f32.gmra.mrb[0].mxu0 %v2194
      %v2481 = vpop.f32.mrb[0].mxu0
      %v2482 = vadd.f32 0.0, %v2481
      %v2483 = vpop.f32.mrb[0].mxu0
      %2484 = vmatprep.mubr.f32.mxu0 %v2099
      %2485 = vmatmul.mubr.f32.gmra.mrb[0].mxu0 %v2195
      %v2486 = vpop.f32.mrb[0].mxu0
      %v2487 = vadd.f32 0.0, %v2486
      %v2488 = vpop.f32.mrb[0].mxu0
      %2489 = vmatprep.mubr.f32.mxu0 %v2100
      %2490 = vmatmul.mubr.f32.gmra.mrb[0].mxu0 %v2196
      %v2491 = vpop.f32.mrb[0].mxu0
      %v2492 = vadd.f32 0.0, %v2491
      %v2493 = vpop.f32.mrb[0].mxu0
      %2494 = vmatprep.mubr.f32.mxu0 %v2101
      %2495 = vmatmul.mubr.f32.gmra.mrb[0].mxu0 %v2197
      %v2496 = vpop.f32.mrb[0].mxu0
      %v2497 = vadd.f32 0.0, %v2496
      %v2498 = vpop.f32.mrb[0].mxu0
      %2499 = vmatprep.mubr.f32.mxu0 %v2102
      %2500 = vmatmul.mubr.f32.gmra.mrb[0].mxu0 %v2198
      %v2501 = vpop.f32.mrb[0].mxu0
      %v2502 = vadd.f32 0.0, %v2501
      %v2503 = vpop.f32.mrb[0].mxu0
      %2504 = vmatprep.mubr.f32.mxu0 %v2103
      %2505 = vmatmul.mubr.f32.gmra.mrb[0].mxu0 %v2199
      %v2506 = vpop.f32.mrb[0].mxu0
      %v2507 = vadd.f32 0.0, %v2506
      %v2508 = vpop.f32.mrb[0].mxu0
      %2509 = vmatprep.mubr.f32.mxu0 %v2104
      %2510 = vmatmul.mubr.f32.gmra.mrb[0].mxu0 %v2200
      %v2511 = vpop.f32.mrb[0].mxu0
      %v2512 = vadd.f32 0.0, %v2511
      %v2513 = vpop.f32.mrb[0].mxu0
      %2514 = vmatprep.mubr.f32.mxu0 %v2105
      %2515 = vmatmul.mubr.f32.gmra.mrb[0].mxu0 %v2201
      %v2516 = vpop.f32.mrb[0].mxu0
      %v2517 = vadd.f32 0.0, %v2516
      %v2518 = vpop.f32.mrb[0].mxu0
      %2519 = vmatprep.mubr.f32.mxu0 %v2106
      %2520 = vmatmul.mubr.f32.gmra.mrb[0].mxu0 %v2202
      %v2521 = vpop.f32.mrb[0].mxu0
      %v2522 = vadd.f32 0.0, %v2521
      %v2523 = vpop.f32.mrb[0].mxu0
      %2524 = vmatprep.mubr.f32.mxu0 %v2107
      %2525 = vmatmul.mubr.f32.gmra.mrb[0].mxu0 %v2203
      %v2526 = vpop.f32.mrb[0].mxu0
      %v2527 = vadd.f32 0.0, %v2526
      %v2528 = vpop.f32.mrb[0].mxu0
      %2529 = vmatprep.mubr.f32.mxu0 %v2108
      %2530 = vmatmul.mubr.f32.gmra.mrb[0].mxu0 %v2204
      %v2531 = vpop.f32.mrb[0].mxu0
      %v2532 = vadd.f32 0.0, %v2531
      %v2533 = vpop.f32.mrb[0].mxu0
      %2534 = vmatprep.mubr.f32.mxu0 %v2109
      %2535 = vmatmul.mubr.f32.gmra.mrb[0].mxu0 %v2205
      %v2536 = vpop.f32.mrb[0].mxu0
      %v2537 = vadd.f32 0.0, %v2536
      %v2538 = vpop.f32.mrb[0].mxu0
      %2539 = vmatprep.mubr.f32.mxu0 %v2110
      %2540 = vmatmul.mubr.f32.gmra.mrb[0].mxu0 %v2206
      %v2541 = vpop.f32.mrb[0].mxu0
      %v2542 = vadd.f32 0.0, %v2541
      %v2543 = vpop.f32.mrb[0].mxu0
      %2544 = vmatprep.mubr.f32.mxu0 %v2111
      %2545 = vmatmul.mubr.f32.gmra.mrb[0].mxu0 %v2207
      %v2546 = vpop.f32.mrb[0].mxu0
      %v2547 = vadd.f32 0.0, %v2546
      %v2548 = vpop.f32.mrb[0].mxu0
      %2549 = vmatprep.mubr.f32.mxu0 %v2112
      %2550 = vmatmul.mubr.f32.gmra.mrb[0].mxu0 %v2208
      %v2551 = vpop.f32.mrb[0].mxu0
      %v2552 = vadd.f32 0.0, %v2551
      %v2553 = vpop.f32.mrb[0].mxu0
      %2554 = vmatprep.mubr.f32.mxu0 %v2113
      %2555 = vmatmul.mubr.f32.gmra.mrb[0].mxu0 %v2209
      %v2556 = vpop.f32.mrb[0].mxu0
      %v2557 = vadd.f32 0.0, %v2556
      %v2558 = vpop.f32.mrb[0].mxu0
      %2559 = vmatprep.mubr.f32.mxu0 %v2114
      %2560 = vmatmul.mubr.f32.gmra.mrb[0].mxu0 %v2210
      %v2561 = vpop.f32.mrb[0].mxu0
      %v2562 = vadd.f32 0.0, %v2561
      %v2563 = vpop.f32.mrb[0].mxu0
      %2564 = vmatprep.mubr.f32.mxu0 %v2115
      %2565 = vmatmul.mubr.f32.gmra.mrb[0].mxu0 %v2211
      %v2566 = vpop.f32.mrb[0].mxu0
      %v2567 = vadd.f32 0.0, %v2566
      %v2568 = vpop.f32.mrb[0].mxu0
      %2569 = vmatprep.mubr.f32.mxu0 %v2116
      %2570 = vmatmul.mubr.f32.gmra.mrb[0].mxu0 %v2212
      %v2571 = vpop.f32.mrb[0].mxu0
      %v2572 = vadd.f32 0.0, %v2571
      %v2573 = vpop.f32.mrb[0].mxu0
      %2574 = vmatprep.mubr.f32.mxu0 %v2117
      %2575 = vmatmul.mubr.f32.gmra.mrb[0].mxu0 %v2213
      %v2576 = vpop.f32.mrb[0].mxu0
      %v2577 = vadd.f32 0.0, %v2576
      %v2578 = vpop.f32.mrb[0].mxu0
      %2579 = vmatprep.mubr.f32.mxu0 %v2118
      %2580 = vmatmul.mubr.f32.gmra.mrb[0].mxu0 %v2214
      %v2581 = vpop.f32.mrb[0].mxu0
      %v2582 = vadd.f32 0.0, %v2581
      %v2583 = vpop.f32.mrb[0].mxu0
      %2584 = vmatprep.mubr.f32.mxu0 %v2119
      %2585 = vmatmul.mubr.f32.gmra.mrb[0].mxu0 %v2215
      %v2586 = vpop.f32.mrb[0].mxu0
      %v2587 = vadd.f32 0.0, %v2586
      %v2588 = vpop.f32.mrb[0].mxu0
      %2589 = vmatprep.mubr.f32.mxu0 %v2120
      %2590 = vmatmul.mubr.f32.gmra.mrb[0].mxu0 %v2216
      %v2591 = vpop.f32.mrb[0].mxu0
      %v2592 = vadd.f32 0.0, %v2591
      %v2593 = vpop.f32.mrb[0].mxu0
      %2594 = vmatprep.mubr.f32.mxu0 %v2121
      %2595 = vmatmul.mubr.f32.gmra.mrb[0].mxu0 %v2217
      %v2596 = vpop.f32.mrb[0].mxu0
      %v2597 = vadd.f32 0.0, %v2596
      %v2598 = vpop.f32.mrb[0].mxu0
      %2599 = vmatprep.mubr.f32.mxu0 %v2122
      %2600 = vmatmul.mubr.f32.gmra.mrb[0].mxu0 %v2218
      %v2601 = vpop.f32.mrb[0].mxu0
      %v2602 = vadd.f32 0.0, %v2601
      %v2603 = vpop.f32.mrb[0].mxu0
      %2604 = vmatprep.mubr.f32.mxu0 %v2123
      %2605 = vmatmul.mubr.f32.gmra.mrb[0].mxu0 %v2219
      %v2606 = vpop.f32.mrb[0].mxu0
      %v2607 = vadd.f32 0.0, %v2606
      %v2608 = vpop.f32.mrb[0].mxu0
      %2609 = vmatprep.mubr.f32.mxu0 %v2124
      %2610 = vmatmul.mubr.f32.gmra.mrb[0].mxu0 %v2220
      %v2611 = vpop.f32.mrb[0].mxu0
      %v2612 = vadd.f32 0.0, %v2611
      %v2613 = vpop.f32.mrb[0].mxu0
      %2614 = vmatprep.mubr.f32.mxu0 %v2125
      %2615 = vmatmul.mubr.f32.gmra.mrb[0].mxu0 %v2221
      %v2616 = vpop.f32.mrb[0].mxu0
      %v2617 = vadd.f32 0.0, %v2616
      %v2618 = vpop.f32.mrb[0].mxu0
      %2619 = vmatprep.mubr.f32.mxu0 %v2126
      %2620 = vmatmul.mubr.f32.gmra.mrb[0].mxu0 %v2222
      %v2621 = vpop.f32.mrb[0].mxu0
      %v2622 = vadd.f32 0.0, %v2621
      %v2623 = vpop.f32.mrb[0].mxu0
      %2624 = vdwg.mxu0
      %2625 = vmatprep.subr.mxu0 0.0
      %2626 = vmatpush1.msra.mxu0 %v2384
      %2627 = vmatprep.subr.mxu0 0.0
      %2628 = vmatpush1.msra.mxu0 %v2385
      %2629 = vmatprep.subr.mxu0 0.0
      %2630 = vmatpush1.msra.mxu0 %v2386
      %2631 = vmatprep.subr.mxu0 0.0
      %2632 = vmatpush1.msra.mxu0 %v2387
      %2633 = vmatprep.subr.mxu0 0.0
      %2634 = vmatpush1.msra.mxu0 %v2388
      %2635 = vmatprep.subr.mxu0 0.0
      %2636 = vmatpush1.msra.mxu0 %v2389
      %2637 = vmatprep.subr.mxu0 0.0
      %2638 = vmatpush1.msra.mxu0 %v2390
      %2639 = vmatprep.subr.mxu0 0.0
      %2640 = vmatpush1.msra.mxu0 %v2391
      %2641 = vmatprep.subr.mxu0 0.0
      %2642 = vmatpush1.msra.mxu0 %v2392
      %2643 = vmatprep.subr.mxu0 0.0
      %2644 = vmatpush1.msra.mxu0 %v2393
      %2645 = vmatprep.subr.mxu0 0.0
      %2646 = vmatpush1.msra.mxu0 %v2394
      %2647 = vmatprep.subr.mxu0 0.0
      %2648 = vmatpush1.msra.mxu0 %v2395
      %2649 = vmatprep.subr.mxu0 0.0
      %2650 = vmatpush1.msra.mxu0 %v2396
      %2651 = vmatprep.subr.mxu0 0.0
      %2652 = vmatpush1.msra.mxu0 %v2397
      %2653 = vmatprep.subr.mxu0 0.0
      %2654 = vmatpush1.msra.mxu0 %v2398
      %2655 = vmatprep.subr.mxu0 0.0
      %2656 = vmatpush1.msra.mxu0 %v2399
      %2657 = vmatprep.subr.mxu0 0.0
      %2658 = vmatpush1.msra.mxu0 0.0
      %2659 = vmatprep.subr.mxu0 0.0
      %2660 = vmatpush1.msra.mxu0 0.0
      %2661 = vmatprep.subr.mxu0 0.0
      %2662 = vmatpush1.msra.mxu0 0.0
      %2663 = vmatprep.subr.mxu0 0.0
      %2664 = vmatpush1.msra.mxu0 0.0
      %2665 = vmatprep.subr.mxu0 0.0
      %2666 = vmatpush1.msra.mxu0 0.0
      %2667 = vmatprep.subr.mxu0 0.0
      %2668 = vmatpush1.msra.mxu0 0.0
      %2669 = vmatprep.subr.mxu0 0.0
      %2670 = vmatpush1.msra.mxu0 0.0
      %2671 = vmatprep.subr.mxu0 0.0
      %2672 = vmatpush1.msra.mxu0 0.0
      %2673 = vmatprep.subr.mxu0 0.0
      %2674 = vmatpush1.msra.mxu0 0.0
      %2675 = vmatprep.subr.mxu0 0.0
      %2676 = vmatpush1.msra.mxu0 0.0
      %2677 = vmatprep.subr.mxu0 0.0
      %2678 = vmatpush1.msra.mxu0 0.0
      %2679 = vmatprep.subr.mxu0 0.0
      %2680 = vmatpush1.msra.mxu0 0.0
      %2681 = vmatprep.subr.mxu0 0.0
      %2682 = vmatpush1.msra.mxu0 0.0
      %2683 = vmatprep.subr.mxu0 0.0
      %2684 = vmatpush1.msra.mxu0 0.0
      %2685 = vmatprep.subr.mxu0 0.0
      %2686 = vmatpush1.msra.mxu0 0.0
      %2687 = vmatprep.subr.mxu0 0.0
      %2688 = vmatpush1.msra.mxu0 0.0
      %2689 = vmatprep.mubr.f32.mxu0 0.0
      %2690 = vmatmul.mubr.f32.gmra.mrb[0].mxu0 %v2287
      %v2691 = vpop.f32.mrb[0].mxu0
      %v2692 = vadd.f32 %v2467, %v2691
      %v2693 = vpop.f32.mrb[0].mxu0
      %2694 = vmatprep.mubr.f32.mxu0 0.0
      %2695 = vmatmul.mubr.f32.gmra.mrb[0].mxu0 %v2288
      %v2696 = vpop.f32.mrb[0].mxu0
      %v2697 = vadd.f32 %v2472, %v2696
      %v2698 = vpop.f32.mrb[0].mxu0
      %2699 = vmatprep.mubr.f32.mxu0 0.0
      %2700 = vmatmul.mubr.f32.gmra.mrb[0].mxu0 %v2289
      %v2701 = vpop.f32.mrb[0].mxu0
      %v2702 = vadd.f32 %v2477, %v2701
      %v2703 = vpop.f32.mrb[0].mxu0
      %2704 = vmatprep.mubr.f32.mxu0 0.0
      %2705 = vmatmul.mubr.f32.gmra.mrb[0].mxu0 %v2290
      %v2706 = vpop.f32.mrb[0].mxu0
      %v2707 = vadd.f32 %v2482, %v2706
      %v2708 = vpop.f32.mrb[0].mxu0
      %2709 = vmatprep.mubr.f32.mxu0 0.0
      %2710 = vmatmul.mubr.f32.gmra.mrb[0].mxu0 %v2291
      %v2711 = vpop.f32.mrb[0].mxu0
      %v2712 = vadd.f32 %v2487, %v2711
      %v2713 = vpop.f32.mrb[0].mxu0
      %2714 = vmatprep.mubr.f32.mxu0 0.0
      %2715 = vmatmul.mubr.f32.gmra.mrb[0].mxu0 %v2292
      %v2716 = vpop.f32.mrb[0].mxu0
      %v2717 = vadd.f32 %v2492, %v2716
      %v2718 = vpop.f32.mrb[0].mxu0
      %2719 = vmatprep.mubr.f32.mxu0 0.0
      %2720 = vmatmul.mubr.f32.gmra.mrb[0].mxu0 %v2293
      %v2721 = vpop.f32.mrb[0].mxu0
      %v2722 = vadd.f32 %v2497, %v2721
      %v2723 = vpop.f32.mrb[0].mxu0
      %2724 = vmatprep.mubr.f32.mxu0 0.0
      %2725 = vmatmul.mubr.f32.gmra.mrb[0].mxu0 %v2294
      %v2726 = vpop.f32.mrb[0].mxu0
      %v2727 = vadd.f32 %v2502, %v2726
      %v2728 = vpop.f32.mrb[0].mxu0
      %2729 = vmatprep.mubr.f32.mxu0 0.0
      %2730 = vmatmul.mubr.f32.gmra.mrb[0].mxu0 %v2295
      %v2731 = vpop.f32.mrb[0].mxu0
      %v2732 = vadd.f32 %v2507, %v2731
      %v2733 = vpop.f32.mrb[0].mxu0
      %2734 = vmatprep.mubr.f32.mxu0 0.0
      %2735 = vmatmul.mubr.f32.gmra.mrb[0].mxu0 %v2296
      %v2736 = vpop.f32.mrb[0].mxu0
      %v2737 = vadd.f32 %v2512, %v2736
      %v2738 = vpop.f32.mrb[0].mxu0
      %2739 = vmatprep.mubr.f32.mxu0 0.0
      %2740 = vmatmul.mubr.f32.gmra.mrb[0].mxu0 %v2297
      %v2741 = vpop.f32.mrb[0].mxu0
      %v2742 = vadd.f32 %v2517, %v2741
      %v2743 = vpop.f32.mrb[0].mxu0
      %2744 = vmatprep.mubr.f32.mxu0 0.0
      %2745 = vmatmul.mubr.f32.gmra.mrb[0].mxu0 %v2298
      %v2746 = vpop.f32.mrb[0].mxu0
      %v2747 = vadd.f32 %v2522, %v2746
      %v2748 = vpop.f32.mrb[0].mxu0
      %2749 = vmatprep.mubr.f32.mxu0 0.0
      %2750 = vmatmul.mubr.f32.gmra.mrb[0].mxu0 %v2299
      %v2751 = vpop.f32.mrb[0].mxu0
      %v2752 = vadd.f32 %v2527, %v2751
      %v2753 = vpop.f32.mrb[0].mxu0
      %2754 = vmatprep.mubr.f32.mxu0 0.0
      %2755 = vmatmul.mubr.f32.gmra.mrb[0].mxu0 %v2300
      %v2756 = vpop.f32.mrb[0].mxu0
      %v2757 = vadd.f32 %v2532, %v2756
      %v2758 = vpop.f32.mrb[0].mxu0
      %2759 = vmatprep.mubr.f32.mxu0 0.0
      %2760 = vmatmul.mubr.f32.gmra.mrb[0].mxu0 %v2301
      %v2761 = vpop.f32.mrb[0].mxu0
      %v2762 = vadd.f32 %v2537, %v2761
      %v2763 = vpop.f32.mrb[0].mxu0
      %2764 = vmatprep.mubr.f32.mxu0 0.0
      %2765 = vmatmul.mubr.f32.gmra.mrb[0].mxu0 %v2302
      %v2766 = vpop.f32.mrb[0].mxu0
      %v2767 = vadd.f32 %v2542, %v2766
      %v2768 = vpop.f32.mrb[0].mxu0
      %2769 = vmatprep.mubr.f32.mxu0 0.0
      %2770 = vmatmul.mubr.f32.gmra.mrb[0].mxu0 %v2303
      %v2771 = vpop.f32.mrb[0].mxu0
      %v2772 = vadd.f32 %v2547, %v2771
      %v2773 = vpop.f32.mrb[0].mxu0
      %2774 = vmatprep.mubr.f32.mxu0 0.0
      %2775 = vmatmul.mubr.f32.gmra.mrb[0].mxu0 %v2304
      %v2776 = vpop.f32.mrb[0].mxu0
      %v2777 = vadd.f32 %v2552, %v2776
      %v2778 = vpop.f32.mrb[0].mxu0
      %2779 = vmatprep.mubr.f32.mxu0 0.0
      %2780 = vmatmul.mubr.f32.gmra.mrb[0].mxu0 %v2305
      %v2781 = vpop.f32.mrb[0].mxu0
      %v2782 = vadd.f32 %v2557, %v2781
      %v2783 = vpop.f32.mrb[0].mxu0
      %2784 = vmatprep.mubr.f32.mxu0 0.0
      %2785 = vmatmul.mubr.f32.gmra.mrb[0].mxu0 %v2306
      %v2786 = vpop.f32.mrb[0].mxu0
      %v2787 = vadd.f32 %v2562, %v2786
      %v2788 = vpop.f32.mrb[0].mxu0
      %2789 = vmatprep.mubr.f32.mxu0 0.0
      %2790 = vmatmul.mubr.f32.gmra.mrb[0].mxu0 %v2307
      %v2791 = vpop.f32.mrb[0].mxu0
      %v2792 = vadd.f32 %v2567, %v2791
      %v2793 = vpop.f32.mrb[0].mxu0
      %2794 = vmatprep.mubr.f32.mxu0 0.0
      %2795 = vmatmul.mubr.f32.gmra.mrb[0].mxu0 %v2308
      %v2796 = vpop.f32.mrb[0].mxu0
      %v2797 = vadd.f32 %v2572, %v2796
      %v2798 = vpop.f32.mrb[0].mxu0
      %2799 = vmatprep.mubr.f32.mxu0 0.0
      %2800 = vmatmul.mubr.f32.gmra.mrb[0].mxu0 %v2309
      %v2801 = vpop.f32.mrb[0].mxu0
      %v2802 = vadd.f32 %v2577, %v2801
      %v2803 = vpop.f32.mrb[0].mxu0
      %2804 = vmatprep.mubr.f32.mxu0 0.0
      %2805 = vmatmul.mubr.f32.gmra.mrb[0].mxu0 %v2310
      %v2806 = vpop.f32.mrb[0].mxu0
      %v2807 = vadd.f32 %v2582, %v2806
      %v2808 = vpop.f32.mrb[0].mxu0
      %2809 = vmatprep.mubr.f32.mxu0 0.0
      %2810 = vmatmul.mubr.f32.gmra.mrb[0].mxu0 %v2311
      %v2811 = vpop.f32.mrb[0].mxu0
      %v2812 = vadd.f32 %v2587, %v2811
      %v2813 = vpop.f32.mrb[0].mxu0
      %2814 = vmatprep.mubr.f32.mxu0 0.0
      %2815 = vmatmul.mubr.f32.gmra.mrb[0].mxu0 %v2312
      %v2816 = vpop.f32.mrb[0].mxu0
      %v2817 = vadd.f32 %v2592, %v2816
      %v2818 = vpop.f32.mrb[0].mxu0
      %2819 = vmatprep.mubr.f32.mxu0 0.0
      %2820 = vmatmul.mubr.f32.gmra.mrb[0].mxu0 %v2313
      %v2821 = vpop.f32.mrb[0].mxu0
      %v2822 = vadd.f32 %v2597, %v2821
      %v2823 = vpop.f32.mrb[0].mxu0
      %2824 = vmatprep.mubr.f32.mxu0 0.0
      %2825 = vmatmul.mubr.f32.gmra.mrb[0].mxu0 %v2314
      %v2826 = vpop.f32.mrb[0].mxu0
      %v2827 = vadd.f32 %v2602, %v2826
      %v2828 = vpop.f32.mrb[0].mxu0
      %2829 = vmatprep.mubr.f32.mxu0 0.0
      %2830 = vmatmul.mubr.f32.gmra.mrb[0].mxu0 %v2315
      %v2831 = vpop.f32.mrb[0].mxu0
      %v2832 = vadd.f32 %v2607, %v2831
      %v2833 = vpop.f32.mrb[0].mxu0
      %2834 = vmatprep.mubr.f32.mxu0 0.0
      %2835 = vmatmul.mubr.f32.gmra.mrb[0].mxu0 %v2316
      %v2836 = vpop.f32.mrb[0].mxu0
      %v2837 = vadd.f32 %v2612, %v2836
      %v2838 = vpop.f32.mrb[0].mxu0
      %2839 = vmatprep.mubr.f32.mxu0 0.0
      %2840 = vmatmul.mubr.f32.gmra.mrb[0].mxu0 %v2317
      %v2841 = vpop.f32.mrb[0].mxu0
      %v2842 = vadd.f32 %v2617, %v2841
      %v2843 = vpop.f32.mrb[0].mxu0
      %2844 = vmatprep.mubr.f32.mxu0 0.0
      %2845 = vmatmul.mubr.f32.gmra.mrb[0].mxu0 %v2318
      %v2846 = vpop.f32.mrb[0].mxu0
      %v2847 = vadd.f32 %v2622, %v2846
      %v2848 = vpop.f32.mrb[0].mxu0
      %2849 = vdwg.mxu0
      %v2850 = vadd.f32 %v2319, %v2692
      %v2851 = vadd.f32 %v2320, %v2697
      %v2852 = vadd.f32 %v2321, %v2702
      %v2853 = vadd.f32 %v2322, %v2707
      %v2854 = vadd.f32 %v2323, %v2712
      %v2855 = vadd.f32 %v2324, %v2717
      %v2856 = vadd.f32 %v2325, %v2722
      %v2857 = vadd.f32 %v2326, %v2727
      %v2858 = vadd.f32 %v2327, %v2732
      %v2859 = vadd.f32 %v2328, %v2737
      %v2860 = vadd.f32 %v2329, %v2742
      %v2861 = vadd.f32 %v2330, %v2747
      %v2862 = vadd.f32 %v2331, %v2752
      %v2863 = vadd.f32 %v2332, %v2757
      %v2864 = vadd.f32 %v2333, %v2762
      %v2865 = vadd.f32 %v2334, %v2767
      %v2866 = vadd.f32 %v2335, %v2772
      %v2867 = vadd.f32 %v2336, %v2777
      %v2868 = vadd.f32 %v2337, %v2782
      %v2869 = vadd.f32 %v2338, %v2787
      %v2870 = vadd.f32 %v2339, %v2792
      %v2871 = vadd.f32 %v2340, %v2797
      %v2872 = vadd.f32 %v2341, %v2802
      %v2873 = vadd.f32 %v2342, %v2807
      %v2874 = vadd.f32 %v2343, %v2812
      %v2875 = vadd.f32 %v2344, %v2817
      %v2876 = vadd.f32 %v2345, %v2822
      %v2877 = vadd.f32 %v2346, %v2827
      %v2878 = vadd.f32 %v2347, %v2832
      %v2879 = vadd.f32 %v2348, %v2837
      %v2880 = vadd.f32 %v2349, %v2842
      %v2881 = vadd.f32 %v2350, %v2847
      %2882 = vst [vmem:[#allocation3] sm:$0xff] %v2850
      %2883 = vst [vmem:[#allocation3 + $0x8] sm:$0xff] %v2851
      %2884 = vst [vmem:[#allocation3 + $0x10] sm:$0xff] %v2852
      %2885 = vst [vmem:[#allocation3 + $0x18] sm:$0xff] %v2853
      %2886 = vst [vmem:[#allocation3 + $0x20] sm:$0xff] %v2854
      %2887 = vst [vmem:[#allocation3 + $0x28] sm:$0xff] %v2855
      %2888 = vst [vmem:[#allocation3 + $0x30] sm:$0xff] %v2856
      %2889 = vst [vmem:[#allocation3 + $0x38] sm:$0xff] %v2857
      %2890 = vst [vmem:[#allocation3 + $0x40] sm:$0xff] %v2858
      %2891 = vst [vmem:[#allocation3 + $0x48] sm:$0xff] %v2859
      %2892 = vst [vmem:[#allocation3 + $0x50] sm:$0xff] %v2860
      %2893 = vst [vmem:[#allocation3 + $0x58] sm:$0xff] %v2861
      %2894 = vst [vmem:[#allocation3 + $0x60] sm:$0xff] %v2862
      %2895 = vst [vmem:[#allocation3 + $0x68] sm:$0xff] %v2863
      %2896 = vst [vmem:[#allocation3 + $0x70] sm:$0xff] %v2864
      %2897 = vst [vmem:[#allocation3 + $0x78] sm:$0xff] %v2865
      %2898 = vst [vmem:[#allocation3 + $0x80] sm:$0xff] %v2866
      %2899 = vst [vmem:[#allocation3 + $0x88] sm:$0xff] %v2867
      %2900 = vst [vmem:[#allocation3 + $0x90] sm:$0xff] %v2868
      %2901 = vst [vmem:[#allocation3 + $0x98] sm:$0xff] %v2869
      %2902 = vst [vmem:[#allocation3 + $0xa0] sm:$0xff] %v2870
      %2903 = vst [vmem:[#allocation3 + $0xa8] sm:$0xff] %v2871
      %2904 = vst [vmem:[#allocation3 + $0xb0] sm:$0xff] %v2872
      %2905 = vst [vmem:[#allocation3 + $0xb8] sm:$0xff] %v2873
      %2906 = vst [vmem:[#allocation3 + $0xc0] sm:$0xff] %v2874
      %2907 = vst [vmem:[#allocation3 + $0xc8] sm:$0xff] %v2875
      %2908 = vst [vmem:[#allocation3 + $0xd0] sm:$0xff] %v2876
      %2909 = vst [vmem:[#allocation3 + $0xd8] sm:$0xff] %v2877
      %2910 = vst [vmem:[#allocation3 + $0xe0] sm:$0xff] %v2878
      %2911 = vst [vmem:[#allocation3 + $0xe8] sm:$0xff] %v2879
      %2912 = vst [vmem:[#allocation3 + $0xf0] sm:$0xff] %v2880
      %2913 = vst [vmem:[#allocation3 + $0xf8] sm:$0xff] %v2881
      %v2914 = vld [vmem:[#allocation3] sm:$0xff]
      %v2915 = vld [vmem:[#allocation3 + $0x8] sm:$0xff]
      %v2916 = vld [vmem:[#allocation3 + $0x10] sm:$0xff]
      %v2917 = vld [vmem:[#allocation3 + $0x18] sm:$0xff]
      %v2918 = vld [vmem:[#allocation3 + $0x20] sm:$0xff]
      %v2919 = vld [vmem:[#allocation3 + $0x28] sm:$0xff]
      %v2920 = vld [vmem:[#allocation3 + $0x30] sm:$0xff]
      %v2921 = vld [vmem:[#allocation3 + $0x38] sm:$0xff]
      %v2922 = vld [vmem:[#allocation3 + $0x40] sm:$0xff]
      %v2923 = vld [vmem:[#allocation3 + $0x48] sm:$0xff]
      %v2924 = vld [vmem:[#allocation3 + $0x50] sm:$0xff]
      %v2925 = vld [vmem:[#allocation3 + $0x58] sm:$0xff]
      %v2926 = vld [vmem:[#allocation3 + $0x60] sm:$0xff]
      %v2927 = vld [vmem:[#allocation3 + $0x68] sm:$0xff]
      %v2928 = vld [vmem:[#allocation3 + $0x70] sm:$0xff]
      %v2929 = vld [vmem:[#allocation3 + $0x78] sm:$0xff]
      %v2930 = vld [vmem:[#allocation3 + $0x80] sm:$0xff]
      %v2931 = vld [vmem:[#allocation3 + $0x88] sm:$0xff]
      %v2932 = vld [vmem:[#allocation3 + $0x90] sm:$0xff]
      %v2933 = vld [vmem:[#allocation3 + $0x98] sm:$0xff]
      %v2934 = vld [vmem:[#allocation3 + $0xa0] sm:$0xff]
      %v2935 = vld [vmem:[#allocation3 + $0xa8] sm:$0xff]
      %v2936 = vld [vmem:[#allocation3 + $0xb0] sm:$0xff]
      %v2937 = vld [vmem:[#allocation3 + $0xb8] sm:$0xff]
      %v2938 = vld [vmem:[#allocation3 + $0xc0] sm:$0xff]
      %v2939 = vld [vmem:[#allocation3 + $0xc8] sm:$0xff]
      %v2940 = vld [vmem:[#allocation3 + $0xd0] sm:$0xff]
      %v2941 = vld [vmem:[#allocation3 + $0xd8] sm:$0xff]
      %v2942 = vld [vmem:[#allocation3 + $0xe0] sm:$0xff]
      %v2943 = vld [vmem:[#allocation3 + $0xe8] sm:$0xff]
      %v2944 = vld [vmem:[#allocation3 + $0xf0] sm:$0xff]
      %v2945 = vld [vmem:[#allocation3 + $0xf8] sm:$0xff]
      %2946 = vst [vmem:[%s231] sm:$0xff] %v2914
      %2947 = vst [vmem:[%s231 + $0x8] sm:$0xff] %v2915
      %2948 = vst [vmem:[%s231 + $0x10] sm:$0xff] %v2916
      %2949 = vst [vmem:[%s231 + $0x18] sm:$0xff] %v2917
      %2950 = vst [vmem:[%s231 + $0x20] sm:$0xff] %v2918
      %2951 = vst [vmem:[%s231 + $0x28] sm:$0xff] %v2919
      %2952 = vst [vmem:[%s231 + $0x30] sm:$0xff] %v2920
      %2953 = vst [vmem:[%s231 + $0x38] sm:$0xff] %v2921
      %2954 = vst [vmem:[%s231 + $0x40] sm:$0xff] %v2922
      %2955 = vst [vmem:[%s231 + $0x48] sm:$0xff] %v2923
      %2956 = vst [vmem:[%s231 + $0x50] sm:$0xff] %v2924
      %2957 = vst [vmem:[%s231 + $0x58] sm:$0xff] %v2925
      %2958 = vst [vmem:[%s231 + $0x60] sm:$0xff] %v2926
      %2959 = vst [vmem:[%s231 + $0x68] sm:$0xff] %v2927
      %2960 = vst [vmem:[%s231 + $0x70] sm:$0xff] %v2928
      %2961 = vst [vmem:[%s231 + $0x78] sm:$0xff] %v2929
      %2962 = vst [vmem:[%s231 + $0x80] sm:$0xff] %v2930
      %2963 = vst [vmem:[%s231 + $0x88] sm:$0xff] %v2931
      %2964 = vst [vmem:[%s231 + $0x90] sm:$0xff] %v2932
      %2965 = vst [vmem:[%s231 + $0x98] sm:$0xff] %v2933
      %2966 = vst [vmem:[%s231 + $0xa0] sm:$0xff] %v2934
      %2967 = vst [vmem:[%s231 + $0xa8] sm:$0xff] %v2935
      %2968 = vst [vmem:[%s231 + $0xb0] sm:$0xff] %v2936
      %2969 = vst [vmem:[%s231 + $0xb8] sm:$0xff] %v2937
      %2970 = vst [vmem:[%s231 + $0xc0] sm:$0xff] %v2938
      %2971 = vst [vmem:[%s231 + $0xc8] sm:$0xff] %v2939
      %2972 = vst [vmem:[%s231 + $0xd0] sm:$0xff] %v2940
      %2973 = vst [vmem:[%s231 + $0xd8] sm:$0xff] %v2941
      %2974 = vst [vmem:[%s231 + $0xe0] sm:$0xff] %v2942
      %2975 = vst [vmem:[%s231 + $0xe8] sm:$0xff] %v2943
      %2976 = vst [vmem:[%s231 + $0xf0] sm:$0xff] %v2944
      %2977 = vst [vmem:[%s231 + $0xf8] sm:$0xff] %v2945
      %v2978 = vadd.f32 %v2914, %v2915
      %v2979 = vadd.f32 %v2978, %v2916
      %v2980 = vadd.f32 %v2979, %v2917
      %v2981 = vadd.f32 %v2980, %v2918
      %v2982 = vadd.f32 %v2981, %v2919
      %v2983 = vadd.f32 %v2982, %v2920
      %v2984 = vadd.f32 %v2983, %v2921
      %v2985 = vadd.f32 %v2984, %v2922
      %v2986 = vadd.f32 %v2985, %v2923
      %v2987 = vadd.f32 %v2986, %v2924
      %v2988 = vadd.f32 %v2987, %v2925
      %v2989 = vadd.f32 %v2988, %v2926
      %v2990 = vadd.f32 %v2989, %v2927
      %v2991 = vadd.f32 %v2990, %v2928
      %v2992 = vadd.f32 %v2991, %v2929
      %v2993 = vadd.f32 %v2992, %v2930
      %v2994 = vadd.f32 %v2993, %v2931
      %v2995 = vadd.f32 %v2994, %v2932
      %v2996 = vadd.f32 %v2995, %v2933
      %v2997 = vadd.f32 %v2996, %v2934
      %v2998 = vadd.f32 %v2997, %v2935
      %v2999 = vadd.f32 %v2998, %v2936
      %v3000 = vadd.f32 %v2999, %v2937
      %v3001 = vadd.f32 %v3000, %v2938
      %v3002 = vadd.f32 %v3001, %v2939
      %v3003 = vadd.f32 %v3002, %v2940
      %v3004 = vadd.f32 %v3003, %v2941
      %v3005 = vadd.f32 %v3004, %v2942
      %v3006 = vadd.f32 %v3005, %v2943
      %v3007 = vadd.f32 %v3006, %v2944
      %v3008 = vadd.f32 %v3007, %v2945
      %v3009 = vrot.slane %v3008, 4
      %v3010 = vadd.f32 %v3008, %v3009
      %v3011 = vrot.slane %v3010, 2
      %v3012 = vadd.f32 %v3010, %v3011
      %v3013 = vrot.slane %v3012, 1
      %v3014 = vadd.f32 %v3012, %v3013
      %v3015 = vmul.f32 %v2914, %v2914
      %v3016 = vmul.f32 %v2915, %v2915
      %v3017 = vmul.f32 %v2916, %v2916
      %v3018 = vmul.f32 %v2917, %v2917
      %v3019 = vmul.f32 %v2918, %v2918
      %v3020 = vmul.f32 %v2919, %v2919
      %v3021 = vmul.f32 %v2920, %v2920
      %v3022 = vmul.f32 %v2921, %v2921
      %v3023 = vmul.f32 %v2922, %v2922
      %v3024 = vmul.f32 %v2923, %v2923
      %v3025 = vmul.f32 %v2924, %v2924
      %v3026 = vmul.f32 %v2925, %v2925
      %v3027 = vmul.f32 %v2926, %v2926
      %v3028 = vmul.f32 %v2927, %v2927
      %v3029 = vmul.f32 %v2928, %v2928
      %v3030 = vmul.f32 %v2929, %v2929
      %v3031 = vmul.f32 %v2930, %v2930
      %v3032 = vmul.f32 %v2931, %v2931
      %v3033 = vmul.f32 %v2932, %v2932
      %v3034 = vmul.f32 %v2933, %v2933
      %v3035 = vmul.f32 %v2934, %v2934
      %v3036 = vmul.f32 %v2935, %v2935
      %v3037 = vmul.f32 %v2936, %v2936
      %v3038 = vmul.f32 %v2937, %v2937
      %v3039 = vmul.f32 %v2938, %v2938
      %v3040 = vmul.f32 %v2939, %v2939
      %v3041 = vmul.f32 %v2940, %v2940
      %v3042 = vmul.f32 %v2941, %v2941
      %v3043 = vmul.f32 %v2942, %v2942
      %v3044 = vmul.f32 %v2943, %v2943
      %v3045 = vmul.f32 %v2944, %v2944
      %v3046 = vmul.f32 %v2945, %v2945
      %v3047 = vadd.f32 %v3015, %v3016
      %v3048 = vadd.f32 %v3047, %v3017
      %v3049 = vadd.f32 %v3048, %v3018
      %v3050 = vadd.f32 %v3049, %v3019
      %v3051 = vadd.f32 %v3050, %v3020
      %v3052 = vadd.f32 %v3051, %v3021
      %v3053 = vadd.f32 %v3052, %v3022
      %v3054 = vadd.f32 %v3053, %v3023
      %v3055 = vadd.f32 %v3054, %v3024
      %v3056 = vadd.f32 %v3055, %v3025
      %v3057 = vadd.f32 %v3056, %v3026
      %v3058 = vadd.f32 %v3057, %v3027
      %v3059 = vadd.f32 %v3058, %v3028
      %v3060 = vadd.f32 %v3059, %v3029
      %v3061 = vadd.f32 %v3060, %v3030
      %v3062 = vadd.f32 %v3061, %v3031
      %v3063 = vadd.f32 %v3062, %v3032
      %v3064 = vadd.f32 %v3063, %v3033
      %v3065 = vadd.f32 %v3064, %v3034
      %v3066 = vadd.f32 %v3065, %v3035
      %v3067 = vadd.f32 %v3066, %v3036
      %v3068 = vadd.f32 %v3067, %v3037
      %v3069 = vadd.f32 %v3068, %v3038
      %v3070 = vadd.f32 %v3069, %v3039
      %v3071 = vadd.f32 %v3070, %v3040
      %v3072 = vadd.f32 %v3071, %v3041
      %v3073 = vadd.f32 %v3072, %v3042
      %v3074 = vadd.f32 %v3073, %v3043
      %v3075 = vadd.f32 %v3074, %v3044
      %v3076 = vadd.f32 %v3075, %v3045
      %v3077 = vadd.f32 %v3076, %v3046
      %v3078 = vrot.slane %v3077, 4
      %v3079 = vadd.f32 %v3077, %v3078
      %v3080 = vrot.slane %v3079, 2
      %v3081 = vadd.f32 %v3079, %v3080
      %v3082 = vrot.slane %v3081, 1
      %v3083 = vadd.f32 %v3081, %v3082
      %vm3084 = vcmask 1040384
      %v3085 = vsel %vm3084, %v3014, %v3083
      %3086 = vst [vmem:[%s235] sm:$0x3] %v3085
      %p3087 = scmp.lt.s32.totalorder %s17, 1
      %s3088 = scalar_select %p3087, %s17, 1
      %s3089 = smul.addr %s3088, 32
      %s3090 = smul.addr %s3089, 8
      %s3091 = scalar_lea.vmem %s4, %s3090
      %p3092 = scmp.lt.s32.totalorder %s17, 1
      %s3093 = scalar_select %p3092, %s17, 1
      %s3094 = smul.addr %s3093, 2
      %s3095 = scalar_lea.vmem %s5, %s3094
      // Predicated region
      $region37: #{residual_block_forward.4} parent=35 // pred_check
        %p3096 = pneg %p124
      $region38: #{residual_block_forward.4} parent=35 // pred_check_branch
        %3098 = sbr.rel (%p3096) target = $region40
      $region39: #{residual_block_forward.4} parent=35 // pred_region
        _
      $region40: #{residual_block_forward.4} parent=35 // pred_fallthru
        _
      // Predicated region
      $region41: #{residual_block_forward.4} parent=35 // pred_check
        %p3099 = pneg %p150
      $region42: #{residual_block_forward.4} parent=35 // pred_check_branch
        %3101 = sbr.rel (%p3099) target = $region44
      $region43: #{residual_block_forward.4} parent=35 // pred_region
        _
      $region44: #{residual_block_forward.4} parent=35 // pred_fallthru
        _
    $region36: #{residual_block_forward.4} parent=5 // pred_fallthru
      _
    %p3102 = scmp.le.s32.totalorder 2, %s12
    // Predicated region
    $region45: #{residual_block_forward.4} parent=5 // pred_check
      %p3103 = pneg %p3102
    $region46: #{residual_block_forward.4} parent=5 // pred_check_branch
      %3105 = sbr.rel (%p3103) target = $region48
    $region47: #{residual_block_forward.4} parent=5 // pred_region
      %s3106 = ssub.s32 %s12, 2
      // Predicated region
      $region49: #{residual_block_forward.4} parent=47 // pred_check
        %p3107 = pneg %p130
      $region50: #{residual_block_forward.4} parent=47 // pred_check_branch
        %3109 = sbr.rel (%p3107) target = $region52
      $region51: #{residual_block_forward.4} parent=47 // pred_region
        %p3110 = scmp.lt.s32.totalorder %s18, 1
        %s3111 = scalar_select %p3110, %s18, 1
        %s3112 = smul.addr %s3111, 32
        %s3113 = smul.addr %s3112, 8
        %s3114 = scalar_lea.vmem %s4, %s3113
      $region52: #{residual_block_forward.4} parent=47 // pred_fallthru
        _
      // Predicated region
      $region53: #{residual_block_forward.4} parent=47 // pred_check
        %p3115 = pneg %p156
      $region54: #{residual_block_forward.4} parent=47 // pred_check_branch
        %3117 = sbr.rel (%p3115) target = $region56
      $region55: #{residual_block_forward.4} parent=47 // pred_region
        %p3118 = scmp.lt.s32.totalorder %s18, 1
        %s3119 = scalar_select %p3118, %s18, 1
        %s3120 = smul.addr %s3119, 2
        %s3121 = scalar_lea.vmem %s5, %s3120
      $region56: #{residual_block_forward.4} parent=47 // pred_fallthru
        _
    $region48: #{residual_block_forward.4} parent=5 // pred_fallthru
      _
  $region6: #{residual_block_forward.4} parent=0 // loop_footer
    %s16 = sadd.s32 1, %s12
  $region7: #{residual_block_forward.4} parent=0 // loop_footer_branch
    %11 = sbr.rel target = $region3
  $region8: #{residual_block_forward.4} parent=0 // loop_exit
    _

</llo_original>
